<compile_context>
chip_gen: v7x
topology: tpu7x:2x2x1
jax: 0.10.0
libtpu: 0.0.40
codegen_flags: <defaults>
</compile_context>

<pallas_src>
import numpy as np
import jax
import jax.numpy as jnp
from jax.experimental import pallas as pl
from jax.experimental.pallas import tpu as pltpu

# ---- module hyper-parameters (match MTCHead) --------------------------------
C_IN = 2048                      # input channels to the head
C_PP = C_IN // 4                 # 512, channels of each pyramid branch
C_BLOCK = 512                    # output channels of the 3x3 conv block
SCALES = (1, 2, 3, 6)            # adaptive pool output sizes
SMAX = 36                        # max pooled cells per sample (6*6), padded for all scales
NCLASSES = (12, 2, 2, 2)         # task head channel counts
NOUT = sum(NCLASSES)             # 18
NOUT_PAD = 128                   # lane-dense padded head output width
H_SP = 12                        # spatial size (divisible by 1,2,3,6)
HW = H_SP * H_SP                 # 144
BATCH = 2
ROWS = BATCH * HW                # 288 = matmul M dimension (batch folded in)
BSMAX = BATCH * SMAX             # 72  = pooled rows with batch folded in
C_CAT = C_IN + 4 * C_PP          # 4096 channels after pyramid concat
NXCOPY = C_IN // C_PP            # 4 pass-through copy steps in kernel 1
CBLK = 512                       # input-channel block streamed per grid step in kernel 2
KC = C_CAT // CBLK               # 8 reduction steps
NSPLIT = 2                       # conv-output-channel split (uses both v7x TensorCores)
C_HALF = C_BLOCK // NSPLIT       # 256
BN_EPS = 1e-5


# ---------------------------------------------------------------------------
# Host-built constant matrices (batch-block-diagonal adaptive avg pool, bilinear
# align_corners upsample, and conv-tap boundary masks).
# ---------------------------------------------------------------------------
def build_pool_matrix(s):
    """(BSMAX, ROWS) block-diagonal matrix: row n*SMAX + py*s+px averages sample n's block."""
    b = H_SP // s
    a1 = np.zeros((SMAX, HW), np.float32)
    for py in range(s):
        for px in range(s):
            r = py * s + px
            for yy in range(py * b, (py + 1) * b):
                for xx in range(px * b, (px + 1) * b):
                    a1[r, yy * H_SP + xx] = 1.0 / (b * b)
    a = np.zeros((BSMAX, ROWS), np.float32)
    for n in range(BATCH):
        a[n * SMAX:(n + 1) * SMAX, n * HW:(n + 1) * HW] = a1
    return a


def build_bilinear_matrix(s):
    """(ROWS, BSMAX) block-diagonal bilinear align_corners=True matrix (s,s)->(H,H) per sample."""
    m1 = np.zeros((HW, SMAX), np.float32)
    if s == 1:
        m1[:, 0] = 1.0
    else:
        for oy in range(H_SP):
            for ox in range(H_SP):
                fy = oy * (s - 1) / (H_SP - 1)
                fx = ox * (s - 1) / (H_SP - 1)
                y0, x0 = int(np.floor(fy)), int(np.floor(fx))
                y1, x1 = min(y0 + 1, s - 1), min(x0 + 1, s - 1)
                wy, wx = fy - y0, fx - x0
                r = oy * H_SP + ox
                m1[r, y0 * s + x0] += (1 - wy) * (1 - wx)
                m1[r, y0 * s + x1] += (1 - wy) * wx
                m1[r, y1 * s + x0] += wy * (1 - wx)
                m1[r, y1 * s + x1] += wy * wx
    m = np.zeros((ROWS, BSMAX), np.float32)
    for n in range(BATCH):
        m[n * HW:(n + 1) * HW, n * SMAX:(n + 1) * SMAX] = m1
    return m


def build_tap_masks():
    """(9, ROWS, 1) validity masks for the 9 conv taps after flattened-row shifting."""
    masks = np.zeros((9, ROWS, 1), np.float32)
    for t in range(9):
        oy, ox = t // 3 - 1, t % 3 - 1
        for r in range(ROWS):
            y = (r % HW) // H_SP
            x = r % H_SP
            if 0 <= y + oy < H_SP and 0 <= x + ox < H_SP:
                masks[t, r, 0] = 1.0
    return masks


# ---------------------------------------------------------------------------
# Kernel 1: pyramid pooling branch, written directly into the concatenated
# (ROWS, C_CAT) bf16 layout.  grid=(8,): steps 0..3 copy x's 512-channel slabs,
# steps 4..7 run (pool -> 1x1 conv (BN folded, bf16) -> ReLU -> bilinear upsample)
# for the four scales.  Batch is folded into M via block-diagonal constant matrices.
# ---------------------------------------------------------------------------
def pyramid_cat_kernel(x_ref, a_ref, m_ref, w_ref, b_ref, o_ref):
    # x_ref: (ROWS, C_IN) f32   a_ref: (BSMAX, ROWS) f32   m_ref: (ROWS, BSMAX) f32
    # w_ref: (C_IN, C_PP) bf16 folded   b_ref: (1, C_PP) f32 folded   o_ref: (ROWS, C_PP) bf16
    g = pl.program_id(0)

    for gi in range(NXCOPY):                       # pass-through copy of x into the cat layout
        @pl.when(g == gi)
        def _copy(gi=gi):
            o_ref[...] = x_ref[:, gi * C_PP:(gi + 1) * C_PP].astype(o_ref.dtype)

    @pl.when(g >= NXCOPY)
    def _pyramid():
        pooled = jnp.dot(a_ref[...], x_ref[...], preferred_element_type=jnp.float32)
        y = jnp.dot(pooled.astype(jnp.bfloat16), w_ref[...],
                    preferred_element_type=jnp.float32) + b_ref[...]
        y = jnp.maximum(y, 0.0)
        # Padded pooled rows contribute relu(bias) but multiply zero columns of m_ref.
        o_ref[...] = jnp.dot(m_ref[...], y,
                             preferred_element_type=jnp.float32).astype(o_ref.dtype)


def pyramid_cat(x2d, a_pad, m_pad, w1, b1):
    scale_idx = lambda g: jnp.maximum(g - NXCOPY, 0)
    return pl.pallas_call(
        pyramid_cat_kernel,
        out_shape=jax.ShapeDtypeStruct((ROWS, C_CAT), jnp.bfloat16),
        grid=(NXCOPY + len(SCALES),),
        in_specs=[
            pl.BlockSpec((ROWS, C_IN), lambda g: (0, 0)),                      # x, DMA'd once
            pl.BlockSpec((None, BSMAX, ROWS), lambda g: (scale_idx(g), 0, 0)),
            pl.BlockSpec((None, ROWS, BSMAX), lambda g: (scale_idx(g), 0, 0)),
            pl.BlockSpec((None, C_IN, C_PP), lambda g: (scale_idx(g), 0, 0)),
            pl.BlockSpec((None, 1, C_PP), lambda g: (scale_idx(g), 0, 0)),
        ],
        out_specs=pl.BlockSpec((ROWS, C_PP), lambda g: (0, g)),
        compiler_params=pltpu.CompilerParams(
            dimension_semantics=("parallel",),
            vmem_limit_bytes=40 * 1024 * 1024),
    )(x2d, a_pad, m_pad, w1, b1)


# ---------------------------------------------------------------------------
# Kernel 2: 3x3 conv (pad=1, BN folded, bf16 weights) + ReLU + fused task heads.
# grid=(NSPLIT, KC): axis 0 splits conv output channels across TensorCores
# ("parallel"), axis 1 streams input-channel blocks ("arbitrary", reduction).
# Hot loop: one fused (ROWS,CBLK)x(CBLK,9*C_HALF) bf16 matmul accumulated into a
# wide f32 scratch; roll+mask+tap-sum+ReLU+partial-head happen once in finalize.
# ---------------------------------------------------------------------------
def block_head_kernel(cat_ref, wc_ref, masks_ref, shift_ref, wo_ref, out_ref, acc_ref):
    kc = pl.program_id(1)

    @pl.when(kc == 0)
    def _init():
        acc_ref[...] = jnp.zeros_like(acc_ref)

    acc_ref[...] += jnp.dot(cat_ref[...], wc_ref[...],
                            preferred_element_type=jnp.float32)

    @pl.when(kc == KC - 1)
    def _finish():
        # Deferred per-tap shift/mask (linear in the K-sum), done once per core.
        total = acc_ref[:, 4 * C_HALF:5 * C_HALF]          # center tap, no shift/mask needed
        for t in range(9):
            if t == 4:
                continue
            oy, ox = t // 3 - 1, t % 3 - 1
            s = oy * H_SP + ox                             # row shift in flattened space
            c = pltpu.roll(acc_ref[:, t * C_HALF:(t + 1) * C_HALF], (-s) % ROWS, axis=0)
            total = total + c * masks_ref[t]
        # folded BatchNorm shift + ReLU; Dropout(0.1) is eval-mode identity.
        h = jnp.maximum(total + shift_ref[...], 0.0)
        out_ref[...] = jnp.dot(h, wo_ref[...], preferred_element_type=jnp.float32)


def block_and_heads(cat, w2d, masks, shift2, wout):
    assert cat.shape == (ROWS, C_CAT)
    return pl.pallas_call(
        block_head_kernel,
        out_shape=jax.ShapeDtypeStruct((NSPLIT, ROWS, NOUT_PAD), jnp.float32),
        grid=(NSPLIT, KC),
        in_specs=[
            pl.BlockSpec((ROWS, CBLK), lambda p, kc: (0, kc)),
            pl.BlockSpec((None, CBLK, 9 * C_HALF), lambda p, kc: (p, kc, 0)),
            pl.BlockSpec((9, ROWS, 1), lambda p, kc: (0, 0, 0)),
            pl.BlockSpec((None, 1, C_HALF), lambda p, kc: (p, 0, 0)),
            pl.BlockSpec((None, C_HALF, NOUT_PAD), lambda p, kc: (p, 0, 0)),
        ],
        out_specs=pl.BlockSpec((None, ROWS, NOUT_PAD), lambda p, kc: (p, 0, 0)),
        scratch_shapes=[pltpu.VMEM((ROWS, 9 * C_HALF), jnp.float32)],
        compiler_params=pltpu.CompilerParams(
            dimension_semantics=("parallel", "arbitrary"),
            vmem_limit_bytes=40 * 1024 * 1024),
    )(cat, w2d, masks, shift2, wout)


# ---------------------------------------------------------------------------
# Host-side parameter preparation: BN folding, bf16 weight repacking, constants.
# ---------------------------------------------------------------------------
def prepare_params(p):
    a_list, m_list, w_list, b_list = [], [], [], []
    for i, s in enumerate(SCALES):
        a_list.append(build_pool_matrix(s))
        m_list.append(build_bilinear_matrix(s))
        scale = p[f"pp{i}_gamma"] / jnp.sqrt(p[f"pp{i}_var"] + BN_EPS)          # (C_PP,)
        w_list.append((p[f"pp{i}_w"] * scale[:, None]).T)                        # (C_IN, C_PP)
        b_list.append((p[f"pp{i}_beta"] - p[f"pp{i}_mean"] * scale)[None, :])    # (1, C_PP)
    prep = {
        "a_pad": jnp.asarray(np.stack(a_list)),               # (4, BSMAX, ROWS) f32
        "m_pad": jnp.asarray(np.stack(m_list)),               # (4, ROWS, BSMAX) f32
        "w1": jnp.stack(w_list).astype(jnp.bfloat16),          # (4, C_IN, C_PP) bf16
        "b1": jnp.stack(b_list),                               # (4, 1, C_PP) f32
        "masks": jnp.asarray(build_tap_masks()),               # (9, ROWS, 1) f32
    }
    # 3x3 conv block: fold BN scale, repack OIHW -> per output-channel-split
    # (C_CAT, 9*C_HALF) with columns grouped by tap t = dy*3+dx, bf16.
    scale2 = p["blk_gamma"] / jnp.sqrt(p["blk_var"] + BN_EPS)                    # (C_BLOCK,)
    wf = p["blk_w"] * scale2[:, None, None, None]                                 # OIHW folded
    wf_t = jnp.transpose(wf, (1, 2, 3, 0))                                        # (C_CAT,3,3,C_BLOCK)
    prep["w2d"] = jnp.stack([
        wf_t[..., q * C_HALF:(q + 1) * C_HALF].reshape(C_CAT, 9 * C_HALF)
        for q in range(NSPLIT)]).astype(jnp.bfloat16)                             # (2, C_CAT, 9*C_HALF)
    shift2 = p["blk_beta"] - p["blk_mean"] * scale2                               # (C_BLOCK,)
    prep["shift2"] = shift2.reshape(NSPLIT, 1, C_HALF)                            # (2, 1, C_HALF)
    # Task heads concatenated + lane-padded to 128 output columns, split by C_BLOCK rows.
    wout = jnp.zeros((C_BLOCK, NOUT_PAD), jnp.float32)
    bout = jnp.zeros((1, NOUT_PAD), jnp.float32)
    off = 0
    for i, nc in enumerate(NCLASSES):
        wout = wout.at[:, off:off + nc].set(p[f"out{i}_w"].T)
        bout = bout.at[0, off:off + nc].set(p[f"out{i}_b"])
        off += nc
    prep["wout"] = wout.reshape(NSPLIT, C_HALF, NOUT_PAD)                         # (2, C_HALF, 128)
    prep["bout"] = bout                                                            # (1, 128)
    return prep


# ---------------------------------------------------------------------------
# Full forward pass (only a NCHW->NHWC transpose and the tiny partial-sum/bias
# add remain in plain JAX).
# ---------------------------------------------------------------------------
def mtc_head_forward(x, prep):
    n, c, h, w = x.shape
    x2d = jnp.transpose(x, (0, 2, 3, 1)).reshape(ROWS, C_IN)
    cat = pyramid_cat(x2d, prep["a_pad"], prep["m_pad"], prep["w1"], prep["b1"])
    partial = block_and_heads(cat, prep["w2d"], prep["masks"], prep["shift2"], prep["wout"])
    out2d = partial.sum(axis=0) + prep["bout"]                  # sum TC partial heads + bias
    out = out2d[:, :NOUT].reshape(n, H_SP, H_SP, NOUT)
    res, off = [], 0
    for nc in NCLASSES:
        res.append(jnp.transpose(out[..., off:off + nc], (0, 3, 1, 2)))
        off += nc
    return tuple(res)


# ---------------------------------------------------------------------------
# Pure-JAX reference (eval-mode BN, exact align_corners bilinear, SAME 3x3 conv).
# ---------------------------------------------------------------------------
def reference(x, p):
    hp = jax.lax.Precision.HIGHEST
    n, c, h, w = x.shape

    def bn(y, pref):
        g, b = p[f"{pref}_gamma"], p[f"{pref}_beta"]
        m, v = p[f"{pref}_mean"], p[f"{pref}_var"]
        inv = (g / jnp.sqrt(v + BN_EPS))[None, :, None, None]
        return (y - m[None, :, None, None]) * inv + b[None, :, None, None]

    def upsample(y, size):
        s = y.shape[-1]
        if s == 1:
            return jnp.broadcast_to(y, y.shape[:2] + (size, size))
        coord = jnp.arange(size) * (s - 1) / (size - 1)
        lo = jnp.floor(coord).astype(jnp.int32)
        hi = jnp.minimum(lo + 1, s - 1)
        fr = (coord - lo).astype(y.dtype)

        def interp_last(z):
            return z[..., lo] * (1.0 - fr) + z[..., hi] * fr

        y = interp_last(y)                                               # along W
        y = jnp.swapaxes(interp_last(jnp.swapaxes(y, -1, -2)), -1, -2)   # along H
        return y

    feats = [x]
    for i, s in enumerate(SCALES):
        blk = h // s
        pooled = x.reshape(n, c, s, blk, s, blk).mean(axis=(3, 5))       # adaptive avg pool
        y = jnp.einsum("nchw,oc->nohw", pooled, p[f"pp{i}_w"], precision=hp)
        y = jnp.maximum(bn(y, f"pp{i}"), 0.0)
        feats.append(upsample(y, h))
    cat = jnp.concatenate(feats, axis=1)
    y = jax.lax.conv_general_dilated(cat, p["blk_w"], (1, 1), ((1, 1), (1, 1)),
                                     dimension_numbers=("NCHW", "OIHW", "NCHW"),
                                     precision=hp)
    y = jnp.maximum(bn(y, "blk"), 0.0)     # Dropout(0.1): eval-mode identity
    res = []
    for i, nc in enumerate(NCLASSES):
        o = (jnp.einsum("nchw,oc->nohw", y, p[f"out{i}_w"], precision=hp)
             + p[f"out{i}_b"][None, :, None, None])
        res.append(o)
    return tuple(res)


if __name__ == "__main__":
    key = jax.random.PRNGKey(0)
    ks = iter(jax.random.split(key, 64))
    x = jax.random.normal(next(ks), (BATCH, C_IN, H_SP, H_SP), jnp.float32)

    p = {}
    for i in range(len(SCALES)):
        p[f"pp{i}_w"] = jax.random.normal(next(ks), (C_PP, C_IN), jnp.float32) * 0.02
        p[f"pp{i}_gamma"] = 1.0 + 0.1 * jax.random.normal(next(ks), (C_PP,), jnp.float32)
        p[f"pp{i}_beta"] = 0.1 * jax.random.normal(next(ks), (C_PP,), jnp.float32)
        p[f"pp{i}_mean"] = 0.1 * jax.random.normal(next(ks), (C_PP,), jnp.float32)
        p[f"pp{i}_var"] = 1.0 + 0.5 * jax.random.uniform(next(ks), (C_PP,), jnp.float32)
    p["blk_w"] = jax.random.normal(next(ks), (C_BLOCK, C_CAT, 3, 3), jnp.float32) * 0.01
    p["blk_gamma"] = 1.0 + 0.1 * jax.random.normal(next(ks), (C_BLOCK,), jnp.float32)
    p["blk_beta"] = 0.1 * jax.random.normal(next(ks), (C_BLOCK,), jnp.float32)
    p["blk_mean"] = 0.1 * jax.random.normal(next(ks), (C_BLOCK,), jnp.float32)
    p["blk_var"] = 1.0 + 0.5 * jax.random.uniform(next(ks), (C_BLOCK,), jnp.float32)
    for i, nc in enumerate(NCLASSES):
        p[f"out{i}_w"] = jax.random.normal(next(ks), (nc, C_BLOCK), jnp.float32) * 0.05
        p[f"out{i}_b"] = 0.05 * jax.random.normal(next(ks), (nc,), jnp.float32)

    prep = prepare_params(p)
    outs = jax.block_until_ready(mtc_head_forward(x, prep))
    refs = reference(x, p)

    for i, (o, r) in enumerate(zip(outs, refs)):
        assert o.shape == (BATCH, NCLASSES[i], H_SP, H_SP), o.shape
        assert o.shape == r.shape, (o.shape, r.shape)
        err = float(jnp.max(jnp.abs(o - r)))
        assert jnp.allclose(o, r, rtol=3e-2, atol=3e-2), f"task {i} max abs err {err}"

    print("KERNEL_OK")
</pallas_src>

<mosaic_0001>
module attributes {stable_mosaic.version = 11 : i64} {
  func.func @pyramid_cat_kernel(%arg0: i32, %arg1: memref<288x2048xf32, #tpu.memory_space<vmem>>, %arg2: memref<1x72x288xf32, #tpu.memory_space<vmem>>, %arg3: memref<1x288x72xf32, #tpu.memory_space<vmem>>, %arg4: memref<1x2048x512xbf16, #tpu.memory_space<vmem>>, %arg5: memref<1x1x512xf32, #tpu.memory_space<vmem>>, %arg6: memref<288x512xbf16, #tpu.memory_space<vmem>>) attributes {dimension_semantics = [#tpu.dimension_semantics<parallel>], iteration_bounds = array<i64: 8>, scalar_prefetch = 0 : i64, scratch_operands = 0 : i64, tpu.core_type = #tpu.core_type<tc>, window_params = [{pipeline_mode = #tpu.pipeline_mode<synchronous>, transform_indices = @transform_0, window_bounds = array<i64: 288, 2048>}, {transform_indices = @transform_1, window_bounds = array<i64: 1, 72, 288>}, {transform_indices = @transform_2, window_bounds = array<i64: 1, 288, 72>}, {transform_indices = @transform_3, window_bounds = array<i64: 1, 2048, 512>}, {transform_indices = @transform_4, window_bounds = array<i64: 1, 1, 512>}, {transform_indices = @transform_5, window_bounds = array<i64: 288, 512>}]} {
    %c0_i32 = arith.constant 0 : i32
    %0 = arith.cmpi eq, %arg0, %c0_i32 : i32
    %1 = arith.extui %0 : i1 to i32
    %c0_i32_0 = arith.constant 0 : i32
    %2 = arith.cmpi ne, %1, %c0_i32_0 : i32
    scf.if %2 {
      %c0 = arith.constant 0 : index
      %c0_5 = arith.constant 0 : index
      %15 = vector.load %arg1[%c0, %c0_5] : memref<288x2048xf32, #tpu.memory_space<vmem>>, vector<288x512xf32>
      %16 = arith.truncf %15 : vector<288x512xf32> to vector<288x512xbf16>
      %c0_6 = arith.constant 0 : index
      %c0_7 = arith.constant 0 : index
      %17 = vector.load %arg6[%c0_6, %c0_7] : memref<288x512xbf16, #tpu.memory_space<vmem>>, vector<288x512xbf16>
      tpu.vector_store %arg6[%c0_6, %c0_7], %16 {strides = array<i32>} : memref<288x512xbf16, #tpu.memory_space<vmem>>, vector<288x512xbf16>,
    } else {
    }
    %c1_i32 = arith.constant 1 : i32
    %3 = arith.cmpi eq, %arg0, %c1_i32 : i32
    %4 = arith.extui %3 : i1 to i32
    %c0_i32_1 = arith.constant 0 : i32
    %5 = arith.cmpi ne, %4, %c0_i32_1 : i32
    scf.if %5 {
      %c0 = arith.constant 0 : index
      %c512 = arith.constant 512 : index
      %15 = vector.load %arg1[%c0, %c512] : memref<288x2048xf32, #tpu.memory_space<vmem>>, vector<288x512xf32>
      %16 = arith.truncf %15 : vector<288x512xf32> to vector<288x512xbf16>
      %c0_5 = arith.constant 0 : index
      %c0_6 = arith.constant 0 : index
      %17 = vector.load %arg6[%c0_5, %c0_6] : memref<288x512xbf16, #tpu.memory_space<vmem>>, vector<288x512xbf16>
      tpu.vector_store %arg6[%c0_5, %c0_6], %16 {strides = array<i32>} : memref<288x512xbf16, #tpu.memory_space<vmem>>, vector<288x512xbf16>,
    } else {
    }
    %c2_i32 = arith.constant 2 : i32
    %6 = arith.cmpi eq, %arg0, %c2_i32 : i32
    %7 = arith.extui %6 : i1 to i32
    %c0_i32_2 = arith.constant 0 : i32
    %8 = arith.cmpi ne, %7, %c0_i32_2 : i32
    scf.if %8 {
      %c0 = arith.constant 0 : index
      %c1024 = arith.constant 1024 : index
      %15 = vector.load %arg1[%c0, %c1024] : memref<288x2048xf32, #tpu.memory_space<vmem>>, vector<288x512xf32>
      %16 = arith.truncf %15 : vector<288x512xf32> to vector<288x512xbf16>
      %c0_5 = arith.constant 0 : index
      %c0_6 = arith.constant 0 : index
      %17 = vector.load %arg6[%c0_5, %c0_6] : memref<288x512xbf16, #tpu.memory_space<vmem>>, vector<288x512xbf16>
      tpu.vector_store %arg6[%c0_5, %c0_6], %16 {strides = array<i32>} : memref<288x512xbf16, #tpu.memory_space<vmem>>, vector<288x512xbf16>,
    } else {
    }
    %c3_i32 = arith.constant 3 : i32
    %9 = arith.cmpi eq, %arg0, %c3_i32 : i32
    %10 = arith.extui %9 : i1 to i32
    %c0_i32_3 = arith.constant 0 : i32
    %11 = arith.cmpi ne, %10, %c0_i32_3 : i32
    scf.if %11 {
      %c0 = arith.constant 0 : index
      %c1536 = arith.constant 1536 : index
      %15 = vector.load %arg1[%c0, %c1536] : memref<288x2048xf32, #tpu.memory_space<vmem>>, vector<288x512xf32>
      %16 = arith.truncf %15 : vector<288x512xf32> to vector<288x512xbf16>
      %c0_5 = arith.constant 0 : index
      %c0_6 = arith.constant 0 : index
      %17 = vector.load %arg6[%c0_5, %c0_6] : memref<288x512xbf16, #tpu.memory_space<vmem>>, vector<288x512xbf16>
      tpu.vector_store %arg6[%c0_5, %c0_6], %16 {strides = array<i32>} : memref<288x512xbf16, #tpu.memory_space<vmem>>, vector<288x512xbf16>,
    } else {
    }
    %c4_i32 = arith.constant 4 : i32
    %12 = arith.cmpi sge, %arg0, %c4_i32 : i32
    %13 = arith.extui %12 : i1 to i32
    %c0_i32_4 = arith.constant 0 : i32
    %14 = arith.cmpi ne, %13, %c0_i32_4 : i32
    scf.if %14 {
      %c0 = arith.constant 0 : index
      %c0_5 = arith.constant 0 : index
      %c0_6 = arith.constant 0 : index
      %15 = vector.load %arg2[%c0, %c0_5, %c0_6] : memref<1x72x288xf32, #tpu.memory_space<vmem>>, vector<1x72x288xf32>
      %16 = vector.shape_cast %15 : vector<1x72x288xf32> to vector<72x288xf32>
      %c0_7 = arith.constant 0 : index
      %c0_8 = arith.constant 0 : index
      %17 = vector.load %arg1[%c0_7, %c0_8] : memref<288x2048xf32, #tpu.memory_space<vmem>>, vector<288x2048xf32>
      %cst = arith.constant dense<0.000000e+00> : vector<72x2048xf32>
      %18 = tpu.matmul %16, %17, %cst {dimension_numbers = #tpu.dot_dimension_numbers<[1], [0], [0], [1], [0, 0, 1, 1], [], []>} : vector<72x288xf32>, vector<288x2048xf32>, vector<72x2048xf32> -> vector<72x2048xf32>
      %19 = arith.truncf %18 : vector<72x2048xf32> to vector<72x2048xbf16>
      %c0_9 = arith.constant 0 : index
      %c0_10 = arith.constant 0 : index
      %c0_11 = arith.constant 0 : index
      %20 = vector.load %arg4[%c0_9, %c0_10, %c0_11] : memref<1x2048x512xbf16, #tpu.memory_space<vmem>>, vector<1x2048x512xbf16>
      %21 = vector.shape_cast %20 : vector<1x2048x512xbf16> to vector<2048x512xbf16>
      %cst_12 = arith.constant dense<0.000000e+00> : vector<72x512xf32>
      %22 = tpu.matmul %19, %21, %cst_12 {dimension_numbers = #tpu.dot_dimension_numbers<[1], [0], [0], [1], [0, 0, 1, 1], [], []>} : vector<72x2048xbf16>, vector<2048x512xbf16>, vector<72x512xf32> -> vector<72x512xf32>
      %c0_13 = arith.constant 0 : index
      %c0_14 = arith.constant 0 : index
      %c0_15 = arith.constant 0 : index
      %23 = vector.load %arg5[%c0_13, %c0_14, %c0_15] : memref<1x1x512xf32, #tpu.memory_space<vmem>>, vector<1x1x512xf32>
      %24 = vector.shape_cast %23 : vector<1x1x512xf32> to vector<1x512xf32>
      %25 = vector.broadcast %24 : vector<1x512xf32> to vector<72x512xf32>
      %26 = arith.addf %22, %25 : vector<72x512xf32>
      %cst_16 = arith.constant 0.000000e+00 : f32
      %27 = vector.broadcast %cst_16 : f32 to vector<72x512xf32>
      %28 = arith.maximumf %26, %27 : vector<72x512xf32>
      %c0_17 = arith.constant 0 : index
      %c0_18 = arith.constant 0 : index
      %c0_19 = arith.constant 0 : index
      %29 = vector.load %arg3[%c0_17, %c0_18, %c0_19] : memref<1x288x72xf32, #tpu.memory_space<vmem>>, vector<1x288x72xf32>
      %30 = vector.shape_cast %29 : vector<1x288x72xf32> to vector<288x72xf32>
      %cst_20 = arith.constant dense<0.000000e+00> : vector<288x512xf32>
      %31 = tpu.matmul %30, %28, %cst_20 {dimension_numbers = #tpu.dot_dimension_numbers<[1], [0], [0], [1], [0, 0, 1, 1], [], []>} : vector<288x72xf32>, vector<72x512xf32>, vector<288x512xf32> -> vector<288x512xf32>
      %32 = arith.truncf %31 : vector<288x512xf32> to vector<288x512xbf16>
      %c0_21 = arith.constant 0 : index
      %c0_22 = arith.constant 0 : index
      %33 = vector.load %arg6[%c0_21, %c0_22] : memref<288x512xbf16, #tpu.memory_space<vmem>>, vector<288x512xbf16>
      tpu.vector_store %arg6[%c0_21, %c0_22], %32 {strides = array<i32>} : memref<288x512xbf16, #tpu.memory_space<vmem>>, vector<288x512xbf16>,
    } else {
    }
    return
  }
  func.func @transform_0(%arg0: i32) -> (i32, i32) {
    %c0_i32 = arith.constant 0 : i32
    %c0_i32_0 = arith.constant 0 : i32
    %c0_i32_1 = arith.constant 0 : i32
    return %c0_i32, %c0_i32_0 : i32, i32
  }
  func.func @transform_1(%arg0: i32) -> (i32, i32, i32) {
    %c4_i32 = arith.constant 4 : i32
    %0 = arith.subi %arg0, %c4_i32 : i32
    %c0_i32 = arith.constant 0 : i32
    %1 = arith.maxsi %0, %c0_i32 : i32
    %c0_i32_0 = arith.constant 0 : i32
    %c0_i32_1 = arith.constant 0 : i32
    %c0_i32_2 = arith.constant 0 : i32
    return %1, %c0_i32_0, %c0_i32_1 : i32, i32, i32
  }
  func.func @transform_2(%arg0: i32) -> (i32, i32, i32) {
    %c4_i32 = arith.constant 4 : i32
    %0 = arith.subi %arg0, %c4_i32 : i32
    %c0_i32 = arith.constant 0 : i32
    %1 = arith.maxsi %0, %c0_i32 : i32
    %c0_i32_0 = arith.constant 0 : i32
    %c0_i32_1 = arith.constant 0 : i32
    %c0_i32_2 = arith.constant 0 : i32
    return %1, %c0_i32_0, %c0_i32_1 : i32, i32, i32
  }
  func.func @transform_3(%arg0: i32) -> (i32, i32, i32) {
    %c4_i32 = arith.constant 4 : i32
    %0 = arith.subi %arg0, %c4_i32 : i32
    %c0_i32 = arith.constant 0 : i32
    %1 = arith.maxsi %0, %c0_i32 : i32
    %c0_i32_0 = arith.constant 0 : i32
    %c0_i32_1 = arith.constant 0 : i32
    %c0_i32_2 = arith.constant 0 : i32
    return %1, %c0_i32_0, %c0_i32_1 : i32, i32, i32
  }
  func.func @transform_4(%arg0: i32) -> (i32, i32, i32) {
    %c4_i32 = arith.constant 4 : i32
    %0 = arith.subi %arg0, %c4_i32 : i32
    %c0_i32 = arith.constant 0 : i32
    %1 = arith.maxsi %0, %c0_i32 : i32
    %c0_i32_0 = arith.constant 0 : i32
    %c0_i32_1 = arith.constant 0 : i32
    %c0_i32_2 = arith.constant 0 : i32
    return %1, %c0_i32_0, %c0_i32_1 : i32, i32, i32
  }
  func.func @transform_5(%arg0: i32) -> (i32, i32) {
    %c0_i32 = arith.constant 0 : i32
    %c0_i32_0 = arith.constant 0 : i32
    return %c0_i32, %arg0 : i32, i32
  }
}

</mosaic_0001>

<llo_original>
// kernel: tpu_custom_call.1
$region0: #{tpu_custom_call.1}
  #allocation0 [shape = 'u32[]', space=smem, size = 0x4, offset = 0x4, fixed_abs, tag = 'smem constant byte address 0x4 - core index']
  #allocation1 [shape = 'u32[144,128]{1,0:T(1,128)}', space=vmem, size = 0x12000, scoped, tag = 'internal scratch']
  %s0 = inlined_call_operand.hbm [shape: f32[288,2048], index: 0, kind: input, shape index: {}]
  %s1 = inlined_call_operand.hbm [shape: f32[4,72,288], index: 1, kind: input, shape index: {}]
  %s2 = inlined_call_operand.vmem [shape: f32[4,288,72], index: 2, kind: input, shape index: {}]
  %s3 = inlined_call_operand.hbm [shape: bf16[4,2048,512], index: 3, kind: input, shape index: {}]
  %s4 = inlined_call_operand.hbm [shape: f32[4,1,512], index: 4, kind: input, shape index: {}]
  %s5 = inlined_call_operand.hbm [shape: bf16[288,4096], index: 5, kind: output, shape index: {}]
  %s6 = sld [smem:[#allocation0]]
  $region89: #{tpu_custom_call.1} parent=0
    _
  %s8 = ssub.s32 1, %s6
  %s9 = scalar_select 0, %s8, %s6
  $region1: #{tpu_custom_call.1} parent=0
    #allocation2 [shape = 'u8[2359296]{0}', space=vmem, size = 0x240000, scoped, tag = 'input window, operand 0, single buffered']
    #allocation3 [shape = 's32[2]{0}', space=sflag, size = 0x8, scoped, tag = 'scoped memory for tpu_custom_call.1']
    #allocation4 [shape = 's32[2]{0}', space=sflag, size = 0x8, scoped, tag = 'scoped memory for tpu_custom_call.1']
    #allocation5 [shape = 'u8[221184]{0}', space=vmem, size = 0x36000, scoped, tag = 'input window, operand 1']
    #allocation6 [shape = 's32[2]{0}', space=sflag, size = 0x8, scoped, tag = 'scoped memory for tpu_custom_call.1']
    #allocation7 [shape = 'u8[4194304]{0}', space=vmem, size = 0x400000, scoped, tag = 'input window, operand 3']
    #allocation8 [shape = 'u8[4096]{0}', space=vmem, size = 0x1000, scoped, tag = 'input window, operand 4']
    #allocation9 [shape = 's32[2]{0}', space=sflag, size = 0x8, scoped, tag = 'scoped memory for tpu_custom_call.1']
    #allocation10 [shape = 'u8[589824]{0}', space=vmem, size = 0x90000, scoped, tag = 'output window, operand 0']
    %10 = vsyncpa [#allocation3], 0
    %11 = vsyncpa [#allocation6], 0
    %s12 = scalar_lea.sflag [#allocation6], 1
    %13 = vsyncpa %s12, 0
    %14 = vsyncpa [#allocation9], 0
    %s15 = scalar_lea.sflag [#allocation9], 1
    %16 = vsyncpa %s15, 0
    %17 = vsyncpa [#allocation4], 0
    %s18 = scalar_lea.sflag [#allocation4], 1
    %19 = vsyncpa %s18, 0
    loop: start=0, step=1, limit=10
    $region2: #{tpu_custom_call.1} parent=1 // loop_pre_header
      _
    $region3: #{tpu_custom_call.1} parent=1 // loop_header
      %s21 = sphi 0, %s25
      %p22 = scmp.ge.s32.totalorder %s21, 10
      %s29 = sphi 0, %s29
      %s31 = sphi 0, %s29
      %s32 = sphi 0, %s31
      %s46 = sphi 0, %s32
      %s58 = sphi 0, %s60
      %s61 = sphi 0, %s58
      %s62 = sphi 0, %s61
      %s78 = sphi 0, %s62
      %s90 = sphi 0, %s92
      %s93 = sphi 0, %s90
      %s94 = sphi 0, %s93
      %s110 = sphi 0, %s94
      %s122 = sphi 0, %s124
      %s125 = sphi 0, %s122
      %s126 = sphi 0, %s125
      %s142 = sphi 0, %s126
      %s154 = sphi 0, %s156
      %s157 = sphi 0, %s154
      %s158 = sphi 0, %s157
      %s174 = sphi 0, %s158
      %s180 = sphi 0, %s182
      %s183 = sphi 0, %s180
      %s184 = sphi 0, %s183
      %s200 = sphi 0, %s184
    $region4: #{tpu_custom_call.1} parent=1 // loop_header_branch
      %24 = sbr.rel (%p22) target = $region8
    $region5: #{tpu_custom_call.1} parent=1 // loop_body
      %s26 = ssub.s32 %s21, 1
      %s27 = ssub.s32 %s21, 2
      %s28 = sadd.s32 %s21, 1
      %s30 = sadd.s32 %s29, 1
      %p33 = scmp.eq.s32.totalorder %s21, 7
      %p34 = scmp.ne.s32.totalorder %s29, %s31
      %p35 = scmp.eq.s32.totalorder %s21, 0
      %p36 = por %p34, %p35
      %p37 = scmp.ne.s32.totalorder %s29, %s31
      %p38 = scmp.eq.s32.totalorder %s26, 7
      %p39 = por %p37, %p38
      %p40 = scmp.ne.s32.totalorder %s31, %s32
      %p41 = scmp.eq.s32.totalorder %s26, 0
      %p42 = por %p40, %p41
      %p43 = scmp.ne.s32.totalorder %s31, %s32
      %p44 = scmp.eq.s32.totalorder %s27, 7
      %p45 = por %p43, %p44
      %p47 = scmp.ne.s32.totalorder %s32, %s46
      %p48 = scmp.eq.s32.totalorder %s27, 0
      %p49 = por %p47, %p48
      %s50 = ssub.s32 %s21, 4
      %p51 = scmp.gt.s32.totalorder %s50, 0
      %s52 = scalar_select %p51, %s50, 0
      %s53 = ssub.s32 %s28, 4
      %p54 = scmp.gt.s32.totalorder %s53, 0
      %s55 = scalar_select %p54, %s53, 0
      %s56 = ssub.s32 %s52, %s55
      %p57 = scmp.eq.s32.totalorder %s56, 0
      %s59 = sadd.s32 %s58, 1
      %s60 = scalar_select %p57, %s58, %s59
      %p63 = pneg %p57
      %p64 = scmp.eq.s32.totalorder %s21, 7
      %p65 = por %p63, %p64
      %p66 = scmp.ne.s32.totalorder %s58, %s61
      %p67 = scmp.eq.s32.totalorder %s21, 0
      %p68 = por %p66, %p67
      %p69 = scmp.ne.s32.totalorder %s58, %s61
      %p70 = scmp.eq.s32.totalorder %s26, 7
      %p71 = por %p69, %p70
      %p72 = scmp.ne.s32.totalorder %s61, %s62
      %p73 = scmp.eq.s32.totalorder %s26, 0
      %p74 = por %p72, %p73
      %p75 = scmp.ne.s32.totalorder %s61, %s62
      %p76 = scmp.eq.s32.totalorder %s27, 7
      %p77 = por %p75, %p76
      %p79 = scmp.ne.s32.totalorder %s62, %s78
      %p80 = scmp.eq.s32.totalorder %s27, 0
      %p81 = por %p79, %p80
      %s82 = ssub.s32 %s21, 4
      %p83 = scmp.gt.s32.totalorder %s82, 0
      %s84 = scalar_select %p83, %s82, 0
      %s85 = ssub.s32 %s28, 4
      %p86 = scmp.gt.s32.totalorder %s85, 0
      %s87 = scalar_select %p86, %s85, 0
      %s88 = ssub.s32 %s84, %s87
      %p89 = scmp.eq.s32.totalorder %s88, 0
      %s91 = sadd.s32 %s90, 1
      %s92 = scalar_select %p89, %s90, %s91
      %p95 = pneg %p89
      %p96 = scmp.eq.s32.totalorder %s21, 7
      %p97 = por %p95, %p96
      %p98 = scmp.ne.s32.totalorder %s90, %s93
      %p99 = scmp.eq.s32.totalorder %s21, 0
      %p100 = por %p98, %p99
      %p101 = scmp.ne.s32.totalorder %s90, %s93
      %p102 = scmp.eq.s32.totalorder %s26, 7
      %p103 = por %p101, %p102
      %p104 = scmp.ne.s32.totalorder %s93, %s94
      %p105 = scmp.eq.s32.totalorder %s26, 0
      %p106 = por %p104, %p105
      %p107 = scmp.ne.s32.totalorder %s93, %s94
      %p108 = scmp.eq.s32.totalorder %s27, 7
      %p109 = por %p107, %p108
      %p111 = scmp.ne.s32.totalorder %s94, %s110
      %p112 = scmp.eq.s32.totalorder %s27, 0
      %p113 = por %p111, %p112
      %s114 = ssub.s32 %s21, 4
      %p115 = scmp.gt.s32.totalorder %s114, 0
      %s116 = scalar_select %p115, %s114, 0
      %s117 = ssub.s32 %s28, 4
      %p118 = scmp.gt.s32.totalorder %s117, 0
      %s119 = scalar_select %p118, %s117, 0
      %s120 = ssub.s32 %s116, %s119
      %p121 = scmp.eq.s32.totalorder %s120, 0
      %s123 = sadd.s32 %s122, 1
      %s124 = scalar_select %p121, %s122, %s123
      %p127 = pneg %p121
      %p128 = scmp.eq.s32.totalorder %s21, 7
      %p129 = por %p127, %p128
      %p130 = scmp.ne.s32.totalorder %s122, %s125
      %p131 = scmp.eq.s32.totalorder %s21, 0
      %p132 = por %p130, %p131
      %p133 = scmp.ne.s32.totalorder %s122, %s125
      %p134 = scmp.eq.s32.totalorder %s26, 7
      %p135 = por %p133, %p134
      %p136 = scmp.ne.s32.totalorder %s125, %s126
      %p137 = scmp.eq.s32.totalorder %s26, 0
      %p138 = por %p136, %p137
      %p139 = scmp.ne.s32.totalorder %s125, %s126
      %p140 = scmp.eq.s32.totalorder %s27, 7
      %p141 = por %p139, %p140
      %p143 = scmp.ne.s32.totalorder %s126, %s142
      %p144 = scmp.eq.s32.totalorder %s27, 0
      %p145 = por %p143, %p144
      %s146 = ssub.s32 %s21, 4
      %p147 = scmp.gt.s32.totalorder %s146, 0
      %s148 = scalar_select %p147, %s146, 0
      %s149 = ssub.s32 %s28, 4
      %p150 = scmp.gt.s32.totalorder %s149, 0
      %s151 = scalar_select %p150, %s149, 0
      %s152 = ssub.s32 %s148, %s151
      %p153 = scmp.eq.s32.totalorder %s152, 0
      %s155 = sadd.s32 %s154, 1
      %s156 = scalar_select %p153, %s154, %s155
      %p159 = pneg %p153
      %p160 = scmp.eq.s32.totalorder %s21, 7
      %p161 = por %p159, %p160
      %p162 = scmp.ne.s32.totalorder %s154, %s157
      %p163 = scmp.eq.s32.totalorder %s21, 0
      %p164 = por %p162, %p163
      %p165 = scmp.ne.s32.totalorder %s154, %s157
      %p166 = scmp.eq.s32.totalorder %s26, 7
      %p167 = por %p165, %p166
      %p168 = scmp.ne.s32.totalorder %s157, %s158
      %p169 = scmp.eq.s32.totalorder %s26, 0
      %p170 = por %p168, %p169
      %p171 = scmp.ne.s32.totalorder %s157, %s158
      %p172 = scmp.eq.s32.totalorder %s27, 7
      %p173 = por %p171, %p172
      %p175 = scmp.ne.s32.totalorder %s158, %s174
      %p176 = scmp.eq.s32.totalorder %s27, 0
      %p177 = por %p175, %p176
      %s178 = ssub.s32 %s21, %s28
      %p179 = scmp.eq.s32.totalorder %s178, 0
      %s181 = sadd.s32 %s180, 1
      %s182 = scalar_select %p179, %s180, %s181
      %p185 = pneg %p179
      %p186 = scmp.eq.s32.totalorder %s21, 7
      %p187 = por %p185, %p186
      %p188 = scmp.ne.s32.totalorder %s180, %s183
      %p189 = scmp.eq.s32.totalorder %s21, 0
      %p190 = por %p188, %p189
      %p191 = scmp.ne.s32.totalorder %s180, %s183
      %p192 = scmp.eq.s32.totalorder %s26, 7
      %p193 = por %p191, %p192
      %p194 = scmp.ne.s32.totalorder %s183, %s184
      %p195 = scmp.eq.s32.totalorder %s26, 0
      %p196 = por %p194, %p195
      %p197 = scmp.ne.s32.totalorder %s183, %s184
      %p198 = scmp.eq.s32.totalorder %s27, 7
      %p199 = por %p197, %p198
      %p201 = scmp.ne.s32.totalorder %s184, %s200
      %p202 = scmp.eq.s32.totalorder %s27, 0
      %p203 = por %p201, %p202
      %p204 = scmp.le.s32.totalorder 1, %s21
      %p205 = scmp.lt.s32.totalorder %s21, 9
      %p206 = pnand %p204, %p205
      %p207 = pneg %p206
      // Predicated region
      $region9: #{tpu_custom_call.1} parent=5 // pred_check
        _
      $region10: #{tpu_custom_call.1} parent=5 // pred_check_branch
        %209 = sbr.rel (%p206) target = $region12
      $region11: #{tpu_custom_call.1} parent=5 // pred_region
        %s210 = ssub.s32 %s21, 1
        // Predicated region
        $region13: #{tpu_custom_call.1} parent=11 // pred_check
          %p211 = pneg %p42
        $region14: #{tpu_custom_call.1} parent=11 // pred_check_branch
          %213 = sbr.rel (%p211) target = $region16
        $region15: #{tpu_custom_call.1} parent=11 // pred_region
          %s215 = ssub.s32 73728, 73728
          %216 = vsyncadd [#allocation3], %s215
          %s217 = sshll.u32 [#allocation2], 4
          %s218 = int_to_ptr.vmem [resolvable:$true] %s217
          %223 = dma.hbm_to_vmem [thread:$0]  %s0, 73728, %s218, [#allocation3], 2048, 2048, 128
        $region16: #{tpu_custom_call.1} parent=11 // pred_fallthru
          _
      $region12: #{tpu_custom_call.1} parent=5 // pred_fallthru
        _
      %p224 = scmp.lt.s32.totalorder %s21, 8
      // Predicated region
      $region17: #{tpu_custom_call.1} parent=5 // pred_check
        %p225 = pneg %p224
      $region18: #{tpu_custom_call.1} parent=5 // pred_check_branch
        %227 = sbr.rel (%p225) target = $region20
      $region19: #{tpu_custom_call.1} parent=5 // pred_region
        // Predicated region
        $region21: #{tpu_custom_call.1} parent=19 // pred_check
          %p228 = pneg %p68
        $region22: #{tpu_custom_call.1} parent=19 // pred_check_branch
          %230 = sbr.rel (%p228) target = $region24
        $region23: #{tpu_custom_call.1} parent=19 // pred_region
          %s231 = sand.u32 %s21, 1
          %s232 = scalar_lea.sflag [#allocation6], %s231
          %s233 = sand.u32 %s58, 1
          %s234 = smul.addr %s233, 216
          %s235 = scalar_lea.vmem [#allocation5], %s234
          %s236 = ssub.s32 %s21, 4
          %p237 = scmp.gt.s32.totalorder %s236, 0
          %s238 = scalar_select %p237, %s236, 0
          %s240 = ssub.s32 3456, 3456
          %241 = vsyncadd %s232, %s240
          %s242 = smul.addr %s238, 27
          %s243 = smul.addr %s242, 128
          %s244 = scalar_lea.hbm %s1, %s243
          %s245 = sshll.u32 %s235, 4
          %s246 = int_to_ptr.vmem [resolvable:$true] %s245
          %251 = dma.hbm_to_vmem [thread:$0]  %s244, 3456, %s246, %s232, 384, 384, 24
        $region24: #{tpu_custom_call.1} parent=19 // pred_fallthru
          _
        // Predicated region
        $region25: #{tpu_custom_call.1} parent=19 // pred_check
          %p252 = pneg %p100
        $region26: #{tpu_custom_call.1} parent=19 // pred_check_branch
          %254 = sbr.rel (%p252) target = $region28
        $region27: #{tpu_custom_call.1} parent=19 // pred_region
          %s255 = ssub.s32 %s21, 4
          %p256 = scmp.gt.s32.totalorder %s255, 0
          %s257 = scalar_select %p256, %s255, 0
          %p258 = scmp.lt.s32.totalorder %s257, 3
          %s259 = scalar_select %p258, %s257, 3
          %s260 = smul.addr %s259, 36
          %s261 = smul.addr %s260, 8
          %s262 = scalar_lea.vmem %s2, %s261
          %s263 = ssub.s32 %s21, 4
          %p264 = scmp.gt.s32.totalorder %s263, 0
          %s265 = scalar_select %p264, %s263, 0
        $region28: #{tpu_custom_call.1} parent=19 // pred_fallthru
          _
        // Predicated region
        $region29: #{tpu_custom_call.1} parent=19 // pred_check
          %p266 = pneg %p132
        $region30: #{tpu_custom_call.1} parent=19 // pred_check_branch
          %268 = sbr.rel (%p266) target = $region32
        $region31: #{tpu_custom_call.1} parent=19 // pred_region
          %s269 = sand.u32 %s21, 1
          %s270 = scalar_lea.sflag [#allocation6], %s269
          %s271 = sand.u32 %s122, 1
          %s272 = smul.addr %s271, 4096
          %s273 = scalar_lea.vmem [#allocation7], %s272
          %s274 = ssub.s32 %s21, 4
          %p275 = scmp.gt.s32.totalorder %s274, 0
          %s276 = scalar_select %p275, %s274, 0
          %s278 = ssub.s32 65536, 65536
          %279 = vsyncadd %s270, %s278
          %s280 = smul.addr %s276, 1024
          %s281 = smul.addr %s280, 64
          %s282 = scalar_lea.hbm %s3, %s281
          %s283 = sshll.u32 %s273, 4
          %s284 = int_to_ptr.vmem [resolvable:$true] %s283
          %289 = dma.hbm_to_vmem [thread:$0]  %s282, 65536, %s284, %s270, 256, 256, 16
        $region32: #{tpu_custom_call.1} parent=19 // pred_fallthru
          _
        // Predicated region
        $region33: #{tpu_custom_call.1} parent=19 // pred_check
          %p290 = pneg %p164
        $region34: #{tpu_custom_call.1} parent=19 // pred_check_branch
          %292 = sbr.rel (%p290) target = $region36
        $region35: #{tpu_custom_call.1} parent=19 // pred_region
          %s293 = sand.u32 %s154, 1
          %s294 = scalar_lea.sflag [#allocation9], %s293
          %s295 = sand.u32 %s154, 1
          %s296 = smul.addr %s295, 4
          %s297 = scalar_lea.vmem [#allocation8], %s296
          %s298 = ssub.s32 %s21, 4
          %p299 = scmp.gt.s32.totalorder %s298, 0
          %s300 = scalar_select %p299, %s298, 0
          %s302 = ssub.s32 64, 64
          %303 = vsyncadd %s294, %s302
          %s304 = smul.addr %s300, 4
          %s305 = smul.addr %s304, 16
          %s306 = scalar_lea.hbm %s4, %s305
          %s308 = sshll.u32 %s297, 4
          %s309 = int_to_ptr.vmem [resolvable:$true] %s308
          %311 = dma.hbm_to_vmem [thread:$0]  %s306, 64, %s309, %s294
        $region36: #{tpu_custom_call.1} parent=19 // pred_fallthru
          _
      $region20: #{tpu_custom_call.1} parent=5 // pred_fallthru
        _
      %p312 = scmp.le.s32.totalorder 1, %s21
      %p313 = scmp.lt.s32.totalorder %s21, 9
      %p314 = pnand %p312, %p313
      %p315 = pneg %p314
      // Predicated region
      $region37: #{tpu_custom_call.1} parent=5 // pred_check
        _
      $region38: #{tpu_custom_call.1} parent=5 // pred_check_branch
        %317 = sbr.rel (%p314) target = $region40
      $region39: #{tpu_custom_call.1} parent=5 // pred_region
        %s318 = ssub.s32 %s21, 1
        // Predicated region
        $region41: #{tpu_custom_call.1} parent=39 // pred_check
          %p319 = pneg %p42
        $region42: #{tpu_custom_call.1} parent=39 // pred_check_branch
          %321 = sbr.rel (%p319) target = $region44
        $region43: #{tpu_custom_call.1} parent=39 // pred_region
          %322 = dma.done [#allocation3], 73728
        $region44: #{tpu_custom_call.1} parent=39 // pred_fallthru
          _
        %s323 = sand.u32 %s26, 1
        %s324 = scalar_lea.sflag [#allocation6], %s323
        %s325 = sand.u32 %s61, 1
        %s326 = smul.addr %s325, 216
        %s327 = scalar_lea.vmem [#allocation5], %s326
        // Predicated region
        $region45: #{tpu_custom_call.1} parent=39 // pred_check
          %p328 = pneg %p74
        $region46: #{tpu_custom_call.1} parent=39 // pred_check_branch
          %330 = sbr.rel (%p328) target = $region48
        $region47: #{tpu_custom_call.1} parent=39 // pred_region
          %331 = dma.done %s324, 3456
        $region48: #{tpu_custom_call.1} parent=39 // pred_fallthru
          _
        %s332 = sand.u32 %s26, 1
        %s333 = scalar_lea.sflag [#allocation6], %s332
        %s334 = sand.u32 %s125, 1
        %s335 = smul.addr %s334, 4096
        %s336 = scalar_lea.vmem [#allocation7], %s335
        // Predicated region
        $region49: #{tpu_custom_call.1} parent=39 // pred_check
          %p337 = pneg %p138
        $region50: #{tpu_custom_call.1} parent=39 // pred_check_branch
          %339 = sbr.rel (%p337) target = $region52
        $region51: #{tpu_custom_call.1} parent=39 // pred_region
          %340 = dma.done %s333, 65536
        $region52: #{tpu_custom_call.1} parent=39 // pred_fallthru
          _
        %s341 = sand.u32 %s157, 1
        %s342 = scalar_lea.sflag [#allocation9], %s341
        %s343 = sand.u32 %s157, 1
        %s344 = smul.addr %s343, 4
        %s345 = scalar_lea.vmem [#allocation8], %s344
        // Predicated region
        $region53: #{tpu_custom_call.1} parent=39 // pred_check
          %p346 = pneg %p170
        $region54: #{tpu_custom_call.1} parent=39 // pred_check_branch
          %348 = sbr.rel (%p346) target = $region56
        $region55: #{tpu_custom_call.1} parent=39 // pred_region
          %349 = dma.done %s342, 64
        $region56: #{tpu_custom_call.1} parent=39 // pred_fallthru
          _
        %p350 = pneg %p42
        %p351 = pneg %p39
        %s352 = sand.u32 %s26, 1
        %s353 = scalar_lea.sflag [#allocation6], %s352
        %s354 = sand.u32 %s61, 1
        %s355 = smul.addr %s354, 216
        %s356 = scalar_lea.vmem [#allocation5], %s355
        %p357 = pneg %p74
        %p358 = pneg %p71
        %s359 = ssub.s32 %s26, 4
        %p360 = scmp.gt.s32.totalorder %s359, 0
        %s361 = scalar_select %p360, %s359, 0
        %p362 = scmp.lt.s32.totalorder %s361, 3
        %s363 = scalar_select %p362, %s361, 3
        %s364 = smul.addr %s363, 36
        %s365 = smul.addr %s364, 8
        %s366 = scalar_lea.vmem %s2, %s365
        %p367 = pneg %p106
        %p368 = pneg %p103
        %s369 = sand.u32 %s26, 1
        %s370 = scalar_lea.sflag [#allocation6], %s369
        %s371 = sand.u32 %s125, 1
        %s372 = smul.addr %s371, 4096
        %s373 = scalar_lea.vmem [#allocation7], %s372
        %p374 = pneg %p138
        %p375 = pneg %p135
        %s376 = sand.u32 %s157, 1
        %s377 = scalar_lea.sflag [#allocation9], %s376
        %s378 = sand.u32 %s157, 1
        %s379 = smul.addr %s378, 4
        %s380 = scalar_lea.vmem [#allocation8], %s379
        %p381 = pneg %p170
        %p382 = pneg %p167
        %p383 = pneg %p196
        %p384 = pneg %p193
        %s385 = sand.u32 %s183, 1
        %s386 = scalar_lea.sflag [#allocation4], %s385
        %s387 = sand.u32 %s183, 1
        %s388 = smul.addr %s387, 576
        %s389 = scalar_lea.vmem [#allocation10], %s388
        %s390 = ssub.s32 %s26, 4
        %p391 = scmp.gt.s32.totalorder %s390, 0
        %s392 = scalar_select %p391, %s390, 0
        %s393 = ssub.s32 %s26, 4
        %p394 = scmp.gt.s32.totalorder %s393, 0
        %s395 = scalar_select %p394, %s393, 0
        %p396 = scmp.lt.s32.totalorder %s395, 3
        %s397 = scalar_select %p396, %s395, 3
        %s398 = smul.addr %s397, 36
        %s399 = smul.addr %s398, 8
        %s400 = scalar_lea.vmem %s2, %s399
        %s401 = ssub.s32 %s26, 4
        %p402 = scmp.gt.s32.totalorder %s401, 0
        %s403 = scalar_select %p402, %s401, 0
        %s404 = ssub.s32 %s26, 4
        %p405 = scmp.gt.s32.totalorder %s404, 0
        %s406 = scalar_select %p405, %s404, 0
        %s407 = ssub.s32 %s26, 4
        %p408 = scmp.gt.s32.totalorder %s407, 0
        %s409 = scalar_select %p408, %s407, 0
        %s410 = smul.u32 4, %s26
        %p411 = scmp.eq.s32.totalorder %s26, 0
        // Predicated region
        $region57: #{tpu_custom_call.1} parent=39 // pred_check
          %p412 = pneg %p411
        $region58: #{tpu_custom_call.1} parent=39 // pred_check_branch
          %414 = sbr.rel (%p412) target = $region60
        $region59: #{tpu_custom_call.1} parent=39 // pred_region
          %v415 = vld [vmem:[#allocation2] sm:$0xff]
          %v416 = vld [vmem:[#allocation2 + $0x8] sm:$0xff]
          %v417 = vld [vmem:[#allocation2 + $0x10] sm:$0xff]
          %v418 = vld [vmem:[#allocation2 + $0x18] sm:$0xff]
          %v419 = vld [vmem:[#allocation2 + $0x80] sm:$0xff]
          %v420 = vld [vmem:[#allocation2 + $0x88] sm:$0xff]
          %v421 = vld [vmem:[#allocation2 + $0x90] sm:$0xff]
          %v422 = vld [vmem:[#allocation2 + $0x98] sm:$0xff]
          %v423 = vld [vmem:[#allocation2 + $0x100] sm:$0xff]
          %v424 = vld [vmem:[#allocation2 + $0x108] sm:$0xff]
          %v425 = vld [vmem:[#allocation2 + $0x110] sm:$0xff]
          %v426 = vld [vmem:[#allocation2 + $0x118] sm:$0xff]
          %v427 = vld [vmem:[#allocation2 + $0x180] sm:$0xff]
          %v428 = vld [vmem:[#allocation2 + $0x188] sm:$0xff]
          %v429 = vld [vmem:[#allocation2 + $0x190] sm:$0xff]
          %v430 = vld [vmem:[#allocation2 + $0x198] sm:$0xff]
          %v431 = vld [vmem:[#allocation2 + $0x200] sm:$0xff]
          %v432 = vld [vmem:[#allocation2 + $0x208] sm:$0xff]
          %v433 = vld [vmem:[#allocation2 + $0x210] sm:$0xff]
          %v434 = vld [vmem:[#allocation2 + $0x218] sm:$0xff]
          %v435 = vld [vmem:[#allocation2 + $0x280] sm:$0xff]
          %v436 = vld [vmem:[#allocation2 + $0x288] sm:$0xff]
          %v437 = vld [vmem:[#allocation2 + $0x290] sm:$0xff]
          %v438 = vld [vmem:[#allocation2 + $0x298] sm:$0xff]
          %v439 = vld [vmem:[#allocation2 + $0x300] sm:$0xff]
          %v440 = vld [vmem:[#allocation2 + $0x308] sm:$0xff]
          %v441 = vld [vmem:[#allocation2 + $0x310] sm:$0xff]
          %v442 = vld [vmem:[#allocation2 + $0x318] sm:$0xff]
          %v443 = vld [vmem:[#allocation2 + $0x380] sm:$0xff]
          %v444 = vld [vmem:[#allocation2 + $0x388] sm:$0xff]
          %v445 = vld [vmem:[#allocation2 + $0x390] sm:$0xff]
          %v446 = vld [vmem:[#allocation2 + $0x398] sm:$0xff]
          %v447 = vld [vmem:[#allocation2 + $0x400] sm:$0xff]
          %v448 = vld [vmem:[#allocation2 + $0x408] sm:$0xff]
          %v449 = vld [vmem:[#allocation2 + $0x410] sm:$0xff]
          %v450 = vld [vmem:[#allocation2 + $0x418] sm:$0xff]
          %v451 = vld [vmem:[#allocation2 + $0x480] sm:$0xff]
          %v452 = vld [vmem:[#allocation2 + $0x488] sm:$0xff]
          %v453 = vld [vmem:[#allocation2 + $0x490] sm:$0xff]
          %v454 = vld [vmem:[#allocation2 + $0x498] sm:$0xff]
          %v455 = vld [vmem:[#allocation2 + $0x500] sm:$0xff]
          %v456 = vld [vmem:[#allocation2 + $0x508] sm:$0xff]
          %v457 = vld [vmem:[#allocation2 + $0x510] sm:$0xff]
          %v458 = vld [vmem:[#allocation2 + $0x518] sm:$0xff]
          %v459 = vld [vmem:[#allocation2 + $0x580] sm:$0xff]
          %v460 = vld [vmem:[#allocation2 + $0x588] sm:$0xff]
          %v461 = vld [vmem:[#allocation2 + $0x590] sm:$0xff]
          %v462 = vld [vmem:[#allocation2 + $0x598] sm:$0xff]
          %v463 = vld [vmem:[#allocation2 + $0x600] sm:$0xff]
          %v464 = vld [vmem:[#allocation2 + $0x608] sm:$0xff]
          %v465 = vld [vmem:[#allocation2 + $0x610] sm:$0xff]
          %v466 = vld [vmem:[#allocation2 + $0x618] sm:$0xff]
          %v467 = vld [vmem:[#allocation2 + $0x680] sm:$0xff]
          %v468 = vld [vmem:[#allocation2 + $0x688] sm:$0xff]
          %v469 = vld [vmem:[#allocation2 + $0x690] sm:$0xff]
          %v470 = vld [vmem:[#allocation2 + $0x698] sm:$0xff]
          %v471 = vld [vmem:[#allocation2 + $0x700] sm:$0xff]
          %v472 = vld [vmem:[#allocation2 + $0x708] sm:$0xff]
          %v473 = vld [vmem:[#allocation2 + $0x710] sm:$0xff]
          %v474 = vld [vmem:[#allocation2 + $0x718] sm:$0xff]
          %v475 = vld [vmem:[#allocation2 + $0x780] sm:$0xff]
          %v476 = vld [vmem:[#allocation2 + $0x788] sm:$0xff]
          %v477 = vld [vmem:[#allocation2 + $0x790] sm:$0xff]
          %v478 = vld [vmem:[#allocation2 + $0x798] sm:$0xff]
          %v479 = vld [vmem:[#allocation2 + $0x800] sm:$0xff]
          %v480 = vld [vmem:[#allocation2 + $0x808] sm:$0xff]
          %v481 = vld [vmem:[#allocation2 + $0x810] sm:$0xff]
          %v482 = vld [vmem:[#allocation2 + $0x818] sm:$0xff]
          %v483 = vld [vmem:[#allocation2 + $0x880] sm:$0xff]
          %v484 = vld [vmem:[#allocation2 + $0x888] sm:$0xff]
          %v485 = vld [vmem:[#allocation2 + $0x890] sm:$0xff]
          %v486 = vld [vmem:[#allocation2 + $0x898] sm:$0xff]
          %v487 = vld [vmem:[#allocation2 + $0x900] sm:$0xff]
          %v488 = vld [vmem:[#allocation2 + $0x908] sm:$0xff]
          %v489 = vld [vmem:[#allocation2 + $0x910] sm:$0xff]
          %v490 = vld [vmem:[#allocation2 + $0x918] sm:$0xff]
          %v491 = vld [vmem:[#allocation2 + $0x980] sm:$0xff]
          %v492 = vld [vmem:[#allocation2 + $0x988] sm:$0xff]
          %v493 = vld [vmem:[#allocation2 + $0x990] sm:$0xff]
          %v494 = vld [vmem:[#allocation2 + $0x998] sm:$0xff]
          %v495 = vld [vmem:[#allocation2 + $0xa00] sm:$0xff]
          %v496 = vld [vmem:[#allocation2 + $0xa08] sm:$0xff]
          %v497 = vld [vmem:[#allocation2 + $0xa10] sm:$0xff]
          %v498 = vld [vmem:[#allocation2 + $0xa18] sm:$0xff]
          %v499 = vld [vmem:[#allocation2 + $0xa80] sm:$0xff]
          %v500 = vld [vmem:[#allocation2 + $0xa88] sm:$0xff]
          %v501 = vld [vmem:[#allocation2 + $0xa90] sm:$0xff]
          %v502 = vld [vmem:[#allocation2 + $0xa98] sm:$0xff]
          %v503 = vld [vmem:[#allocation2 + $0xb00] sm:$0xff]
          %v504 = vld [vmem:[#allocation2 + $0xb08] sm:$0xff]
          %v505 = vld [vmem:[#allocation2 + $0xb10] sm:$0xff]
          %v506 = vld [vmem:[#allocation2 + $0xb18] sm:$0xff]
          %v507 = vld [vmem:[#allocation2 + $0xb80] sm:$0xff]
          %v508 = vld [vmem:[#allocation2 + $0xb88] sm:$0xff]
          %v509 = vld [vmem:[#allocation2 + $0xb90] sm:$0xff]
          %v510 = vld [vmem:[#allocation2 + $0xb98] sm:$0xff]
          %v511 = vld [vmem:[#allocation2 + $0xc00] sm:$0xff]
          %v512 = vld [vmem:[#allocation2 + $0xc08] sm:$0xff]
          %v513 = vld [vmem:[#allocation2 + $0xc10] sm:$0xff]
          %v514 = vld [vmem:[#allocation2 + $0xc18] sm:$0xff]
          %v515 = vld [vmem:[#allocation2 + $0xc80] sm:$0xff]
          %v516 = vld [vmem:[#allocation2 + $0xc88] sm:$0xff]
          %v517 = vld [vmem:[#allocation2 + $0xc90] sm:$0xff]
          %v518 = vld [vmem:[#allocation2 + $0xc98] sm:$0xff]
          %v519 = vld [vmem:[#allocation2 + $0xd00] sm:$0xff]
          %v520 = vld [vmem:[#allocation2 + $0xd08] sm:$0xff]
          %v521 = vld [vmem:[#allocation2 + $0xd10] sm:$0xff]
          %v522 = vld [vmem:[#allocation2 + $0xd18] sm:$0xff]
          %v523 = vld [vmem:[#allocation2 + $0xd80] sm:$0xff]
          %v524 = vld [vmem:[#allocation2 + $0xd88] sm:$0xff]
          %v525 = vld [vmem:[#allocation2 + $0xd90] sm:$0xff]
          %v526 = vld [vmem:[#allocation2 + $0xd98] sm:$0xff]
          %v527 = vld [vmem:[#allocation2 + $0xe00] sm:$0xff]
          %v528 = vld [vmem:[#allocation2 + $0xe08] sm:$0xff]
          %v529 = vld [vmem:[#allocation2 + $0xe10] sm:$0xff]
          %v530 = vld [vmem:[#allocation2 + $0xe18] sm:$0xff]
          %v531 = vld [vmem:[#allocation2 + $0xe80] sm:$0xff]
          %v532 = vld [vmem:[#allocation2 + $0xe88] sm:$0xff]
          %v533 = vld [vmem:[#allocation2 + $0xe90] sm:$0xff]
          %v534 = vld [vmem:[#allocation2 + $0xe98] sm:$0xff]
          %v535 = vld [vmem:[#allocation2 + $0xf00] sm:$0xff]
          %v536 = vld [vmem:[#allocation2 + $0xf08] sm:$0xff]
          %v537 = vld [vmem:[#allocation2 + $0xf10] sm:$0xff]
          %v538 = vld [vmem:[#allocation2 + $0xf18] sm:$0xff]
          %v539 = vld [vmem:[#allocation2 + $0xf80] sm:$0xff]
          %v540 = vld [vmem:[#allocation2 + $0xf88] sm:$0xff]
          %v541 = vld [vmem:[#allocation2 + $0xf90] sm:$0xff]
          %v542 = vld [vmem:[#allocation2 + $0xf98] sm:$0xff]
          %v543 = vld [vmem:[#allocation2 + $0x1000] sm:$0xff]
          %v544 = vld [vmem:[#allocation2 + $0x1008] sm:$0xff]
          %v545 = vld [vmem:[#allocation2 + $0x1010] sm:$0xff]
          %v546 = vld [vmem:[#allocation2 + $0x1018] sm:$0xff]
          %v547 = vld [vmem:[#allocation2 + $0x1080] sm:$0xff]
          %v548 = vld [vmem:[#allocation2 + $0x1088] sm:$0xff]
          %v549 = vld [vmem:[#allocation2 + $0x1090] sm:$0xff]
          %v550 = vld [vmem:[#allocation2 + $0x1098] sm:$0xff]
          %v551 = vld [vmem:[#allocation2 + $0x1100] sm:$0xff]
          %v552 = vld [vmem:[#allocation2 + $0x1108] sm:$0xff]
          %v553 = vld [vmem:[#allocation2 + $0x1110] sm:$0xff]
          %v554 = vld [vmem:[#allocation2 + $0x1118] sm:$0xff]
          %v555 = vld [vmem:[#allocation2 + $0x1180] sm:$0xff]
          %v556 = vld [vmem:[#allocation2 + $0x1188] sm:$0xff]
          %v557 = vld [vmem:[#allocation2 + $0x1190] sm:$0xff]
          %v558 = vld [vmem:[#allocation2 + $0x1198] sm:$0xff]
          %v559 = vpack.c.bf16 %v419, %v415
          %v560 = vpack.c.bf16 %v420, %v416
          %v561 = vpack.c.bf16 %v421, %v417
          %v562 = vpack.c.bf16 %v422, %v418
          %v563 = vpack.c.bf16 %v427, %v423
          %v564 = vpack.c.bf16 %v428, %v424
          %v565 = vpack.c.bf16 %v429, %v425
          %v566 = vpack.c.bf16 %v430, %v426
          %v567 = vpack.c.bf16 %v435, %v431
          %v568 = vpack.c.bf16 %v436, %v432
          %v569 = vpack.c.bf16 %v437, %v433
          %v570 = vpack.c.bf16 %v438, %v434
          %v571 = vpack.c.bf16 %v443, %v439
          %v572 = vpack.c.bf16 %v444, %v440
          %v573 = vpack.c.bf16 %v445, %v441
          %v574 = vpack.c.bf16 %v446, %v442
          %v575 = vpack.c.bf16 %v451, %v447
          %v576 = vpack.c.bf16 %v452, %v448
          %v577 = vpack.c.bf16 %v453, %v449
          %v578 = vpack.c.bf16 %v454, %v450
          %v579 = vpack.c.bf16 %v459, %v455
          %v580 = vpack.c.bf16 %v460, %v456
          %v581 = vpack.c.bf16 %v461, %v457
          %v582 = vpack.c.bf16 %v462, %v458
          %v583 = vpack.c.bf16 %v467, %v463
          %v584 = vpack.c.bf16 %v468, %v464
          %v585 = vpack.c.bf16 %v469, %v465
          %v586 = vpack.c.bf16 %v470, %v466
          %v587 = vpack.c.bf16 %v475, %v471
          %v588 = vpack.c.bf16 %v476, %v472
          %v589 = vpack.c.bf16 %v477, %v473
          %v590 = vpack.c.bf16 %v478, %v474
          %v591 = vpack.c.bf16 %v483, %v479
          %v592 = vpack.c.bf16 %v484, %v480
          %v593 = vpack.c.bf16 %v485, %v481
          %v594 = vpack.c.bf16 %v486, %v482
          %v595 = vpack.c.bf16 %v491, %v487
          %v596 = vpack.c.bf16 %v492, %v488
          %v597 = vpack.c.bf16 %v493, %v489
          %v598 = vpack.c.bf16 %v494, %v490
          %v599 = vpack.c.bf16 %v499, %v495
          %v600 = vpack.c.bf16 %v500, %v496
          %v601 = vpack.c.bf16 %v501, %v497
          %v602 = vpack.c.bf16 %v502, %v498
          %v603 = vpack.c.bf16 %v507, %v503
          %v604 = vpack.c.bf16 %v508, %v504
          %v605 = vpack.c.bf16 %v509, %v505
          %v606 = vpack.c.bf16 %v510, %v506
          %v607 = vpack.c.bf16 %v515, %v511
          %v608 = vpack.c.bf16 %v516, %v512
          %v609 = vpack.c.bf16 %v517, %v513
          %v610 = vpack.c.bf16 %v518, %v514
          %v611 = vpack.c.bf16 %v523, %v519
          %v612 = vpack.c.bf16 %v524, %v520
          %v613 = vpack.c.bf16 %v525, %v521
          %v614 = vpack.c.bf16 %v526, %v522
          %v615 = vpack.c.bf16 %v531, %v527
          %v616 = vpack.c.bf16 %v532, %v528
          %v617 = vpack.c.bf16 %v533, %v529
          %v618 = vpack.c.bf16 %v534, %v530
          %v619 = vpack.c.bf16 %v539, %v535
          %v620 = vpack.c.bf16 %v540, %v536
          %v621 = vpack.c.bf16 %v541, %v537
          %v622 = vpack.c.bf16 %v542, %v538
          %v623 = vpack.c.bf16 %v547, %v543
          %v624 = vpack.c.bf16 %v548, %v544
          %v625 = vpack.c.bf16 %v549, %v545
          %v626 = vpack.c.bf16 %v550, %v546
          %v627 = vpack.c.bf16 %v555, %v551
          %v628 = vpack.c.bf16 %v556, %v552
          %v629 = vpack.c.bf16 %v557, %v553
          %v630 = vpack.c.bf16 %v558, %v554
          %v703 = vunpack.c.l.b16 %v559
          %v704 = vunpack.c.l.b16 %v560
          %v705 = vunpack.c.l.b16 %v561
          %v706 = vunpack.c.l.b16 %v562
          %v707 = vunpack.c.h.b16 %v559
          %v708 = vunpack.c.h.b16 %v560
          %v709 = vunpack.c.h.b16 %v561
          %v710 = vunpack.c.h.b16 %v562
          %v711 = vunpack.c.l.b16 %v563
          %v712 = vunpack.c.l.b16 %v564
          %v713 = vunpack.c.l.b16 %v565
          %v714 = vunpack.c.l.b16 %v566
          %v715 = vunpack.c.h.b16 %v563
          %v716 = vunpack.c.h.b16 %v564
          %v717 = vunpack.c.h.b16 %v565
          %v718 = vunpack.c.h.b16 %v566
          %v719 = vunpack.c.l.b16 %v567
          %v720 = vunpack.c.l.b16 %v568
          %v721 = vunpack.c.l.b16 %v569
          %v722 = vunpack.c.l.b16 %v570
          %v723 = vunpack.c.h.b16 %v567
          %v724 = vunpack.c.h.b16 %v568
          %v725 = vunpack.c.h.b16 %v569
          %v726 = vunpack.c.h.b16 %v570
          %v727 = vunpack.c.l.b16 %v571
          %v728 = vunpack.c.l.b16 %v572
          %v729 = vunpack.c.l.b16 %v573
          %v730 = vunpack.c.l.b16 %v574
          %v731 = vunpack.c.h.b16 %v571
          %v732 = vunpack.c.h.b16 %v572
          %v733 = vunpack.c.h.b16 %v573
          %v734 = vunpack.c.h.b16 %v574
          %v735 = vunpack.c.l.b16 %v575
          %v736 = vunpack.c.l.b16 %v576
          %v737 = vunpack.c.l.b16 %v577
          %v738 = vunpack.c.l.b16 %v578
          %v739 = vunpack.c.h.b16 %v575
          %v740 = vunpack.c.h.b16 %v576
          %v741 = vunpack.c.h.b16 %v577
          %v742 = vunpack.c.h.b16 %v578
          %v743 = vunpack.c.l.b16 %v579
          %v744 = vunpack.c.l.b16 %v580
          %v745 = vunpack.c.l.b16 %v581
          %v746 = vunpack.c.l.b16 %v582
          %v747 = vunpack.c.h.b16 %v579
          %v748 = vunpack.c.h.b16 %v580
          %v749 = vunpack.c.h.b16 %v581
          %v750 = vunpack.c.h.b16 %v582
          %v751 = vunpack.c.l.b16 %v583
          %v752 = vunpack.c.l.b16 %v584
          %v753 = vunpack.c.l.b16 %v585
          %v754 = vunpack.c.l.b16 %v586
          %v755 = vunpack.c.h.b16 %v583
          %v756 = vunpack.c.h.b16 %v584
          %v757 = vunpack.c.h.b16 %v585
          %v758 = vunpack.c.h.b16 %v586
          %v759 = vunpack.c.l.b16 %v587
          %v760 = vunpack.c.l.b16 %v588
          %v761 = vunpack.c.l.b16 %v589
          %v762 = vunpack.c.l.b16 %v590
          %v763 = vunpack.c.h.b16 %v587
          %v764 = vunpack.c.h.b16 %v588
          %v765 = vunpack.c.h.b16 %v589
          %v766 = vunpack.c.h.b16 %v590
          %v767 = vunpack.c.l.b16 %v591
          %v768 = vunpack.c.l.b16 %v592
          %v769 = vunpack.c.l.b16 %v593
          %v770 = vunpack.c.l.b16 %v594
          %v771 = vunpack.c.h.b16 %v591
          %v772 = vunpack.c.h.b16 %v592
          %v773 = vunpack.c.h.b16 %v593
          %v774 = vunpack.c.h.b16 %v594
          %v775 = vunpack.c.l.b16 %v595
          %v776 = vunpack.c.l.b16 %v596
          %v777 = vunpack.c.l.b16 %v597
          %v778 = vunpack.c.l.b16 %v598
          %v779 = vunpack.c.h.b16 %v595
          %v780 = vunpack.c.h.b16 %v596
          %v781 = vunpack.c.h.b16 %v597
          %v782 = vunpack.c.h.b16 %v598
          %v783 = vunpack.c.l.b16 %v599
          %v784 = vunpack.c.l.b16 %v600
          %v785 = vunpack.c.l.b16 %v601
          %v786 = vunpack.c.l.b16 %v602
          %v787 = vunpack.c.h.b16 %v599
          %v788 = vunpack.c.h.b16 %v600
          %v789 = vunpack.c.h.b16 %v601
          %v790 = vunpack.c.h.b16 %v602
          %v791 = vunpack.c.l.b16 %v603
          %v792 = vunpack.c.l.b16 %v604
          %v793 = vunpack.c.l.b16 %v605
          %v794 = vunpack.c.l.b16 %v606
          %v795 = vunpack.c.h.b16 %v603
          %v796 = vunpack.c.h.b16 %v604
          %v797 = vunpack.c.h.b16 %v605
          %v798 = vunpack.c.h.b16 %v606
          %v799 = vunpack.c.l.b16 %v607
          %v800 = vunpack.c.l.b16 %v608
          %v801 = vunpack.c.l.b16 %v609
          %v802 = vunpack.c.l.b16 %v610
          %v803 = vunpack.c.h.b16 %v607
          %v804 = vunpack.c.h.b16 %v608
          %v805 = vunpack.c.h.b16 %v609
          %v806 = vunpack.c.h.b16 %v610
          %v807 = vunpack.c.l.b16 %v611
          %v808 = vunpack.c.l.b16 %v612
          %v809 = vunpack.c.l.b16 %v613
          %v810 = vunpack.c.l.b16 %v614
          %v811 = vunpack.c.h.b16 %v611
          %v812 = vunpack.c.h.b16 %v612
          %v813 = vunpack.c.h.b16 %v613
          %v814 = vunpack.c.h.b16 %v614
          %v815 = vunpack.c.l.b16 %v615
          %v816 = vunpack.c.l.b16 %v616
          %v817 = vunpack.c.l.b16 %v617
          %v818 = vunpack.c.l.b16 %v618
          %v819 = vunpack.c.h.b16 %v615
          %v820 = vunpack.c.h.b16 %v616
          %v821 = vunpack.c.h.b16 %v617
          %v822 = vunpack.c.h.b16 %v618
          %v823 = vunpack.c.l.b16 %v619
          %v824 = vunpack.c.l.b16 %v620
          %v825 = vunpack.c.l.b16 %v621
          %v826 = vunpack.c.l.b16 %v622
          %v827 = vunpack.c.h.b16 %v619
          %v828 = vunpack.c.h.b16 %v620
          %v829 = vunpack.c.h.b16 %v621
          %v830 = vunpack.c.h.b16 %v622
          %v831 = vunpack.c.l.b16 %v623
          %v832 = vunpack.c.l.b16 %v624
          %v833 = vunpack.c.l.b16 %v625
          %v834 = vunpack.c.l.b16 %v626
          %v835 = vunpack.c.h.b16 %v623
          %v836 = vunpack.c.h.b16 %v624
          %v837 = vunpack.c.h.b16 %v625
          %v838 = vunpack.c.h.b16 %v626
          %v839 = vunpack.c.l.b16 %v627
          %v840 = vunpack.c.l.b16 %v628
          %v841 = vunpack.c.l.b16 %v629
          %v842 = vunpack.c.l.b16 %v630
          %v843 = vunpack.c.h.b16 %v627
          %v844 = vunpack.c.h.b16 %v628
          %v845 = vunpack.c.h.b16 %v629
          %v846 = vunpack.c.h.b16 %v630
          %v847 = vpack.c.b16 %v704, %v703
          %v848 = vpack.c.b16 %v706, %v705
          %v849 = vpack.c.b16 %v708, %v707
          %v850 = vpack.c.b16 %v710, %v709
          %v851 = vpack.c.b16 %v712, %v711
          %v852 = vpack.c.b16 %v714, %v713
          %v853 = vpack.c.b16 %v716, %v715
          %v854 = vpack.c.b16 %v718, %v717
          %v855 = vpack.c.b16 %v720, %v719
          %v856 = vpack.c.b16 %v722, %v721
          %v857 = vpack.c.b16 %v724, %v723
          %v858 = vpack.c.b16 %v726, %v725
          %v859 = vpack.c.b16 %v728, %v727
          %v860 = vpack.c.b16 %v730, %v729
          %v861 = vpack.c.b16 %v732, %v731
          %v862 = vpack.c.b16 %v734, %v733
          %v863 = vpack.c.b16 %v736, %v735
          %v864 = vpack.c.b16 %v738, %v737
          %v865 = vpack.c.b16 %v740, %v739
          %v866 = vpack.c.b16 %v742, %v741
          %v867 = vpack.c.b16 %v744, %v743
          %v868 = vpack.c.b16 %v746, %v745
          %v869 = vpack.c.b16 %v748, %v747
          %v870 = vpack.c.b16 %v750, %v749
          %v871 = vpack.c.b16 %v752, %v751
          %v872 = vpack.c.b16 %v754, %v753
          %v873 = vpack.c.b16 %v756, %v755
          %v874 = vpack.c.b16 %v758, %v757
          %v875 = vpack.c.b16 %v760, %v759
          %v876 = vpack.c.b16 %v762, %v761
          %v877 = vpack.c.b16 %v764, %v763
          %v878 = vpack.c.b16 %v766, %v765
          %v879 = vpack.c.b16 %v768, %v767
          %v880 = vpack.c.b16 %v770, %v769
          %v881 = vpack.c.b16 %v772, %v771
          %v882 = vpack.c.b16 %v774, %v773
          %v883 = vpack.c.b16 %v776, %v775
          %v884 = vpack.c.b16 %v778, %v777
          %v885 = vpack.c.b16 %v780, %v779
          %v886 = vpack.c.b16 %v782, %v781
          %v887 = vpack.c.b16 %v784, %v783
          %v888 = vpack.c.b16 %v786, %v785
          %v889 = vpack.c.b16 %v788, %v787
          %v890 = vpack.c.b16 %v790, %v789
          %v891 = vpack.c.b16 %v792, %v791
          %v892 = vpack.c.b16 %v794, %v793
          %v893 = vpack.c.b16 %v796, %v795
          %v894 = vpack.c.b16 %v798, %v797
          %v895 = vpack.c.b16 %v800, %v799
          %v896 = vpack.c.b16 %v802, %v801
          %v897 = vpack.c.b16 %v804, %v803
          %v898 = vpack.c.b16 %v806, %v805
          %v899 = vpack.c.b16 %v808, %v807
          %v900 = vpack.c.b16 %v810, %v809
          %v901 = vpack.c.b16 %v812, %v811
          %v902 = vpack.c.b16 %v814, %v813
          %v903 = vpack.c.b16 %v816, %v815
          %v904 = vpack.c.b16 %v818, %v817
          %v905 = vpack.c.b16 %v820, %v819
          %v906 = vpack.c.b16 %v822, %v821
          %v907 = vpack.c.b16 %v824, %v823
          %v908 = vpack.c.b16 %v826, %v825
          %v909 = vpack.c.b16 %v828, %v827
          %v910 = vpack.c.b16 %v830, %v829
          %v911 = vpack.c.b16 %v832, %v831
          %v912 = vpack.c.b16 %v834, %v833
          %v913 = vpack.c.b16 %v836, %v835
          %v914 = vpack.c.b16 %v838, %v837
          %v915 = vpack.c.b16 %v840, %v839
          %v916 = vpack.c.b16 %v842, %v841
          %v917 = vpack.c.b16 %v844, %v843
          %v918 = vpack.c.b16 %v846, %v845
          %991 = vst [vmem:[%s389] sm:$0xff] %v847
          %992 = vst [vmem:[%s389 + $0x8] sm:$0xff] %v848
          %993 = vst [vmem:[%s389 + $0x10] sm:$0xff] %v849
          %994 = vst [vmem:[%s389 + $0x18] sm:$0xff] %v850
          %995 = vst [vmem:[%s389 + $0x20] sm:$0xff] %v851
          %996 = vst [vmem:[%s389 + $0x28] sm:$0xff] %v852
          %997 = vst [vmem:[%s389 + $0x30] sm:$0xff] %v853
          %998 = vst [vmem:[%s389 + $0x38] sm:$0xff] %v854
          %999 = vst [vmem:[%s389 + $0x40] sm:$0xff] %v855
          %1000 = vst [vmem:[%s389 + $0x48] sm:$0xff] %v856
          %1001 = vst [vmem:[%s389 + $0x50] sm:$0xff] %v857
          %1002 = vst [vmem:[%s389 + $0x58] sm:$0xff] %v858
          %1003 = vst [vmem:[%s389 + $0x60] sm:$0xff] %v859
          %1004 = vst [vmem:[%s389 + $0x68] sm:$0xff] %v860
          %1005 = vst [vmem:[%s389 + $0x70] sm:$0xff] %v861
          %1006 = vst [vmem:[%s389 + $0x78] sm:$0xff] %v862
          %1007 = vst [vmem:[%s389 + $0x80] sm:$0xff] %v863
          %1008 = vst [vmem:[%s389 + $0x88] sm:$0xff] %v864
          %1009 = vst [vmem:[%s389 + $0x90] sm:$0xff] %v865
          %1010 = vst [vmem:[%s389 + $0x98] sm:$0xff] %v866
          %1011 = vst [vmem:[%s389 + $0xa0] sm:$0xff] %v867
          %1012 = vst [vmem:[%s389 + $0xa8] sm:$0xff] %v868
          %1013 = vst [vmem:[%s389 + $0xb0] sm:$0xff] %v869
          %1014 = vst [vmem:[%s389 + $0xb8] sm:$0xff] %v870
          %1015 = vst [vmem:[%s389 + $0xc0] sm:$0xff] %v871
          %1016 = vst [vmem:[%s389 + $0xc8] sm:$0xff] %v872
          %1017 = vst [vmem:[%s389 + $0xd0] sm:$0xff] %v873
          %1018 = vst [vmem:[%s389 + $0xd8] sm:$0xff] %v874
          %1019 = vst [vmem:[%s389 + $0xe0] sm:$0xff] %v875
          %1020 = vst [vmem:[%s389 + $0xe8] sm:$0xff] %v876
          %1021 = vst [vmem:[%s389 + $0xf0] sm:$0xff] %v877
          %1022 = vst [vmem:[%s389 + $0xf8] sm:$0xff] %v878
          %1023 = vst [vmem:[%s389 + $0x100] sm:$0xff] %v879
          %1024 = vst [vmem:[%s389 + $0x108] sm:$0xff] %v880
          %1025 = vst [vmem:[%s389 + $0x110] sm:$0xff] %v881
          %1026 = vst [vmem:[%s389 + $0x118] sm:$0xff] %v882
          %1027 = vst [vmem:[%s389 + $0x120] sm:$0xff] %v883
          %1028 = vst [vmem:[%s389 + $0x128] sm:$0xff] %v884
          %1029 = vst [vmem:[%s389 + $0x130] sm:$0xff] %v885
          %1030 = vst [vmem:[%s389 + $0x138] sm:$0xff] %v886
          %1031 = vst [vmem:[%s389 + $0x140] sm:$0xff] %v887
          %1032 = vst [vmem:[%s389 + $0x148] sm:$0xff] %v888
          %1033 = vst [vmem:[%s389 + $0x150] sm:$0xff] %v889
          %1034 = vst [vmem:[%s389 + $0x158] sm:$0xff] %v890
          %1035 = vst [vmem:[%s389 + $0x160] sm:$0xff] %v891
          %1036 = vst [vmem:[%s389 + $0x168] sm:$0xff] %v892
          %1037 = vst [vmem:[%s389 + $0x170] sm:$0xff] %v893
          %1038 = vst [vmem:[%s389 + $0x178] sm:$0xff] %v894
          %1039 = vst [vmem:[%s389 + $0x180] sm:$0xff] %v895
          %1040 = vst [vmem:[%s389 + $0x188] sm:$0xff] %v896
          %1041 = vst [vmem:[%s389 + $0x190] sm:$0xff] %v897
          %1042 = vst [vmem:[%s389 + $0x198] sm:$0xff] %v898
          %1043 = vst [vmem:[%s389 + $0x1a0] sm:$0xff] %v899
          %1044 = vst [vmem:[%s389 + $0x1a8] sm:$0xff] %v900
          %1045 = vst [vmem:[%s389 + $0x1b0] sm:$0xff] %v901
          %1046 = vst [vmem:[%s389 + $0x1b8] sm:$0xff] %v902
          %1047 = vst [vmem:[%s389 + $0x1c0] sm:$0xff] %v903
          %1048 = vst [vmem:[%s389 + $0x1c8] sm:$0xff] %v904
          %1049 = vst [vmem:[%s389 + $0x1d0] sm:$0xff] %v905
          %1050 = vst [vmem:[%s389 + $0x1d8] sm:$0xff] %v906
          %1051 = vst [vmem:[%s389 + $0x1e0] sm:$0xff] %v907
          %1052 = vst [vmem:[%s389 + $0x1e8] sm:$0xff] %v908
          %1053 = vst [vmem:[%s389 + $0x1f0] sm:$0xff] %v909
          %1054 = vst [vmem:[%s389 + $0x1f8] sm:$0xff] %v910
          %1055 = vst [vmem:[%s389 + $0x200] sm:$0xff] %v911
          %1056 = vst [vmem:[%s389 + $0x208] sm:$0xff] %v912
          %1057 = vst [vmem:[%s389 + $0x210] sm:$0xff] %v913
          %1058 = vst [vmem:[%s389 + $0x218] sm:$0xff] %v914
          %1059 = vst [vmem:[%s389 + $0x220] sm:$0xff] %v915
          %1060 = vst [vmem:[%s389 + $0x228] sm:$0xff] %v916
          %1061 = vst [vmem:[%s389 + $0x230] sm:$0xff] %v917
          %1062 = vst [vmem:[%s389 + $0x238] sm:$0xff] %v918
        $region60: #{tpu_custom_call.1} parent=39 // pred_fallthru
          _
        %p1063 = scmp.eq.s32.totalorder %s26, 1
        // Predicated region
        $region61: #{tpu_custom_call.1} parent=39 // pred_check
          %p1064 = pneg %p1063
        $region62: #{tpu_custom_call.1} parent=39 // pred_check_branch
          %1066 = sbr.rel (%p1064) target = $region64
        $region63: #{tpu_custom_call.1} parent=39 // pred_region
          %v1067 = vld [vmem:[#allocation2 + $0x20] sm:$0xff]
          %v1068 = vld [vmem:[#allocation2 + $0x28] sm:$0xff]
          %v1069 = vld [vmem:[#allocation2 + $0x30] sm:$0xff]
          %v1070 = vld [vmem:[#allocation2 + $0x38] sm:$0xff]
          %v1071 = vld [vmem:[#allocation2 + $0xa0] sm:$0xff]
          %v1072 = vld [vmem:[#allocation2 + $0xa8] sm:$0xff]
          %v1073 = vld [vmem:[#allocation2 + $0xb0] sm:$0xff]
          %v1074 = vld [vmem:[#allocation2 + $0xb8] sm:$0xff]
          %v1075 = vld [vmem:[#allocation2 + $0x120] sm:$0xff]
          %v1076 = vld [vmem:[#allocation2 + $0x128] sm:$0xff]
          %v1077 = vld [vmem:[#allocation2 + $0x130] sm:$0xff]
          %v1078 = vld [vmem:[#allocation2 + $0x138] sm:$0xff]
          %v1079 = vld [vmem:[#allocation2 + $0x1a0] sm:$0xff]
          %v1080 = vld [vmem:[#allocation2 + $0x1a8] sm:$0xff]
          %v1081 = vld [vmem:[#allocation2 + $0x1b0] sm:$0xff]
          %v1082 = vld [vmem:[#allocation2 + $0x1b8] sm:$0xff]
          %v1083 = vld [vmem:[#allocation2 + $0x220] sm:$0xff]
          %v1084 = vld [vmem:[#allocation2 + $0x228] sm:$0xff]
          %v1085 = vld [vmem:[#allocation2 + $0x230] sm:$0xff]
          %v1086 = vld [vmem:[#allocation2 + $0x238] sm:$0xff]
          %v1087 = vld [vmem:[#allocation2 + $0x2a0] sm:$0xff]
          %v1088 = vld [vmem:[#allocation2 + $0x2a8] sm:$0xff]
          %v1089 = vld [vmem:[#allocation2 + $0x2b0] sm:$0xff]
          %v1090 = vld [vmem:[#allocation2 + $0x2b8] sm:$0xff]
          %v1091 = vld [vmem:[#allocation2 + $0x320] sm:$0xff]
          %v1092 = vld [vmem:[#allocation2 + $0x328] sm:$0xff]
          %v1093 = vld [vmem:[#allocation2 + $0x330] sm:$0xff]
          %v1094 = vld [vmem:[#allocation2 + $0x338] sm:$0xff]
          %v1095 = vld [vmem:[#allocation2 + $0x3a0] sm:$0xff]
          %v1096 = vld [vmem:[#allocation2 + $0x3a8] sm:$0xff]
          %v1097 = vld [vmem:[#allocation2 + $0x3b0] sm:$0xff]
          %v1098 = vld [vmem:[#allocation2 + $0x3b8] sm:$0xff]
          %v1099 = vld [vmem:[#allocation2 + $0x420] sm:$0xff]
          %v1100 = vld [vmem:[#allocation2 + $0x428] sm:$0xff]
          %v1101 = vld [vmem:[#allocation2 + $0x430] sm:$0xff]
          %v1102 = vld [vmem:[#allocation2 + $0x438] sm:$0xff]
          %v1103 = vld [vmem:[#allocation2 + $0x4a0] sm:$0xff]
          %v1104 = vld [vmem:[#allocation2 + $0x4a8] sm:$0xff]
          %v1105 = vld [vmem:[#allocation2 + $0x4b0] sm:$0xff]
          %v1106 = vld [vmem:[#allocation2 + $0x4b8] sm:$0xff]
          %v1107 = vld [vmem:[#allocation2 + $0x520] sm:$0xff]
          %v1108 = vld [vmem:[#allocation2 + $0x528] sm:$0xff]
          %v1109 = vld [vmem:[#allocation2 + $0x530] sm:$0xff]
          %v1110 = vld [vmem:[#allocation2 + $0x538] sm:$0xff]
          %v1111 = vld [vmem:[#allocation2 + $0x5a0] sm:$0xff]
          %v1112 = vld [vmem:[#allocation2 + $0x5a8] sm:$0xff]
          %v1113 = vld [vmem:[#allocation2 + $0x5b0] sm:$0xff]
          %v1114 = vld [vmem:[#allocation2 + $0x5b8] sm:$0xff]
          %v1115 = vld [vmem:[#allocation2 + $0x620] sm:$0xff]
          %v1116 = vld [vmem:[#allocation2 + $0x628] sm:$0xff]
          %v1117 = vld [vmem:[#allocation2 + $0x630] sm:$0xff]
          %v1118 = vld [vmem:[#allocation2 + $0x638] sm:$0xff]
          %v1119 = vld [vmem:[#allocation2 + $0x6a0] sm:$0xff]
          %v1120 = vld [vmem:[#allocation2 + $0x6a8] sm:$0xff]
          %v1121 = vld [vmem:[#allocation2 + $0x6b0] sm:$0xff]
          %v1122 = vld [vmem:[#allocation2 + $0x6b8] sm:$0xff]
          %v1123 = vld [vmem:[#allocation2 + $0x720] sm:$0xff]
          %v1124 = vld [vmem:[#allocation2 + $0x728] sm:$0xff]
          %v1125 = vld [vmem:[#allocation2 + $0x730] sm:$0xff]
          %v1126 = vld [vmem:[#allocation2 + $0x738] sm:$0xff]
          %v1127 = vld [vmem:[#allocation2 + $0x7a0] sm:$0xff]
          %v1128 = vld [vmem:[#allocation2 + $0x7a8] sm:$0xff]
          %v1129 = vld [vmem:[#allocation2 + $0x7b0] sm:$0xff]
          %v1130 = vld [vmem:[#allocation2 + $0x7b8] sm:$0xff]
          %v1131 = vld [vmem:[#allocation2 + $0x820] sm:$0xff]
          %v1132 = vld [vmem:[#allocation2 + $0x828] sm:$0xff]
          %v1133 = vld [vmem:[#allocation2 + $0x830] sm:$0xff]
          %v1134 = vld [vmem:[#allocation2 + $0x838] sm:$0xff]
          %v1135 = vld [vmem:[#allocation2 + $0x8a0] sm:$0xff]
          %v1136 = vld [vmem:[#allocation2 + $0x8a8] sm:$0xff]
          %v1137 = vld [vmem:[#allocation2 + $0x8b0] sm:$0xff]
          %v1138 = vld [vmem:[#allocation2 + $0x8b8] sm:$0xff]
          %v1139 = vld [vmem:[#allocation2 + $0x920] sm:$0xff]
          %v1140 = vld [vmem:[#allocation2 + $0x928] sm:$0xff]
          %v1141 = vld [vmem:[#allocation2 + $0x930] sm:$0xff]
          %v1142 = vld [vmem:[#allocation2 + $0x938] sm:$0xff]
          %v1143 = vld [vmem:[#allocation2 + $0x9a0] sm:$0xff]
          %v1144 = vld [vmem:[#allocation2 + $0x9a8] sm:$0xff]
          %v1145 = vld [vmem:[#allocation2 + $0x9b0] sm:$0xff]
          %v1146 = vld [vmem:[#allocation2 + $0x9b8] sm:$0xff]
          %v1147 = vld [vmem:[#allocation2 + $0xa20] sm:$0xff]
          %v1148 = vld [vmem:[#allocation2 + $0xa28] sm:$0xff]
          %v1149 = vld [vmem:[#allocation2 + $0xa30] sm:$0xff]
          %v1150 = vld [vmem:[#allocation2 + $0xa38] sm:$0xff]
          %v1151 = vld [vmem:[#allocation2 + $0xaa0] sm:$0xff]
          %v1152 = vld [vmem:[#allocation2 + $0xaa8] sm:$0xff]
          %v1153 = vld [vmem:[#allocation2 + $0xab0] sm:$0xff]
          %v1154 = vld [vmem:[#allocation2 + $0xab8] sm:$0xff]
          %v1155 = vld [vmem:[#allocation2 + $0xb20] sm:$0xff]
          %v1156 = vld [vmem:[#allocation2 + $0xb28] sm:$0xff]
          %v1157 = vld [vmem:[#allocation2 + $0xb30] sm:$0xff]
          %v1158 = vld [vmem:[#allocation2 + $0xb38] sm:$0xff]
          %v1159 = vld [vmem:[#allocation2 + $0xba0] sm:$0xff]
          %v1160 = vld [vmem:[#allocation2 + $0xba8] sm:$0xff]
          %v1161 = vld [vmem:[#allocation2 + $0xbb0] sm:$0xff]
          %v1162 = vld [vmem:[#allocation2 + $0xbb8] sm:$0xff]
          %v1163 = vld [vmem:[#allocation2 + $0xc20] sm:$0xff]
          %v1164 = vld [vmem:[#allocation2 + $0xc28] sm:$0xff]
          %v1165 = vld [vmem:[#allocation2 + $0xc30] sm:$0xff]
          %v1166 = vld [vmem:[#allocation2 + $0xc38] sm:$0xff]
          %v1167 = vld [vmem:[#allocation2 + $0xca0] sm:$0xff]
          %v1168 = vld [vmem:[#allocation2 + $0xca8] sm:$0xff]
          %v1169 = vld [vmem:[#allocation2 + $0xcb0] sm:$0xff]
          %v1170 = vld [vmem:[#allocation2 + $0xcb8] sm:$0xff]
          %v1171 = vld [vmem:[#allocation2 + $0xd20] sm:$0xff]
          %v1172 = vld [vmem:[#allocation2 + $0xd28] sm:$0xff]
          %v1173 = vld [vmem:[#allocation2 + $0xd30] sm:$0xff]
          %v1174 = vld [vmem:[#allocation2 + $0xd38] sm:$0xff]
          %v1175 = vld [vmem:[#allocation2 + $0xda0] sm:$0xff]
          %v1176 = vld [vmem:[#allocation2 + $0xda8] sm:$0xff]
          %v1177 = vld [vmem:[#allocation2 + $0xdb0] sm:$0xff]
          %v1178 = vld [vmem:[#allocation2 + $0xdb8] sm:$0xff]
          %v1179 = vld [vmem:[#allocation2 + $0xe20] sm:$0xff]
          %v1180 = vld [vmem:[#allocation2 + $0xe28] sm:$0xff]
          %v1181 = vld [vmem:[#allocation2 + $0xe30] sm:$0xff]
          %v1182 = vld [vmem:[#allocation2 + $0xe38] sm:$0xff]
          %v1183 = vld [vmem:[#allocation2 + $0xea0] sm:$0xff]
          %v1184 = vld [vmem:[#allocation2 + $0xea8] sm:$0xff]
          %v1185 = vld [vmem:[#allocation2 + $0xeb0] sm:$0xff]
          %v1186 = vld [vmem:[#allocation2 + $0xeb8] sm:$0xff]
          %v1187 = vld [vmem:[#allocation2 + $0xf20] sm:$0xff]
          %v1188 = vld [vmem:[#allocation2 + $0xf28] sm:$0xff]
          %v1189 = vld [vmem:[#allocation2 + $0xf30] sm:$0xff]
          %v1190 = vld [vmem:[#allocation2 + $0xf38] sm:$0xff]
          %v1191 = vld [vmem:[#allocation2 + $0xfa0] sm:$0xff]
          %v1192 = vld [vmem:[#allocation2 + $0xfa8] sm:$0xff]
          %v1193 = vld [vmem:[#allocation2 + $0xfb0] sm:$0xff]
          %v1194 = vld [vmem:[#allocation2 + $0xfb8] sm:$0xff]
          %v1195 = vld [vmem:[#allocation2 + $0x1020] sm:$0xff]
          %v1196 = vld [vmem:[#allocation2 + $0x1028] sm:$0xff]
          %v1197 = vld [vmem:[#allocation2 + $0x1030] sm:$0xff]
          %v1198 = vld [vmem:[#allocation2 + $0x1038] sm:$0xff]
          %v1199 = vld [vmem:[#allocation2 + $0x10a0] sm:$0xff]
          %v1200 = vld [vmem:[#allocation2 + $0x10a8] sm:$0xff]
          %v1201 = vld [vmem:[#allocation2 + $0x10b0] sm:$0xff]
          %v1202 = vld [vmem:[#allocation2 + $0x10b8] sm:$0xff]
          %v1203 = vld [vmem:[#allocation2 + $0x1120] sm:$0xff]
          %v1204 = vld [vmem:[#allocation2 + $0x1128] sm:$0xff]
          %v1205 = vld [vmem:[#allocation2 + $0x1130] sm:$0xff]
          %v1206 = vld [vmem:[#allocation2 + $0x1138] sm:$0xff]
          %v1207 = vld [vmem:[#allocation2 + $0x11a0] sm:$0xff]
          %v1208 = vld [vmem:[#allocation2 + $0x11a8] sm:$0xff]
          %v1209 = vld [vmem:[#allocation2 + $0x11b0] sm:$0xff]
          %v1210 = vld [vmem:[#allocation2 + $0x11b8] sm:$0xff]
          %v1211 = vpack.c.bf16 %v1071, %v1067
          %v1212 = vpack.c.bf16 %v1072, %v1068
          %v1213 = vpack.c.bf16 %v1073, %v1069
          %v1214 = vpack.c.bf16 %v1074, %v1070
          %v1215 = vpack.c.bf16 %v1079, %v1075
          %v1216 = vpack.c.bf16 %v1080, %v1076
          %v1217 = vpack.c.bf16 %v1081, %v1077
          %v1218 = vpack.c.bf16 %v1082, %v1078
          %v1219 = vpack.c.bf16 %v1087, %v1083
          %v1220 = vpack.c.bf16 %v1088, %v1084
          %v1221 = vpack.c.bf16 %v1089, %v1085
          %v1222 = vpack.c.bf16 %v1090, %v1086
          %v1223 = vpack.c.bf16 %v1095, %v1091
          %v1224 = vpack.c.bf16 %v1096, %v1092
          %v1225 = vpack.c.bf16 %v1097, %v1093
          %v1226 = vpack.c.bf16 %v1098, %v1094
          %v1227 = vpack.c.bf16 %v1103, %v1099
          %v1228 = vpack.c.bf16 %v1104, %v1100
          %v1229 = vpack.c.bf16 %v1105, %v1101
          %v1230 = vpack.c.bf16 %v1106, %v1102
          %v1231 = vpack.c.bf16 %v1111, %v1107
          %v1232 = vpack.c.bf16 %v1112, %v1108
          %v1233 = vpack.c.bf16 %v1113, %v1109
          %v1234 = vpack.c.bf16 %v1114, %v1110
          %v1235 = vpack.c.bf16 %v1119, %v1115
          %v1236 = vpack.c.bf16 %v1120, %v1116
          %v1237 = vpack.c.bf16 %v1121, %v1117
          %v1238 = vpack.c.bf16 %v1122, %v1118
          %v1239 = vpack.c.bf16 %v1127, %v1123
          %v1240 = vpack.c.bf16 %v1128, %v1124
          %v1241 = vpack.c.bf16 %v1129, %v1125
          %v1242 = vpack.c.bf16 %v1130, %v1126
          %v1243 = vpack.c.bf16 %v1135, %v1131
          %v1244 = vpack.c.bf16 %v1136, %v1132
          %v1245 = vpack.c.bf16 %v1137, %v1133
          %v1246 = vpack.c.bf16 %v1138, %v1134
          %v1247 = vpack.c.bf16 %v1143, %v1139
          %v1248 = vpack.c.bf16 %v1144, %v1140
          %v1249 = vpack.c.bf16 %v1145, %v1141
          %v1250 = vpack.c.bf16 %v1146, %v1142
          %v1251 = vpack.c.bf16 %v1151, %v1147
          %v1252 = vpack.c.bf16 %v1152, %v1148
          %v1253 = vpack.c.bf16 %v1153, %v1149
          %v1254 = vpack.c.bf16 %v1154, %v1150
          %v1255 = vpack.c.bf16 %v1159, %v1155
          %v1256 = vpack.c.bf16 %v1160, %v1156
          %v1257 = vpack.c.bf16 %v1161, %v1157
          %v1258 = vpack.c.bf16 %v1162, %v1158
          %v1259 = vpack.c.bf16 %v1167, %v1163
          %v1260 = vpack.c.bf16 %v1168, %v1164
          %v1261 = vpack.c.bf16 %v1169, %v1165
          %v1262 = vpack.c.bf16 %v1170, %v1166
          %v1263 = vpack.c.bf16 %v1175, %v1171
          %v1264 = vpack.c.bf16 %v1176, %v1172
          %v1265 = vpack.c.bf16 %v1177, %v1173
          %v1266 = vpack.c.bf16 %v1178, %v1174
          %v1267 = vpack.c.bf16 %v1183, %v1179
          %v1268 = vpack.c.bf16 %v1184, %v1180
          %v1269 = vpack.c.bf16 %v1185, %v1181
          %v1270 = vpack.c.bf16 %v1186, %v1182
          %v1271 = vpack.c.bf16 %v1191, %v1187
          %v1272 = vpack.c.bf16 %v1192, %v1188
          %v1273 = vpack.c.bf16 %v1193, %v1189
          %v1274 = vpack.c.bf16 %v1194, %v1190
          %v1275 = vpack.c.bf16 %v1199, %v1195
          %v1276 = vpack.c.bf16 %v1200, %v1196
          %v1277 = vpack.c.bf16 %v1201, %v1197
          %v1278 = vpack.c.bf16 %v1202, %v1198
          %v1279 = vpack.c.bf16 %v1207, %v1203
          %v1280 = vpack.c.bf16 %v1208, %v1204
          %v1281 = vpack.c.bf16 %v1209, %v1205
          %v1282 = vpack.c.bf16 %v1210, %v1206
          %v1355 = vunpack.c.l.b16 %v1211
          %v1356 = vunpack.c.l.b16 %v1212
          %v1357 = vunpack.c.l.b16 %v1213
          %v1358 = vunpack.c.l.b16 %v1214
          %v1359 = vunpack.c.h.b16 %v1211
          %v1360 = vunpack.c.h.b16 %v1212
          %v1361 = vunpack.c.h.b16 %v1213
          %v1362 = vunpack.c.h.b16 %v1214
          %v1363 = vunpack.c.l.b16 %v1215
          %v1364 = vunpack.c.l.b16 %v1216
          %v1365 = vunpack.c.l.b16 %v1217
          %v1366 = vunpack.c.l.b16 %v1218
          %v1367 = vunpack.c.h.b16 %v1215
          %v1368 = vunpack.c.h.b16 %v1216
          %v1369 = vunpack.c.h.b16 %v1217
          %v1370 = vunpack.c.h.b16 %v1218
          %v1371 = vunpack.c.l.b16 %v1219
          %v1372 = vunpack.c.l.b16 %v1220
          %v1373 = vunpack.c.l.b16 %v1221
          %v1374 = vunpack.c.l.b16 %v1222
          %v1375 = vunpack.c.h.b16 %v1219
          %v1376 = vunpack.c.h.b16 %v1220
          %v1377 = vunpack.c.h.b16 %v1221
          %v1378 = vunpack.c.h.b16 %v1222
          %v1379 = vunpack.c.l.b16 %v1223
          %v1380 = vunpack.c.l.b16 %v1224
          %v1381 = vunpack.c.l.b16 %v1225
          %v1382 = vunpack.c.l.b16 %v1226
          %v1383 = vunpack.c.h.b16 %v1223
          %v1384 = vunpack.c.h.b16 %v1224
          %v1385 = vunpack.c.h.b16 %v1225
          %v1386 = vunpack.c.h.b16 %v1226
          %v1387 = vunpack.c.l.b16 %v1227
          %v1388 = vunpack.c.l.b16 %v1228
          %v1389 = vunpack.c.l.b16 %v1229
          %v1390 = vunpack.c.l.b16 %v1230
          %v1391 = vunpack.c.h.b16 %v1227
          %v1392 = vunpack.c.h.b16 %v1228
          %v1393 = vunpack.c.h.b16 %v1229
          %v1394 = vunpack.c.h.b16 %v1230
          %v1395 = vunpack.c.l.b16 %v1231
          %v1396 = vunpack.c.l.b16 %v1232
          %v1397 = vunpack.c.l.b16 %v1233
          %v1398 = vunpack.c.l.b16 %v1234
          %v1399 = vunpack.c.h.b16 %v1231
          %v1400 = vunpack.c.h.b16 %v1232
          %v1401 = vunpack.c.h.b16 %v1233
          %v1402 = vunpack.c.h.b16 %v1234
          %v1403 = vunpack.c.l.b16 %v1235
          %v1404 = vunpack.c.l.b16 %v1236
          %v1405 = vunpack.c.l.b16 %v1237
          %v1406 = vunpack.c.l.b16 %v1238
          %v1407 = vunpack.c.h.b16 %v1235
          %v1408 = vunpack.c.h.b16 %v1236
          %v1409 = vunpack.c.h.b16 %v1237
          %v1410 = vunpack.c.h.b16 %v1238
          %v1411 = vunpack.c.l.b16 %v1239
          %v1412 = vunpack.c.l.b16 %v1240
          %v1413 = vunpack.c.l.b16 %v1241
          %v1414 = vunpack.c.l.b16 %v1242
          %v1415 = vunpack.c.h.b16 %v1239
          %v1416 = vunpack.c.h.b16 %v1240
          %v1417 = vunpack.c.h.b16 %v1241
          %v1418 = vunpack.c.h.b16 %v1242
          %v1419 = vunpack.c.l.b16 %v1243
          %v1420 = vunpack.c.l.b16 %v1244
          %v1421 = vunpack.c.l.b16 %v1245
          %v1422 = vunpack.c.l.b16 %v1246
          %v1423 = vunpack.c.h.b16 %v1243
          %v1424 = vunpack.c.h.b16 %v1244
          %v1425 = vunpack.c.h.b16 %v1245
          %v1426 = vunpack.c.h.b16 %v1246
          %v1427 = vunpack.c.l.b16 %v1247
          %v1428 = vunpack.c.l.b16 %v1248
          %v1429 = vunpack.c.l.b16 %v1249
          %v1430 = vunpack.c.l.b16 %v1250
          %v1431 = vunpack.c.h.b16 %v1247
          %v1432 = vunpack.c.h.b16 %v1248
          %v1433 = vunpack.c.h.b16 %v1249
          %v1434 = vunpack.c.h.b16 %v1250
          %v1435 = vunpack.c.l.b16 %v1251
          %v1436 = vunpack.c.l.b16 %v1252
          %v1437 = vunpack.c.l.b16 %v1253
          %v1438 = vunpack.c.l.b16 %v1254
          %v1439 = vunpack.c.h.b16 %v1251
          %v1440 = vunpack.c.h.b16 %v1252
          %v1441 = vunpack.c.h.b16 %v1253
          %v1442 = vunpack.c.h.b16 %v1254
          %v1443 = vunpack.c.l.b16 %v1255
          %v1444 = vunpack.c.l.b16 %v1256
          %v1445 = vunpack.c.l.b16 %v1257
          %v1446 = vunpack.c.l.b16 %v1258
          %v1447 = vunpack.c.h.b16 %v1255
          %v1448 = vunpack.c.h.b16 %v1256
          %v1449 = vunpack.c.h.b16 %v1257
          %v1450 = vunpack.c.h.b16 %v1258
          %v1451 = vunpack.c.l.b16 %v1259
          %v1452 = vunpack.c.l.b16 %v1260
          %v1453 = vunpack.c.l.b16 %v1261
          %v1454 = vunpack.c.l.b16 %v1262
          %v1455 = vunpack.c.h.b16 %v1259
          %v1456 = vunpack.c.h.b16 %v1260
          %v1457 = vunpack.c.h.b16 %v1261
          %v1458 = vunpack.c.h.b16 %v1262
          %v1459 = vunpack.c.l.b16 %v1263
          %v1460 = vunpack.c.l.b16 %v1264
          %v1461 = vunpack.c.l.b16 %v1265
          %v1462 = vunpack.c.l.b16 %v1266
          %v1463 = vunpack.c.h.b16 %v1263
          %v1464 = vunpack.c.h.b16 %v1264
          %v1465 = vunpack.c.h.b16 %v1265
          %v1466 = vunpack.c.h.b16 %v1266
          %v1467 = vunpack.c.l.b16 %v1267
          %v1468 = vunpack.c.l.b16 %v1268
          %v1469 = vunpack.c.l.b16 %v1269
          %v1470 = vunpack.c.l.b16 %v1270
          %v1471 = vunpack.c.h.b16 %v1267
          %v1472 = vunpack.c.h.b16 %v1268
          %v1473 = vunpack.c.h.b16 %v1269
          %v1474 = vunpack.c.h.b16 %v1270
          %v1475 = vunpack.c.l.b16 %v1271
          %v1476 = vunpack.c.l.b16 %v1272
          %v1477 = vunpack.c.l.b16 %v1273
          %v1478 = vunpack.c.l.b16 %v1274
          %v1479 = vunpack.c.h.b16 %v1271
          %v1480 = vunpack.c.h.b16 %v1272
          %v1481 = vunpack.c.h.b16 %v1273
          %v1482 = vunpack.c.h.b16 %v1274
          %v1483 = vunpack.c.l.b16 %v1275
          %v1484 = vunpack.c.l.b16 %v1276
          %v1485 = vunpack.c.l.b16 %v1277
          %v1486 = vunpack.c.l.b16 %v1278
          %v1487 = vunpack.c.h.b16 %v1275
          %v1488 = vunpack.c.h.b16 %v1276
          %v1489 = vunpack.c.h.b16 %v1277
          %v1490 = vunpack.c.h.b16 %v1278
          %v1491 = vunpack.c.l.b16 %v1279
          %v1492 = vunpack.c.l.b16 %v1280
          %v1493 = vunpack.c.l.b16 %v1281
          %v1494 = vunpack.c.l.b16 %v1282
          %v1495 = vunpack.c.h.b16 %v1279
          %v1496 = vunpack.c.h.b16 %v1280
          %v1497 = vunpack.c.h.b16 %v1281
          %v1498 = vunpack.c.h.b16 %v1282
          %v1499 = vpack.c.b16 %v1356, %v1355
          %v1500 = vpack.c.b16 %v1358, %v1357
          %v1501 = vpack.c.b16 %v1360, %v1359
          %v1502 = vpack.c.b16 %v1362, %v1361
          %v1503 = vpack.c.b16 %v1364, %v1363
          %v1504 = vpack.c.b16 %v1366, %v1365
          %v1505 = vpack.c.b16 %v1368, %v1367
          %v1506 = vpack.c.b16 %v1370, %v1369
          %v1507 = vpack.c.b16 %v1372, %v1371
          %v1508 = vpack.c.b16 %v1374, %v1373
          %v1509 = vpack.c.b16 %v1376, %v1375
          %v1510 = vpack.c.b16 %v1378, %v1377
          %v1511 = vpack.c.b16 %v1380, %v1379
          %v1512 = vpack.c.b16 %v1382, %v1381
          %v1513 = vpack.c.b16 %v1384, %v1383
          %v1514 = vpack.c.b16 %v1386, %v1385
          %v1515 = vpack.c.b16 %v1388, %v1387
          %v1516 = vpack.c.b16 %v1390, %v1389
          %v1517 = vpack.c.b16 %v1392, %v1391
          %v1518 = vpack.c.b16 %v1394, %v1393
          %v1519 = vpack.c.b16 %v1396, %v1395
          %v1520 = vpack.c.b16 %v1398, %v1397
          %v1521 = vpack.c.b16 %v1400, %v1399
          %v1522 = vpack.c.b16 %v1402, %v1401
          %v1523 = vpack.c.b16 %v1404, %v1403
          %v1524 = vpack.c.b16 %v1406, %v1405
          %v1525 = vpack.c.b16 %v1408, %v1407
          %v1526 = vpack.c.b16 %v1410, %v1409
          %v1527 = vpack.c.b16 %v1412, %v1411
          %v1528 = vpack.c.b16 %v1414, %v1413
          %v1529 = vpack.c.b16 %v1416, %v1415
          %v1530 = vpack.c.b16 %v1418, %v1417
          %v1531 = vpack.c.b16 %v1420, %v1419
          %v1532 = vpack.c.b16 %v1422, %v1421
          %v1533 = vpack.c.b16 %v1424, %v1423
          %v1534 = vpack.c.b16 %v1426, %v1425
          %v1535 = vpack.c.b16 %v1428, %v1427
          %v1536 = vpack.c.b16 %v1430, %v1429
          %v1537 = vpack.c.b16 %v1432, %v1431
          %v1538 = vpack.c.b16 %v1434, %v1433
          %v1539 = vpack.c.b16 %v1436, %v1435
          %v1540 = vpack.c.b16 %v1438, %v1437
          %v1541 = vpack.c.b16 %v1440, %v1439
          %v1542 = vpack.c.b16 %v1442, %v1441
          %v1543 = vpack.c.b16 %v1444, %v1443
          %v1544 = vpack.c.b16 %v1446, %v1445
          %v1545 = vpack.c.b16 %v1448, %v1447
          %v1546 = vpack.c.b16 %v1450, %v1449
          %v1547 = vpack.c.b16 %v1452, %v1451
          %v1548 = vpack.c.b16 %v1454, %v1453
          %v1549 = vpack.c.b16 %v1456, %v1455
          %v1550 = vpack.c.b16 %v1458, %v1457
          %v1551 = vpack.c.b16 %v1460, %v1459
          %v1552 = vpack.c.b16 %v1462, %v1461
          %v1553 = vpack.c.b16 %v1464, %v1463
          %v1554 = vpack.c.b16 %v1466, %v1465
          %v1555 = vpack.c.b16 %v1468, %v1467
          %v1556 = vpack.c.b16 %v1470, %v1469
          %v1557 = vpack.c.b16 %v1472, %v1471
          %v1558 = vpack.c.b16 %v1474, %v1473
          %v1559 = vpack.c.b16 %v1476, %v1475
          %v1560 = vpack.c.b16 %v1478, %v1477
          %v1561 = vpack.c.b16 %v1480, %v1479
          %v1562 = vpack.c.b16 %v1482, %v1481
          %v1563 = vpack.c.b16 %v1484, %v1483
          %v1564 = vpack.c.b16 %v1486, %v1485
          %v1565 = vpack.c.b16 %v1488, %v1487
          %v1566 = vpack.c.b16 %v1490, %v1489
          %v1567 = vpack.c.b16 %v1492, %v1491
          %v1568 = vpack.c.b16 %v1494, %v1493
          %v1569 = vpack.c.b16 %v1496, %v1495
          %v1570 = vpack.c.b16 %v1498, %v1497
          %1643 = vst [vmem:[%s389] sm:$0xff] %v1499
          %1644 = vst [vmem:[%s389 + $0x8] sm:$0xff] %v1500
          %1645 = vst [vmem:[%s389 + $0x10] sm:$0xff] %v1501
          %1646 = vst [vmem:[%s389 + $0x18] sm:$0xff] %v1502
          %1647 = vst [vmem:[%s389 + $0x20] sm:$0xff] %v1503
          %1648 = vst [vmem:[%s389 + $0x28] sm:$0xff] %v1504
          %1649 = vst [vmem:[%s389 + $0x30] sm:$0xff] %v1505
          %1650 = vst [vmem:[%s389 + $0x38] sm:$0xff] %v1506
          %1651 = vst [vmem:[%s389 + $0x40] sm:$0xff] %v1507
          %1652 = vst [vmem:[%s389 + $0x48] sm:$0xff] %v1508
          %1653 = vst [vmem:[%s389 + $0x50] sm:$0xff] %v1509
          %1654 = vst [vmem:[%s389 + $0x58] sm:$0xff] %v1510
          %1655 = vst [vmem:[%s389 + $0x60] sm:$0xff] %v1511
          %1656 = vst [vmem:[%s389 + $0x68] sm:$0xff] %v1512
          %1657 = vst [vmem:[%s389 + $0x70] sm:$0xff] %v1513
          %1658 = vst [vmem:[%s389 + $0x78] sm:$0xff] %v1514
          %1659 = vst [vmem:[%s389 + $0x80] sm:$0xff] %v1515
          %1660 = vst [vmem:[%s389 + $0x88] sm:$0xff] %v1516
          %1661 = vst [vmem:[%s389 + $0x90] sm:$0xff] %v1517
          %1662 = vst [vmem:[%s389 + $0x98] sm:$0xff] %v1518
          %1663 = vst [vmem:[%s389 + $0xa0] sm:$0xff] %v1519
          %1664 = vst [vmem:[%s389 + $0xa8] sm:$0xff] %v1520
          %1665 = vst [vmem:[%s389 + $0xb0] sm:$0xff] %v1521
          %1666 = vst [vmem:[%s389 + $0xb8] sm:$0xff] %v1522
          %1667 = vst [vmem:[%s389 + $0xc0] sm:$0xff] %v1523
          %1668 = vst [vmem:[%s389 + $0xc8] sm:$0xff] %v1524
          %1669 = vst [vmem:[%s389 + $0xd0] sm:$0xff] %v1525
          %1670 = vst [vmem:[%s389 + $0xd8] sm:$0xff] %v1526
          %1671 = vst [vmem:[%s389 + $0xe0] sm:$0xff] %v1527
          %1672 = vst [vmem:[%s389 + $0xe8] sm:$0xff] %v1528
          %1673 = vst [vmem:[%s389 + $0xf0] sm:$0xff] %v1529
          %1674 = vst [vmem:[%s389 + $0xf8] sm:$0xff] %v1530
          %1675 = vst [vmem:[%s389 + $0x100] sm:$0xff] %v1531
          %1676 = vst [vmem:[%s389 + $0x108] sm:$0xff] %v1532
          %1677 = vst [vmem:[%s389 + $0x110] sm:$0xff] %v1533
          %1678 = vst [vmem:[%s389 + $0x118] sm:$0xff] %v1534
          %1679 = vst [vmem:[%s389 + $0x120] sm:$0xff] %v1535
          %1680 = vst [vmem:[%s389 + $0x128] sm:$0xff] %v1536
          %1681 = vst [vmem:[%s389 + $0x130] sm:$0xff] %v1537
          %1682 = vst [vmem:[%s389 + $0x138] sm:$0xff] %v1538
          %1683 = vst [vmem:[%s389 + $0x140] sm:$0xff] %v1539
          %1684 = vst [vmem:[%s389 + $0x148] sm:$0xff] %v1540
          %1685 = vst [vmem:[%s389 + $0x150] sm:$0xff] %v1541
          %1686 = vst [vmem:[%s389 + $0x158] sm:$0xff] %v1542
          %1687 = vst [vmem:[%s389 + $0x160] sm:$0xff] %v1543
          %1688 = vst [vmem:[%s389 + $0x168] sm:$0xff] %v1544
          %1689 = vst [vmem:[%s389 + $0x170] sm:$0xff] %v1545
          %1690 = vst [vmem:[%s389 + $0x178] sm:$0xff] %v1546
          %1691 = vst [vmem:[%s389 + $0x180] sm:$0xff] %v1547
          %1692 = vst [vmem:[%s389 + $0x188] sm:$0xff] %v1548
          %1693 = vst [vmem:[%s389 + $0x190] sm:$0xff] %v1549
          %1694 = vst [vmem:[%s389 + $0x198] sm:$0xff] %v1550
          %1695 = vst [vmem:[%s389 + $0x1a0] sm:$0xff] %v1551
          %1696 = vst [vmem:[%s389 + $0x1a8] sm:$0xff] %v1552
          %1697 = vst [vmem:[%s389 + $0x1b0] sm:$0xff] %v1553
          %1698 = vst [vmem:[%s389 + $0x1b8] sm:$0xff] %v1554
          %1699 = vst [vmem:[%s389 + $0x1c0] sm:$0xff] %v1555
          %1700 = vst [vmem:[%s389 + $0x1c8] sm:$0xff] %v1556
          %1701 = vst [vmem:[%s389 + $0x1d0] sm:$0xff] %v1557
          %1702 = vst [vmem:[%s389 + $0x1d8] sm:$0xff] %v1558
          %1703 = vst [vmem:[%s389 + $0x1e0] sm:$0xff] %v1559
          %1704 = vst [vmem:[%s389 + $0x1e8] sm:$0xff] %v1560
          %1705 = vst [vmem:[%s389 + $0x1f0] sm:$0xff] %v1561
          %1706 = vst [vmem:[%s389 + $0x1f8] sm:$0xff] %v1562
          %1707 = vst [vmem:[%s389 + $0x200] sm:$0xff] %v1563
          %1708 = vst [vmem:[%s389 + $0x208] sm:$0xff] %v1564
          %1709 = vst [vmem:[%s389 + $0x210] sm:$0xff] %v1565
          %1710 = vst [vmem:[%s389 + $0x218] sm:$0xff] %v1566
          %1711 = vst [vmem:[%s389 + $0x220] sm:$0xff] %v1567
          %1712 = vst [vmem:[%s389 + $0x228] sm:$0xff] %v1568
          %1713 = vst [vmem:[%s389 + $0x230] sm:$0xff] %v1569
          %1714 = vst [vmem:[%s389 + $0x238] sm:$0xff] %v1570
        $region64: #{tpu_custom_call.1} parent=39 // pred_fallthru
          _
        %p1715 = scmp.eq.s32.totalorder %s26, 2
        // Predicated region
        $region65: #{tpu_custom_call.1} parent=39 // pred_check
          %p1716 = pneg %p1715
        $region66: #{tpu_custom_call.1} parent=39 // pred_check_branch
          %1718 = sbr.rel (%p1716) target = $region68
        $region67: #{tpu_custom_call.1} parent=39 // pred_region
          %v1719 = vld [vmem:[#allocation2 + $0x40] sm:$0xff]
          %v1720 = vld [vmem:[#allocation2 + $0x48] sm:$0xff]
          %v1721 = vld [vmem:[#allocation2 + $0x50] sm:$0xff]
          %v1722 = vld [vmem:[#allocation2 + $0x58] sm:$0xff]
          %v1723 = vld [vmem:[#allocation2 + $0xc0] sm:$0xff]
          %v1724 = vld [vmem:[#allocation2 + $0xc8] sm:$0xff]
          %v1725 = vld [vmem:[#allocation2 + $0xd0] sm:$0xff]
          %v1726 = vld [vmem:[#allocation2 + $0xd8] sm:$0xff]
          %v1727 = vld [vmem:[#allocation2 + $0x140] sm:$0xff]
          %v1728 = vld [vmem:[#allocation2 + $0x148] sm:$0xff]
          %v1729 = vld [vmem:[#allocation2 + $0x150] sm:$0xff]
          %v1730 = vld [vmem:[#allocation2 + $0x158] sm:$0xff]
          %v1731 = vld [vmem:[#allocation2 + $0x1c0] sm:$0xff]
          %v1732 = vld [vmem:[#allocation2 + $0x1c8] sm:$0xff]
          %v1733 = vld [vmem:[#allocation2 + $0x1d0] sm:$0xff]
          %v1734 = vld [vmem:[#allocation2 + $0x1d8] sm:$0xff]
          %v1735 = vld [vmem:[#allocation2 + $0x240] sm:$0xff]
          %v1736 = vld [vmem:[#allocation2 + $0x248] sm:$0xff]
          %v1737 = vld [vmem:[#allocation2 + $0x250] sm:$0xff]
          %v1738 = vld [vmem:[#allocation2 + $0x258] sm:$0xff]
          %v1739 = vld [vmem:[#allocation2 + $0x2c0] sm:$0xff]
          %v1740 = vld [vmem:[#allocation2 + $0x2c8] sm:$0xff]
          %v1741 = vld [vmem:[#allocation2 + $0x2d0] sm:$0xff]
          %v1742 = vld [vmem:[#allocation2 + $0x2d8] sm:$0xff]
          %v1743 = vld [vmem:[#allocation2 + $0x340] sm:$0xff]
          %v1744 = vld [vmem:[#allocation2 + $0x348] sm:$0xff]
          %v1745 = vld [vmem:[#allocation2 + $0x350] sm:$0xff]
          %v1746 = vld [vmem:[#allocation2 + $0x358] sm:$0xff]
          %v1747 = vld [vmem:[#allocation2 + $0x3c0] sm:$0xff]
          %v1748 = vld [vmem:[#allocation2 + $0x3c8] sm:$0xff]
          %v1749 = vld [vmem:[#allocation2 + $0x3d0] sm:$0xff]
          %v1750 = vld [vmem:[#allocation2 + $0x3d8] sm:$0xff]
          %v1751 = vld [vmem:[#allocation2 + $0x440] sm:$0xff]
          %v1752 = vld [vmem:[#allocation2 + $0x448] sm:$0xff]
          %v1753 = vld [vmem:[#allocation2 + $0x450] sm:$0xff]
          %v1754 = vld [vmem:[#allocation2 + $0x458] sm:$0xff]
          %v1755 = vld [vmem:[#allocation2 + $0x4c0] sm:$0xff]
          %v1756 = vld [vmem:[#allocation2 + $0x4c8] sm:$0xff]
          %v1757 = vld [vmem:[#allocation2 + $0x4d0] sm:$0xff]
          %v1758 = vld [vmem:[#allocation2 + $0x4d8] sm:$0xff]
          %v1759 = vld [vmem:[#allocation2 + $0x540] sm:$0xff]
          %v1760 = vld [vmem:[#allocation2 + $0x548] sm:$0xff]
          %v1761 = vld [vmem:[#allocation2 + $0x550] sm:$0xff]
          %v1762 = vld [vmem:[#allocation2 + $0x558] sm:$0xff]
          %v1763 = vld [vmem:[#allocation2 + $0x5c0] sm:$0xff]
          %v1764 = vld [vmem:[#allocation2 + $0x5c8] sm:$0xff]
          %v1765 = vld [vmem:[#allocation2 + $0x5d0] sm:$0xff]
          %v1766 = vld [vmem:[#allocation2 + $0x5d8] sm:$0xff]
          %v1767 = vld [vmem:[#allocation2 + $0x640] sm:$0xff]
          %v1768 = vld [vmem:[#allocation2 + $0x648] sm:$0xff]
          %v1769 = vld [vmem:[#allocation2 + $0x650] sm:$0xff]
          %v1770 = vld [vmem:[#allocation2 + $0x658] sm:$0xff]
          %v1771 = vld [vmem:[#allocation2 + $0x6c0] sm:$0xff]
          %v1772 = vld [vmem:[#allocation2 + $0x6c8] sm:$0xff]
          %v1773 = vld [vmem:[#allocation2 + $0x6d0] sm:$0xff]
          %v1774 = vld [vmem:[#allocation2 + $0x6d8] sm:$0xff]
          %v1775 = vld [vmem:[#allocation2 + $0x740] sm:$0xff]
          %v1776 = vld [vmem:[#allocation2 + $0x748] sm:$0xff]
          %v1777 = vld [vmem:[#allocation2 + $0x750] sm:$0xff]
          %v1778 = vld [vmem:[#allocation2 + $0x758] sm:$0xff]
          %v1779 = vld [vmem:[#allocation2 + $0x7c0] sm:$0xff]
          %v1780 = vld [vmem:[#allocation2 + $0x7c8] sm:$0xff]
          %v1781 = vld [vmem:[#allocation2 + $0x7d0] sm:$0xff]
          %v1782 = vld [vmem:[#allocation2 + $0x7d8] sm:$0xff]
          %v1783 = vld [vmem:[#allocation2 + $0x840] sm:$0xff]
          %v1784 = vld [vmem:[#allocation2 + $0x848] sm:$0xff]
          %v1785 = vld [vmem:[#allocation2 + $0x850] sm:$0xff]
          %v1786 = vld [vmem:[#allocation2 + $0x858] sm:$0xff]
          %v1787 = vld [vmem:[#allocation2 + $0x8c0] sm:$0xff]
          %v1788 = vld [vmem:[#allocation2 + $0x8c8] sm:$0xff]
          %v1789 = vld [vmem:[#allocation2 + $0x8d0] sm:$0xff]
          %v1790 = vld [vmem:[#allocation2 + $0x8d8] sm:$0xff]
          %v1791 = vld [vmem:[#allocation2 + $0x940] sm:$0xff]
          %v1792 = vld [vmem:[#allocation2 + $0x948] sm:$0xff]
          %v1793 = vld [vmem:[#allocation2 + $0x950] sm:$0xff]
          %v1794 = vld [vmem:[#allocation2 + $0x958] sm:$0xff]
          %v1795 = vld [vmem:[#allocation2 + $0x9c0] sm:$0xff]
          %v1796 = vld [vmem:[#allocation2 + $0x9c8] sm:$0xff]
          %v1797 = vld [vmem:[#allocation2 + $0x9d0] sm:$0xff]
          %v1798 = vld [vmem:[#allocation2 + $0x9d8] sm:$0xff]
          %v1799 = vld [vmem:[#allocation2 + $0xa40] sm:$0xff]
          %v1800 = vld [vmem:[#allocation2 + $0xa48] sm:$0xff]
          %v1801 = vld [vmem:[#allocation2 + $0xa50] sm:$0xff]
          %v1802 = vld [vmem:[#allocation2 + $0xa58] sm:$0xff]
          %v1803 = vld [vmem:[#allocation2 + $0xac0] sm:$0xff]
          %v1804 = vld [vmem:[#allocation2 + $0xac8] sm:$0xff]
          %v1805 = vld [vmem:[#allocation2 + $0xad0] sm:$0xff]
          %v1806 = vld [vmem:[#allocation2 + $0xad8] sm:$0xff]
          %v1807 = vld [vmem:[#allocation2 + $0xb40] sm:$0xff]
          %v1808 = vld [vmem:[#allocation2 + $0xb48] sm:$0xff]
          %v1809 = vld [vmem:[#allocation2 + $0xb50] sm:$0xff]
          %v1810 = vld [vmem:[#allocation2 + $0xb58] sm:$0xff]
          %v1811 = vld [vmem:[#allocation2 + $0xbc0] sm:$0xff]
          %v1812 = vld [vmem:[#allocation2 + $0xbc8] sm:$0xff]
          %v1813 = vld [vmem:[#allocation2 + $0xbd0] sm:$0xff]
          %v1814 = vld [vmem:[#allocation2 + $0xbd8] sm:$0xff]
          %v1815 = vld [vmem:[#allocation2 + $0xc40] sm:$0xff]
          %v1816 = vld [vmem:[#allocation2 + $0xc48] sm:$0xff]
          %v1817 = vld [vmem:[#allocation2 + $0xc50] sm:$0xff]
          %v1818 = vld [vmem:[#allocation2 + $0xc58] sm:$0xff]
          %v1819 = vld [vmem:[#allocation2 + $0xcc0] sm:$0xff]
          %v1820 = vld [vmem:[#allocation2 + $0xcc8] sm:$0xff]
          %v1821 = vld [vmem:[#allocation2 + $0xcd0] sm:$0xff]
          %v1822 = vld [vmem:[#allocation2 + $0xcd8] sm:$0xff]
          %v1823 = vld [vmem:[#allocation2 + $0xd40] sm:$0xff]
          %v1824 = vld [vmem:[#allocation2 + $0xd48] sm:$0xff]
          %v1825 = vld [vmem:[#allocation2 + $0xd50] sm:$0xff]
          %v1826 = vld [vmem:[#allocation2 + $0xd58] sm:$0xff]
          %v1827 = vld [vmem:[#allocation2 + $0xdc0] sm:$0xff]
          %v1828 = vld [vmem:[#allocation2 + $0xdc8] sm:$0xff]
          %v1829 = vld [vmem:[#allocation2 + $0xdd0] sm:$0xff]
          %v1830 = vld [vmem:[#allocation2 + $0xdd8] sm:$0xff]
          %v1831 = vld [vmem:[#allocation2 + $0xe40] sm:$0xff]
          %v1832 = vld [vmem:[#allocation2 + $0xe48] sm:$0xff]
          %v1833 = vld [vmem:[#allocation2 + $0xe50] sm:$0xff]
          %v1834 = vld [vmem:[#allocation2 + $0xe58] sm:$0xff]
          %v1835 = vld [vmem:[#allocation2 + $0xec0] sm:$0xff]
          %v1836 = vld [vmem:[#allocation2 + $0xec8] sm:$0xff]
          %v1837 = vld [vmem:[#allocation2 + $0xed0] sm:$0xff]
          %v1838 = vld [vmem:[#allocation2 + $0xed8] sm:$0xff]
          %v1839 = vld [vmem:[#allocation2 + $0xf40] sm:$0xff]
          %v1840 = vld [vmem:[#allocation2 + $0xf48] sm:$0xff]
          %v1841 = vld [vmem:[#allocation2 + $0xf50] sm:$0xff]
          %v1842 = vld [vmem:[#allocation2 + $0xf58] sm:$0xff]
          %v1843 = vld [vmem:[#allocation2 + $0xfc0] sm:$0xff]
          %v1844 = vld [vmem:[#allocation2 + $0xfc8] sm:$0xff]
          %v1845 = vld [vmem:[#allocation2 + $0xfd0] sm:$0xff]
          %v1846 = vld [vmem:[#allocation2 + $0xfd8] sm:$0xff]
          %v1847 = vld [vmem:[#allocation2 + $0x1040] sm:$0xff]
          %v1848 = vld [vmem:[#allocation2 + $0x1048] sm:$0xff]
          %v1849 = vld [vmem:[#allocation2 + $0x1050] sm:$0xff]
          %v1850 = vld [vmem:[#allocation2 + $0x1058] sm:$0xff]
          %v1851 = vld [vmem:[#allocation2 + $0x10c0] sm:$0xff]
          %v1852 = vld [vmem:[#allocation2 + $0x10c8] sm:$0xff]
          %v1853 = vld [vmem:[#allocation2 + $0x10d0] sm:$0xff]
          %v1854 = vld [vmem:[#allocation2 + $0x10d8] sm:$0xff]
          %v1855 = vld [vmem:[#allocation2 + $0x1140] sm:$0xff]
          %v1856 = vld [vmem:[#allocation2 + $0x1148] sm:$0xff]
          %v1857 = vld [vmem:[#allocation2 + $0x1150] sm:$0xff]
          %v1858 = vld [vmem:[#allocation2 + $0x1158] sm:$0xff]
          %v1859 = vld [vmem:[#allocation2 + $0x11c0] sm:$0xff]
          %v1860 = vld [vmem:[#allocation2 + $0x11c8] sm:$0xff]
          %v1861 = vld [vmem:[#allocation2 + $0x11d0] sm:$0xff]
          %v1862 = vld [vmem:[#allocation2 + $0x11d8] sm:$0xff]
          %v1863 = vpack.c.bf16 %v1723, %v1719
          %v1864 = vpack.c.bf16 %v1724, %v1720
          %v1865 = vpack.c.bf16 %v1725, %v1721
          %v1866 = vpack.c.bf16 %v1726, %v1722
          %v1867 = vpack.c.bf16 %v1731, %v1727
          %v1868 = vpack.c.bf16 %v1732, %v1728
          %v1869 = vpack.c.bf16 %v1733, %v1729
          %v1870 = vpack.c.bf16 %v1734, %v1730
          %v1871 = vpack.c.bf16 %v1739, %v1735
          %v1872 = vpack.c.bf16 %v1740, %v1736
          %v1873 = vpack.c.bf16 %v1741, %v1737
          %v1874 = vpack.c.bf16 %v1742, %v1738
          %v1875 = vpack.c.bf16 %v1747, %v1743
          %v1876 = vpack.c.bf16 %v1748, %v1744
          %v1877 = vpack.c.bf16 %v1749, %v1745
          %v1878 = vpack.c.bf16 %v1750, %v1746
          %v1879 = vpack.c.bf16 %v1755, %v1751
          %v1880 = vpack.c.bf16 %v1756, %v1752
          %v1881 = vpack.c.bf16 %v1757, %v1753
          %v1882 = vpack.c.bf16 %v1758, %v1754
          %v1883 = vpack.c.bf16 %v1763, %v1759
          %v1884 = vpack.c.bf16 %v1764, %v1760
          %v1885 = vpack.c.bf16 %v1765, %v1761
          %v1886 = vpack.c.bf16 %v1766, %v1762
          %v1887 = vpack.c.bf16 %v1771, %v1767
          %v1888 = vpack.c.bf16 %v1772, %v1768
          %v1889 = vpack.c.bf16 %v1773, %v1769
          %v1890 = vpack.c.bf16 %v1774, %v1770
          %v1891 = vpack.c.bf16 %v1779, %v1775
          %v1892 = vpack.c.bf16 %v1780, %v1776
          %v1893 = vpack.c.bf16 %v1781, %v1777
          %v1894 = vpack.c.bf16 %v1782, %v1778
          %v1895 = vpack.c.bf16 %v1787, %v1783
          %v1896 = vpack.c.bf16 %v1788, %v1784
          %v1897 = vpack.c.bf16 %v1789, %v1785
          %v1898 = vpack.c.bf16 %v1790, %v1786
          %v1899 = vpack.c.bf16 %v1795, %v1791
          %v1900 = vpack.c.bf16 %v1796, %v1792
          %v1901 = vpack.c.bf16 %v1797, %v1793
          %v1902 = vpack.c.bf16 %v1798, %v1794
          %v1903 = vpack.c.bf16 %v1803, %v1799
          %v1904 = vpack.c.bf16 %v1804, %v1800
          %v1905 = vpack.c.bf16 %v1805, %v1801
          %v1906 = vpack.c.bf16 %v1806, %v1802
          %v1907 = vpack.c.bf16 %v1811, %v1807
          %v1908 = vpack.c.bf16 %v1812, %v1808
          %v1909 = vpack.c.bf16 %v1813, %v1809
          %v1910 = vpack.c.bf16 %v1814, %v1810
          %v1911 = vpack.c.bf16 %v1819, %v1815
          %v1912 = vpack.c.bf16 %v1820, %v1816
          %v1913 = vpack.c.bf16 %v1821, %v1817
          %v1914 = vpack.c.bf16 %v1822, %v1818
          %v1915 = vpack.c.bf16 %v1827, %v1823
          %v1916 = vpack.c.bf16 %v1828, %v1824
          %v1917 = vpack.c.bf16 %v1829, %v1825
          %v1918 = vpack.c.bf16 %v1830, %v1826
          %v1919 = vpack.c.bf16 %v1835, %v1831
          %v1920 = vpack.c.bf16 %v1836, %v1832
          %v1921 = vpack.c.bf16 %v1837, %v1833
          %v1922 = vpack.c.bf16 %v1838, %v1834
          %v1923 = vpack.c.bf16 %v1843, %v1839
          %v1924 = vpack.c.bf16 %v1844, %v1840
          %v1925 = vpack.c.bf16 %v1845, %v1841
          %v1926 = vpack.c.bf16 %v1846, %v1842
          %v1927 = vpack.c.bf16 %v1851, %v1847
          %v1928 = vpack.c.bf16 %v1852, %v1848
          %v1929 = vpack.c.bf16 %v1853, %v1849
          %v1930 = vpack.c.bf16 %v1854, %v1850
          %v1931 = vpack.c.bf16 %v1859, %v1855
          %v1932 = vpack.c.bf16 %v1860, %v1856
          %v1933 = vpack.c.bf16 %v1861, %v1857
          %v1934 = vpack.c.bf16 %v1862, %v1858
          %v2007 = vunpack.c.l.b16 %v1863
          %v2008 = vunpack.c.l.b16 %v1864
          %v2009 = vunpack.c.l.b16 %v1865
          %v2010 = vunpack.c.l.b16 %v1866
          %v2011 = vunpack.c.h.b16 %v1863
          %v2012 = vunpack.c.h.b16 %v1864
          %v2013 = vunpack.c.h.b16 %v1865
          %v2014 = vunpack.c.h.b16 %v1866
          %v2015 = vunpack.c.l.b16 %v1867
          %v2016 = vunpack.c.l.b16 %v1868
          %v2017 = vunpack.c.l.b16 %v1869
          %v2018 = vunpack.c.l.b16 %v1870
          %v2019 = vunpack.c.h.b16 %v1867
          %v2020 = vunpack.c.h.b16 %v1868
          %v2021 = vunpack.c.h.b16 %v1869
          %v2022 = vunpack.c.h.b16 %v1870
          %v2023 = vunpack.c.l.b16 %v1871
          %v2024 = vunpack.c.l.b16 %v1872
          %v2025 = vunpack.c.l.b16 %v1873
          %v2026 = vunpack.c.l.b16 %v1874
          %v2027 = vunpack.c.h.b16 %v1871
          %v2028 = vunpack.c.h.b16 %v1872
          %v2029 = vunpack.c.h.b16 %v1873
          %v2030 = vunpack.c.h.b16 %v1874
          %v2031 = vunpack.c.l.b16 %v1875
          %v2032 = vunpack.c.l.b16 %v1876
          %v2033 = vunpack.c.l.b16 %v1877
          %v2034 = vunpack.c.l.b16 %v1878
          %v2035 = vunpack.c.h.b16 %v1875
          %v2036 = vunpack.c.h.b16 %v1876
          %v2037 = vunpack.c.h.b16 %v1877
          %v2038 = vunpack.c.h.b16 %v1878
          %v2039 = vunpack.c.l.b16 %v1879
          %v2040 = vunpack.c.l.b16 %v1880
          %v2041 = vunpack.c.l.b16 %v1881
          %v2042 = vunpack.c.l.b16 %v1882
          %v2043 = vunpack.c.h.b16 %v1879
          %v2044 = vunpack.c.h.b16 %v1880
          %v2045 = vunpack.c.h.b16 %v1881
          %v2046 = vunpack.c.h.b16 %v1882
          %v2047 = vunpack.c.l.b16 %v1883
          %v2048 = vunpack.c.l.b16 %v1884
          %v2049 = vunpack.c.l.b16 %v1885
          %v2050 = vunpack.c.l.b16 %v1886
          %v2051 = vunpack.c.h.b16 %v1883
          %v2052 = vunpack.c.h.b16 %v1884
          %v2053 = vunpack.c.h.b16 %v1885
          %v2054 = vunpack.c.h.b16 %v1886
          %v2055 = vunpack.c.l.b16 %v1887
          %v2056 = vunpack.c.l.b16 %v1888
          %v2057 = vunpack.c.l.b16 %v1889
          %v2058 = vunpack.c.l.b16 %v1890
          %v2059 = vunpack.c.h.b16 %v1887
          %v2060 = vunpack.c.h.b16 %v1888
          %v2061 = vunpack.c.h.b16 %v1889
          %v2062 = vunpack.c.h.b16 %v1890
          %v2063 = vunpack.c.l.b16 %v1891
          %v2064 = vunpack.c.l.b16 %v1892
          %v2065 = vunpack.c.l.b16 %v1893
          %v2066 = vunpack.c.l.b16 %v1894
          %v2067 = vunpack.c.h.b16 %v1891
          %v2068 = vunpack.c.h.b16 %v1892
          %v2069 = vunpack.c.h.b16 %v1893
          %v2070 = vunpack.c.h.b16 %v1894
          %v2071 = vunpack.c.l.b16 %v1895
          %v2072 = vunpack.c.l.b16 %v1896
          %v2073 = vunpack.c.l.b16 %v1897
          %v2074 = vunpack.c.l.b16 %v1898
          %v2075 = vunpack.c.h.b16 %v1895
          %v2076 = vunpack.c.h.b16 %v1896
          %v2077 = vunpack.c.h.b16 %v1897
          %v2078 = vunpack.c.h.b16 %v1898
          %v2079 = vunpack.c.l.b16 %v1899
          %v2080 = vunpack.c.l.b16 %v1900
          %v2081 = vunpack.c.l.b16 %v1901
          %v2082 = vunpack.c.l.b16 %v1902
          %v2083 = vunpack.c.h.b16 %v1899
          %v2084 = vunpack.c.h.b16 %v1900
          %v2085 = vunpack.c.h.b16 %v1901
          %v2086 = vunpack.c.h.b16 %v1902
          %v2087 = vunpack.c.l.b16 %v1903
          %v2088 = vunpack.c.l.b16 %v1904
          %v2089 = vunpack.c.l.b16 %v1905
          %v2090 = vunpack.c.l.b16 %v1906
          %v2091 = vunpack.c.h.b16 %v1903
          %v2092 = vunpack.c.h.b16 %v1904
          %v2093 = vunpack.c.h.b16 %v1905
          %v2094 = vunpack.c.h.b16 %v1906
          %v2095 = vunpack.c.l.b16 %v1907
          %v2096 = vunpack.c.l.b16 %v1908
          %v2097 = vunpack.c.l.b16 %v1909
          %v2098 = vunpack.c.l.b16 %v1910
          %v2099 = vunpack.c.h.b16 %v1907
          %v2100 = vunpack.c.h.b16 %v1908
          %v2101 = vunpack.c.h.b16 %v1909
          %v2102 = vunpack.c.h.b16 %v1910
          %v2103 = vunpack.c.l.b16 %v1911
          %v2104 = vunpack.c.l.b16 %v1912
          %v2105 = vunpack.c.l.b16 %v1913
          %v2106 = vunpack.c.l.b16 %v1914
          %v2107 = vunpack.c.h.b16 %v1911
          %v2108 = vunpack.c.h.b16 %v1912
          %v2109 = vunpack.c.h.b16 %v1913
          %v2110 = vunpack.c.h.b16 %v1914
          %v2111 = vunpack.c.l.b16 %v1915
          %v2112 = vunpack.c.l.b16 %v1916
          %v2113 = vunpack.c.l.b16 %v1917
          %v2114 = vunpack.c.l.b16 %v1918
          %v2115 = vunpack.c.h.b16 %v1915
          %v2116 = vunpack.c.h.b16 %v1916
          %v2117 = vunpack.c.h.b16 %v1917
          %v2118 = vunpack.c.h.b16 %v1918
          %v2119 = vunpack.c.l.b16 %v1919
          %v2120 = vunpack.c.l.b16 %v1920
          %v2121 = vunpack.c.l.b16 %v1921
          %v2122 = vunpack.c.l.b16 %v1922
          %v2123 = vunpack.c.h.b16 %v1919
          %v2124 = vunpack.c.h.b16 %v1920
          %v2125 = vunpack.c.h.b16 %v1921
          %v2126 = vunpack.c.h.b16 %v1922
          %v2127 = vunpack.c.l.b16 %v1923
          %v2128 = vunpack.c.l.b16 %v1924
          %v2129 = vunpack.c.l.b16 %v1925
          %v2130 = vunpack.c.l.b16 %v1926
          %v2131 = vunpack.c.h.b16 %v1923
          %v2132 = vunpack.c.h.b16 %v1924
          %v2133 = vunpack.c.h.b16 %v1925
          %v2134 = vunpack.c.h.b16 %v1926
          %v2135 = vunpack.c.l.b16 %v1927
          %v2136 = vunpack.c.l.b16 %v1928
          %v2137 = vunpack.c.l.b16 %v1929
          %v2138 = vunpack.c.l.b16 %v1930
          %v2139 = vunpack.c.h.b16 %v1927
          %v2140 = vunpack.c.h.b16 %v1928
          %v2141 = vunpack.c.h.b16 %v1929
          %v2142 = vunpack.c.h.b16 %v1930
          %v2143 = vunpack.c.l.b16 %v1931
          %v2144 = vunpack.c.l.b16 %v1932
          %v2145 = vunpack.c.l.b16 %v1933
          %v2146 = vunpack.c.l.b16 %v1934
          %v2147 = vunpack.c.h.b16 %v1931
          %v2148 = vunpack.c.h.b16 %v1932
          %v2149 = vunpack.c.h.b16 %v1933
          %v2150 = vunpack.c.h.b16 %v1934
          %v2151 = vpack.c.b16 %v2008, %v2007
          %v2152 = vpack.c.b16 %v2010, %v2009
          %v2153 = vpack.c.b16 %v2012, %v2011
          %v2154 = vpack.c.b16 %v2014, %v2013
          %v2155 = vpack.c.b16 %v2016, %v2015
          %v2156 = vpack.c.b16 %v2018, %v2017
          %v2157 = vpack.c.b16 %v2020, %v2019
          %v2158 = vpack.c.b16 %v2022, %v2021
          %v2159 = vpack.c.b16 %v2024, %v2023
          %v2160 = vpack.c.b16 %v2026, %v2025
          %v2161 = vpack.c.b16 %v2028, %v2027
          %v2162 = vpack.c.b16 %v2030, %v2029
          %v2163 = vpack.c.b16 %v2032, %v2031
          %v2164 = vpack.c.b16 %v2034, %v2033
          %v2165 = vpack.c.b16 %v2036, %v2035
          %v2166 = vpack.c.b16 %v2038, %v2037
          %v2167 = vpack.c.b16 %v2040, %v2039
          %v2168 = vpack.c.b16 %v2042, %v2041
          %v2169 = vpack.c.b16 %v2044, %v2043
          %v2170 = vpack.c.b16 %v2046, %v2045
          %v2171 = vpack.c.b16 %v2048, %v2047
          %v2172 = vpack.c.b16 %v2050, %v2049
          %v2173 = vpack.c.b16 %v2052, %v2051
          %v2174 = vpack.c.b16 %v2054, %v2053
          %v2175 = vpack.c.b16 %v2056, %v2055
          %v2176 = vpack.c.b16 %v2058, %v2057
          %v2177 = vpack.c.b16 %v2060, %v2059
          %v2178 = vpack.c.b16 %v2062, %v2061
          %v2179 = vpack.c.b16 %v2064, %v2063
          %v2180 = vpack.c.b16 %v2066, %v2065
          %v2181 = vpack.c.b16 %v2068, %v2067
          %v2182 = vpack.c.b16 %v2070, %v2069
          %v2183 = vpack.c.b16 %v2072, %v2071
          %v2184 = vpack.c.b16 %v2074, %v2073
          %v2185 = vpack.c.b16 %v2076, %v2075
          %v2186 = vpack.c.b16 %v2078, %v2077
          %v2187 = vpack.c.b16 %v2080, %v2079
          %v2188 = vpack.c.b16 %v2082, %v2081
          %v2189 = vpack.c.b16 %v2084, %v2083
          %v2190 = vpack.c.b16 %v2086, %v2085
          %v2191 = vpack.c.b16 %v2088, %v2087
          %v2192 = vpack.c.b16 %v2090, %v2089
          %v2193 = vpack.c.b16 %v2092, %v2091
          %v2194 = vpack.c.b16 %v2094, %v2093
          %v2195 = vpack.c.b16 %v2096, %v2095
          %v2196 = vpack.c.b16 %v2098, %v2097
          %v2197 = vpack.c.b16 %v2100, %v2099
          %v2198 = vpack.c.b16 %v2102, %v2101
          %v2199 = vpack.c.b16 %v2104, %v2103
          %v2200 = vpack.c.b16 %v2106, %v2105
          %v2201 = vpack.c.b16 %v2108, %v2107
          %v2202 = vpack.c.b16 %v2110, %v2109
          %v2203 = vpack.c.b16 %v2112, %v2111
          %v2204 = vpack.c.b16 %v2114, %v2113
          %v2205 = vpack.c.b16 %v2116, %v2115
          %v2206 = vpack.c.b16 %v2118, %v2117
          %v2207 = vpack.c.b16 %v2120, %v2119
          %v2208 = vpack.c.b16 %v2122, %v2121
          %v2209 = vpack.c.b16 %v2124, %v2123
          %v2210 = vpack.c.b16 %v2126, %v2125
          %v2211 = vpack.c.b16 %v2128, %v2127
          %v2212 = vpack.c.b16 %v2130, %v2129
          %v2213 = vpack.c.b16 %v2132, %v2131
          %v2214 = vpack.c.b16 %v2134, %v2133
          %v2215 = vpack.c.b16 %v2136, %v2135
          %v2216 = vpack.c.b16 %v2138, %v2137
          %v2217 = vpack.c.b16 %v2140, %v2139
          %v2218 = vpack.c.b16 %v2142, %v2141
          %v2219 = vpack.c.b16 %v2144, %v2143
          %v2220 = vpack.c.b16 %v2146, %v2145
          %v2221 = vpack.c.b16 %v2148, %v2147
          %v2222 = vpack.c.b16 %v2150, %v2149
          %2295 = vst [vmem:[%s389] sm:$0xff] %v2151
          %2296 = vst [vmem:[%s389 + $0x8] sm:$0xff] %v2152
          %2297 = vst [vmem:[%s389 + $0x10] sm:$0xff] %v2153
          %2298 = vst [vmem:[%s389 + $0x18] sm:$0xff] %v2154
          %2299 = vst [vmem:[%s389 + $0x20] sm:$0xff] %v2155
          %2300 = vst [vmem:[%s389 + $0x28] sm:$0xff] %v2156
          %2301 = vst [vmem:[%s389 + $0x30] sm:$0xff] %v2157
          %2302 = vst [vmem:[%s389 + $0x38] sm:$0xff] %v2158
          %2303 = vst [vmem:[%s389 + $0x40] sm:$0xff] %v2159
          %2304 = vst [vmem:[%s389 + $0x48] sm:$0xff] %v2160
          %2305 = vst [vmem:[%s389 + $0x50] sm:$0xff] %v2161
          %2306 = vst [vmem:[%s389 + $0x58] sm:$0xff] %v2162
          %2307 = vst [vmem:[%s389 + $0x60] sm:$0xff] %v2163
          %2308 = vst [vmem:[%s389 + $0x68] sm:$0xff] %v2164
          %2309 = vst [vmem:[%s389 + $0x70] sm:$0xff] %v2165
          %2310 = vst [vmem:[%s389 + $0x78] sm:$0xff] %v2166
          %2311 = vst [vmem:[%s389 + $0x80] sm:$0xff] %v2167
          %2312 = vst [vmem:[%s389 + $0x88] sm:$0xff] %v2168
          %2313 = vst [vmem:[%s389 + $0x90] sm:$0xff] %v2169
          %2314 = vst [vmem:[%s389 + $0x98] sm:$0xff] %v2170
          %2315 = vst [vmem:[%s389 + $0xa0] sm:$0xff] %v2171
          %2316 = vst [vmem:[%s389 + $0xa8] sm:$0xff] %v2172
          %2317 = vst [vmem:[%s389 + $0xb0] sm:$0xff] %v2173
          %2318 = vst [vmem:[%s389 + $0xb8] sm:$0xff] %v2174
          %2319 = vst [vmem:[%s389 + $0xc0] sm:$0xff] %v2175
          %2320 = vst [vmem:[%s389 + $0xc8] sm:$0xff] %v2176
          %2321 = vst [vmem:[%s389 + $0xd0] sm:$0xff] %v2177
          %2322 = vst [vmem:[%s389 + $0xd8] sm:$0xff] %v2178
          %2323 = vst [vmem:[%s389 + $0xe0] sm:$0xff] %v2179
          %2324 = vst [vmem:[%s389 + $0xe8] sm:$0xff] %v2180
          %2325 = vst [vmem:[%s389 + $0xf0] sm:$0xff] %v2181
          %2326 = vst [vmem:[%s389 + $0xf8] sm:$0xff] %v2182
          %2327 = vst [vmem:[%s389 + $0x100] sm:$0xff] %v2183
          %2328 = vst [vmem:[%s389 + $0x108] sm:$0xff] %v2184
          %2329 = vst [vmem:[%s389 + $0x110] sm:$0xff] %v2185
          %2330 = vst [vmem:[%s389 + $0x118] sm:$0xff] %v2186
          %2331 = vst [vmem:[%s389 + $0x120] sm:$0xff] %v2187
          %2332 = vst [vmem:[%s389 + $0x128] sm:$0xff] %v2188
          %2333 = vst [vmem:[%s389 + $0x130] sm:$0xff] %v2189
          %2334 = vst [vmem:[%s389 + $0x138] sm:$0xff] %v2190
          %2335 = vst [vmem:[%s389 + $0x140] sm:$0xff] %v2191
          %2336 = vst [vmem:[%s389 + $0x148] sm:$0xff] %v2192
          %2337 = vst [vmem:[%s389 + $0x150] sm:$0xff] %v2193
          %2338 = vst [vmem:[%s389 + $0x158] sm:$0xff] %v2194
          %2339 = vst [vmem:[%s389 + $0x160] sm:$0xff] %v2195
          %2340 = vst [vmem:[%s389 + $0x168] sm:$0xff] %v2196
          %2341 = vst [vmem:[%s389 + $0x170] sm:$0xff] %v2197
          %2342 = vst [vmem:[%s389 + $0x178] sm:$0xff] %v2198
          %2343 = vst [vmem:[%s389 + $0x180] sm:$0xff] %v2199
          %2344 = vst [vmem:[%s389 + $0x188] sm:$0xff] %v2200
          %2345 = vst [vmem:[%s389 + $0x190] sm:$0xff] %v2201
          %2346 = vst [vmem:[%s389 + $0x198] sm:$0xff] %v2202
          %2347 = vst [vmem:[%s389 + $0x1a0] sm:$0xff] %v2203
          %2348 = vst [vmem:[%s389 + $0x1a8] sm:$0xff] %v2204
          %2349 = vst [vmem:[%s389 + $0x1b0] sm:$0xff] %v2205
          %2350 = vst [vmem:[%s389 + $0x1b8] sm:$0xff] %v2206
          %2351 = vst [vmem:[%s389 + $0x1c0] sm:$0xff] %v2207
          %2352 = vst [vmem:[%s389 + $0x1c8] sm:$0xff] %v2208
          %2353 = vst [vmem:[%s389 + $0x1d0] sm:$0xff] %v2209
          %2354 = vst [vmem:[%s389 + $0x1d8] sm:$0xff] %v2210
          %2355 = vst [vmem:[%s389 + $0x1e0] sm:$0xff] %v2211
          %2356 = vst [vmem:[%s389 + $0x1e8] sm:$0xff] %v2212
          %2357 = vst [vmem:[%s389 + $0x1f0] sm:$0xff] %v2213
          %2358 = vst [vmem:[%s389 + $0x1f8] sm:$0xff] %v2214
          %2359 = vst [vmem:[%s389 + $0x200] sm:$0xff] %v2215
          %2360 = vst [vmem:[%s389 + $0x208] sm:$0xff] %v2216
          %2361 = vst [vmem:[%s389 + $0x210] sm:$0xff] %v2217
          %2362 = vst [vmem:[%s389 + $0x218] sm:$0xff] %v2218
          %2363 = vst [vmem:[%s389 + $0x220] sm:$0xff] %v2219
          %2364 = vst [vmem:[%s389 + $0x228] sm:$0xff] %v2220
          %2365 = vst [vmem:[%s389 + $0x230] sm:$0xff] %v2221
          %2366 = vst [vmem:[%s389 + $0x238] sm:$0xff] %v2222
        $region68: #{tpu_custom_call.1} parent=39 // pred_fallthru
          _
        %p2367 = scmp.eq.s32.totalorder %s26, 3
        // Predicated region
        $region69: #{tpu_custom_call.1} parent=39 // pred_check
          %p2368 = pneg %p2367
        $region70: #{tpu_custom_call.1} parent=39 // pred_check_branch
          %2370 = sbr.rel (%p2368) target = $region72
        $region71: #{tpu_custom_call.1} parent=39 // pred_region
          %v2371 = vld [vmem:[#allocation2 + $0x60] sm:$0xff]
          %v2372 = vld [vmem:[#allocation2 + $0x68] sm:$0xff]
          %v2373 = vld [vmem:[#allocation2 + $0x70] sm:$0xff]
          %v2374 = vld [vmem:[#allocation2 + $0x78] sm:$0xff]
          %v2375 = vld [vmem:[#allocation2 + $0xe0] sm:$0xff]
          %v2376 = vld [vmem:[#allocation2 + $0xe8] sm:$0xff]
          %v2377 = vld [vmem:[#allocation2 + $0xf0] sm:$0xff]
          %v2378 = vld [vmem:[#allocation2 + $0xf8] sm:$0xff]
          %v2379 = vld [vmem:[#allocation2 + $0x160] sm:$0xff]
          %v2380 = vld [vmem:[#allocation2 + $0x168] sm:$0xff]
          %v2381 = vld [vmem:[#allocation2 + $0x170] sm:$0xff]
          %v2382 = vld [vmem:[#allocation2 + $0x178] sm:$0xff]
          %v2383 = vld [vmem:[#allocation2 + $0x1e0] sm:$0xff]
          %v2384 = vld [vmem:[#allocation2 + $0x1e8] sm:$0xff]
          %v2385 = vld [vmem:[#allocation2 + $0x1f0] sm:$0xff]
          %v2386 = vld [vmem:[#allocation2 + $0x1f8] sm:$0xff]
          %v2387 = vld [vmem:[#allocation2 + $0x260] sm:$0xff]
          %v2388 = vld [vmem:[#allocation2 + $0x268] sm:$0xff]
          %v2389 = vld [vmem:[#allocation2 + $0x270] sm:$0xff]
          %v2390 = vld [vmem:[#allocation2 + $0x278] sm:$0xff]
          %v2391 = vld [vmem:[#allocation2 + $0x2e0] sm:$0xff]
          %v2392 = vld [vmem:[#allocation2 + $0x2e8] sm:$0xff]
          %v2393 = vld [vmem:[#allocation2 + $0x2f0] sm:$0xff]
          %v2394 = vld [vmem:[#allocation2 + $0x2f8] sm:$0xff]
          %v2395 = vld [vmem:[#allocation2 + $0x360] sm:$0xff]
          %v2396 = vld [vmem:[#allocation2 + $0x368] sm:$0xff]
          %v2397 = vld [vmem:[#allocation2 + $0x370] sm:$0xff]
          %v2398 = vld [vmem:[#allocation2 + $0x378] sm:$0xff]
          %v2399 = vld [vmem:[#allocation2 + $0x3e0] sm:$0xff]
          %v2400 = vld [vmem:[#allocation2 + $0x3e8] sm:$0xff]
          %v2401 = vld [vmem:[#allocation2 + $0x3f0] sm:$0xff]
          %v2402 = vld [vmem:[#allocation2 + $0x3f8] sm:$0xff]
          %v2403 = vld [vmem:[#allocation2 + $0x460] sm:$0xff]
          %v2404 = vld [vmem:[#allocation2 + $0x468] sm:$0xff]
          %v2405 = vld [vmem:[#allocation2 + $0x470] sm:$0xff]
          %v2406 = vld [vmem:[#allocation2 + $0x478] sm:$0xff]
          %v2407 = vld [vmem:[#allocation2 + $0x4e0] sm:$0xff]
          %v2408 = vld [vmem:[#allocation2 + $0x4e8] sm:$0xff]
          %v2409 = vld [vmem:[#allocation2 + $0x4f0] sm:$0xff]
          %v2410 = vld [vmem:[#allocation2 + $0x4f8] sm:$0xff]
          %v2411 = vld [vmem:[#allocation2 + $0x560] sm:$0xff]
          %v2412 = vld [vmem:[#allocation2 + $0x568] sm:$0xff]
          %v2413 = vld [vmem:[#allocation2 + $0x570] sm:$0xff]
          %v2414 = vld [vmem:[#allocation2 + $0x578] sm:$0xff]
          %v2415 = vld [vmem:[#allocation2 + $0x5e0] sm:$0xff]
          %v2416 = vld [vmem:[#allocation2 + $0x5e8] sm:$0xff]
          %v2417 = vld [vmem:[#allocation2 + $0x5f0] sm:$0xff]
          %v2418 = vld [vmem:[#allocation2 + $0x5f8] sm:$0xff]
          %v2419 = vld [vmem:[#allocation2 + $0x660] sm:$0xff]
          %v2420 = vld [vmem:[#allocation2 + $0x668] sm:$0xff]
          %v2421 = vld [vmem:[#allocation2 + $0x670] sm:$0xff]
          %v2422 = vld [vmem:[#allocation2 + $0x678] sm:$0xff]
          %v2423 = vld [vmem:[#allocation2 + $0x6e0] sm:$0xff]
          %v2424 = vld [vmem:[#allocation2 + $0x6e8] sm:$0xff]
          %v2425 = vld [vmem:[#allocation2 + $0x6f0] sm:$0xff]
          %v2426 = vld [vmem:[#allocation2 + $0x6f8] sm:$0xff]
          %v2427 = vld [vmem:[#allocation2 + $0x760] sm:$0xff]
          %v2428 = vld [vmem:[#allocation2 + $0x768] sm:$0xff]
          %v2429 = vld [vmem:[#allocation2 + $0x770] sm:$0xff]
          %v2430 = vld [vmem:[#allocation2 + $0x778] sm:$0xff]
          %v2431 = vld [vmem:[#allocation2 + $0x7e0] sm:$0xff]
          %v2432 = vld [vmem:[#allocation2 + $0x7e8] sm:$0xff]
          %v2433 = vld [vmem:[#allocation2 + $0x7f0] sm:$0xff]
          %v2434 = vld [vmem:[#allocation2 + $0x7f8] sm:$0xff]
          %v2435 = vld [vmem:[#allocation2 + $0x860] sm:$0xff]
          %v2436 = vld [vmem:[#allocation2 + $0x868] sm:$0xff]
          %v2437 = vld [vmem:[#allocation2 + $0x870] sm:$0xff]
          %v2438 = vld [vmem:[#allocation2 + $0x878] sm:$0xff]
          %v2439 = vld [vmem:[#allocation2 + $0x8e0] sm:$0xff]
          %v2440 = vld [vmem:[#allocation2 + $0x8e8] sm:$0xff]
          %v2441 = vld [vmem:[#allocation2 + $0x8f0] sm:$0xff]
          %v2442 = vld [vmem:[#allocation2 + $0x8f8] sm:$0xff]
          %v2443 = vld [vmem:[#allocation2 + $0x960] sm:$0xff]
          %v2444 = vld [vmem:[#allocation2 + $0x968] sm:$0xff]
          %v2445 = vld [vmem:[#allocation2 + $0x970] sm:$0xff]
          %v2446 = vld [vmem:[#allocation2 + $0x978] sm:$0xff]
          %v2447 = vld [vmem:[#allocation2 + $0x9e0] sm:$0xff]
          %v2448 = vld [vmem:[#allocation2 + $0x9e8] sm:$0xff]
          %v2449 = vld [vmem:[#allocation2 + $0x9f0] sm:$0xff]
          %v2450 = vld [vmem:[#allocation2 + $0x9f8] sm:$0xff]
          %v2451 = vld [vmem:[#allocation2 + $0xa60] sm:$0xff]
          %v2452 = vld [vmem:[#allocation2 + $0xa68] sm:$0xff]
          %v2453 = vld [vmem:[#allocation2 + $0xa70] sm:$0xff]
          %v2454 = vld [vmem:[#allocation2 + $0xa78] sm:$0xff]
          %v2455 = vld [vmem:[#allocation2 + $0xae0] sm:$0xff]
          %v2456 = vld [vmem:[#allocation2 + $0xae8] sm:$0xff]
          %v2457 = vld [vmem:[#allocation2 + $0xaf0] sm:$0xff]
          %v2458 = vld [vmem:[#allocation2 + $0xaf8] sm:$0xff]
          %v2459 = vld [vmem:[#allocation2 + $0xb60] sm:$0xff]
          %v2460 = vld [vmem:[#allocation2 + $0xb68] sm:$0xff]
          %v2461 = vld [vmem:[#allocation2 + $0xb70] sm:$0xff]
          %v2462 = vld [vmem:[#allocation2 + $0xb78] sm:$0xff]
          %v2463 = vld [vmem:[#allocation2 + $0xbe0] sm:$0xff]
          %v2464 = vld [vmem:[#allocation2 + $0xbe8] sm:$0xff]
          %v2465 = vld [vmem:[#allocation2 + $0xbf0] sm:$0xff]
          %v2466 = vld [vmem:[#allocation2 + $0xbf8] sm:$0xff]
          %v2467 = vld [vmem:[#allocation2 + $0xc60] sm:$0xff]
          %v2468 = vld [vmem:[#allocation2 + $0xc68] sm:$0xff]
          %v2469 = vld [vmem:[#allocation2 + $0xc70] sm:$0xff]
          %v2470 = vld [vmem:[#allocation2 + $0xc78] sm:$0xff]
          %v2471 = vld [vmem:[#allocation2 + $0xce0] sm:$0xff]
          %v2472 = vld [vmem:[#allocation2 + $0xce8] sm:$0xff]
          %v2473 = vld [vmem:[#allocation2 + $0xcf0] sm:$0xff]
          %v2474 = vld [vmem:[#allocation2 + $0xcf8] sm:$0xff]
          %v2475 = vld [vmem:[#allocation2 + $0xd60] sm:$0xff]
          %v2476 = vld [vmem:[#allocation2 + $0xd68] sm:$0xff]
          %v2477 = vld [vmem:[#allocation2 + $0xd70] sm:$0xff]
          %v2478 = vld [vmem:[#allocation2 + $0xd78] sm:$0xff]
          %v2479 = vld [vmem:[#allocation2 + $0xde0] sm:$0xff]
          %v2480 = vld [vmem:[#allocation2 + $0xde8] sm:$0xff]
          %v2481 = vld [vmem:[#allocation2 + $0xdf0] sm:$0xff]
          %v2482 = vld [vmem:[#allocation2 + $0xdf8] sm:$0xff]
          %v2483 = vld [vmem:[#allocation2 + $0xe60] sm:$0xff]
          %v2484 = vld [vmem:[#allocation2 + $0xe68] sm:$0xff]
          %v2485 = vld [vmem:[#allocation2 + $0xe70] sm:$0xff]
          %v2486 = vld [vmem:[#allocation2 + $0xe78] sm:$0xff]
          %v2487 = vld [vmem:[#allocation2 + $0xee0] sm:$0xff]
          %v2488 = vld [vmem:[#allocation2 + $0xee8] sm:$0xff]
          %v2489 = vld [vmem:[#allocation2 + $0xef0] sm:$0xff]
          %v2490 = vld [vmem:[#allocation2 + $0xef8] sm:$0xff]
          %v2491 = vld [vmem:[#allocation2 + $0xf60] sm:$0xff]
          %v2492 = vld [vmem:[#allocation2 + $0xf68] sm:$0xff]
          %v2493 = vld [vmem:[#allocation2 + $0xf70] sm:$0xff]
          %v2494 = vld [vmem:[#allocation2 + $0xf78] sm:$0xff]
          %v2495 = vld [vmem:[#allocation2 + $0xfe0] sm:$0xff]
          %v2496 = vld [vmem:[#allocation2 + $0xfe8] sm:$0xff]
          %v2497 = vld [vmem:[#allocation2 + $0xff0] sm:$0xff]
          %v2498 = vld [vmem:[#allocation2 + $0xff8] sm:$0xff]
          %v2499 = vld [vmem:[#allocation2 + $0x1060] sm:$0xff]
          %v2500 = vld [vmem:[#allocation2 + $0x1068] sm:$0xff]
          %v2501 = vld [vmem:[#allocation2 + $0x1070] sm:$0xff]
          %v2502 = vld [vmem:[#allocation2 + $0x1078] sm:$0xff]
          %v2503 = vld [vmem:[#allocation2 + $0x10e0] sm:$0xff]
          %v2504 = vld [vmem:[#allocation2 + $0x10e8] sm:$0xff]
          %v2505 = vld [vmem:[#allocation2 + $0x10f0] sm:$0xff]
          %v2506 = vld [vmem:[#allocation2 + $0x10f8] sm:$0xff]
          %v2507 = vld [vmem:[#allocation2 + $0x1160] sm:$0xff]
          %v2508 = vld [vmem:[#allocation2 + $0x1168] sm:$0xff]
          %v2509 = vld [vmem:[#allocation2 + $0x1170] sm:$0xff]
          %v2510 = vld [vmem:[#allocation2 + $0x1178] sm:$0xff]
          %v2511 = vld [vmem:[#allocation2 + $0x11e0] sm:$0xff]
          %v2512 = vld [vmem:[#allocation2 + $0x11e8] sm:$0xff]
          %v2513 = vld [vmem:[#allocation2 + $0x11f0] sm:$0xff]
          %v2514 = vld [vmem:[#allocation2 + $0x11f8] sm:$0xff]
          %v2515 = vpack.c.bf16 %v2375, %v2371
          %v2516 = vpack.c.bf16 %v2376, %v2372
          %v2517 = vpack.c.bf16 %v2377, %v2373
          %v2518 = vpack.c.bf16 %v2378, %v2374
          %v2519 = vpack.c.bf16 %v2383, %v2379
          %v2520 = vpack.c.bf16 %v2384, %v2380
          %v2521 = vpack.c.bf16 %v2385, %v2381
          %v2522 = vpack.c.bf16 %v2386, %v2382
          %v2523 = vpack.c.bf16 %v2391, %v2387
          %v2524 = vpack.c.bf16 %v2392, %v2388
          %v2525 = vpack.c.bf16 %v2393, %v2389
          %v2526 = vpack.c.bf16 %v2394, %v2390
          %v2527 = vpack.c.bf16 %v2399, %v2395
          %v2528 = vpack.c.bf16 %v2400, %v2396
          %v2529 = vpack.c.bf16 %v2401, %v2397
          %v2530 = vpack.c.bf16 %v2402, %v2398
          %v2531 = vpack.c.bf16 %v2407, %v2403
          %v2532 = vpack.c.bf16 %v2408, %v2404
          %v2533 = vpack.c.bf16 %v2409, %v2405
          %v2534 = vpack.c.bf16 %v2410, %v2406
          %v2535 = vpack.c.bf16 %v2415, %v2411
          %v2536 = vpack.c.bf16 %v2416, %v2412
          %v2537 = vpack.c.bf16 %v2417, %v2413
          %v2538 = vpack.c.bf16 %v2418, %v2414
          %v2539 = vpack.c.bf16 %v2423, %v2419
          %v2540 = vpack.c.bf16 %v2424, %v2420
          %v2541 = vpack.c.bf16 %v2425, %v2421
          %v2542 = vpack.c.bf16 %v2426, %v2422
          %v2543 = vpack.c.bf16 %v2431, %v2427
          %v2544 = vpack.c.bf16 %v2432, %v2428
          %v2545 = vpack.c.bf16 %v2433, %v2429
          %v2546 = vpack.c.bf16 %v2434, %v2430
          %v2547 = vpack.c.bf16 %v2439, %v2435
          %v2548 = vpack.c.bf16 %v2440, %v2436
          %v2549 = vpack.c.bf16 %v2441, %v2437
          %v2550 = vpack.c.bf16 %v2442, %v2438
          %v2551 = vpack.c.bf16 %v2447, %v2443
          %v2552 = vpack.c.bf16 %v2448, %v2444
          %v2553 = vpack.c.bf16 %v2449, %v2445
          %v2554 = vpack.c.bf16 %v2450, %v2446
          %v2555 = vpack.c.bf16 %v2455, %v2451
          %v2556 = vpack.c.bf16 %v2456, %v2452
          %v2557 = vpack.c.bf16 %v2457, %v2453
          %v2558 = vpack.c.bf16 %v2458, %v2454
          %v2559 = vpack.c.bf16 %v2463, %v2459
          %v2560 = vpack.c.bf16 %v2464, %v2460
          %v2561 = vpack.c.bf16 %v2465, %v2461
          %v2562 = vpack.c.bf16 %v2466, %v2462
          %v2563 = vpack.c.bf16 %v2471, %v2467
          %v2564 = vpack.c.bf16 %v2472, %v2468
          %v2565 = vpack.c.bf16 %v2473, %v2469
          %v2566 = vpack.c.bf16 %v2474, %v2470
          %v2567 = vpack.c.bf16 %v2479, %v2475
          %v2568 = vpack.c.bf16 %v2480, %v2476
          %v2569 = vpack.c.bf16 %v2481, %v2477
          %v2570 = vpack.c.bf16 %v2482, %v2478
          %v2571 = vpack.c.bf16 %v2487, %v2483
          %v2572 = vpack.c.bf16 %v2488, %v2484
          %v2573 = vpack.c.bf16 %v2489, %v2485
          %v2574 = vpack.c.bf16 %v2490, %v2486
          %v2575 = vpack.c.bf16 %v2495, %v2491
          %v2576 = vpack.c.bf16 %v2496, %v2492
          %v2577 = vpack.c.bf16 %v2497, %v2493
          %v2578 = vpack.c.bf16 %v2498, %v2494
          %v2579 = vpack.c.bf16 %v2503, %v2499
          %v2580 = vpack.c.bf16 %v2504, %v2500
          %v2581 = vpack.c.bf16 %v2505, %v2501
          %v2582 = vpack.c.bf16 %v2506, %v2502
          %v2583 = vpack.c.bf16 %v2511, %v2507
          %v2584 = vpack.c.bf16 %v2512, %v2508
          %v2585 = vpack.c.bf16 %v2513, %v2509
          %v2586 = vpack.c.bf16 %v2514, %v2510
          %v2659 = vunpack.c.l.b16 %v2515
          %v2660 = vunpack.c.l.b16 %v2516
          %v2661 = vunpack.c.l.b16 %v2517
          %v2662 = vunpack.c.l.b16 %v2518
          %v2663 = vunpack.c.h.b16 %v2515
          %v2664 = vunpack.c.h.b16 %v2516
          %v2665 = vunpack.c.h.b16 %v2517
          %v2666 = vunpack.c.h.b16 %v2518
          %v2667 = vunpack.c.l.b16 %v2519
          %v2668 = vunpack.c.l.b16 %v2520
          %v2669 = vunpack.c.l.b16 %v2521
          %v2670 = vunpack.c.l.b16 %v2522
          %v2671 = vunpack.c.h.b16 %v2519
          %v2672 = vunpack.c.h.b16 %v2520
          %v2673 = vunpack.c.h.b16 %v2521
          %v2674 = vunpack.c.h.b16 %v2522
          %v2675 = vunpack.c.l.b16 %v2523
          %v2676 = vunpack.c.l.b16 %v2524
          %v2677 = vunpack.c.l.b16 %v2525
          %v2678 = vunpack.c.l.b16 %v2526
          %v2679 = vunpack.c.h.b16 %v2523
          %v2680 = vunpack.c.h.b16 %v2524
          %v2681 = vunpack.c.h.b16 %v2525
          %v2682 = vunpack.c.h.b16 %v2526
          %v2683 = vunpack.c.l.b16 %v2527
          %v2684 = vunpack.c.l.b16 %v2528
          %v2685 = vunpack.c.l.b16 %v2529
          %v2686 = vunpack.c.l.b16 %v2530
          %v2687 = vunpack.c.h.b16 %v2527
          %v2688 = vunpack.c.h.b16 %v2528
          %v2689 = vunpack.c.h.b16 %v2529
          %v2690 = vunpack.c.h.b16 %v2530
          %v2691 = vunpack.c.l.b16 %v2531
          %v2692 = vunpack.c.l.b16 %v2532
          %v2693 = vunpack.c.l.b16 %v2533
          %v2694 = vunpack.c.l.b16 %v2534
          %v2695 = vunpack.c.h.b16 %v2531
          %v2696 = vunpack.c.h.b16 %v2532
          %v2697 = vunpack.c.h.b16 %v2533
          %v2698 = vunpack.c.h.b16 %v2534
          %v2699 = vunpack.c.l.b16 %v2535
          %v2700 = vunpack.c.l.b16 %v2536
          %v2701 = vunpack.c.l.b16 %v2537
          %v2702 = vunpack.c.l.b16 %v2538
          %v2703 = vunpack.c.h.b16 %v2535
          %v2704 = vunpack.c.h.b16 %v2536
          %v2705 = vunpack.c.h.b16 %v2537
          %v2706 = vunpack.c.h.b16 %v2538
          %v2707 = vunpack.c.l.b16 %v2539
          %v2708 = vunpack.c.l.b16 %v2540
          %v2709 = vunpack.c.l.b16 %v2541
          %v2710 = vunpack.c.l.b16 %v2542
          %v2711 = vunpack.c.h.b16 %v2539
          %v2712 = vunpack.c.h.b16 %v2540
          %v2713 = vunpack.c.h.b16 %v2541
          %v2714 = vunpack.c.h.b16 %v2542
          %v2715 = vunpack.c.l.b16 %v2543
          %v2716 = vunpack.c.l.b16 %v2544
          %v2717 = vunpack.c.l.b16 %v2545
          %v2718 = vunpack.c.l.b16 %v2546
          %v2719 = vunpack.c.h.b16 %v2543
          %v2720 = vunpack.c.h.b16 %v2544
          %v2721 = vunpack.c.h.b16 %v2545
          %v2722 = vunpack.c.h.b16 %v2546
          %v2723 = vunpack.c.l.b16 %v2547
          %v2724 = vunpack.c.l.b16 %v2548
          %v2725 = vunpack.c.l.b16 %v2549
          %v2726 = vunpack.c.l.b16 %v2550
          %v2727 = vunpack.c.h.b16 %v2547
          %v2728 = vunpack.c.h.b16 %v2548
          %v2729 = vunpack.c.h.b16 %v2549
          %v2730 = vunpack.c.h.b16 %v2550
          %v2731 = vunpack.c.l.b16 %v2551
          %v2732 = vunpack.c.l.b16 %v2552
          %v2733 = vunpack.c.l.b16 %v2553
          %v2734 = vunpack.c.l.b16 %v2554
          %v2735 = vunpack.c.h.b16 %v2551
          %v2736 = vunpack.c.h.b16 %v2552
          %v2737 = vunpack.c.h.b16 %v2553
          %v2738 = vunpack.c.h.b16 %v2554
          %v2739 = vunpack.c.l.b16 %v2555
          %v2740 = vunpack.c.l.b16 %v2556
          %v2741 = vunpack.c.l.b16 %v2557
          %v2742 = vunpack.c.l.b16 %v2558
          %v2743 = vunpack.c.h.b16 %v2555
          %v2744 = vunpack.c.h.b16 %v2556
          %v2745 = vunpack.c.h.b16 %v2557
          %v2746 = vunpack.c.h.b16 %v2558
          %v2747 = vunpack.c.l.b16 %v2559
          %v2748 = vunpack.c.l.b16 %v2560
          %v2749 = vunpack.c.l.b16 %v2561
          %v2750 = vunpack.c.l.b16 %v2562
          %v2751 = vunpack.c.h.b16 %v2559
          %v2752 = vunpack.c.h.b16 %v2560
          %v2753 = vunpack.c.h.b16 %v2561
          %v2754 = vunpack.c.h.b16 %v2562
          %v2755 = vunpack.c.l.b16 %v2563
          %v2756 = vunpack.c.l.b16 %v2564
          %v2757 = vunpack.c.l.b16 %v2565
          %v2758 = vunpack.c.l.b16 %v2566
          %v2759 = vunpack.c.h.b16 %v2563
          %v2760 = vunpack.c.h.b16 %v2564
          %v2761 = vunpack.c.h.b16 %v2565
          %v2762 = vunpack.c.h.b16 %v2566
          %v2763 = vunpack.c.l.b16 %v2567
          %v2764 = vunpack.c.l.b16 %v2568
          %v2765 = vunpack.c.l.b16 %v2569
          %v2766 = vunpack.c.l.b16 %v2570
          %v2767 = vunpack.c.h.b16 %v2567
          %v2768 = vunpack.c.h.b16 %v2568
          %v2769 = vunpack.c.h.b16 %v2569
          %v2770 = vunpack.c.h.b16 %v2570
          %v2771 = vunpack.c.l.b16 %v2571
          %v2772 = vunpack.c.l.b16 %v2572
          %v2773 = vunpack.c.l.b16 %v2573
          %v2774 = vunpack.c.l.b16 %v2574
          %v2775 = vunpack.c.h.b16 %v2571
          %v2776 = vunpack.c.h.b16 %v2572
          %v2777 = vunpack.c.h.b16 %v2573
          %v2778 = vunpack.c.h.b16 %v2574
          %v2779 = vunpack.c.l.b16 %v2575
          %v2780 = vunpack.c.l.b16 %v2576
          %v2781 = vunpack.c.l.b16 %v2577
          %v2782 = vunpack.c.l.b16 %v2578
          %v2783 = vunpack.c.h.b16 %v2575
          %v2784 = vunpack.c.h.b16 %v2576
          %v2785 = vunpack.c.h.b16 %v2577
          %v2786 = vunpack.c.h.b16 %v2578
          %v2787 = vunpack.c.l.b16 %v2579
          %v2788 = vunpack.c.l.b16 %v2580
          %v2789 = vunpack.c.l.b16 %v2581
          %v2790 = vunpack.c.l.b16 %v2582
          %v2791 = vunpack.c.h.b16 %v2579
          %v2792 = vunpack.c.h.b16 %v2580
          %v2793 = vunpack.c.h.b16 %v2581
          %v2794 = vunpack.c.h.b16 %v2582
          %v2795 = vunpack.c.l.b16 %v2583
          %v2796 = vunpack.c.l.b16 %v2584
          %v2797 = vunpack.c.l.b16 %v2585
          %v2798 = vunpack.c.l.b16 %v2586
          %v2799 = vunpack.c.h.b16 %v2583
          %v2800 = vunpack.c.h.b16 %v2584
          %v2801 = vunpack.c.h.b16 %v2585
          %v2802 = vunpack.c.h.b16 %v2586
          %v2803 = vpack.c.b16 %v2660, %v2659
          %v2804 = vpack.c.b16 %v2662, %v2661
          %v2805 = vpack.c.b16 %v2664, %v2663
          %v2806 = vpack.c.b16 %v2666, %v2665
          %v2807 = vpack.c.b16 %v2668, %v2667
          %v2808 = vpack.c.b16 %v2670, %v2669
          %v2809 = vpack.c.b16 %v2672, %v2671
          %v2810 = vpack.c.b16 %v2674, %v2673
          %v2811 = vpack.c.b16 %v2676, %v2675
          %v2812 = vpack.c.b16 %v2678, %v2677
          %v2813 = vpack.c.b16 %v2680, %v2679
          %v2814 = vpack.c.b16 %v2682, %v2681
          %v2815 = vpack.c.b16 %v2684, %v2683
          %v2816 = vpack.c.b16 %v2686, %v2685
          %v2817 = vpack.c.b16 %v2688, %v2687
          %v2818 = vpack.c.b16 %v2690, %v2689
          %v2819 = vpack.c.b16 %v2692, %v2691
          %v2820 = vpack.c.b16 %v2694, %v2693
          %v2821 = vpack.c.b16 %v2696, %v2695
          %v2822 = vpack.c.b16 %v2698, %v2697
          %v2823 = vpack.c.b16 %v2700, %v2699
          %v2824 = vpack.c.b16 %v2702, %v2701
          %v2825 = vpack.c.b16 %v2704, %v2703
          %v2826 = vpack.c.b16 %v2706, %v2705
          %v2827 = vpack.c.b16 %v2708, %v2707
          %v2828 = vpack.c.b16 %v2710, %v2709
          %v2829 = vpack.c.b16 %v2712, %v2711
          %v2830 = vpack.c.b16 %v2714, %v2713
          %v2831 = vpack.c.b16 %v2716, %v2715
          %v2832 = vpack.c.b16 %v2718, %v2717
          %v2833 = vpack.c.b16 %v2720, %v2719
          %v2834 = vpack.c.b16 %v2722, %v2721
          %v2835 = vpack.c.b16 %v2724, %v2723
          %v2836 = vpack.c.b16 %v2726, %v2725
          %v2837 = vpack.c.b16 %v2728, %v2727
          %v2838 = vpack.c.b16 %v2730, %v2729
          %v2839 = vpack.c.b16 %v2732, %v2731
          %v2840 = vpack.c.b16 %v2734, %v2733
          %v2841 = vpack.c.b16 %v2736, %v2735
          %v2842 = vpack.c.b16 %v2738, %v2737
          %v2843 = vpack.c.b16 %v2740, %v2739
          %v2844 = vpack.c.b16 %v2742, %v2741
          %v2845 = vpack.c.b16 %v2744, %v2743
          %v2846 = vpack.c.b16 %v2746, %v2745
          %v2847 = vpack.c.b16 %v2748, %v2747
          %v2848 = vpack.c.b16 %v2750, %v2749
          %v2849 = vpack.c.b16 %v2752, %v2751
          %v2850 = vpack.c.b16 %v2754, %v2753
          %v2851 = vpack.c.b16 %v2756, %v2755
          %v2852 = vpack.c.b16 %v2758, %v2757
          %v2853 = vpack.c.b16 %v2760, %v2759
          %v2854 = vpack.c.b16 %v2762, %v2761
          %v2855 = vpack.c.b16 %v2764, %v2763
          %v2856 = vpack.c.b16 %v2766, %v2765
          %v2857 = vpack.c.b16 %v2768, %v2767
          %v2858 = vpack.c.b16 %v2770, %v2769
          %v2859 = vpack.c.b16 %v2772, %v2771
          %v2860 = vpack.c.b16 %v2774, %v2773
          %v2861 = vpack.c.b16 %v2776, %v2775
          %v2862 = vpack.c.b16 %v2778, %v2777
          %v2863 = vpack.c.b16 %v2780, %v2779
          %v2864 = vpack.c.b16 %v2782, %v2781
          %v2865 = vpack.c.b16 %v2784, %v2783
          %v2866 = vpack.c.b16 %v2786, %v2785
          %v2867 = vpack.c.b16 %v2788, %v2787
          %v2868 = vpack.c.b16 %v2790, %v2789
          %v2869 = vpack.c.b16 %v2792, %v2791
          %v2870 = vpack.c.b16 %v2794, %v2793
          %v2871 = vpack.c.b16 %v2796, %v2795
          %v2872 = vpack.c.b16 %v2798, %v2797
          %v2873 = vpack.c.b16 %v2800, %v2799
          %v2874 = vpack.c.b16 %v2802, %v2801
          %2947 = vst [vmem:[%s389] sm:$0xff] %v2803
          %2948 = vst [vmem:[%s389 + $0x8] sm:$0xff] %v2804
          %2949 = vst [vmem:[%s389 + $0x10] sm:$0xff] %v2805
          %2950 = vst [vmem:[%s389 + $0x18] sm:$0xff] %v2806
          %2951 = vst [vmem:[%s389 + $0x20] sm:$0xff] %v2807
          %2952 = vst [vmem:[%s389 + $0x28] sm:$0xff] %v2808
          %2953 = vst [vmem:[%s389 + $0x30] sm:$0xff] %v2809
          %2954 = vst [vmem:[%s389 + $0x38] sm:$0xff] %v2810
          %2955 = vst [vmem:[%s389 + $0x40] sm:$0xff] %v2811
          %2956 = vst [vmem:[%s389 + $0x48] sm:$0xff] %v2812
          %2957 = vst [vmem:[%s389 + $0x50] sm:$0xff] %v2813
          %2958 = vst [vmem:[%s389 + $0x58] sm:$0xff] %v2814
          %2959 = vst [vmem:[%s389 + $0x60] sm:$0xff] %v2815
          %2960 = vst [vmem:[%s389 + $0x68] sm:$0xff] %v2816
          %2961 = vst [vmem:[%s389 + $0x70] sm:$0xff] %v2817
          %2962 = vst [vmem:[%s389 + $0x78] sm:$0xff] %v2818
          %2963 = vst [vmem:[%s389 + $0x80] sm:$0xff] %v2819
          %2964 = vst [vmem:[%s389 + $0x88] sm:$0xff] %v2820
          %2965 = vst [vmem:[%s389 + $0x90] sm:$0xff] %v2821
          %2966 = vst [vmem:[%s389 + $0x98] sm:$0xff] %v2822
          %2967 = vst [vmem:[%s389 + $0xa0] sm:$0xff] %v2823
          %2968 = vst [vmem:[%s389 + $0xa8] sm:$0xff] %v2824
          %2969 = vst [vmem:[%s389 + $0xb0] sm:$0xff] %v2825
          %2970 = vst [vmem:[%s389 + $0xb8] sm:$0xff] %v2826
          %2971 = vst [vmem:[%s389 + $0xc0] sm:$0xff] %v2827
          %2972 = vst [vmem:[%s389 + $0xc8] sm:$0xff] %v2828
          %2973 = vst [vmem:[%s389 + $0xd0] sm:$0xff] %v2829
          %2974 = vst [vmem:[%s389 + $0xd8] sm:$0xff] %v2830
          %2975 = vst [vmem:[%s389 + $0xe0] sm:$0xff] %v2831
          %2976 = vst [vmem:[%s389 + $0xe8] sm:$0xff] %v2832
          %2977 = vst [vmem:[%s389 + $0xf0] sm:$0xff] %v2833
          %2978 = vst [vmem:[%s389 + $0xf8] sm:$0xff] %v2834
          %2979 = vst [vmem:[%s389 + $0x100] sm:$0xff] %v2835
          %2980 = vst [vmem:[%s389 + $0x108] sm:$0xff] %v2836
          %2981 = vst [vmem:[%s389 + $0x110] sm:$0xff] %v2837
          %2982 = vst [vmem:[%s389 + $0x118] sm:$0xff] %v2838
          %2983 = vst [vmem:[%s389 + $0x120] sm:$0xff] %v2839
          %2984 = vst [vmem:[%s389 + $0x128] sm:$0xff] %v2840
          %2985 = vst [vmem:[%s389 + $0x130] sm:$0xff] %v2841
          %2986 = vst [vmem:[%s389 + $0x138] sm:$0xff] %v2842
          %2987 = vst [vmem:[%s389 + $0x140] sm:$0xff] %v2843
          %2988 = vst [vmem:[%s389 + $0x148] sm:$0xff] %v2844
          %2989 = vst [vmem:[%s389 + $0x150] sm:$0xff] %v2845
          %2990 = vst [vmem:[%s389 + $0x158] sm:$0xff] %v2846
          %2991 = vst [vmem:[%s389 + $0x160] sm:$0xff] %v2847
          %2992 = vst [vmem:[%s389 + $0x168] sm:$0xff] %v2848
          %2993 = vst [vmem:[%s389 + $0x170] sm:$0xff] %v2849
          %2994 = vst [vmem:[%s389 + $0x178] sm:$0xff] %v2850
          %2995 = vst [vmem:[%s389 + $0x180] sm:$0xff] %v2851
          %2996 = vst [vmem:[%s389 + $0x188] sm:$0xff] %v2852
          %2997 = vst [vmem:[%s389 + $0x190] sm:$0xff] %v2853
          %2998 = vst [vmem:[%s389 + $0x198] sm:$0xff] %v2854
          %2999 = vst [vmem:[%s389 + $0x1a0] sm:$0xff] %v2855
          %3000 = vst [vmem:[%s389 + $0x1a8] sm:$0xff] %v2856
          %3001 = vst [vmem:[%s389 + $0x1b0] sm:$0xff] %v2857
          %3002 = vst [vmem:[%s389 + $0x1b8] sm:$0xff] %v2858
          %3003 = vst [vmem:[%s389 + $0x1c0] sm:$0xff] %v2859
          %3004 = vst [vmem:[%s389 + $0x1c8] sm:$0xff] %v2860
          %3005 = vst [vmem:[%s389 + $0x1d0] sm:$0xff] %v2861
          %3006 = vst [vmem:[%s389 + $0x1d8] sm:$0xff] %v2862
          %3007 = vst [vmem:[%s389 + $0x1e0] sm:$0xff] %v2863
          %3008 = vst [vmem:[%s389 + $0x1e8] sm:$0xff] %v2864
          %3009 = vst [vmem:[%s389 + $0x1f0] sm:$0xff] %v2865
          %3010 = vst [vmem:[%s389 + $0x1f8] sm:$0xff] %v2866
          %3011 = vst [vmem:[%s389 + $0x200] sm:$0xff] %v2867
          %3012 = vst [vmem:[%s389 + $0x208] sm:$0xff] %v2868
          %3013 = vst [vmem:[%s389 + $0x210] sm:$0xff] %v2869
          %3014 = vst [vmem:[%s389 + $0x218] sm:$0xff] %v2870
          %3015 = vst [vmem:[%s389 + $0x220] sm:$0xff] %v2871
          %3016 = vst [vmem:[%s389 + $0x228] sm:$0xff] %v2872
          %3017 = vst [vmem:[%s389 + $0x230] sm:$0xff] %v2873
          %3018 = vst [vmem:[%s389 + $0x238] sm:$0xff] %v2874
        $region72: #{tpu_custom_call.1} parent=39 // pred_fallthru
          _
        %p3019 = scmp.ge.s32.totalorder %s26, 4
        // Predicated region
        $region73: #{tpu_custom_call.1} parent=39 // pred_check
          %p3020 = pneg %p3019
        $region74: #{tpu_custom_call.1} parent=39 // pred_check_branch
          %3022 = sbr.rel (%p3020) target = $region76
        $region75: #{tpu_custom_call.1} parent=39 // pred_region
          %v3023 = vld [vmem:[%s327] sm:$0xff]
          %v3024 = vld [vmem:[%s327 + $0x8] sm:$0xff]
          %v3025 = vld [vmem:[%s327 + $0x10] sm:$0xff]
          %v3026 = vld [vmem:[%s327 + $0x18] sm:$0xff]
          %v3027 = vld [vmem:[%s327 + $0x20] sm:$0xff]
          %v3028 = vld [vmem:[%s327 + $0x28] sm:$0xff]
          %v3029 = vld [vmem:[%s327 + $0x30] sm:$0xff]
          %v3030 = vld [vmem:[%s327 + $0x38] sm:$0xff]
          %v3031 = vld [vmem:[%s327 + $0x40] sm:$0xff]
          %v3032 = vld [vmem:[%s327 + $0x48] sm:$0xff]
          %v3033 = vld [vmem:[%s327 + $0x50] sm:$0xff]
          %v3034 = vld [vmem:[%s327 + $0x58] sm:$0xff]
          %v3035 = vld [vmem:[%s327 + $0x60] sm:$0xff]
          %v3036 = vld [vmem:[%s327 + $0x68] sm:$0xff]
          %v3037 = vld [vmem:[%s327 + $0x70] sm:$0xff]
          %v3038 = vld [vmem:[%s327 + $0x78] sm:$0xff]
          %v3039 = vld [vmem:[%s327 + $0x80] sm:$0xff]
          %v3040 = vld [vmem:[%s327 + $0x88] sm:$0xff]
          %v3041 = vld [vmem:[%s327 + $0x90] sm:$0xff]
          %v3042 = vld [vmem:[%s327 + $0x98] sm:$0xff]
          %v3043 = vld [vmem:[%s327 + $0xa0] sm:$0xff]
          %v3044 = vld [vmem:[%s327 + $0xa8] sm:$0xff]
          %v3045 = vld [vmem:[%s327 + $0xb0] sm:$0xff]
          %v3046 = vld [vmem:[%s327 + $0xb8] sm:$0xff]
          %v3047 = vld [vmem:[%s327 + $0xc0] sm:$0xff]
          %v3048 = vld [vmem:[%s327 + $0xc8] sm:$0xff]
          %v3049 = vld [vmem:[%s327 + $0xd0] sm:$0xff]
          %v3050 = vld [vmem:[#allocation2] sm:$0xff]
          %v3051 = vld [vmem:[#allocation2 + $0x8] sm:$0xff]
          %v3052 = vld [vmem:[#allocation2 + $0x10] sm:$0xff]
          %v3053 = vld [vmem:[#allocation2 + $0x18] sm:$0xff]
          %v3054 = vld [vmem:[#allocation2 + $0x20] sm:$0xff]
          %v3055 = vld [vmem:[#allocation2 + $0x28] sm:$0xff]
          %v3056 = vld [vmem:[#allocation2 + $0x30] sm:$0xff]
          %v3057 = vld [vmem:[#allocation2 + $0x38] sm:$0xff]
          %v3058 = vld [vmem:[#allocation2 + $0x40] sm:$0xff]
          %v3059 = vld [vmem:[#allocation2 + $0x48] sm:$0xff]
          %v3060 = vld [vmem:[#allocation2 + $0x50] sm:$0xff]
          %v3061 = vld [vmem:[#allocation2 + $0x58] sm:$0xff]
          %v3062 = vld [vmem:[#allocation2 + $0x60] sm:$0xff]
          %v3063 = vld [vmem:[#allocation2 + $0x68] sm:$0xff]
          %v3064 = vld [vmem:[#allocation2 + $0x70] sm:$0xff]
          %v3065 = vld [vmem:[#allocation2 + $0x78] sm:$0xff]
          %v3066 = vld [vmem:[#allocation2 + $0x80] sm:$0xff]
          %v3067 = vld [vmem:[#allocation2 + $0x88] sm:$0xff]
          %v3068 = vld [vmem:[#allocation2 + $0x90] sm:$0xff]
          %v3069 = vld [vmem:[#allocation2 + $0x98] sm:$0xff]
          %v3070 = vld [vmem:[#allocation2 + $0xa0] sm:$0xff]
          %v3071 = vld [vmem:[#allocation2 + $0xa8] sm:$0xff]
          %v3072 = vld [vmem:[#allocation2 + $0xb0] sm:$0xff]
          %v3073 = vld [vmem:[#allocation2 + $0xb8] sm:$0xff]
          %v3074 = vld [vmem:[#allocation2 + $0xc0] sm:$0xff]
          %v3075 = vld [vmem:[#allocation2 + $0xc8] sm:$0xff]
          %v3076 = vld [vmem:[#allocation2 + $0xd0] sm:$0xff]
          %v3077 = vld [vmem:[#allocation2 + $0xd8] sm:$0xff]
          %v3078 = vld [vmem:[#allocation2 + $0xe0] sm:$0xff]
          %v3079 = vld [vmem:[#allocation2 + $0xe8] sm:$0xff]
          %v3080 = vld [vmem:[#allocation2 + $0xf0] sm:$0xff]
          %v3081 = vld [vmem:[#allocation2 + $0xf8] sm:$0xff]
          %v3082 = vld [vmem:[#allocation2 + $0x100] sm:$0xff]
          %v3083 = vld [vmem:[#allocation2 + $0x108] sm:$0xff]
          %v3084 = vld [vmem:[#allocation2 + $0x110] sm:$0xff]
          %v3085 = vld [vmem:[#allocation2 + $0x118] sm:$0xff]
          %v3086 = vld [vmem:[#allocation2 + $0x120] sm:$0xff]
          %v3087 = vld [vmem:[#allocation2 + $0x128] sm:$0xff]
          %v3088 = vld [vmem:[#allocation2 + $0x130] sm:$0xff]
          %v3089 = vld [vmem:[#allocation2 + $0x138] sm:$0xff]
          %v3090 = vld [vmem:[#allocation2 + $0x140] sm:$0xff]
          %v3091 = vld [vmem:[#allocation2 + $0x148] sm:$0xff]
          %v3092 = vld [vmem:[#allocation2 + $0x150] sm:$0xff]
          %v3093 = vld [vmem:[#allocation2 + $0x158] sm:$0xff]
          %v3094 = vld [vmem:[#allocation2 + $0x160] sm:$0xff]
          %v3095 = vld [vmem:[#allocation2 + $0x168] sm:$0xff]
          %v3096 = vld [vmem:[#allocation2 + $0x170] sm:$0xff]
          %v3097 = vld [vmem:[#allocation2 + $0x178] sm:$0xff]
          %v3098 = vld [vmem:[#allocation2 + $0x180] sm:$0xff]
          %v3099 = vld [vmem:[#allocation2 + $0x188] sm:$0xff]
          %v3100 = vld [vmem:[#allocation2 + $0x190] sm:$0xff]
          %v3101 = vld [vmem:[#allocation2 + $0x198] sm:$0xff]
          %v3102 = vld [vmem:[#allocation2 + $0x1a0] sm:$0xff]
          %v3103 = vld [vmem:[#allocation2 + $0x1a8] sm:$0xff]
          %v3104 = vld [vmem:[#allocation2 + $0x1b0] sm:$0xff]
          %v3105 = vld [vmem:[#allocation2 + $0x1b8] sm:$0xff]
          %v3106 = vld [vmem:[#allocation2 + $0x1c0] sm:$0xff]
          %v3107 = vld [vmem:[#allocation2 + $0x1c8] sm:$0xff]
          %v3108 = vld [vmem:[#allocation2 + $0x1d0] sm:$0xff]
          %v3109 = vld [vmem:[#allocation2 + $0x1d8] sm:$0xff]
          %v3110 = vld [vmem:[#allocation2 + $0x1e0] sm:$0xff]
          %v3111 = vld [vmem:[#allocation2 + $0x1e8] sm:$0xff]
          %v3112 = vld [vmem:[#allocation2 + $0x1f0] sm:$0xff]
          %v3113 = vld [vmem:[#allocation2 + $0x1f8] sm:$0xff]
          %v3114 = vld [vmem:[#allocation2 + $0x200] sm:$0xff]
          %v3115 = vld [vmem:[#allocation2 + $0x208] sm:$0xff]
          %v3116 = vld [vmem:[#allocation2 + $0x210] sm:$0xff]
          %v3117 = vld [vmem:[#allocation2 + $0x218] sm:$0xff]
          %v3118 = vld [vmem:[#allocation2 + $0x220] sm:$0xff]
          %v3119 = vld [vmem:[#allocation2 + $0x228] sm:$0xff]
          %v3120 = vld [vmem:[#allocation2 + $0x230] sm:$0xff]
          %v3121 = vld [vmem:[#allocation2 + $0x238] sm:$0xff]
          %v3122 = vld [vmem:[#allocation2 + $0x240] sm:$0xff]
          %v3123 = vld [vmem:[#allocation2 + $0x248] sm:$0xff]
          %v3124 = vld [vmem:[#allocation2 + $0x250] sm:$0xff]
          %v3125 = vld [vmem:[#allocation2 + $0x258] sm:$0xff]
          %v3126 = vld [vmem:[#allocation2 + $0x260] sm:$0xff]
          %v3127 = vld [vmem:[#allocation2 + $0x268] sm:$0xff]
          %v3128 = vld [vmem:[#allocation2 + $0x270] sm:$0xff]
          %v3129 = vld [vmem:[#allocation2 + $0x278] sm:$0xff]
          %v3130 = vld [vmem:[#allocation2 + $0x280] sm:$0xff]
          %v3131 = vld [vmem:[#allocation2 + $0x288] sm:$0xff]
          %v3132 = vld [vmem:[#allocation2 + $0x290] sm:$0xff]
          %v3133 = vld [vmem:[#allocation2 + $0x298] sm:$0xff]
          %v3134 = vld [vmem:[#allocation2 + $0x2a0] sm:$0xff]
          %v3135 = vld [vmem:[#allocation2 + $0x2a8] sm:$0xff]
          %v3136 = vld [vmem:[#allocation2 + $0x2b0] sm:$0xff]
          %v3137 = vld [vmem:[#allocation2 + $0x2b8] sm:$0xff]
          %v3138 = vld [vmem:[#allocation2 + $0x2c0] sm:$0xff]
          %v3139 = vld [vmem:[#allocation2 + $0x2c8] sm:$0xff]
          %v3140 = vld [vmem:[#allocation2 + $0x2d0] sm:$0xff]
          %v3141 = vld [vmem:[#allocation2 + $0x2d8] sm:$0xff]
          %v3142 = vld [vmem:[#allocation2 + $0x2e0] sm:$0xff]
          %v3143 = vld [vmem:[#allocation2 + $0x2e8] sm:$0xff]
          %v3144 = vld [vmem:[#allocation2 + $0x2f0] sm:$0xff]
          %v3145 = vld [vmem:[#allocation2 + $0x2f8] sm:$0xff]
          %v3146 = vld [vmem:[#allocation2 + $0x300] sm:$0xff]
          %v3147 = vld [vmem:[#allocation2 + $0x308] sm:$0xff]
          %v3148 = vld [vmem:[#allocation2 + $0x310] sm:$0xff]
          %v3149 = vld [vmem:[#allocation2 + $0x318] sm:$0xff]
          %v3150 = vld [vmem:[#allocation2 + $0x320] sm:$0xff]
          %v3151 = vld [vmem:[#allocation2 + $0x328] sm:$0xff]
          %v3152 = vld [vmem:[#allocation2 + $0x330] sm:$0xff]
          %v3153 = vld [vmem:[#allocation2 + $0x338] sm:$0xff]
          %v3154 = vld [vmem:[#allocation2 + $0x340] sm:$0xff]
          %v3155 = vld [vmem:[#allocation2 + $0x348] sm:$0xff]
          %v3156 = vld [vmem:[#allocation2 + $0x350] sm:$0xff]
          %v3157 = vld [vmem:[#allocation2 + $0x358] sm:$0xff]
          %v3158 = vld [vmem:[#allocation2 + $0x360] sm:$0xff]
          %v3159 = vld [vmem:[#allocation2 + $0x368] sm:$0xff]
          %v3160 = vld [vmem:[#allocation2 + $0x370] sm:$0xff]
          %v3161 = vld [vmem:[#allocation2 + $0x378] sm:$0xff]
          %v3162 = vld [vmem:[#allocation2 + $0x380] sm:$0xff]
          %v3163 = vld [vmem:[#allocation2 + $0x388] sm:$0xff]
          %v3164 = vld [vmem:[#allocation2 + $0x390] sm:$0xff]
          %v3165 = vld [vmem:[#allocation2 + $0x398] sm:$0xff]
          %v3166 = vld [vmem:[#allocation2 + $0x3a0] sm:$0xff]
          %v3167 = vld [vmem:[#allocation2 + $0x3a8] sm:$0xff]
          %v3168 = vld [vmem:[#allocation2 + $0x3b0] sm:$0xff]
          %v3169 = vld [vmem:[#allocation2 + $0x3b8] sm:$0xff]
          %v3170 = vld [vmem:[#allocation2 + $0x3c0] sm:$0xff]
          %v3171 = vld [vmem:[#allocation2 + $0x3c8] sm:$0xff]
          %v3172 = vld [vmem:[#allocation2 + $0x3d0] sm:$0xff]
          %v3173 = vld [vmem:[#allocation2 + $0x3d8] sm:$0xff]
          %v3174 = vld [vmem:[#allocation2 + $0x3e0] sm:$0xff]
          %v3175 = vld [vmem:[#allocation2 + $0x3e8] sm:$0xff]
          %v3176 = vld [vmem:[#allocation2 + $0x3f0] sm:$0xff]
          %v3177 = vld [vmem:[#allocation2 + $0x3f8] sm:$0xff]
          %v3178 = vld [vmem:[#allocation2 + $0x400] sm:$0xff]
          %v3179 = vld [vmem:[#allocation2 + $0x408] sm:$0xff]
          %v3180 = vld [vmem:[#allocation2 + $0x410] sm:$0xff]
          %v3181 = vld [vmem:[#allocation2 + $0x418] sm:$0xff]
          %v3182 = vld [vmem:[#allocation2 + $0x420] sm:$0xff]
          %v3183 = vld [vmem:[#allocation2 + $0x428] sm:$0xff]
          %v3184 = vld [vmem:[#allocation2 + $0x430] sm:$0xff]
          %v3185 = vld [vmem:[#allocation2 + $0x438] sm:$0xff]
          %v3186 = vld [vmem:[#allocation2 + $0x440] sm:$0xff]
          %v3187 = vld [vmem:[#allocation2 + $0x448] sm:$0xff]
          %v3188 = vld [vmem:[#allocation2 + $0x450] sm:$0xff]
          %v3189 = vld [vmem:[#allocation2 + $0x458] sm:$0xff]
          %v3190 = vld [vmem:[#allocation2 + $0x460] sm:$0xff]
          %v3191 = vld [vmem:[#allocation2 + $0x468] sm:$0xff]
          %v3192 = vld [vmem:[#allocation2 + $0x470] sm:$0xff]
          %v3193 = vld [vmem:[#allocation2 + $0x478] sm:$0xff]
          %v3194 = vld [vmem:[#allocation2 + $0x480] sm:$0xff]
          %v3195 = vld [vmem:[#allocation2 + $0x488] sm:$0xff]
          %v3196 = vld [vmem:[#allocation2 + $0x490] sm:$0xff]
          %v3197 = vld [vmem:[#allocation2 + $0x498] sm:$0xff]
          %v3198 = vld [vmem:[#allocation2 + $0x4a0] sm:$0xff]
          %v3199 = vld [vmem:[#allocation2 + $0x4a8] sm:$0xff]
          %v3200 = vld [vmem:[#allocation2 + $0x4b0] sm:$0xff]
          %v3201 = vld [vmem:[#allocation2 + $0x4b8] sm:$0xff]
          %v3202 = vld [vmem:[#allocation2 + $0x4c0] sm:$0xff]
          %v3203 = vld [vmem:[#allocation2 + $0x4c8] sm:$0xff]
          %v3204 = vld [vmem:[#allocation2 + $0x4d0] sm:$0xff]
          %v3205 = vld [vmem:[#allocation2 + $0x4d8] sm:$0xff]
          %v3206 = vld [vmem:[#allocation2 + $0x4e0] sm:$0xff]
          %v3207 = vld [vmem:[#allocation2 + $0x4e8] sm:$0xff]
          %v3208 = vld [vmem:[#allocation2 + $0x4f0] sm:$0xff]
          %v3209 = vld [vmem:[#allocation2 + $0x4f8] sm:$0xff]
          %v3210 = vld [vmem:[#allocation2 + $0x500] sm:$0xff]
          %v3211 = vld [vmem:[#allocation2 + $0x508] sm:$0xff]
          %v3212 = vld [vmem:[#allocation2 + $0x510] sm:$0xff]
          %v3213 = vld [vmem:[#allocation2 + $0x518] sm:$0xff]
          %v3214 = vld [vmem:[#allocation2 + $0x520] sm:$0xff]
          %v3215 = vld [vmem:[#allocation2 + $0x528] sm:$0xff]
          %v3216 = vld [vmem:[#allocation2 + $0x530] sm:$0xff]
          %v3217 = vld [vmem:[#allocation2 + $0x538] sm:$0xff]
          %v3218 = vld [vmem:[#allocation2 + $0x540] sm:$0xff]
          %v3219 = vld [vmem:[#allocation2 + $0x548] sm:$0xff]
          %v3220 = vld [vmem:[#allocation2 + $0x550] sm:$0xff]
          %v3221 = vld [vmem:[#allocation2 + $0x558] sm:$0xff]
          %v3222 = vld [vmem:[#allocation2 + $0x560] sm:$0xff]
          %v3223 = vld [vmem:[#allocation2 + $0x568] sm:$0xff]
          %v3224 = vld [vmem:[#allocation2 + $0x570] sm:$0xff]
          %v3225 = vld [vmem:[#allocation2 + $0x578] sm:$0xff]
          %v3226 = vld [vmem:[#allocation2 + $0x580] sm:$0xff]
          %v3227 = vld [vmem:[#allocation2 + $0x588] sm:$0xff]
          %v3228 = vld [vmem:[#allocation2 + $0x590] sm:$0xff]
          %v3229 = vld [vmem:[#allocation2 + $0x598] sm:$0xff]
          %v3230 = vld [vmem:[#allocation2 + $0x5a0] sm:$0xff]
          %v3231 = vld [vmem:[#allocation2 + $0x5a8] sm:$0xff]
          %v3232 = vld [vmem:[#allocation2 + $0x5b0] sm:$0xff]
          %v3233 = vld [vmem:[#allocation2 + $0x5b8] sm:$0xff]
          %v3234 = vld [vmem:[#allocation2 + $0x5c0] sm:$0xff]
          %v3235 = vld [vmem:[#allocation2 + $0x5c8] sm:$0xff]
          %v3236 = vld [vmem:[#allocation2 + $0x5d0] sm:$0xff]
          %v3237 = vld [vmem:[#allocation2 + $0x5d8] sm:$0xff]
          %v3238 = vld [vmem:[#allocation2 + $0x5e0] sm:$0xff]
          %v3239 = vld [vmem:[#allocation2 + $0x5e8] sm:$0xff]
          %v3240 = vld [vmem:[#allocation2 + $0x5f0] sm:$0xff]
          %v3241 = vld [vmem:[#allocation2 + $0x5f8] sm:$0xff]
          %v3242 = vld [vmem:[#allocation2 + $0x600] sm:$0xff]
          %v3243 = vld [vmem:[#allocation2 + $0x608] sm:$0xff]
          %v3244 = vld [vmem:[#allocation2 + $0x610] sm:$0xff]
          %v3245 = vld [vmem:[#allocation2 + $0x618] sm:$0xff]
          %v3246 = vld [vmem:[#allocation2 + $0x620] sm:$0xff]
          %v3247 = vld [vmem:[#allocation2 + $0x628] sm:$0xff]
          %v3248 = vld [vmem:[#allocation2 + $0x630] sm:$0xff]
          %v3249 = vld [vmem:[#allocation2 + $0x638] sm:$0xff]
          %v3250 = vld [vmem:[#allocation2 + $0x640] sm:$0xff]
          %v3251 = vld [vmem:[#allocation2 + $0x648] sm:$0xff]
          %v3252 = vld [vmem:[#allocation2 + $0x650] sm:$0xff]
          %v3253 = vld [vmem:[#allocation2 + $0x658] sm:$0xff]
          %v3254 = vld [vmem:[#allocation2 + $0x660] sm:$0xff]
          %v3255 = vld [vmem:[#allocation2 + $0x668] sm:$0xff]
          %v3256 = vld [vmem:[#allocation2 + $0x670] sm:$0xff]
          %v3257 = vld [vmem:[#allocation2 + $0x678] sm:$0xff]
          %v3258 = vld [vmem:[#allocation2 + $0x680] sm:$0xff]
          %v3259 = vld [vmem:[#allocation2 + $0x688] sm:$0xff]
          %v3260 = vld [vmem:[#allocation2 + $0x690] sm:$0xff]
          %v3261 = vld [vmem:[#allocation2 + $0x698] sm:$0xff]
          %v3262 = vld [vmem:[#allocation2 + $0x6a0] sm:$0xff]
          %v3263 = vld [vmem:[#allocation2 + $0x6a8] sm:$0xff]
          %v3264 = vld [vmem:[#allocation2 + $0x6b0] sm:$0xff]
          %v3265 = vld [vmem:[#allocation2 + $0x6b8] sm:$0xff]
          %v3266 = vld [vmem:[#allocation2 + $0x6c0] sm:$0xff]
          %v3267 = vld [vmem:[#allocation2 + $0x6c8] sm:$0xff]
          %v3268 = vld [vmem:[#allocation2 + $0x6d0] sm:$0xff]
          %v3269 = vld [vmem:[#allocation2 + $0x6d8] sm:$0xff]
          %v3270 = vld [vmem:[#allocation2 + $0x6e0] sm:$0xff]
          %v3271 = vld [vmem:[#allocation2 + $0x6e8] sm:$0xff]
          %v3272 = vld [vmem:[#allocation2 + $0x6f0] sm:$0xff]
          %v3273 = vld [vmem:[#allocation2 + $0x6f8] sm:$0xff]
          %v3274 = vld [vmem:[#allocation2 + $0x700] sm:$0xff]
          %v3275 = vld [vmem:[#allocation2 + $0x708] sm:$0xff]
          %v3276 = vld [vmem:[#allocation2 + $0x710] sm:$0xff]
          %v3277 = vld [vmem:[#allocation2 + $0x718] sm:$0xff]
          %v3278 = vld [vmem:[#allocation2 + $0x720] sm:$0xff]
          %v3279 = vld [vmem:[#allocation2 + $0x728] sm:$0xff]
          %v3280 = vld [vmem:[#allocation2 + $0x730] sm:$0xff]
          %v3281 = vld [vmem:[#allocation2 + $0x738] sm:$0xff]
          %v3282 = vld [vmem:[#allocation2 + $0x740] sm:$0xff]
          %v3283 = vld [vmem:[#allocation2 + $0x748] sm:$0xff]
          %v3284 = vld [vmem:[#allocation2 + $0x750] sm:$0xff]
          %v3285 = vld [vmem:[#allocation2 + $0x758] sm:$0xff]
          %v3286 = vld [vmem:[#allocation2 + $0x760] sm:$0xff]
          %v3287 = vld [vmem:[#allocation2 + $0x768] sm:$0xff]
          %v3288 = vld [vmem:[#allocation2 + $0x770] sm:$0xff]
          %v3289 = vld [vmem:[#allocation2 + $0x778] sm:$0xff]
          %v3290 = vld [vmem:[#allocation2 + $0x780] sm:$0xff]
          %v3291 = vld [vmem:[#allocation2 + $0x788] sm:$0xff]
          %v3292 = vld [vmem:[#allocation2 + $0x790] sm:$0xff]
          %v3293 = vld [vmem:[#allocation2 + $0x798] sm:$0xff]
          %v3294 = vld [vmem:[#allocation2 + $0x7a0] sm:$0xff]
          %v3295 = vld [vmem:[#allocation2 + $0x7a8] sm:$0xff]
          %v3296 = vld [vmem:[#allocation2 + $0x7b0] sm:$0xff]
          %v3297 = vld [vmem:[#allocation2 + $0x7b8] sm:$0xff]
          %v3298 = vld [vmem:[#allocation2 + $0x7c0] sm:$0xff]
          %v3299 = vld [vmem:[#allocation2 + $0x7c8] sm:$0xff]
          %v3300 = vld [vmem:[#allocation2 + $0x7d0] sm:$0xff]
          %v3301 = vld [vmem:[#allocation2 + $0x7d8] sm:$0xff]
          %v3302 = vld [vmem:[#allocation2 + $0x7e0] sm:$0xff]
          %v3303 = vld [vmem:[#allocation2 + $0x7e8] sm:$0xff]
          %v3304 = vld [vmem:[#allocation2 + $0x7f0] sm:$0xff]
          %v3305 = vld [vmem:[#allocation2 + $0x7f8] sm:$0xff]
          %v3306 = vld [vmem:[#allocation2 + $0x800] sm:$0xff]
          %v3307 = vld [vmem:[#allocation2 + $0x808] sm:$0xff]
          %v3308 = vld [vmem:[#allocation2 + $0x810] sm:$0xff]
          %v3309 = vld [vmem:[#allocation2 + $0x818] sm:$0xff]
          %v3310 = vld [vmem:[#allocation2 + $0x820] sm:$0xff]
          %v3311 = vld [vmem:[#allocation2 + $0x828] sm:$0xff]
          %v3312 = vld [vmem:[#allocation2 + $0x830] sm:$0xff]
          %v3313 = vld [vmem:[#allocation2 + $0x838] sm:$0xff]
          %v3314 = vld [vmem:[#allocation2 + $0x840] sm:$0xff]
          %v3315 = vld [vmem:[#allocation2 + $0x848] sm:$0xff]
          %v3316 = vld [vmem:[#allocation2 + $0x850] sm:$0xff]
          %v3317 = vld [vmem:[#allocation2 + $0x858] sm:$0xff]
          %v3318 = vld [vmem:[#allocation2 + $0x860] sm:$0xff]
          %v3319 = vld [vmem:[#allocation2 + $0x868] sm:$0xff]
          %v3320 = vld [vmem:[#allocation2 + $0x870] sm:$0xff]
          %v3321 = vld [vmem:[#allocation2 + $0x878] sm:$0xff]
          %v3322 = vld [vmem:[#allocation2 + $0x880] sm:$0xff]
          %v3323 = vld [vmem:[#allocation2 + $0x888] sm:$0xff]
          %v3324 = vld [vmem:[#allocation2 + $0x890] sm:$0xff]
          %v3325 = vld [vmem:[#allocation2 + $0x898] sm:$0xff]
          %v3326 = vld [vmem:[#allocation2 + $0x8a0] sm:$0xff]
          %v3327 = vld [vmem:[#allocation2 + $0x8a8] sm:$0xff]
          %v3328 = vld [vmem:[#allocation2 + $0x8b0] sm:$0xff]
          %v3329 = vld [vmem:[#allocation2 + $0x8b8] sm:$0xff]
          %v3330 = vld [vmem:[#allocation2 + $0x8c0] sm:$0xff]
          %v3331 = vld [vmem:[#allocation2 + $0x8c8] sm:$0xff]
          %v3332 = vld [vmem:[#allocation2 + $0x8d0] sm:$0xff]
          %v3333 = vld [vmem:[#allocation2 + $0x8d8] sm:$0xff]
          %v3334 = vld [vmem:[#allocation2 + $0x8e0] sm:$0xff]
          %v3335 = vld [vmem:[#allocation2 + $0x8e8] sm:$0xff]
          %v3336 = vld [vmem:[#allocation2 + $0x8f0] sm:$0xff]
          %v3337 = vld [vmem:[#allocation2 + $0x8f8] sm:$0xff]
          %v3338 = vld [vmem:[#allocation2 + $0x900] sm:$0xff]
          %v3339 = vld [vmem:[#allocation2 + $0x908] sm:$0xff]
          %v3340 = vld [vmem:[#allocation2 + $0x910] sm:$0xff]
          %v3341 = vld [vmem:[#allocation2 + $0x918] sm:$0xff]
          %v3342 = vld [vmem:[#allocation2 + $0x920] sm:$0xff]
          %v3343 = vld [vmem:[#allocation2 + $0x928] sm:$0xff]
          %v3344 = vld [vmem:[#allocation2 + $0x930] sm:$0xff]
          %v3345 = vld [vmem:[#allocation2 + $0x938] sm:$0xff]
          %v3346 = vld [vmem:[#allocation2 + $0x940] sm:$0xff]
          %v3347 = vld [vmem:[#allocation2 + $0x948] sm:$0xff]
          %v3348 = vld [vmem:[#allocation2 + $0x950] sm:$0xff]
          %v3349 = vld [vmem:[#allocation2 + $0x958] sm:$0xff]
          %v3350 = vld [vmem:[#allocation2 + $0x960] sm:$0xff]
          %v3351 = vld [vmem:[#allocation2 + $0x968] sm:$0xff]
          %v3352 = vld [vmem:[#allocation2 + $0x970] sm:$0xff]
          %v3353 = vld [vmem:[#allocation2 + $0x978] sm:$0xff]
          %v3354 = vld [vmem:[#allocation2 + $0x980] sm:$0xff]
          %v3355 = vld [vmem:[#allocation2 + $0x988] sm:$0xff]
          %v3356 = vld [vmem:[#allocation2 + $0x990] sm:$0xff]
          %v3357 = vld [vmem:[#allocation2 + $0x998] sm:$0xff]
          %v3358 = vld [vmem:[#allocation2 + $0x9a0] sm:$0xff]
          %v3359 = vld [vmem:[#allocation2 + $0x9a8] sm:$0xff]
          %v3360 = vld [vmem:[#allocation2 + $0x9b0] sm:$0xff]
          %v3361 = vld [vmem:[#allocation2 + $0x9b8] sm:$0xff]
          %v3362 = vld [vmem:[#allocation2 + $0x9c0] sm:$0xff]
          %v3363 = vld [vmem:[#allocation2 + $0x9c8] sm:$0xff]
          %v3364 = vld [vmem:[#allocation2 + $0x9d0] sm:$0xff]
          %v3365 = vld [vmem:[#allocation2 + $0x9d8] sm:$0xff]
          %v3366 = vld [vmem:[#allocation2 + $0x9e0] sm:$0xff]
          %v3367 = vld [vmem:[#allocation2 + $0x9e8] sm:$0xff]
          %v3368 = vld [vmem:[#allocation2 + $0x9f0] sm:$0xff]
          %v3369 = vld [vmem:[#allocation2 + $0x9f8] sm:$0xff]
          %v3370 = vld [vmem:[#allocation2 + $0xa00] sm:$0xff]
          %v3371 = vld [vmem:[#allocation2 + $0xa08] sm:$0xff]
          %v3372 = vld [vmem:[#allocation2 + $0xa10] sm:$0xff]
          %v3373 = vld [vmem:[#allocation2 + $0xa18] sm:$0xff]
          %v3374 = vld [vmem:[#allocation2 + $0xa20] sm:$0xff]
          %v3375 = vld [vmem:[#allocation2 + $0xa28] sm:$0xff]
          %v3376 = vld [vmem:[#allocation2 + $0xa30] sm:$0xff]
          %v3377 = vld [vmem:[#allocation2 + $0xa38] sm:$0xff]
          %v3378 = vld [vmem:[#allocation2 + $0xa40] sm:$0xff]
          %v3379 = vld [vmem:[#allocation2 + $0xa48] sm:$0xff]
          %v3380 = vld [vmem:[#allocation2 + $0xa50] sm:$0xff]
          %v3381 = vld [vmem:[#allocation2 + $0xa58] sm:$0xff]
          %v3382 = vld [vmem:[#allocation2 + $0xa60] sm:$0xff]
          %v3383 = vld [vmem:[#allocation2 + $0xa68] sm:$0xff]
          %v3384 = vld [vmem:[#allocation2 + $0xa70] sm:$0xff]
          %v3385 = vld [vmem:[#allocation2 + $0xa78] sm:$0xff]
          %v3386 = vld [vmem:[#allocation2 + $0xa80] sm:$0xff]
          %v3387 = vld [vmem:[#allocation2 + $0xa88] sm:$0xff]
          %v3388 = vld [vmem:[#allocation2 + $0xa90] sm:$0xff]
          %v3389 = vld [vmem:[#allocation2 + $0xa98] sm:$0xff]
          %v3390 = vld [vmem:[#allocation2 + $0xaa0] sm:$0xff]
          %v3391 = vld [vmem:[#allocation2 + $0xaa8] sm:$0xff]
          %v3392 = vld [vmem:[#allocation2 + $0xab0] sm:$0xff]
          %v3393 = vld [vmem:[#allocation2 + $0xab8] sm:$0xff]
          %v3394 = vld [vmem:[#allocation2 + $0xac0] sm:$0xff]
          %v3395 = vld [vmem:[#allocation2 + $0xac8] sm:$0xff]
          %v3396 = vld [vmem:[#allocation2 + $0xad0] sm:$0xff]
          %v3397 = vld [vmem:[#allocation2 + $0xad8] sm:$0xff]
          %v3398 = vld [vmem:[#allocation2 + $0xae0] sm:$0xff]
          %v3399 = vld [vmem:[#allocation2 + $0xae8] sm:$0xff]
          %v3400 = vld [vmem:[#allocation2 + $0xaf0] sm:$0xff]
          %v3401 = vld [vmem:[#allocation2 + $0xaf8] sm:$0xff]
          %v3402 = vld [vmem:[#allocation2 + $0xb00] sm:$0xff]
          %v3403 = vld [vmem:[#allocation2 + $0xb08] sm:$0xff]
          %v3404 = vld [vmem:[#allocation2 + $0xb10] sm:$0xff]
          %v3405 = vld [vmem:[#allocation2 + $0xb18] sm:$0xff]
          %v3406 = vld [vmem:[#allocation2 + $0xb20] sm:$0xff]
          %v3407 = vld [vmem:[#allocation2 + $0xb28] sm:$0xff]
          %v3408 = vld [vmem:[#allocation2 + $0xb30] sm:$0xff]
          %v3409 = vld [vmem:[#allocation2 + $0xb38] sm:$0xff]
          %v3410 = vld [vmem:[#allocation2 + $0xb40] sm:$0xff]
          %v3411 = vld [vmem:[#allocation2 + $0xb48] sm:$0xff]
          %v3412 = vld [vmem:[#allocation2 + $0xb50] sm:$0xff]
          %v3413 = vld [vmem:[#allocation2 + $0xb58] sm:$0xff]
          %v3414 = vld [vmem:[#allocation2 + $0xb60] sm:$0xff]
          %v3415 = vld [vmem:[#allocation2 + $0xb68] sm:$0xff]
          %v3416 = vld [vmem:[#allocation2 + $0xb70] sm:$0xff]
          %v3417 = vld [vmem:[#allocation2 + $0xb78] sm:$0xff]
          %v3418 = vld [vmem:[#allocation2 + $0xb80] sm:$0xff]
          %v3419 = vld [vmem:[#allocation2 + $0xb88] sm:$0xff]
          %v3420 = vld [vmem:[#allocation2 + $0xb90] sm:$0xff]
          %v3421 = vld [vmem:[#allocation2 + $0xb98] sm:$0xff]
          %v3422 = vld [vmem:[#allocation2 + $0xba0] sm:$0xff]
          %v3423 = vld [vmem:[#allocation2 + $0xba8] sm:$0xff]
          %v3424 = vld [vmem:[#allocation2 + $0xbb0] sm:$0xff]
          %v3425 = vld [vmem:[#allocation2 + $0xbb8] sm:$0xff]
          %v3426 = vld [vmem:[#allocation2 + $0xbc0] sm:$0xff]
          %v3427 = vld [vmem:[#allocation2 + $0xbc8] sm:$0xff]
          %v3428 = vld [vmem:[#allocation2 + $0xbd0] sm:$0xff]
          %v3429 = vld [vmem:[#allocation2 + $0xbd8] sm:$0xff]
          %v3430 = vld [vmem:[#allocation2 + $0xbe0] sm:$0xff]
          %v3431 = vld [vmem:[#allocation2 + $0xbe8] sm:$0xff]
          %v3432 = vld [vmem:[#allocation2 + $0xbf0] sm:$0xff]
          %v3433 = vld [vmem:[#allocation2 + $0xbf8] sm:$0xff]
          %v3434 = vld [vmem:[#allocation2 + $0xc00] sm:$0xff]
          %v3435 = vld [vmem:[#allocation2 + $0xc08] sm:$0xff]
          %v3436 = vld [vmem:[#allocation2 + $0xc10] sm:$0xff]
          %v3437 = vld [vmem:[#allocation2 + $0xc18] sm:$0xff]
          %v3438 = vld [vmem:[#allocation2 + $0xc20] sm:$0xff]
          %v3439 = vld [vmem:[#allocation2 + $0xc28] sm:$0xff]
          %v3440 = vld [vmem:[#allocation2 + $0xc30] sm:$0xff]
          %v3441 = vld [vmem:[#allocation2 + $0xc38] sm:$0xff]
          %v3442 = vld [vmem:[#allocation2 + $0xc40] sm:$0xff]
          %v3443 = vld [vmem:[#allocation2 + $0xc48] sm:$0xff]
          %v3444 = vld [vmem:[#allocation2 + $0xc50] sm:$0xff]
          %v3445 = vld [vmem:[#allocation2 + $0xc58] sm:$0xff]
          %v3446 = vld [vmem:[#allocation2 + $0xc60] sm:$0xff]
          %v3447 = vld [vmem:[#allocation2 + $0xc68] sm:$0xff]
          %v3448 = vld [vmem:[#allocation2 + $0xc70] sm:$0xff]
          %v3449 = vld [vmem:[#allocation2 + $0xc78] sm:$0xff]
          %v3450 = vld [vmem:[#allocation2 + $0xc80] sm:$0xff]
          %v3451 = vld [vmem:[#allocation2 + $0xc88] sm:$0xff]
          %v3452 = vld [vmem:[#allocation2 + $0xc90] sm:$0xff]
          %v3453 = vld [vmem:[#allocation2 + $0xc98] sm:$0xff]
          %v3454 = vld [vmem:[#allocation2 + $0xca0] sm:$0xff]
          %v3455 = vld [vmem:[#allocation2 + $0xca8] sm:$0xff]
          %v3456 = vld [vmem:[#allocation2 + $0xcb0] sm:$0xff]
          %v3457 = vld [vmem:[#allocation2 + $0xcb8] sm:$0xff]
          %v3458 = vld [vmem:[#allocation2 + $0xcc0] sm:$0xff]
          %v3459 = vld [vmem:[#allocation2 + $0xcc8] sm:$0xff]
          %v3460 = vld [vmem:[#allocation2 + $0xcd0] sm:$0xff]
          %v3461 = vld [vmem:[#allocation2 + $0xcd8] sm:$0xff]
          %v3462 = vld [vmem:[#allocation2 + $0xce0] sm:$0xff]
          %v3463 = vld [vmem:[#allocation2 + $0xce8] sm:$0xff]
          %v3464 = vld [vmem:[#allocation2 + $0xcf0] sm:$0xff]
          %v3465 = vld [vmem:[#allocation2 + $0xcf8] sm:$0xff]
          %v3466 = vld [vmem:[#allocation2 + $0xd00] sm:$0xff]
          %v3467 = vld [vmem:[#allocation2 + $0xd08] sm:$0xff]
          %v3468 = vld [vmem:[#allocation2 + $0xd10] sm:$0xff]
          %v3469 = vld [vmem:[#allocation2 + $0xd18] sm:$0xff]
          %v3470 = vld [vmem:[#allocation2 + $0xd20] sm:$0xff]
          %v3471 = vld [vmem:[#allocation2 + $0xd28] sm:$0xff]
          %v3472 = vld [vmem:[#allocation2 + $0xd30] sm:$0xff]
          %v3473 = vld [vmem:[#allocation2 + $0xd38] sm:$0xff]
          %v3474 = vld [vmem:[#allocation2 + $0xd40] sm:$0xff]
          %v3475 = vld [vmem:[#allocation2 + $0xd48] sm:$0xff]
          %v3476 = vld [vmem:[#allocation2 + $0xd50] sm:$0xff]
          %v3477 = vld [vmem:[#allocation2 + $0xd58] sm:$0xff]
          %v3478 = vld [vmem:[#allocation2 + $0xd60] sm:$0xff]
          %v3479 = vld [vmem:[#allocation2 + $0xd68] sm:$0xff]
          %v3480 = vld [vmem:[#allocation2 + $0xd70] sm:$0xff]
          %v3481 = vld [vmem:[#allocation2 + $0xd78] sm:$0xff]
          %v3482 = vld [vmem:[#allocation2 + $0xd80] sm:$0xff]
          %v3483 = vld [vmem:[#allocation2 + $0xd88] sm:$0xff]
          %v3484 = vld [vmem:[#allocation2 + $0xd90] sm:$0xff]
          %v3485 = vld [vmem:[#allocation2 + $0xd98] sm:$0xff]
          %v3486 = vld [vmem:[#allocation2 + $0xda0] sm:$0xff]
          %v3487 = vld [vmem:[#allocation2 + $0xda8] sm:$0xff]
          %v3488 = vld [vmem:[#allocation2 + $0xdb0] sm:$0xff]
          %v3489 = vld [vmem:[#allocation2 + $0xdb8] sm:$0xff]
          %v3490 = vld [vmem:[#allocation2 + $0xdc0] sm:$0xff]
          %v3491 = vld [vmem:[#allocation2 + $0xdc8] sm:$0xff]
          %v3492 = vld [vmem:[#allocation2 + $0xdd0] sm:$0xff]
          %v3493 = vld [vmem:[#allocation2 + $0xdd8] sm:$0xff]
          %v3494 = vld [vmem:[#allocation2 + $0xde0] sm:$0xff]
          %v3495 = vld [vmem:[#allocation2 + $0xde8] sm:$0xff]
          %v3496 = vld [vmem:[#allocation2 + $0xdf0] sm:$0xff]
          %v3497 = vld [vmem:[#allocation2 + $0xdf8] sm:$0xff]
          %v3498 = vld [vmem:[#allocation2 + $0xe00] sm:$0xff]
          %v3499 = vld [vmem:[#allocation2 + $0xe08] sm:$0xff]
          %v3500 = vld [vmem:[#allocation2 + $0xe10] sm:$0xff]
          %v3501 = vld [vmem:[#allocation2 + $0xe18] sm:$0xff]
          %v3502 = vld [vmem:[#allocation2 + $0xe20] sm:$0xff]
          %v3503 = vld [vmem:[#allocation2 + $0xe28] sm:$0xff]
          %v3504 = vld [vmem:[#allocation2 + $0xe30] sm:$0xff]
          %v3505 = vld [vmem:[#allocation2 + $0xe38] sm:$0xff]
          %v3506 = vld [vmem:[#allocation2 + $0xe40] sm:$0xff]
          %v3507 = vld [vmem:[#allocation2 + $0xe48] sm:$0xff]
          %v3508 = vld [vmem:[#allocation2 + $0xe50] sm:$0xff]
          %v3509 = vld [vmem:[#allocation2 + $0xe58] sm:$0xff]
          %v3510 = vld [vmem:[#allocation2 + $0xe60] sm:$0xff]
          %v3511 = vld [vmem:[#allocation2 + $0xe68] sm:$0xff]
          %v3512 = vld [vmem:[#allocation2 + $0xe70] sm:$0xff]
          %v3513 = vld [vmem:[#allocation2 + $0xe78] sm:$0xff]
          %v3514 = vld [vmem:[#allocation2 + $0xe80] sm:$0xff]
          %v3515 = vld [vmem:[#allocation2 + $0xe88] sm:$0xff]
          %v3516 = vld [vmem:[#allocation2 + $0xe90] sm:$0xff]
          %v3517 = vld [vmem:[#allocation2 + $0xe98] sm:$0xff]
          %v3518 = vld [vmem:[#allocation2 + $0xea0] sm:$0xff]
          %v3519 = vld [vmem:[#allocation2 + $0xea8] sm:$0xff]
          %v3520 = vld [vmem:[#allocation2 + $0xeb0] sm:$0xff]
          %v3521 = vld [vmem:[#allocation2 + $0xeb8] sm:$0xff]
          %v3522 = vld [vmem:[#allocation2 + $0xec0] sm:$0xff]
          %v3523 = vld [vmem:[#allocation2 + $0xec8] sm:$0xff]
          %v3524 = vld [vmem:[#allocation2 + $0xed0] sm:$0xff]
          %v3525 = vld [vmem:[#allocation2 + $0xed8] sm:$0xff]
          %v3526 = vld [vmem:[#allocation2 + $0xee0] sm:$0xff]
          %v3527 = vld [vmem:[#allocation2 + $0xee8] sm:$0xff]
          %v3528 = vld [vmem:[#allocation2 + $0xef0] sm:$0xff]
          %v3529 = vld [vmem:[#allocation2 + $0xef8] sm:$0xff]
          %v3530 = vld [vmem:[#allocation2 + $0xf00] sm:$0xff]
          %v3531 = vld [vmem:[#allocation2 + $0xf08] sm:$0xff]
          %v3532 = vld [vmem:[#allocation2 + $0xf10] sm:$0xff]
          %v3533 = vld [vmem:[#allocation2 + $0xf18] sm:$0xff]
          %v3534 = vld [vmem:[#allocation2 + $0xf20] sm:$0xff]
          %v3535 = vld [vmem:[#allocation2 + $0xf28] sm:$0xff]
          %v3536 = vld [vmem:[#allocation2 + $0xf30] sm:$0xff]
          %v3537 = vld [vmem:[#allocation2 + $0xf38] sm:$0xff]
          %v3538 = vld [vmem:[#allocation2 + $0xf40] sm:$0xff]
          %v3539 = vld [vmem:[#allocation2 + $0xf48] sm:$0xff]
          %v3540 = vld [vmem:[#allocation2 + $0xf50] sm:$0xff]
          %v3541 = vld [vmem:[#allocation2 + $0xf58] sm:$0xff]
          %v3542 = vld [vmem:[#allocation2 + $0xf60] sm:$0xff]
          %v3543 = vld [vmem:[#allocation2 + $0xf68] sm:$0xff]
          %v3544 = vld [vmem:[#allocation2 + $0xf70] sm:$0xff]
          %v3545 = vld [vmem:[#allocation2 + $0xf78] sm:$0xff]
          %v3546 = vld [vmem:[#allocation2 + $0xf80] sm:$0xff]
          %v3547 = vld [vmem:[#allocation2 + $0xf88] sm:$0xff]
          %v3548 = vld [vmem:[#allocation2 + $0xf90] sm:$0xff]
          %v3549 = vld [vmem:[#allocation2 + $0xf98] sm:$0xff]
          %v3550 = vld [vmem:[#allocation2 + $0xfa0] sm:$0xff]
          %v3551 = vld [vmem:[#allocation2 + $0xfa8] sm:$0xff]
          %v3552 = vld [vmem:[#allocation2 + $0xfb0] sm:$0xff]
          %v3553 = vld [vmem:[#allocation2 + $0xfb8] sm:$0xff]
          %v3554 = vld [vmem:[#allocation2 + $0xfc0] sm:$0xff]
          %v3555 = vld [vmem:[#allocation2 + $0xfc8] sm:$0xff]
          %v3556 = vld [vmem:[#allocation2 + $0xfd0] sm:$0xff]
          %v3557 = vld [vmem:[#allocation2 + $0xfd8] sm:$0xff]
          %v3558 = vld [vmem:[#allocation2 + $0xfe0] sm:$0xff]
          %v3559 = vld [vmem:[#allocation2 + $0xfe8] sm:$0xff]
          %v3560 = vld [vmem:[#allocation2 + $0xff0] sm:$0xff]
          %v3561 = vld [vmem:[#allocation2 + $0xff8] sm:$0xff]
          %v3562 = vld [vmem:[#allocation2 + $0x1000] sm:$0xff]
          %v3563 = vld [vmem:[#allocation2 + $0x1008] sm:$0xff]
          %v3564 = vld [vmem:[#allocation2 + $0x1010] sm:$0xff]
          %v3565 = vld [vmem:[#allocation2 + $0x1018] sm:$0xff]
          %v3566 = vld [vmem:[#allocation2 + $0x1020] sm:$0xff]
          %v3567 = vld [vmem:[#allocation2 + $0x1028] sm:$0xff]
          %v3568 = vld [vmem:[#allocation2 + $0x1030] sm:$0xff]
          %v3569 = vld [vmem:[#allocation2 + $0x1038] sm:$0xff]
          %v3570 = vld [vmem:[#allocation2 + $0x1040] sm:$0xff]
          %v3571 = vld [vmem:[#allocation2 + $0x1048] sm:$0xff]
          %v3572 = vld [vmem:[#allocation2 + $0x1050] sm:$0xff]
          %v3573 = vld [vmem:[#allocation2 + $0x1058] sm:$0xff]
          %v3574 = vld [vmem:[#allocation2 + $0x1060] sm:$0xff]
          %v3575 = vld [vmem:[#allocation2 + $0x1068] sm:$0xff]
          %v3576 = vld [vmem:[#allocation2 + $0x1070] sm:$0xff]
          %v3577 = vld [vmem:[#allocation2 + $0x1078] sm:$0xff]
          %v3578 = vld [vmem:[#allocation2 + $0x1080] sm:$0xff]
          %v3579 = vld [vmem:[#allocation2 + $0x1088] sm:$0xff]
          %v3580 = vld [vmem:[#allocation2 + $0x1090] sm:$0xff]
          %v3581 = vld [vmem:[#allocation2 + $0x1098] sm:$0xff]
          %v3582 = vld [vmem:[#allocation2 + $0x10a0] sm:$0xff]
          %v3583 = vld [vmem:[#allocation2 + $0x10a8] sm:$0xff]
          %v3584 = vld [vmem:[#allocation2 + $0x10b0] sm:$0xff]
          %v3585 = vld [vmem:[#allocation2 + $0x10b8] sm:$0xff]
          %v3586 = vld [vmem:[#allocation2 + $0x10c0] sm:$0xff]
          %v3587 = vld [vmem:[#allocation2 + $0x10c8] sm:$0xff]
          %v3588 = vld [vmem:[#allocation2 + $0x10d0] sm:$0xff]
          %v3589 = vld [vmem:[#allocation2 + $0x10d8] sm:$0xff]
          %v3590 = vld [vmem:[#allocation2 + $0x10e0] sm:$0xff]
          %v3591 = vld [vmem:[#allocation2 + $0x10e8] sm:$0xff]
          %v3592 = vld [vmem:[#allocation2 + $0x10f0] sm:$0xff]
          %v3593 = vld [vmem:[#allocation2 + $0x10f8] sm:$0xff]
          %v3594 = vld [vmem:[#allocation2 + $0x1100] sm:$0xff]
          %v3595 = vld [vmem:[#allocation2 + $0x1108] sm:$0xff]
          %v3596 = vld [vmem:[#allocation2 + $0x1110] sm:$0xff]
          %v3597 = vld [vmem:[#allocation2 + $0x1118] sm:$0xff]
          %v3598 = vld [vmem:[#allocation2 + $0x1120] sm:$0xff]
          %v3599 = vld [vmem:[#allocation2 + $0x1128] sm:$0xff]
          %v3600 = vld [vmem:[#allocation2 + $0x1130] sm:$0xff]
          %v3601 = vld [vmem:[#allocation2 + $0x1138] sm:$0xff]
          %v3602 = vld [vmem:[#allocation2 + $0x1140] sm:$0xff]
          %v3603 = vld [vmem:[#allocation2 + $0x1148] sm:$0xff]
          %v3604 = vld [vmem:[#allocation2 + $0x1150] sm:$0xff]
          %v3605 = vld [vmem:[#allocation2 + $0x1158] sm:$0xff]
          %v3606 = vld [vmem:[#allocation2 + $0x1160] sm:$0xff]
          %v3607 = vld [vmem:[#allocation2 + $0x1168] sm:$0xff]
          %v3608 = vld [vmem:[#allocation2 + $0x1170] sm:$0xff]
          %v3609 = vld [vmem:[#allocation2 + $0x1178] sm:$0xff]
          %v3610 = vld [vmem:[#allocation2 + $0x1180] sm:$0xff]
          %v3611 = vld [vmem:[#allocation2 + $0x1188] sm:$0xff]
          %v3612 = vld [vmem:[#allocation2 + $0x1190] sm:$0xff]
          %v3613 = vld [vmem:[#allocation2 + $0x1198] sm:$0xff]
          %v3614 = vld [vmem:[#allocation2 + $0x11a0] sm:$0xff]
          %v3615 = vld [vmem:[#allocation2 + $0x11a8] sm:$0xff]
          %v3616 = vld [vmem:[#allocation2 + $0x11b0] sm:$0xff]
          %v3617 = vld [vmem:[#allocation2 + $0x11b8] sm:$0xff]
          %v3618 = vld [vmem:[#allocation2 + $0x11c0] sm:$0xff]
          %v3619 = vld [vmem:[#allocation2 + $0x11c8] sm:$0xff]
          %v3620 = vld [vmem:[#allocation2 + $0x11d0] sm:$0xff]
          %v3621 = vld [vmem:[#allocation2 + $0x11d8] sm:$0xff]
          %v3622 = vld [vmem:[#allocation2 + $0x11e0] sm:$0xff]
          %v3623 = vld [vmem:[#allocation2 + $0x11e8] sm:$0xff]
          %v3624 = vld [vmem:[#allocation2 + $0x11f0] sm:$0xff]
          %v3625 = vld [vmem:[#allocation2 + $0x11f8] sm:$0xff]
          %vm3626 = vcmask 261120
          %v3628 = vsel %vm3626, %v3025, 0
          %v3631 = vsel %vm3626, %v3028, 0
          %v3634 = vsel %vm3626, %v3031, 0
          %v3637 = vsel %vm3626, %v3034, 0
          %v3640 = vsel %vm3626, %v3037, 0
          %v3643 = vsel %vm3626, %v3040, 0
          %v3646 = vsel %vm3626, %v3043, 0
          %v3649 = vsel %vm3626, %v3046, 0
          %v3652 = vsel %vm3626, %v3049, 0
          %3654 = vmatprep.subr.mxu0 %v3051
          %3655 = vmatpush1.msra.mxu0 %v3050
          %3656 = vmatprep.subr.mxu0 %v3067
          %3657 = vmatpush1.msra.mxu0 %v3066
          %3658 = vmatprep.subr.mxu0 %v3083
          %3659 = vmatpush1.msra.mxu0 %v3082
          %3660 = vmatprep.subr.mxu0 %v3099
          %3661 = vmatpush1.msra.mxu0 %v3098
          %3662 = vmatprep.subr.mxu0 %v3115
          %3663 = vmatpush1.msra.mxu0 %v3114
          %3664 = vmatprep.subr.mxu0 %v3131
          %3665 = vmatpush1.msra.mxu0 %v3130
          %3666 = vmatprep.subr.mxu0 %v3147
          %3667 = vmatpush1.msra.mxu0 %v3146
          %3668 = vmatprep.subr.mxu0 %v3163
          %3669 = vmatpush1.msra.mxu0 %v3162
          %3670 = vmatprep.subr.mxu0 %v3179
          %3671 = vmatpush1.msra.mxu0 %v3178
          %3672 = vmatprep.subr.mxu0 %v3195
          %3673 = vmatpush1.msra.mxu0 %v3194
          %3674 = vmatprep.subr.mxu0 %v3211
          %3675 = vmatpush1.msra.mxu0 %v3210
          %3676 = vmatprep.subr.mxu0 %v3227
          %3677 = vmatpush1.msra.mxu0 %v3226
          %3678 = vmatprep.subr.mxu0 %v3243
          %3679 = vmatpush1.msra.mxu0 %v3242
          %3680 = vmatprep.subr.mxu0 %v3259
          %3681 = vmatpush1.msra.mxu0 %v3258
          %3682 = vmatprep.subr.mxu0 %v3275
          %3683 = vmatpush1.msra.mxu0 %v3274
          %3684 = vmatprep.subr.mxu0 %v3291
          %3685 = vmatpush1.msra.mxu0 %v3290
          %3686 = vmatprep.subr.mxu0 %v3307
          %3687 = vmatpush1.msra.mxu0 %v3306
          %3688 = vmatprep.subr.mxu0 %v3323
          %3689 = vmatpush1.msra.mxu0 %v3322
          %3690 = vmatprep.subr.mxu0 %v3339
          %3691 = vmatpush1.msra.mxu0 %v3338
          %3692 = vmatprep.subr.mxu0 %v3355
          %3693 = vmatpush1.msra.mxu0 %v3354
          %3694 = vmatprep.subr.mxu0 %v3371
          %3695 = vmatpush1.msra.mxu0 %v3370
          %3696 = vmatprep.subr.mxu0 %v3387
          %3697 = vmatpush1.msra.mxu0 %v3386
          %3698 = vmatprep.subr.mxu0 %v3403
          %3699 = vmatpush1.msra.mxu0 %v3402
          %3700 = vmatprep.subr.mxu0 %v3419
          %3701 = vmatpush1.msra.mxu0 %v3418
          %3702 = vmatprep.subr.mxu0 %v3435
          %3703 = vmatpush1.msra.mxu0 %v3434
          %3704 = vmatprep.subr.mxu0 %v3451
          %3705 = vmatpush1.msra.mxu0 %v3450
          %3706 = vmatprep.subr.mxu0 %v3467
          %3707 = vmatpush1.msra.mxu0 %v3466
          %3708 = vmatprep.subr.mxu0 %v3483
          %3709 = vmatpush1.msra.mxu0 %v3482
          %3710 = vmatprep.subr.mxu0 %v3499
          %3711 = vmatpush1.msra.mxu0 %v3498
          %3712 = vmatprep.subr.mxu0 %v3515
          %3713 = vmatpush1.msra.mxu0 %v3514
          %3714 = vmatprep.subr.mxu0 %v3531
          %3715 = vmatpush1.msra.mxu0 %v3530
          %3716 = vmatprep.subr.mxu0 %v3547
          %3717 = vmatpush1.msra.mxu0 %v3546
          %3718 = vmatprep.mubr.f32.mxu0 %v3024
          %3719 = vmatmul.mubr.f32.gmra.mrb[0].mxu0 %v3023
          %v3720 = vpop.f32.mrb[0].mxu0
          %v3721 = vadd.f32 0.0, %v3720
          %v3722 = vpop.f32.mrb[0].mxu0
          %v3723 = vadd.f32 0.0, %v3722
          %3724 = vmatprep.mubr.f32.mxu0 %v3027
          %3725 = vmatmul.mubr.f32.gmra.mrb[0].mxu0 %v3026
          %v3726 = vpop.f32.mrb[0].mxu0
          %v3727 = vadd.f32 0.0, %v3726
          %v3728 = vpop.f32.mrb[0].mxu0
          %v3729 = vadd.f32 0.0, %v3728
          %3730 = vmatprep.mubr.f32.mxu0 %v3030
          %3731 = vmatmul.mubr.f32.gmra.mrb[0].mxu0 %v3029
          %v3732 = vpop.f32.mrb[0].mxu0
          %v3733 = vadd.f32 0.0, %v3732
          %v3734 = vpop.f32.mrb[0].mxu0
          %v3735 = vadd.f32 0.0, %v3734
          %3736 = vmatprep.mubr.f32.mxu0 %v3033
          %3737 = vmatmul.mubr.f32.gmra.mrb[0].mxu0 %v3032
          %v3738 = vpop.f32.mrb[0].mxu0
          %v3739 = vadd.f32 0.0, %v3738
          %v3740 = vpop.f32.mrb[0].mxu0
          %v3741 = vadd.f32 0.0, %v3740
          %3742 = vmatprep.mubr.f32.mxu0 %v3036
          %3743 = vmatmul.mubr.f32.gmra.mrb[0].mxu0 %v3035
          %v3744 = vpop.f32.mrb[0].mxu0
          %v3745 = vadd.f32 0.0, %v3744
          %v3746 = vpop.f32.mrb[0].mxu0
          %v3747 = vadd.f32 0.0, %v3746
          %3748 = vmatprep.mubr.f32.mxu0 %v3039
          %3749 = vmatmul.mubr.f32.gmra.mrb[0].mxu0 %v3038
          %v3750 = vpop.f32.mrb[0].mxu0
          %v3751 = vadd.f32 0.0, %v3750
          %v3752 = vpop.f32.mrb[0].mxu0
          %v3753 = vadd.f32 0.0, %v3752
          %3754 = vmatprep.mubr.f32.mxu0 %v3042
          %3755 = vmatmul.mubr.f32.gmra.mrb[0].mxu0 %v3041
          %v3756 = vpop.f32.mrb[0].mxu0
          %v3757 = vadd.f32 0.0, %v3756
          %v3758 = vpop.f32.mrb[0].mxu0
          %v3759 = vadd.f32 0.0, %v3758
          %3760 = vmatprep.mubr.f32.mxu0 %v3045
          %3761 = vmatmul.mubr.f32.gmra.mrb[0].mxu0 %v3044
          %v3762 = vpop.f32.mrb[0].mxu0
          %v3763 = vadd.f32 0.0, %v3762
          %v3764 = vpop.f32.mrb[0].mxu0
          %v3765 = vadd.f32 0.0, %v3764
          %3766 = vmatprep.mubr.f32.mxu0 %v3048
          %3767 = vmatmul.mubr.f32.gmra.mrb[0].mxu0 %v3047
          %v3768 = vpop.f32.mrb[0].mxu0
          %v3769 = vadd.f32 0.0, %v3768
          %v3770 = vpop.f32.mrb[0].mxu0
          %v3771 = vadd.f32 0.0, %v3770
          %3772 = vdwg.mxu0
          %3773 = vmatprep.subr.mxu0 %v3563
          %3774 = vmatpush1.msra.mxu0 %v3562
          %3775 = vmatprep.subr.mxu0 %v3579
          %3776 = vmatpush1.msra.mxu0 %v3578
          %3777 = vmatprep.subr.mxu0 %v3595
          %3778 = vmatpush1.msra.mxu0 %v3594
          %3779 = vmatprep.subr.mxu0 %v3611
          %3780 = vmatpush1.msra.mxu0 %v3610
          %3781 = vmatprep.subr.mxu0 0.0
          %3782 = vmatpush1.msra.mxu0 0.0
          %3783 = vmatprep.subr.mxu0 0.0
          %3784 = vmatpush1.msra.mxu0 0.0
          %3785 = vmatprep.subr.mxu0 0.0
          %3786 = vmatpush1.msra.mxu0 0.0
          %3787 = vmatprep.subr.mxu0 0.0
          %3788 = vmatpush1.msra.mxu0 0.0
          %3789 = vmatprep.subr.mxu0 0.0
          %3790 = vmatpush1.msra.mxu0 0.0
          %3791 = vmatprep.subr.mxu0 0.0
          %3792 = vmatpush1.msra.mxu0 0.0
          %3793 = vmatprep.subr.mxu0 0.0
          %3794 = vmatpush1.msra.mxu0 0.0
          %3795 = vmatprep.subr.mxu0 0.0
          %3796 = vmatpush1.msra.mxu0 0.0
          %3797 = vmatprep.subr.mxu0 0.0
          %3798 = vmatpush1.msra.mxu0 0.0
          %3799 = vmatprep.subr.mxu0 0.0
          %3800 = vmatpush1.msra.mxu0 0.0
          %3801 = vmatprep.subr.mxu0 0.0
          %3802 = vmatpush1.msra.mxu0 0.0
          %3803 = vmatprep.subr.mxu0 0.0
          %3804 = vmatpush1.msra.mxu0 0.0
          %3805 = vmatprep.subr.mxu0 0.0
          %3806 = vmatpush1.msra.mxu0 0.0
          %3807 = vmatprep.subr.mxu0 0.0
          %3808 = vmatpush1.msra.mxu0 0.0
          %3809 = vmatprep.subr.mxu0 0.0
          %3810 = vmatpush1.msra.mxu0 0.0
          %3811 = vmatprep.subr.mxu0 0.0
          %3812 = vmatpush1.msra.mxu0 0.0
          %3813 = vmatprep.subr.mxu0 0.0
          %3814 = vmatpush1.msra.mxu0 0.0
          %3815 = vmatprep.subr.mxu0 0.0
          %3816 = vmatpush1.msra.mxu0 0.0
          %3817 = vmatprep.subr.mxu0 0.0
          %3818 = vmatpush1.msra.mxu0 0.0
          %3819 = vmatprep.subr.mxu0 0.0
          %3820 = vmatpush1.msra.mxu0 0.0
          %3821 = vmatprep.subr.mxu0 0.0
          %3822 = vmatpush1.msra.mxu0 0.0
          %3823 = vmatprep.subr.mxu0 0.0
          %3824 = vmatpush1.msra.mxu0 0.0
          %3825 = vmatprep.subr.mxu0 0.0
          %3826 = vmatpush1.msra.mxu0 0.0
          %3827 = vmatprep.subr.mxu0 0.0
          %3828 = vmatpush1.msra.mxu0 0.0
          %3829 = vmatprep.subr.mxu0 0.0
          %3830 = vmatpush1.msra.mxu0 0.0
          %3831 = vmatprep.subr.mxu0 0.0
          %3832 = vmatpush1.msra.mxu0 0.0
          %3833 = vmatprep.subr.mxu0 0.0
          %3834 = vmatpush1.msra.mxu0 0.0
          %3835 = vmatprep.subr.mxu0 0.0
          %3836 = vmatpush1.msra.mxu0 0.0
          %3837 = vmatprep.mubr.f32.mxu0 0.0
          %3838 = vmatmul.mubr.f32.gmra.mrb[0].mxu0 %v3628
          %v3839 = vpop.f32.mrb[0].mxu0
          %v3840 = vadd.f32 %v3721, %v3839
          %v3841 = vpop.f32.mrb[0].mxu0
          %v3842 = vadd.f32 %v3723, %v3841
          %3843 = vmatprep.mubr.f32.mxu0 0.0
          %3844 = vmatmul.mubr.f32.gmra.mrb[0].mxu0 %v3631
          %v3845 = vpop.f32.mrb[0].mxu0
          %v3846 = vadd.f32 %v3727, %v3845
          %v3847 = vpop.f32.mrb[0].mxu0
          %v3848 = vadd.f32 %v3729, %v3847
          %3849 = vmatprep.mubr.f32.mxu0 0.0
          %3850 = vmatmul.mubr.f32.gmra.mrb[0].mxu0 %v3634
          %v3851 = vpop.f32.mrb[0].mxu0
          %v3852 = vadd.f32 %v3733, %v3851
          %v3853 = vpop.f32.mrb[0].mxu0
          %v3854 = vadd.f32 %v3735, %v3853
          %3855 = vmatprep.mubr.f32.mxu0 0.0
          %3856 = vmatmul.mubr.f32.gmra.mrb[0].mxu0 %v3637
          %v3857 = vpop.f32.mrb[0].mxu0
          %v3858 = vadd.f32 %v3739, %v3857
          %v3859 = vpop.f32.mrb[0].mxu0
          %v3860 = vadd.f32 %v3741, %v3859
          %3861 = vmatprep.mubr.f32.mxu0 0.0
          %3862 = vmatmul.mubr.f32.gmra.mrb[0].mxu0 %v3640
          %v3863 = vpop.f32.mrb[0].mxu0
          %v3864 = vadd.f32 %v3745, %v3863
          %v3865 = vpop.f32.mrb[0].mxu0
          %v3866 = vadd.f32 %v3747, %v3865
          %3867 = vmatprep.mubr.f32.mxu0 0.0
          %3868 = vmatmul.mubr.f32.gmra.mrb[0].mxu0 %v3643
          %v3869 = vpop.f32.mrb[0].mxu0
          %v3870 = vadd.f32 %v3751, %v3869
          %v3871 = vpop.f32.mrb[0].mxu0
          %v3872 = vadd.f32 %v3753, %v3871
          %3873 = vmatprep.mubr.f32.mxu0 0.0
          %3874 = vmatmul.mubr.f32.gmra.mrb[0].mxu0 %v3646
          %v3875 = vpop.f32.mrb[0].mxu0
          %v3876 = vadd.f32 %v3757, %v3875
          %v3877 = vpop.f32.mrb[0].mxu0
          %v3878 = vadd.f32 %v3759, %v3877
          %3879 = vmatprep.mubr.f32.mxu0 0.0
          %3880 = vmatmul.mubr.f32.gmra.mrb[0].mxu0 %v3649
          %v3881 = vpop.f32.mrb[0].mxu0
          %v3882 = vadd.f32 %v3763, %v3881
          %v3883 = vpop.f32.mrb[0].mxu0
          %v3884 = vadd.f32 %v3765, %v3883
          %3885 = vmatprep.mubr.f32.mxu0 0.0
          %3886 = vmatmul.mubr.f32.gmra.mrb[0].mxu0 %v3652
          %v3887 = vpop.f32.mrb[0].mxu0
          %v3888 = vadd.f32 %v3769, %v3887
          %v3889 = vpop.f32.mrb[0].mxu0
          %v3890 = vadd.f32 %v3771, %v3889
          %3891 = vdwg.mxu0
          %3892 = vmatprep.subr.mxu0 %v3053
          %3893 = vmatpush1.msra.mxu0 %v3052
          %3894 = vmatprep.subr.mxu0 %v3069
          %3895 = vmatpush1.msra.mxu0 %v3068
          %3896 = vmatprep.subr.mxu0 %v3085
          %3897 = vmatpush1.msra.mxu0 %v3084
          %3898 = vmatprep.subr.mxu0 %v3101
          %3899 = vmatpush1.msra.mxu0 %v3100
          %3900 = vmatprep.subr.mxu0 %v3117
          %3901 = vmatpush1.msra.mxu0 %v3116
          %3902 = vmatprep.subr.mxu0 %v3133
          %3903 = vmatpush1.msra.mxu0 %v3132
          %3904 = vmatprep.subr.mxu0 %v3149
          %3905 = vmatpush1.msra.mxu0 %v3148
          %3906 = vmatprep.subr.mxu0 %v3165
          %3907 = vmatpush1.msra.mxu0 %v3164
          %3908 = vmatprep.subr.mxu0 %v3181
          %3909 = vmatpush1.msra.mxu0 %v3180
          %3910 = vmatprep.subr.mxu0 %v3197
          %3911 = vmatpush1.msra.mxu0 %v3196
          %3912 = vmatprep.subr.mxu0 %v3213
          %3913 = vmatpush1.msra.mxu0 %v3212
          %3914 = vmatprep.subr.mxu0 %v3229
          %3915 = vmatpush1.msra.mxu0 %v3228
          %3916 = vmatprep.subr.mxu0 %v3245
          %3917 = vmatpush1.msra.mxu0 %v3244
          %3918 = vmatprep.subr.mxu0 %v3261
          %3919 = vmatpush1.msra.mxu0 %v3260
          %3920 = vmatprep.subr.mxu0 %v3277
          %3921 = vmatpush1.msra.mxu0 %v3276
          %3922 = vmatprep.subr.mxu0 %v3293
          %3923 = vmatpush1.msra.mxu0 %v3292
          %3924 = vmatprep.subr.mxu0 %v3309
          %3925 = vmatpush1.msra.mxu0 %v3308
          %3926 = vmatprep.subr.mxu0 %v3325
          %3927 = vmatpush1.msra.mxu0 %v3324
          %3928 = vmatprep.subr.mxu0 %v3341
          %3929 = vmatpush1.msra.mxu0 %v3340
          %3930 = vmatprep.subr.mxu0 %v3357
          %3931 = vmatpush1.msra.mxu0 %v3356
          %3932 = vmatprep.subr.mxu0 %v3373
          %3933 = vmatpush1.msra.mxu0 %v3372
          %3934 = vmatprep.subr.mxu0 %v3389
          %3935 = vmatpush1.msra.mxu0 %v3388
          %3936 = vmatprep.subr.mxu0 %v3405
          %3937 = vmatpush1.msra.mxu0 %v3404
          %3938 = vmatprep.subr.mxu0 %v3421
          %3939 = vmatpush1.msra.mxu0 %v3420
          %3940 = vmatprep.subr.mxu0 %v3437
          %3941 = vmatpush1.msra.mxu0 %v3436
          %3942 = vmatprep.subr.mxu0 %v3453
          %3943 = vmatpush1.msra.mxu0 %v3452
          %3944 = vmatprep.subr.mxu0 %v3469
          %3945 = vmatpush1.msra.mxu0 %v3468
          %3946 = vmatprep.subr.mxu0 %v3485
          %3947 = vmatpush1.msra.mxu0 %v3484
          %3948 = vmatprep.subr.mxu0 %v3501
          %3949 = vmatpush1.msra.mxu0 %v3500
          %3950 = vmatprep.subr.mxu0 %v3517
          %3951 = vmatpush1.msra.mxu0 %v3516
          %3952 = vmatprep.subr.mxu0 %v3533
          %3953 = vmatpush1.msra.mxu0 %v3532
          %3954 = vmatprep.subr.mxu0 %v3549
          %3955 = vmatpush1.msra.mxu0 %v3548
          %3956 = vmatprep.mubr.f32.mxu0 %v3024
          %3957 = vmatmul.mubr.f32.gmra.mrb[0].mxu0 %v3023
          %v3958 = vpop.f32.mrb[0].mxu0
          %v3959 = vadd.f32 0.0, %v3958
          %v3960 = vpop.f32.mrb[0].mxu0
          %v3961 = vadd.f32 0.0, %v3960
          %3962 = vmatprep.mubr.f32.mxu0 %v3027
          %3963 = vmatmul.mubr.f32.gmra.mrb[0].mxu0 %v3026
          %v3964 = vpop.f32.mrb[0].mxu0
          %v3965 = vadd.f32 0.0, %v3964
          %v3966 = vpop.f32.mrb[0].mxu0
          %v3967 = vadd.f32 0.0, %v3966
          %3968 = vmatprep.mubr.f32.mxu0 %v3030
          %3969 = vmatmul.mubr.f32.gmra.mrb[0].mxu0 %v3029
          %v3970 = vpop.f32.mrb[0].mxu0
          %v3971 = vadd.f32 0.0, %v3970
          %v3972 = vpop.f32.mrb[0].mxu0
          %v3973 = vadd.f32 0.0, %v3972
          %3974 = vmatprep.mubr.f32.mxu0 %v3033
          %3975 = vmatmul.mubr.f32.gmra.mrb[0].mxu0 %v3032
          %v3976 = vpop.f32.mrb[0].mxu0
          %v3977 = vadd.f32 0.0, %v3976
          %v3978 = vpop.f32.mrb[0].mxu0
          %v3979 = vadd.f32 0.0, %v3978
          %3980 = vmatprep.mubr.f32.mxu0 %v3036
          %3981 = vmatmul.mubr.f32.gmra.mrb[0].mxu0 %v3035
          %v3982 = vpop.f32.mrb[0].mxu0
          %v3983 = vadd.f32 0.0, %v3982
          %v3984 = vpop.f32.mrb[0].mxu0
          %v3985 = vadd.f32 0.0, %v3984
          %3986 = vmatprep.mubr.f32.mxu0 %v3039
          %3987 = vmatmul.mubr.f32.gmra.mrb[0].mxu0 %v3038
          %v3988 = vpop.f32.mrb[0].mxu0
          %v3989 = vadd.f32 0.0, %v3988
          %v3990 = vpop.f32.mrb[0].mxu0
          %v3991 = vadd.f32 0.0, %v3990
          %3992 = vmatprep.mubr.f32.mxu0 %v3042
          %3993 = vmatmul.mubr.f32.gmra.mrb[0].mxu0 %v3041
          %v3994 = vpop.f32.mrb[0].mxu0
          %v3995 = vadd.f32 0.0, %v3994
          %v3996 = vpop.f32.mrb[0].mxu0
          %v3997 = vadd.f32 0.0, %v3996
          %3998 = vmatprep.mubr.f32.mxu0 %v3045
          %3999 = vmatmul.mubr.f32.gmra.mrb[0].mxu0 %v3044
          %v4000 = vpop.f32.mrb[0].mxu0
          %v4001 = vadd.f32 0.0, %v4000
          %v4002 = vpop.f32.mrb[0].mxu0
          %v4003 = vadd.f32 0.0, %v4002
          %4004 = vmatprep.mubr.f32.mxu0 %v3048
          %4005 = vmatmul.mubr.f32.gmra.mrb[0].mxu0 %v3047
          %v4006 = vpop.f32.mrb[0].mxu0
          %v4007 = vadd.f32 0.0, %v4006
          %v4008 = vpop.f32.mrb[0].mxu0
          %v4009 = vadd.f32 0.0, %v4008
          %4010 = vdwg.mxu0
          %4011 = vmatprep.subr.mxu0 %v3565
          %4012 = vmatpush1.msra.mxu0 %v3564
          %4013 = vmatprep.subr.mxu0 %v3581
          %4014 = vmatpush1.msra.mxu0 %v3580
          %4015 = vmatprep.subr.mxu0 %v3597
          %4016 = vmatpush1.msra.mxu0 %v3596
          %4017 = vmatprep.subr.mxu0 %v3613
          %4018 = vmatpush1.msra.mxu0 %v3612
          %4019 = vmatprep.subr.mxu0 0.0
          %4020 = vmatpush1.msra.mxu0 0.0
          %4021 = vmatprep.subr.mxu0 0.0
          %4022 = vmatpush1.msra.mxu0 0.0
          %4023 = vmatprep.subr.mxu0 0.0
          %4024 = vmatpush1.msra.mxu0 0.0
          %4025 = vmatprep.subr.mxu0 0.0
          %4026 = vmatpush1.msra.mxu0 0.0
          %4027 = vmatprep.subr.mxu0 0.0
          %4028 = vmatpush1.msra.mxu0 0.0
          %4029 = vmatprep.subr.mxu0 0.0
          %4030 = vmatpush1.msra.mxu0 0.0
          %4031 = vmatprep.subr.mxu0 0.0
          %4032 = vmatpush1.msra.mxu0 0.0
          %4033 = vmatprep.subr.mxu0 0.0
          %4034 = vmatpush1.msra.mxu0 0.0
          %4035 = vmatprep.subr.mxu0 0.0
          %4036 = vmatpush1.msra.mxu0 0.0
          %4037 = vmatprep.subr.mxu0 0.0
          %4038 = vmatpush1.msra.mxu0 0.0
          %4039 = vmatprep.subr.mxu0 0.0
          %4040 = vmatpush1.msra.mxu0 0.0
          %4041 = vmatprep.subr.mxu0 0.0
          %4042 = vmatpush1.msra.mxu0 0.0
          %4043 = vmatprep.subr.mxu0 0.0
          %4044 = vmatpush1.msra.mxu0 0.0
          %4045 = vmatprep.subr.mxu0 0.0
          %4046 = vmatpush1.msra.mxu0 0.0
          %4047 = vmatprep.subr.mxu0 0.0
          %4048 = vmatpush1.msra.mxu0 0.0
          %4049 = vmatprep.subr.mxu0 0.0
          %4050 = vmatpush1.msra.mxu0 0.0
          %4051 = vmatprep.subr.mxu0 0.0
          %4052 = vmatpush1.msra.mxu0 0.0
          %4053 = vmatprep.subr.mxu0 0.0
          %4054 = vmatpush1.msra.mxu0 0.0
          %4055 = vmatprep.subr.mxu0 0.0
          %4056 = vmatpush1.msra.mxu0 0.0
          %4057 = vmatprep.subr.mxu0 0.0
          %4058 = vmatpush1.msra.mxu0 0.0
          %4059 = vmatprep.subr.mxu0 0.0
          %4060 = vmatpush1.msra.mxu0 0.0
          %4061 = vmatprep.subr.mxu0 0.0
          %4062 = vmatpush1.msra.mxu0 0.0
          %4063 = vmatprep.subr.mxu0 0.0
          %4064 = vmatpush1.msra.mxu0 0.0
          %4065 = vmatprep.subr.mxu0 0.0
          %4066 = vmatpush1.msra.mxu0 0.0
          %4067 = vmatprep.subr.mxu0 0.0
          %4068 = vmatpush1.msra.mxu0 0.0
          %4069 = vmatprep.subr.mxu0 0.0
          %4070 = vmatpush1.msra.mxu0 0.0
          %4071 = vmatprep.subr.mxu0 0.0
          %4072 = vmatpush1.msra.mxu0 0.0
          %4073 = vmatprep.subr.mxu0 0.0
          %4074 = vmatpush1.msra.mxu0 0.0
          %4075 = vmatprep.mubr.f32.mxu0 0.0
          %4076 = vmatmul.mubr.f32.gmra.mrb[0].mxu0 %v3628
          %v4077 = vpop.f32.mrb[0].mxu0
          %v4078 = vadd.f32 %v3959, %v4077
          %v4079 = vpop.f32.mrb[0].mxu0
          %v4080 = vadd.f32 %v3961, %v4079
          %4081 = vmatprep.mubr.f32.mxu0 0.0
          %4082 = vmatmul.mubr.f32.gmra.mrb[0].mxu0 %v3631
          %v4083 = vpop.f32.mrb[0].mxu0
          %v4084 = vadd.f32 %v3965, %v4083
          %v4085 = vpop.f32.mrb[0].mxu0
          %v4086 = vadd.f32 %v3967, %v4085
          %4087 = vmatprep.mubr.f32.mxu0 0.0
          %4088 = vmatmul.mubr.f32.gmra.mrb[0].mxu0 %v3634
          %v4089 = vpop.f32.mrb[0].mxu0
          %v4090 = vadd.f32 %v3971, %v4089
          %v4091 = vpop.f32.mrb[0].mxu0
          %v4092 = vadd.f32 %v3973, %v4091
          %4093 = vmatprep.mubr.f32.mxu0 0.0
          %4094 = vmatmul.mubr.f32.gmra.mrb[0].mxu0 %v3637
          %v4095 = vpop.f32.mrb[0].mxu0
          %v4096 = vadd.f32 %v3977, %v4095
          %v4097 = vpop.f32.mrb[0].mxu0
          %v4098 = vadd.f32 %v3979, %v4097
          %4099 = vmatprep.mubr.f32.mxu0 0.0
          %4100 = vmatmul.mubr.f32.gmra.mrb[0].mxu0 %v3640
          %v4101 = vpop.f32.mrb[0].mxu0
          %v4102 = vadd.f32 %v3983, %v4101
          %v4103 = vpop.f32.mrb[0].mxu0
          %v4104 = vadd.f32 %v3985, %v4103
          %4105 = vmatprep.mubr.f32.mxu0 0.0
          %4106 = vmatmul.mubr.f32.gmra.mrb[0].mxu0 %v3643
          %v4107 = vpop.f32.mrb[0].mxu0
          %v4108 = vadd.f32 %v3989, %v4107
          %v4109 = vpop.f32.mrb[0].mxu0
          %v4110 = vadd.f32 %v3991, %v4109
          %4111 = vmatprep.mubr.f32.mxu0 0.0
          %4112 = vmatmul.mubr.f32.gmra.mrb[0].mxu0 %v3646
          %v4113 = vpop.f32.mrb[0].mxu0
          %v4114 = vadd.f32 %v3995, %v4113
          %v4115 = vpop.f32.mrb[0].mxu0
          %v4116 = vadd.f32 %v3997, %v4115
          %4117 = vmatprep.mubr.f32.mxu0 0.0
          %4118 = vmatmul.mubr.f32.gmra.mrb[0].mxu0 %v3649
          %v4119 = vpop.f32.mrb[0].mxu0
          %v4120 = vadd.f32 %v4001, %v4119
          %v4121 = vpop.f32.mrb[0].mxu0
          %v4122 = vadd.f32 %v4003, %v4121
          %4123 = vmatprep.mubr.f32.mxu0 0.0
          %4124 = vmatmul.mubr.f32.gmra.mrb[0].mxu0 %v3652
          %v4125 = vpop.f32.mrb[0].mxu0
          %v4126 = vadd.f32 %v4007, %v4125
          %v4127 = vpop.f32.mrb[0].mxu0
          %v4128 = vadd.f32 %v4009, %v4127
          %4129 = vdwg.mxu0
          %4130 = vmatprep.subr.mxu0 %v3055
          %4131 = vmatpush1.msra.mxu0 %v3054
          %4132 = vmatprep.subr.mxu0 %v3071
          %4133 = vmatpush1.msra.mxu0 %v3070
          %4134 = vmatprep.subr.mxu0 %v3087
          %4135 = vmatpush1.msra.mxu0 %v3086
          %4136 = vmatprep.subr.mxu0 %v3103
          %4137 = vmatpush1.msra.mxu0 %v3102
          %4138 = vmatprep.subr.mxu0 %v3119
          %4139 = vmatpush1.msra.mxu0 %v3118
          %4140 = vmatprep.subr.mxu0 %v3135
          %4141 = vmatpush1.msra.mxu0 %v3134
          %4142 = vmatprep.subr.mxu0 %v3151
          %4143 = vmatpush1.msra.mxu0 %v3150
          %4144 = vmatprep.subr.mxu0 %v3167
          %4145 = vmatpush1.msra.mxu0 %v3166
          %4146 = vmatprep.subr.mxu0 %v3183
          %4147 = vmatpush1.msra.mxu0 %v3182
          %4148 = vmatprep.subr.mxu0 %v3199
          %4149 = vmatpush1.msra.mxu0 %v3198
          %4150 = vmatprep.subr.mxu0 %v3215
          %4151 = vmatpush1.msra.mxu0 %v3214
          %4152 = vmatprep.subr.mxu0 %v3231
          %4153 = vmatpush1.msra.mxu0 %v3230
          %4154 = vmatprep.subr.mxu0 %v3247
          %4155 = vmatpush1.msra.mxu0 %v3246
          %4156 = vmatprep.subr.mxu0 %v3263
          %4157 = vmatpush1.msra.mxu0 %v3262
          %4158 = vmatprep.subr.mxu0 %v3279
          %4159 = vmatpush1.msra.mxu0 %v3278
          %4160 = vmatprep.subr.mxu0 %v3295
          %4161 = vmatpush1.msra.mxu0 %v3294
          %4162 = vmatprep.subr.mxu0 %v3311
          %4163 = vmatpush1.msra.mxu0 %v3310
          %4164 = vmatprep.subr.mxu0 %v3327
          %4165 = vmatpush1.msra.mxu0 %v3326
          %4166 = vmatprep.subr.mxu0 %v3343
          %4167 = vmatpush1.msra.mxu0 %v3342
          %4168 = vmatprep.subr.mxu0 %v3359
          %4169 = vmatpush1.msra.mxu0 %v3358
          %4170 = vmatprep.subr.mxu0 %v3375
          %4171 = vmatpush1.msra.mxu0 %v3374
          %4172 = vmatprep.subr.mxu0 %v3391
          %4173 = vmatpush1.msra.mxu0 %v3390
          %4174 = vmatprep.subr.mxu0 %v3407
          %4175 = vmatpush1.msra.mxu0 %v3406
          %4176 = vmatprep.subr.mxu0 %v3423
          %4177 = vmatpush1.msra.mxu0 %v3422
          %4178 = vmatprep.subr.mxu0 %v3439
          %4179 = vmatpush1.msra.mxu0 %v3438
          %4180 = vmatprep.subr.mxu0 %v3455
          %4181 = vmatpush1.msra.mxu0 %v3454
          %4182 = vmatprep.subr.mxu0 %v3471
          %4183 = vmatpush1.msra.mxu0 %v3470
          %4184 = vmatprep.subr.mxu0 %v3487
          %4185 = vmatpush1.msra.mxu0 %v3486
          %4186 = vmatprep.subr.mxu0 %v3503
          %4187 = vmatpush1.msra.mxu0 %v3502
          %4188 = vmatprep.subr.mxu0 %v3519
          %4189 = vmatpush1.msra.mxu0 %v3518
          %4190 = vmatprep.subr.mxu0 %v3535
          %4191 = vmatpush1.msra.mxu0 %v3534
          %4192 = vmatprep.subr.mxu0 %v3551
          %4193 = vmatpush1.msra.mxu0 %v3550
          %4194 = vmatprep.mubr.f32.mxu0 %v3024
          %4195 = vmatmul.mubr.f32.gmra.mrb[0].mxu0 %v3023
          %v4196 = vpop.f32.mrb[0].mxu0
          %v4197 = vadd.f32 0.0, %v4196
          %v4198 = vpop.f32.mrb[0].mxu0
          %v4199 = vadd.f32 0.0, %v4198
          %4200 = vmatprep.mubr.f32.mxu0 %v3027
          %4201 = vmatmul.mubr.f32.gmra.mrb[0].mxu0 %v3026
          %v4202 = vpop.f32.mrb[0].mxu0
          %v4203 = vadd.f32 0.0, %v4202
          %v4204 = vpop.f32.mrb[0].mxu0
          %v4205 = vadd.f32 0.0, %v4204
          %4206 = vmatprep.mubr.f32.mxu0 %v3030
          %4207 = vmatmul.mubr.f32.gmra.mrb[0].mxu0 %v3029
          %v4208 = vpop.f32.mrb[0].mxu0
          %v4209 = vadd.f32 0.0, %v4208
          %v4210 = vpop.f32.mrb[0].mxu0
          %v4211 = vadd.f32 0.0, %v4210
          %4212 = vmatprep.mubr.f32.mxu0 %v3033
          %4213 = vmatmul.mubr.f32.gmra.mrb[0].mxu0 %v3032
          %v4214 = vpop.f32.mrb[0].mxu0
          %v4215 = vadd.f32 0.0, %v4214
          %v4216 = vpop.f32.mrb[0].mxu0
          %v4217 = vadd.f32 0.0, %v4216
          %4218 = vmatprep.mubr.f32.mxu0 %v3036
          %4219 = vmatmul.mubr.f32.gmra.mrb[0].mxu0 %v3035
          %v4220 = vpop.f32.mrb[0].mxu0
          %v4221 = vadd.f32 0.0, %v4220
          %v4222 = vpop.f32.mrb[0].mxu0
          %v4223 = vadd.f32 0.0, %v4222
          %4224 = vmatprep.mubr.f32.mxu0 %v3039
          %4225 = vmatmul.mubr.f32.gmra.mrb[0].mxu0 %v3038
          %v4226 = vpop.f32.mrb[0].mxu0
          %v4227 = vadd.f32 0.0, %v4226
          %v4228 = vpop.f32.mrb[0].mxu0
          %v4229 = vadd.f32 0.0, %v4228
          %4230 = vmatprep.mubr.f32.mxu0 %v3042
          %4231 = vmatmul.mubr.f32.gmra.mrb[0].mxu0 %v3041
          %v4232 = vpop.f32.mrb[0].mxu0
          %v4233 = vadd.f32 0.0, %v4232
          %v4234 = vpop.f32.mrb[0].mxu0
          %v4235 = vadd.f32 0.0, %v4234
          %4236 = vmatprep.mubr.f32.mxu0 %v3045
          %4237 = vmatmul.mubr.f32.gmra.mrb[0].mxu0 %v3044
          %v4238 = vpop.f32.mrb[0].mxu0
          %v4239 = vadd.f32 0.0, %v4238
          %v4240 = vpop.f32.mrb[0].mxu0
          %v4241 = vadd.f32 0.0, %v4240
          %4242 = vmatprep.mubr.f32.mxu0 %v3048
          %4243 = vmatmul.mubr.f32.gmra.mrb[0].mxu0 %v3047
          %v4244 = vpop.f32.mrb[0].mxu0
          %v4245 = vadd.f32 0.0, %v4244
          %v4246 = vpop.f32.mrb[0].mxu0
          %v4247 = vadd.f32 0.0, %v4246
          %4248 = vdwg.mxu0
          %4249 = vmatprep.subr.mxu0 %v3567
          %4250 = vmatpush1.msra.mxu0 %v3566
          %4251 = vmatprep.subr.mxu0 %v3583
          %4252 = vmatpush1.msra.mxu0 %v3582
          %4253 = vmatprep.subr.mxu0 %v3599
          %4254 = vmatpush1.msra.mxu0 %v3598
          %4255 = vmatprep.subr.mxu0 %v3615
          %4256 = vmatpush1.msra.mxu0 %v3614
          %4257 = vmatprep.subr.mxu0 0.0
          %4258 = vmatpush1.msra.mxu0 0.0
          %4259 = vmatprep.subr.mxu0 0.0
          %4260 = vmatpush1.msra.mxu0 0.0
          %4261 = vmatprep.subr.mxu0 0.0
          %4262 = vmatpush1.msra.mxu0 0.0
          %4263 = vmatprep.subr.mxu0 0.0
          %4264 = vmatpush1.msra.mxu0 0.0
          %4265 = vmatprep.subr.mxu0 0.0
          %4266 = vmatpush1.msra.mxu0 0.0
          %4267 = vmatprep.subr.mxu0 0.0
          %4268 = vmatpush1.msra.mxu0 0.0
          %4269 = vmatprep.subr.mxu0 0.0
          %4270 = vmatpush1.msra.mxu0 0.0
          %4271 = vmatprep.subr.mxu0 0.0
          %4272 = vmatpush1.msra.mxu0 0.0
          %4273 = vmatprep.subr.mxu0 0.0
          %4274 = vmatpush1.msra.mxu0 0.0
          %4275 = vmatprep.subr.mxu0 0.0
          %4276 = vmatpush1.msra.mxu0 0.0
          %4277 = vmatprep.subr.mxu0 0.0
          %4278 = vmatpush1.msra.mxu0 0.0
          %4279 = vmatprep.subr.mxu0 0.0
          %4280 = vmatpush1.msra.mxu0 0.0
          %4281 = vmatprep.subr.mxu0 0.0
          %4282 = vmatpush1.msra.mxu0 0.0
          %4283 = vmatprep.subr.mxu0 0.0
          %4284 = vmatpush1.msra.mxu0 0.0
          %4285 = vmatprep.subr.mxu0 0.0
          %4286 = vmatpush1.msra.mxu0 0.0
          %4287 = vmatprep.subr.mxu0 0.0
          %4288 = vmatpush1.msra.mxu0 0.0
          %4289 = vmatprep.subr.mxu0 0.0
          %4290 = vmatpush1.msra.mxu0 0.0
          %4291 = vmatprep.subr.mxu0 0.0
          %4292 = vmatpush1.msra.mxu0 0.0
          %4293 = vmatprep.subr.mxu0 0.0
          %4294 = vmatpush1.msra.mxu0 0.0
          %4295 = vmatprep.subr.mxu0 0.0
          %4296 = vmatpush1.msra.mxu0 0.0
          %4297 = vmatprep.subr.mxu0 0.0
          %4298 = vmatpush1.msra.mxu0 0.0
          %4299 = vmatprep.subr.mxu0 0.0
          %4300 = vmatpush1.msra.mxu0 0.0
          %4301 = vmatprep.subr.mxu0 0.0
          %4302 = vmatpush1.msra.mxu0 0.0
          %4303 = vmatprep.subr.mxu0 0.0
          %4304 = vmatpush1.msra.mxu0 0.0
          %4305 = vmatprep.subr.mxu0 0.0
          %4306 = vmatpush1.msra.mxu0 0.0
          %4307 = vmatprep.subr.mxu0 0.0
          %4308 = vmatpush1.msra.mxu0 0.0
          %4309 = vmatprep.subr.mxu0 0.0
          %4310 = vmatpush1.msra.mxu0 0.0
          %4311 = vmatprep.subr.mxu0 0.0
          %4312 = vmatpush1.msra.mxu0 0.0
          %4313 = vmatprep.mubr.f32.mxu0 0.0
          %4314 = vmatmul.mubr.f32.gmra.mrb[0].mxu0 %v3628
          %v4315 = vpop.f32.mrb[0].mxu0
          %v4316 = vadd.f32 %v4197, %v4315
          %v4317 = vpop.f32.mrb[0].mxu0
          %v4318 = vadd.f32 %v4199, %v4317
          %4319 = vmatprep.mubr.f32.mxu0 0.0
          %4320 = vmatmul.mubr.f32.gmra.mrb[0].mxu0 %v3631
          %v4321 = vpop.f32.mrb[0].mxu0
          %v4322 = vadd.f32 %v4203, %v4321
          %v4323 = vpop.f32.mrb[0].mxu0
          %v4324 = vadd.f32 %v4205, %v4323
          %4325 = vmatprep.mubr.f32.mxu0 0.0
          %4326 = vmatmul.mubr.f32.gmra.mrb[0].mxu0 %v3634
          %v4327 = vpop.f32.mrb[0].mxu0
          %v4328 = vadd.f32 %v4209, %v4327
          %v4329 = vpop.f32.mrb[0].mxu0
          %v4330 = vadd.f32 %v4211, %v4329
          %4331 = vmatprep.mubr.f32.mxu0 0.0
          %4332 = vmatmul.mubr.f32.gmra.mrb[0].mxu0 %v3637
          %v4333 = vpop.f32.mrb[0].mxu0
          %v4334 = vadd.f32 %v4215, %v4333
          %v4335 = vpop.f32.mrb[0].mxu0
          %v4336 = vadd.f32 %v4217, %v4335
          %4337 = vmatprep.mubr.f32.mxu0 0.0
          %4338 = vmatmul.mubr.f32.gmra.mrb[0].mxu0 %v3640
          %v4339 = vpop.f32.mrb[0].mxu0
          %v4340 = vadd.f32 %v4221, %v4339
          %v4341 = vpop.f32.mrb[0].mxu0
          %v4342 = vadd.f32 %v4223, %v4341
          %4343 = vmatprep.mubr.f32.mxu0 0.0
          %4344 = vmatmul.mubr.f32.gmra.mrb[0].mxu0 %v3643
          %v4345 = vpop.f32.mrb[0].mxu0
          %v4346 = vadd.f32 %v4227, %v4345
          %v4347 = vpop.f32.mrb[0].mxu0
          %v4348 = vadd.f32 %v4229, %v4347
          %4349 = vmatprep.mubr.f32.mxu0 0.0
          %4350 = vmatmul.mubr.f32.gmra.mrb[0].mxu0 %v3646
          %v4351 = vpop.f32.mrb[0].mxu0
          %v4352 = vadd.f32 %v4233, %v4351
          %v4353 = vpop.f32.mrb[0].mxu0
          %v4354 = vadd.f32 %v4235, %v4353
          %4355 = vmatprep.mubr.f32.mxu0 0.0
          %4356 = vmatmul.mubr.f32.gmra.mrb[0].mxu0 %v3649
          %v4357 = vpop.f32.mrb[0].mxu0
          %v4358 = vadd.f32 %v4239, %v4357
          %v4359 = vpop.f32.mrb[0].mxu0
          %v4360 = vadd.f32 %v4241, %v4359
          %4361 = vmatprep.mubr.f32.mxu0 0.0
          %4362 = vmatmul.mubr.f32.gmra.mrb[0].mxu0 %v3652
          %v4363 = vpop.f32.mrb[0].mxu0
          %v4364 = vadd.f32 %v4245, %v4363
          %v4365 = vpop.f32.mrb[0].mxu0
          %v4366 = vadd.f32 %v4247, %v4365
          %4367 = vdwg.mxu0
          %4368 = vmatprep.subr.mxu0 %v3057
          %4369 = vmatpush1.msra.mxu0 %v3056
          %4370 = vmatprep.subr.mxu0 %v3073
          %4371 = vmatpush1.msra.mxu0 %v3072
          %4372 = vmatprep.subr.mxu0 %v3089
          %4373 = vmatpush1.msra.mxu0 %v3088
          %4374 = vmatprep.subr.mxu0 %v3105
          %4375 = vmatpush1.msra.mxu0 %v3104
          %4376 = vmatprep.subr.mxu0 %v3121
          %4377 = vmatpush1.msra.mxu0 %v3120
          %4378 = vmatprep.subr.mxu0 %v3137
          %4379 = vmatpush1.msra.mxu0 %v3136
          %4380 = vmatprep.subr.mxu0 %v3153
          %4381 = vmatpush1.msra.mxu0 %v3152
          %4382 = vmatprep.subr.mxu0 %v3169
          %4383 = vmatpush1.msra.mxu0 %v3168
          %4384 = vmatprep.subr.mxu0 %v3185
          %4385 = vmatpush1.msra.mxu0 %v3184
          %4386 = vmatprep.subr.mxu0 %v3201
          %4387 = vmatpush1.msra.mxu0 %v3200
          %4388 = vmatprep.subr.mxu0 %v3217
          %4389 = vmatpush1.msra.mxu0 %v3216
          %4390 = vmatprep.subr.mxu0 %v3233
          %4391 = vmatpush1.msra.mxu0 %v3232
          %4392 = vmatprep.subr.mxu0 %v3249
          %4393 = vmatpush1.msra.mxu0 %v3248
          %4394 = vmatprep.subr.mxu0 %v3265
          %4395 = vmatpush1.msra.mxu0 %v3264
          %4396 = vmatprep.subr.mxu0 %v3281
          %4397 = vmatpush1.msra.mxu0 %v3280
          %4398 = vmatprep.subr.mxu0 %v3297
          %4399 = vmatpush1.msra.mxu0 %v3296
          %4400 = vmatprep.subr.mxu0 %v3313
          %4401 = vmatpush1.msra.mxu0 %v3312
          %4402 = vmatprep.subr.mxu0 %v3329
          %4403 = vmatpush1.msra.mxu0 %v3328
          %4404 = vmatprep.subr.mxu0 %v3345
          %4405 = vmatpush1.msra.mxu0 %v3344
          %4406 = vmatprep.subr.mxu0 %v3361
          %4407 = vmatpush1.msra.mxu0 %v3360
          %4408 = vmatprep.subr.mxu0 %v3377
          %4409 = vmatpush1.msra.mxu0 %v3376
          %4410 = vmatprep.subr.mxu0 %v3393
          %4411 = vmatpush1.msra.mxu0 %v3392
          %4412 = vmatprep.subr.mxu0 %v3409
          %4413 = vmatpush1.msra.mxu0 %v3408
          %4414 = vmatprep.subr.mxu0 %v3425
          %4415 = vmatpush1.msra.mxu0 %v3424
          %4416 = vmatprep.subr.mxu0 %v3441
          %4417 = vmatpush1.msra.mxu0 %v3440
          %4418 = vmatprep.subr.mxu0 %v3457
          %4419 = vmatpush1.msra.mxu0 %v3456
          %4420 = vmatprep.subr.mxu0 %v3473
          %4421 = vmatpush1.msra.mxu0 %v3472
          %4422 = vmatprep.subr.mxu0 %v3489
          %4423 = vmatpush1.msra.mxu0 %v3488
          %4424 = vmatprep.subr.mxu0 %v3505
          %4425 = vmatpush1.msra.mxu0 %v3504
          %4426 = vmatprep.subr.mxu0 %v3521
          %4427 = vmatpush1.msra.mxu0 %v3520
          %4428 = vmatprep.subr.mxu0 %v3537
          %4429 = vmatpush1.msra.mxu0 %v3536
          %4430 = vmatprep.subr.mxu0 %v3553
          %4431 = vmatpush1.msra.mxu0 %v3552
          %4432 = vmatprep.mubr.f32.mxu0 %v3024
          %4433 = vmatmul.mubr.f32.gmra.mrb[0].mxu0 %v3023
          %v4434 = vpop.f32.mrb[0].mxu0
          %v4435 = vadd.f32 0.0, %v4434
          %v4436 = vpop.f32.mrb[0].mxu0
          %v4437 = vadd.f32 0.0, %v4436
          %4438 = vmatprep.mubr.f32.mxu0 %v3027
          %4439 = vmatmul.mubr.f32.gmra.mrb[0].mxu0 %v3026
          %v4440 = vpop.f32.mrb[0].mxu0
          %v4441 = vadd.f32 0.0, %v4440
          %v4442 = vpop.f32.mrb[0].mxu0
          %v4443 = vadd.f32 0.0, %v4442
          %4444 = vmatprep.mubr.f32.mxu0 %v3030
          %4445 = vmatmul.mubr.f32.gmra.mrb[0].mxu0 %v3029
          %v4446 = vpop.f32.mrb[0].mxu0
          %v4447 = vadd.f32 0.0, %v4446
          %v4448 = vpop.f32.mrb[0].mxu0
          %v4449 = vadd.f32 0.0, %v4448
          %4450 = vmatprep.mubr.f32.mxu0 %v3033
          %4451 = vmatmul.mubr.f32.gmra.mrb[0].mxu0 %v3032
          %v4452 = vpop.f32.mrb[0].mxu0
          %v4453 = vadd.f32 0.0, %v4452
          %v4454 = vpop.f32.mrb[0].mxu0
          %v4455 = vadd.f32 0.0, %v4454
          %4456 = vmatprep.mubr.f32.mxu0 %v3036
          %4457 = vmatmul.mubr.f32.gmra.mrb[0].mxu0 %v3035
          %v4458 = vpop.f32.mrb[0].mxu0
          %v4459 = vadd.f32 0.0, %v4458
          %v4460 = vpop.f32.mrb[0].mxu0
          %v4461 = vadd.f32 0.0, %v4460
          %4462 = vmatprep.mubr.f32.mxu0 %v3039
          %4463 = vmatmul.mubr.f32.gmra.mrb[0].mxu0 %v3038
          %v4464 = vpop.f32.mrb[0].mxu0
          %v4465 = vadd.f32 0.0, %v4464
          %v4466 = vpop.f32.mrb[0].mxu0
          %v4467 = vadd.f32 0.0, %v4466
          %4468 = vmatprep.mubr.f32.mxu0 %v3042
          %4469 = vmatmul.mubr.f32.gmra.mrb[0].mxu0 %v3041
          %v4470 = vpop.f32.mrb[0].mxu0
          %v4471 = vadd.f32 0.0, %v4470
          %v4472 = vpop.f32.mrb[0].mxu0
          %v4473 = vadd.f32 0.0, %v4472
          %4474 = vmatprep.mubr.f32.mxu0 %v3045
          %4475 = vmatmul.mubr.f32.gmra.mrb[0].mxu0 %v3044
          %v4476 = vpop.f32.mrb[0].mxu0
          %v4477 = vadd.f32 0.0, %v4476
          %v4478 = vpop.f32.mrb[0].mxu0
          %v4479 = vadd.f32 0.0, %v4478
          %4480 = vmatprep.mubr.f32.mxu0 %v3048
          %4481 = vmatmul.mubr.f32.gmra.mrb[0].mxu0 %v3047
          %v4482 = vpop.f32.mrb[0].mxu0
          %v4483 = vadd.f32 0.0, %v4482
          %v4484 = vpop.f32.mrb[0].mxu0
          %v4485 = vadd.f32 0.0, %v4484
          %4486 = vdwg.mxu0
          %4487 = vmatprep.subr.mxu0 %v3569
          %4488 = vmatpush1.msra.mxu0 %v3568
          %4489 = vmatprep.subr.mxu0 %v3585
          %4490 = vmatpush1.msra.mxu0 %v3584
          %4491 = vmatprep.subr.mxu0 %v3601
          %4492 = vmatpush1.msra.mxu0 %v3600
          %4493 = vmatprep.subr.mxu0 %v3617
          %4494 = vmatpush1.msra.mxu0 %v3616
          %4495 = vmatprep.subr.mxu0 0.0
          %4496 = vmatpush1.msra.mxu0 0.0
          %4497 = vmatprep.subr.mxu0 0.0
          %4498 = vmatpush1.msra.mxu0 0.0
          %4499 = vmatprep.subr.mxu0 0.0
          %4500 = vmatpush1.msra.mxu0 0.0
          %4501 = vmatprep.subr.mxu0 0.0
          %4502 = vmatpush1.msra.mxu0 0.0
          %4503 = vmatprep.subr.mxu0 0.0
          %4504 = vmatpush1.msra.mxu0 0.0
          %4505 = vmatprep.subr.mxu0 0.0
          %4506 = vmatpush1.msra.mxu0 0.0
          %4507 = vmatprep.subr.mxu0 0.0
          %4508 = vmatpush1.msra.mxu0 0.0
          %4509 = vmatprep.subr.mxu0 0.0
          %4510 = vmatpush1.msra.mxu0 0.0
          %4511 = vmatprep.subr.mxu0 0.0
          %4512 = vmatpush1.msra.mxu0 0.0
          %4513 = vmatprep.subr.mxu0 0.0
          %4514 = vmatpush1.msra.mxu0 0.0
          %4515 = vmatprep.subr.mxu0 0.0
          %4516 = vmatpush1.msra.mxu0 0.0
          %4517 = vmatprep.subr.mxu0 0.0
          %4518 = vmatpush1.msra.mxu0 0.0
          %4519 = vmatprep.subr.mxu0 0.0
          %4520 = vmatpush1.msra.mxu0 0.0
          %4521 = vmatprep.subr.mxu0 0.0
          %4522 = vmatpush1.msra.mxu0 0.0
          %4523 = vmatprep.subr.mxu0 0.0
          %4524 = vmatpush1.msra.mxu0 0.0
          %4525 = vmatprep.subr.mxu0 0.0
          %4526 = vmatpush1.msra.mxu0 0.0
          %4527 = vmatprep.subr.mxu0 0.0
          %4528 = vmatpush1.msra.mxu0 0.0
          %4529 = vmatprep.subr.mxu0 0.0
          %4530 = vmatpush1.msra.mxu0 0.0
          %4531 = vmatprep.subr.mxu0 0.0
          %4532 = vmatpush1.msra.mxu0 0.0
          %4533 = vmatprep.subr.mxu0 0.0
          %4534 = vmatpush1.msra.mxu0 0.0
          %4535 = vmatprep.subr.mxu0 0.0
          %4536 = vmatpush1.msra.mxu0 0.0
          %4537 = vmatprep.subr.mxu0 0.0
          %4538 = vmatpush1.msra.mxu0 0.0
          %4539 = vmatprep.subr.mxu0 0.0
          %4540 = vmatpush1.msra.mxu0 0.0
          %4541 = vmatprep.subr.mxu0 0.0
          %4542 = vmatpush1.msra.mxu0 0.0
          %4543 = vmatprep.subr.mxu0 0.0
          %4544 = vmatpush1.msra.mxu0 0.0
          %4545 = vmatprep.subr.mxu0 0.0
          %4546 = vmatpush1.msra.mxu0 0.0
          %4547 = vmatprep.subr.mxu0 0.0
          %4548 = vmatpush1.msra.mxu0 0.0
          %4549 = vmatprep.subr.mxu0 0.0
          %4550 = vmatpush1.msra.mxu0 0.0
          %4551 = vmatprep.mubr.f32.mxu0 0.0
          %4552 = vmatmul.mubr.f32.gmra.mrb[0].mxu0 %v3628
          %v4553 = vpop.f32.mrb[0].mxu0
          %v4554 = vadd.f32 %v4435, %v4553
          %v4555 = vpop.f32.mrb[0].mxu0
          %v4556 = vadd.f32 %v4437, %v4555
          %4557 = vmatprep.mubr.f32.mxu0 0.0
          %4558 = vmatmul.mubr.f32.gmra.mrb[0].mxu0 %v3631
          %v4559 = vpop.f32.mrb[0].mxu0
          %v4560 = vadd.f32 %v4441, %v4559
          %v4561 = vpop.f32.mrb[0].mxu0
          %v4562 = vadd.f32 %v4443, %v4561
          %4563 = vmatprep.mubr.f32.mxu0 0.0
          %4564 = vmatmul.mubr.f32.gmra.mrb[0].mxu0 %v3634
          %v4565 = vpop.f32.mrb[0].mxu0
          %v4566 = vadd.f32 %v4447, %v4565
          %v4567 = vpop.f32.mrb[0].mxu0
          %v4568 = vadd.f32 %v4449, %v4567
          %4569 = vmatprep.mubr.f32.mxu0 0.0
          %4570 = vmatmul.mubr.f32.gmra.mrb[0].mxu0 %v3637
          %v4571 = vpop.f32.mrb[0].mxu0
          %v4572 = vadd.f32 %v4453, %v4571
          %v4573 = vpop.f32.mrb[0].mxu0
          %v4574 = vadd.f32 %v4455, %v4573
          %4575 = vmatprep.mubr.f32.mxu0 0.0
          %4576 = vmatmul.mubr.f32.gmra.mrb[0].mxu0 %v3640
          %v4577 = vpop.f32.mrb[0].mxu0
          %v4578 = vadd.f32 %v4459, %v4577
          %v4579 = vpop.f32.mrb[0].mxu0
          %v4580 = vadd.f32 %v4461, %v4579
          %4581 = vmatprep.mubr.f32.mxu0 0.0
          %4582 = vmatmul.mubr.f32.gmra.mrb[0].mxu0 %v3643
          %v4583 = vpop.f32.mrb[0].mxu0
          %v4584 = vadd.f32 %v4465, %v4583
          %v4585 = vpop.f32.mrb[0].mxu0
          %v4586 = vadd.f32 %v4467, %v4585
          %4587 = vmatprep.mubr.f32.mxu0 0.0
          %4588 = vmatmul.mubr.f32.gmra.mrb[0].mxu0 %v3646
          %v4589 = vpop.f32.mrb[0].mxu0
          %v4590 = vadd.f32 %v4471, %v4589
          %v4591 = vpop.f32.mrb[0].mxu0
          %v4592 = vadd.f32 %v4473, %v4591
          %4593 = vmatprep.mubr.f32.mxu0 0.0
          %4594 = vmatmul.mubr.f32.gmra.mrb[0].mxu0 %v3649
          %v4595 = vpop.f32.mrb[0].mxu0
          %v4596 = vadd.f32 %v4477, %v4595
          %v4597 = vpop.f32.mrb[0].mxu0
          %v4598 = vadd.f32 %v4479, %v4597
          %4599 = vmatprep.mubr.f32.mxu0 0.0
          %4600 = vmatmul.mubr.f32.gmra.mrb[0].mxu0 %v3652
          %v4601 = vpop.f32.mrb[0].mxu0
          %v4602 = vadd.f32 %v4483, %v4601
          %v4603 = vpop.f32.mrb[0].mxu0
          %v4604 = vadd.f32 %v4485, %v4603
          %4605 = vdwg.mxu0
          %4606 = vmatprep.subr.mxu0 %v3059
          %4607 = vmatpush1.msra.mxu0 %v3058
          %4608 = vmatprep.subr.mxu0 %v3075
          %4609 = vmatpush1.msra.mxu0 %v3074
          %4610 = vmatprep.subr.mxu0 %v3091
          %4611 = vmatpush1.msra.mxu0 %v3090
          %4612 = vmatprep.subr.mxu0 %v3107
          %4613 = vmatpush1.msra.mxu0 %v3106
          %4614 = vmatprep.subr.mxu0 %v3123
          %4615 = vmatpush1.msra.mxu0 %v3122
          %4616 = vmatprep.subr.mxu0 %v3139
          %4617 = vmatpush1.msra.mxu0 %v3138
          %4618 = vmatprep.subr.mxu0 %v3155
          %4619 = vmatpush1.msra.mxu0 %v3154
          %4620 = vmatprep.subr.mxu0 %v3171
          %4621 = vmatpush1.msra.mxu0 %v3170
          %4622 = vmatprep.subr.mxu0 %v3187
          %4623 = vmatpush1.msra.mxu0 %v3186
          %4624 = vmatprep.subr.mxu0 %v3203
          %4625 = vmatpush1.msra.mxu0 %v3202
          %4626 = vmatprep.subr.mxu0 %v3219
          %4627 = vmatpush1.msra.mxu0 %v3218
          %4628 = vmatprep.subr.mxu0 %v3235
          %4629 = vmatpush1.msra.mxu0 %v3234
          %4630 = vmatprep.subr.mxu0 %v3251
          %4631 = vmatpush1.msra.mxu0 %v3250
          %4632 = vmatprep.subr.mxu0 %v3267
          %4633 = vmatpush1.msra.mxu0 %v3266
          %4634 = vmatprep.subr.mxu0 %v3283
          %4635 = vmatpush1.msra.mxu0 %v3282
          %4636 = vmatprep.subr.mxu0 %v3299
          %4637 = vmatpush1.msra.mxu0 %v3298
          %4638 = vmatprep.subr.mxu0 %v3315
          %4639 = vmatpush1.msra.mxu0 %v3314
          %4640 = vmatprep.subr.mxu0 %v3331
          %4641 = vmatpush1.msra.mxu0 %v3330
          %4642 = vmatprep.subr.mxu0 %v3347
          %4643 = vmatpush1.msra.mxu0 %v3346
          %4644 = vmatprep.subr.mxu0 %v3363
          %4645 = vmatpush1.msra.mxu0 %v3362
          %4646 = vmatprep.subr.mxu0 %v3379
          %4647 = vmatpush1.msra.mxu0 %v3378
          %4648 = vmatprep.subr.mxu0 %v3395
          %4649 = vmatpush1.msra.mxu0 %v3394
          %4650 = vmatprep.subr.mxu0 %v3411
          %4651 = vmatpush1.msra.mxu0 %v3410
          %4652 = vmatprep.subr.mxu0 %v3427
          %4653 = vmatpush1.msra.mxu0 %v3426
          %4654 = vmatprep.subr.mxu0 %v3443
          %4655 = vmatpush1.msra.mxu0 %v3442
          %4656 = vmatprep.subr.mxu0 %v3459
          %4657 = vmatpush1.msra.mxu0 %v3458
          %4658 = vmatprep.subr.mxu0 %v3475
          %4659 = vmatpush1.msra.mxu0 %v3474
          %4660 = vmatprep.subr.mxu0 %v3491
          %4661 = vmatpush1.msra.mxu0 %v3490
          %4662 = vmatprep.subr.mxu0 %v3507
          %4663 = vmatpush1.msra.mxu0 %v3506
          %4664 = vmatprep.subr.mxu0 %v3523
          %4665 = vmatpush1.msra.mxu0 %v3522
          %4666 = vmatprep.subr.mxu0 %v3539
          %4667 = vmatpush1.msra.mxu0 %v3538
          %4668 = vmatprep.subr.mxu0 %v3555
          %4669 = vmatpush1.msra.mxu0 %v3554
          %4670 = vmatprep.mubr.f32.mxu0 %v3024
          %4671 = vmatmul.mubr.f32.gmra.mrb[0].mxu0 %v3023
          %v4672 = vpop.f32.mrb[0].mxu0
          %v4673 = vadd.f32 0.0, %v4672
          %v4674 = vpop.f32.mrb[0].mxu0
          %v4675 = vadd.f32 0.0, %v4674
          %4676 = vmatprep.mubr.f32.mxu0 %v3027
          %4677 = vmatmul.mubr.f32.gmra.mrb[0].mxu0 %v3026
          %v4678 = vpop.f32.mrb[0].mxu0
          %v4679 = vadd.f32 0.0, %v4678
          %v4680 = vpop.f32.mrb[0].mxu0
          %v4681 = vadd.f32 0.0, %v4680
          %4682 = vmatprep.mubr.f32.mxu0 %v3030
          %4683 = vmatmul.mubr.f32.gmra.mrb[0].mxu0 %v3029
          %v4684 = vpop.f32.mrb[0].mxu0
          %v4685 = vadd.f32 0.0, %v4684
          %v4686 = vpop.f32.mrb[0].mxu0
          %v4687 = vadd.f32 0.0, %v4686
          %4688 = vmatprep.mubr.f32.mxu0 %v3033
          %4689 = vmatmul.mubr.f32.gmra.mrb[0].mxu0 %v3032
          %v4690 = vpop.f32.mrb[0].mxu0
          %v4691 = vadd.f32 0.0, %v4690
          %v4692 = vpop.f32.mrb[0].mxu0
          %v4693 = vadd.f32 0.0, %v4692
          %4694 = vmatprep.mubr.f32.mxu0 %v3036
          %4695 = vmatmul.mubr.f32.gmra.mrb[0].mxu0 %v3035
          %v4696 = vpop.f32.mrb[0].mxu0
          %v4697 = vadd.f32 0.0, %v4696
          %v4698 = vpop.f32.mrb[0].mxu0
          %v4699 = vadd.f32 0.0, %v4698
          %4700 = vmatprep.mubr.f32.mxu0 %v3039
          %4701 = vmatmul.mubr.f32.gmra.mrb[0].mxu0 %v3038
          %v4702 = vpop.f32.mrb[0].mxu0
          %v4703 = vadd.f32 0.0, %v4702
          %v4704 = vpop.f32.mrb[0].mxu0
          %v4705 = vadd.f32 0.0, %v4704
          %4706 = vmatprep.mubr.f32.mxu0 %v3042
          %4707 = vmatmul.mubr.f32.gmra.mrb[0].mxu0 %v3041
          %v4708 = vpop.f32.mrb[0].mxu0
          %v4709 = vadd.f32 0.0, %v4708
          %v4710 = vpop.f32.mrb[0].mxu0
          %v4711 = vadd.f32 0.0, %v4710
          %4712 = vmatprep.mubr.f32.mxu0 %v3045
          %4713 = vmatmul.mubr.f32.gmra.mrb[0].mxu0 %v3044
          %v4714 = vpop.f32.mrb[0].mxu0
          %v4715 = vadd.f32 0.0, %v4714
          %v4716 = vpop.f32.mrb[0].mxu0
          %v4717 = vadd.f32 0.0, %v4716
          %4718 = vmatprep.mubr.f32.mxu0 %v3048
          %4719 = vmatmul.mubr.f32.gmra.mrb[0].mxu0 %v3047
          %v4720 = vpop.f32.mrb[0].mxu0
          %v4721 = vadd.f32 0.0, %v4720
          %v4722 = vpop.f32.mrb[0].mxu0
          %v4723 = vadd.f32 0.0, %v4722
          %4724 = vdwg.mxu0
          %4725 = vmatprep.subr.mxu0 %v3571
          %4726 = vmatpush1.msra.mxu0 %v3570
          %4727 = vmatprep.subr.mxu0 %v3587
          %4728 = vmatpush1.msra.mxu0 %v3586
          %4729 = vmatprep.subr.mxu0 %v3603
          %4730 = vmatpush1.msra.mxu0 %v3602
          %4731 = vmatprep.subr.mxu0 %v3619
          %4732 = vmatpush1.msra.mxu0 %v3618
          %4733 = vmatprep.subr.mxu0 0.0
          %4734 = vmatpush1.msra.mxu0 0.0
          %4735 = vmatprep.subr.mxu0 0.0
          %4736 = vmatpush1.msra.mxu0 0.0
          %4737 = vmatprep.subr.mxu0 0.0
          %4738 = vmatpush1.msra.mxu0 0.0
          %4739 = vmatprep.subr.mxu0 0.0
          %4740 = vmatpush1.msra.mxu0 0.0
          %4741 = vmatprep.subr.mxu0 0.0
          %4742 = vmatpush1.msra.mxu0 0.0
          %4743 = vmatprep.subr.mxu0 0.0
          %4744 = vmatpush1.msra.mxu0 0.0
          %4745 = vmatprep.subr.mxu0 0.0
          %4746 = vmatpush1.msra.mxu0 0.0
          %4747 = vmatprep.subr.mxu0 0.0
          %4748 = vmatpush1.msra.mxu0 0.0
          %4749 = vmatprep.subr.mxu0 0.0
          %4750 = vmatpush1.msra.mxu0 0.0
          %4751 = vmatprep.subr.mxu0 0.0
          %4752 = vmatpush1.msra.mxu0 0.0
          %4753 = vmatprep.subr.mxu0 0.0
          %4754 = vmatpush1.msra.mxu0 0.0
          %4755 = vmatprep.subr.mxu0 0.0
          %4756 = vmatpush1.msra.mxu0 0.0
          %4757 = vmatprep.subr.mxu0 0.0
          %4758 = vmatpush1.msra.mxu0 0.0
          %4759 = vmatprep.subr.mxu0 0.0
          %4760 = vmatpush1.msra.mxu0 0.0
          %4761 = vmatprep.subr.mxu0 0.0
          %4762 = vmatpush1.msra.mxu0 0.0
          %4763 = vmatprep.subr.mxu0 0.0
          %4764 = vmatpush1.msra.mxu0 0.0
          %4765 = vmatprep.subr.mxu0 0.0
          %4766 = vmatpush1.msra.mxu0 0.0
          %4767 = vmatprep.subr.mxu0 0.0
          %4768 = vmatpush1.msra.mxu0 0.0
          %4769 = vmatprep.subr.mxu0 0.0
          %4770 = vmatpush1.msra.mxu0 0.0
          %4771 = vmatprep.subr.mxu0 0.0
          %4772 = vmatpush1.msra.mxu0 0.0
          %4773 = vmatprep.subr.mxu0 0.0
          %4774 = vmatpush1.msra.mxu0 0.0
          %4775 = vmatprep.subr.mxu0 0.0
          %4776 = vmatpush1.msra.mxu0 0.0
          %4777 = vmatprep.subr.mxu0 0.0
          %4778 = vmatpush1.msra.mxu0 0.0
          %4779 = vmatprep.subr.mxu0 0.0
          %4780 = vmatpush1.msra.mxu0 0.0
          %4781 = vmatprep.subr.mxu0 0.0
          %4782 = vmatpush1.msra.mxu0 0.0
          %4783 = vmatprep.subr.mxu0 0.0
          %4784 = vmatpush1.msra.mxu0 0.0
          %4785 = vmatprep.subr.mxu0 0.0
          %4786 = vmatpush1.msra.mxu0 0.0
          %4787 = vmatprep.subr.mxu0 0.0
          %4788 = vmatpush1.msra.mxu0 0.0
          %4789 = vmatprep.mubr.f32.mxu0 0.0
          %4790 = vmatmul.mubr.f32.gmra.mrb[0].mxu0 %v3628
          %v4791 = vpop.f32.mrb[0].mxu0
          %v4792 = vadd.f32 %v4673, %v4791
          %v4793 = vpop.f32.mrb[0].mxu0
          %v4794 = vadd.f32 %v4675, %v4793
          %4795 = vmatprep.mubr.f32.mxu0 0.0
          %4796 = vmatmul.mubr.f32.gmra.mrb[0].mxu0 %v3631
          %v4797 = vpop.f32.mrb[0].mxu0
          %v4798 = vadd.f32 %v4679, %v4797
          %v4799 = vpop.f32.mrb[0].mxu0
          %v4800 = vadd.f32 %v4681, %v4799
          %4801 = vmatprep.mubr.f32.mxu0 0.0
          %4802 = vmatmul.mubr.f32.gmra.mrb[0].mxu0 %v3634
          %v4803 = vpop.f32.mrb[0].mxu0
          %v4804 = vadd.f32 %v4685, %v4803
          %v4805 = vpop.f32.mrb[0].mxu0
          %v4806 = vadd.f32 %v4687, %v4805
          %4807 = vmatprep.mubr.f32.mxu0 0.0
          %4808 = vmatmul.mubr.f32.gmra.mrb[0].mxu0 %v3637
          %v4809 = vpop.f32.mrb[0].mxu0
          %v4810 = vadd.f32 %v4691, %v4809
          %v4811 = vpop.f32.mrb[0].mxu0
          %v4812 = vadd.f32 %v4693, %v4811
          %4813 = vmatprep.mubr.f32.mxu0 0.0
          %4814 = vmatmul.mubr.f32.gmra.mrb[0].mxu0 %v3640
          %v4815 = vpop.f32.mrb[0].mxu0
          %v4816 = vadd.f32 %v4697, %v4815
          %v4817 = vpop.f32.mrb[0].mxu0
          %v4818 = vadd.f32 %v4699, %v4817
          %4819 = vmatprep.mubr.f32.mxu0 0.0
          %4820 = vmatmul.mubr.f32.gmra.mrb[0].mxu0 %v3643
          %v4821 = vpop.f32.mrb[0].mxu0
          %v4822 = vadd.f32 %v4703, %v4821
          %v4823 = vpop.f32.mrb[0].mxu0
          %v4824 = vadd.f32 %v4705, %v4823
          %4825 = vmatprep.mubr.f32.mxu0 0.0
          %4826 = vmatmul.mubr.f32.gmra.mrb[0].mxu0 %v3646
          %v4827 = vpop.f32.mrb[0].mxu0
          %v4828 = vadd.f32 %v4709, %v4827
          %v4829 = vpop.f32.mrb[0].mxu0
          %v4830 = vadd.f32 %v4711, %v4829
          %4831 = vmatprep.mubr.f32.mxu0 0.0
          %4832 = vmatmul.mubr.f32.gmra.mrb[0].mxu0 %v3649
          %v4833 = vpop.f32.mrb[0].mxu0
          %v4834 = vadd.f32 %v4715, %v4833
          %v4835 = vpop.f32.mrb[0].mxu0
          %v4836 = vadd.f32 %v4717, %v4835
          %4837 = vmatprep.mubr.f32.mxu0 0.0
          %4838 = vmatmul.mubr.f32.gmra.mrb[0].mxu0 %v3652
          %v4839 = vpop.f32.mrb[0].mxu0
          %v4840 = vadd.f32 %v4721, %v4839
          %v4841 = vpop.f32.mrb[0].mxu0
          %v4842 = vadd.f32 %v4723, %v4841
          %4843 = vdwg.mxu0
          %4844 = vmatprep.subr.mxu0 %v3061
          %4845 = vmatpush1.msra.mxu0 %v3060
          %4846 = vmatprep.subr.mxu0 %v3077
          %4847 = vmatpush1.msra.mxu0 %v3076
          %4848 = vmatprep.subr.mxu0 %v3093
          %4849 = vmatpush1.msra.mxu0 %v3092
          %4850 = vmatprep.subr.mxu0 %v3109
          %4851 = vmatpush1.msra.mxu0 %v3108
          %4852 = vmatprep.subr.mxu0 %v3125
          %4853 = vmatpush1.msra.mxu0 %v3124
          %4854 = vmatprep.subr.mxu0 %v3141
          %4855 = vmatpush1.msra.mxu0 %v3140
          %4856 = vmatprep.subr.mxu0 %v3157
          %4857 = vmatpush1.msra.mxu0 %v3156
          %4858 = vmatprep.subr.mxu0 %v3173
          %4859 = vmatpush1.msra.mxu0 %v3172
          %4860 = vmatprep.subr.mxu0 %v3189
          %4861 = vmatpush1.msra.mxu0 %v3188
          %4862 = vmatprep.subr.mxu0 %v3205
          %4863 = vmatpush1.msra.mxu0 %v3204
          %4864 = vmatprep.subr.mxu0 %v3221
          %4865 = vmatpush1.msra.mxu0 %v3220
          %4866 = vmatprep.subr.mxu0 %v3237
          %4867 = vmatpush1.msra.mxu0 %v3236
          %4868 = vmatprep.subr.mxu0 %v3253
          %4869 = vmatpush1.msra.mxu0 %v3252
          %4870 = vmatprep.subr.mxu0 %v3269
          %4871 = vmatpush1.msra.mxu0 %v3268
          %4872 = vmatprep.subr.mxu0 %v3285
          %4873 = vmatpush1.msra.mxu0 %v3284
          %4874 = vmatprep.subr.mxu0 %v3301
          %4875 = vmatpush1.msra.mxu0 %v3300
          %4876 = vmatprep.subr.mxu0 %v3317
          %4877 = vmatpush1.msra.mxu0 %v3316
          %4878 = vmatprep.subr.mxu0 %v3333
          %4879 = vmatpush1.msra.mxu0 %v3332
          %4880 = vmatprep.subr.mxu0 %v3349
          %4881 = vmatpush1.msra.mxu0 %v3348
          %4882 = vmatprep.subr.mxu0 %v3365
          %4883 = vmatpush1.msra.mxu0 %v3364
          %4884 = vmatprep.subr.mxu0 %v3381
          %4885 = vmatpush1.msra.mxu0 %v3380
          %4886 = vmatprep.subr.mxu0 %v3397
          %4887 = vmatpush1.msra.mxu0 %v3396
          %4888 = vmatprep.subr.mxu0 %v3413
          %4889 = vmatpush1.msra.mxu0 %v3412
          %4890 = vmatprep.subr.mxu0 %v3429
          %4891 = vmatpush1.msra.mxu0 %v3428
          %4892 = vmatprep.subr.mxu0 %v3445
          %4893 = vmatpush1.msra.mxu0 %v3444
          %4894 = vmatprep.subr.mxu0 %v3461
          %4895 = vmatpush1.msra.mxu0 %v3460
          %4896 = vmatprep.subr.mxu0 %v3477
          %4897 = vmatpush1.msra.mxu0 %v3476
          %4898 = vmatprep.subr.mxu0 %v3493
          %4899 = vmatpush1.msra.mxu0 %v3492
          %4900 = vmatprep.subr.mxu0 %v3509
          %4901 = vmatpush1.msra.mxu0 %v3508
          %4902 = vmatprep.subr.mxu0 %v3525
          %4903 = vmatpush1.msra.mxu0 %v3524
          %4904 = vmatprep.subr.mxu0 %v3541
          %4905 = vmatpush1.msra.mxu0 %v3540
          %4906 = vmatprep.subr.mxu0 %v3557
          %4907 = vmatpush1.msra.mxu0 %v3556
          %4908 = vmatprep.mubr.f32.mxu0 %v3024
          %4909 = vmatmul.mubr.f32.gmra.mrb[0].mxu0 %v3023
          %v4910 = vpop.f32.mrb[0].mxu0
          %v4911 = vadd.f32 0.0, %v4910
          %v4912 = vpop.f32.mrb[0].mxu0
          %v4913 = vadd.f32 0.0, %v4912
          %4914 = vmatprep.mubr.f32.mxu0 %v3027
          %4915 = vmatmul.mubr.f32.gmra.mrb[0].mxu0 %v3026
          %v4916 = vpop.f32.mrb[0].mxu0
          %v4917 = vadd.f32 0.0, %v4916
          %v4918 = vpop.f32.mrb[0].mxu0
          %v4919 = vadd.f32 0.0, %v4918
          %4920 = vmatprep.mubr.f32.mxu0 %v3030
          %4921 = vmatmul.mubr.f32.gmra.mrb[0].mxu0 %v3029
          %v4922 = vpop.f32.mrb[0].mxu0
          %v4923 = vadd.f32 0.0, %v4922
          %v4924 = vpop.f32.mrb[0].mxu0
          %v4925 = vadd.f32 0.0, %v4924
          %4926 = vmatprep.mubr.f32.mxu0 %v3033
          %4927 = vmatmul.mubr.f32.gmra.mrb[0].mxu0 %v3032
          %v4928 = vpop.f32.mrb[0].mxu0
          %v4929 = vadd.f32 0.0, %v4928
          %v4930 = vpop.f32.mrb[0].mxu0
          %v4931 = vadd.f32 0.0, %v4930
          %4932 = vmatprep.mubr.f32.mxu0 %v3036
          %4933 = vmatmul.mubr.f32.gmra.mrb[0].mxu0 %v3035
          %v4934 = vpop.f32.mrb[0].mxu0
          %v4935 = vadd.f32 0.0, %v4934
          %v4936 = vpop.f32.mrb[0].mxu0
          %v4937 = vadd.f32 0.0, %v4936
          %4938 = vmatprep.mubr.f32.mxu0 %v3039
          %4939 = vmatmul.mubr.f32.gmra.mrb[0].mxu0 %v3038
          %v4940 = vpop.f32.mrb[0].mxu0
          %v4941 = vadd.f32 0.0, %v4940
          %v4942 = vpop.f32.mrb[0].mxu0
          %v4943 = vadd.f32 0.0, %v4942
          %4944 = vmatprep.mubr.f32.mxu0 %v3042
          %4945 = vmatmul.mubr.f32.gmra.mrb[0].mxu0 %v3041
          %v4946 = vpop.f32.mrb[0].mxu0
          %v4947 = vadd.f32 0.0, %v4946
          %v4948 = vpop.f32.mrb[0].mxu0
          %v4949 = vadd.f32 0.0, %v4948
          %4950 = vmatprep.mubr.f32.mxu0 %v3045
          %4951 = vmatmul.mubr.f32.gmra.mrb[0].mxu0 %v3044
          %v4952 = vpop.f32.mrb[0].mxu0
          %v4953 = vadd.f32 0.0, %v4952
          %v4954 = vpop.f32.mrb[0].mxu0
          %v4955 = vadd.f32 0.0, %v4954
          %4956 = vmatprep.mubr.f32.mxu0 %v3048
          %4957 = vmatmul.mubr.f32.gmra.mrb[0].mxu0 %v3047
          %v4958 = vpop.f32.mrb[0].mxu0
          %v4959 = vadd.f32 0.0, %v4958
          %v4960 = vpop.f32.mrb[0].mxu0
          %v4961 = vadd.f32 0.0, %v4960
          %4962 = vdwg.mxu0
          %4963 = vmatprep.subr.mxu0 %v3573
          %4964 = vmatpush1.msra.mxu0 %v3572
          %4965 = vmatprep.subr.mxu0 %v3589
          %4966 = vmatpush1.msra.mxu0 %v3588
          %4967 = vmatprep.subr.mxu0 %v3605
          %4968 = vmatpush1.msra.mxu0 %v3604
          %4969 = vmatprep.subr.mxu0 %v3621
          %4970 = vmatpush1.msra.mxu0 %v3620
          %4971 = vmatprep.subr.mxu0 0.0
          %4972 = vmatpush1.msra.mxu0 0.0
          %4973 = vmatprep.subr.mxu0 0.0
          %4974 = vmatpush1.msra.mxu0 0.0
          %4975 = vmatprep.subr.mxu0 0.0
          %4976 = vmatpush1.msra.mxu0 0.0
          %4977 = vmatprep.subr.mxu0 0.0
          %4978 = vmatpush1.msra.mxu0 0.0
          %4979 = vmatprep.subr.mxu0 0.0
          %4980 = vmatpush1.msra.mxu0 0.0
          %4981 = vmatprep.subr.mxu0 0.0
          %4982 = vmatpush1.msra.mxu0 0.0
          %4983 = vmatprep.subr.mxu0 0.0
          %4984 = vmatpush1.msra.mxu0 0.0
          %4985 = vmatprep.subr.mxu0 0.0
          %4986 = vmatpush1.msra.mxu0 0.0
          %4987 = vmatprep.subr.mxu0 0.0
          %4988 = vmatpush1.msra.mxu0 0.0
          %4989 = vmatprep.subr.mxu0 0.0
          %4990 = vmatpush1.msra.mxu0 0.0
          %4991 = vmatprep.subr.mxu0 0.0
          %4992 = vmatpush1.msra.mxu0 0.0
          %4993 = vmatprep.subr.mxu0 0.0
          %4994 = vmatpush1.msra.mxu0 0.0
          %4995 = vmatprep.subr.mxu0 0.0
          %4996 = vmatpush1.msra.mxu0 0.0
          %4997 = vmatprep.subr.mxu0 0.0
          %4998 = vmatpush1.msra.mxu0 0.0
          %4999 = vmatprep.subr.mxu0 0.0
          %5000 = vmatpush1.msra.mxu0 0.0
          %5001 = vmatprep.subr.mxu0 0.0
          %5002 = vmatpush1.msra.mxu0 0.0
          %5003 = vmatprep.subr.mxu0 0.0
          %5004 = vmatpush1.msra.mxu0 0.0
          %5005 = vmatprep.subr.mxu0 0.0
          %5006 = vmatpush1.msra.mxu0 0.0
          %5007 = vmatprep.subr.mxu0 0.0
          %5008 = vmatpush1.msra.mxu0 0.0
          %5009 = vmatprep.subr.mxu0 0.0
          %5010 = vmatpush1.msra.mxu0 0.0
          %5011 = vmatprep.subr.mxu0 0.0
          %5012 = vmatpush1.msra.mxu0 0.0
          %5013 = vmatprep.subr.mxu0 0.0
          %5014 = vmatpush1.msra.mxu0 0.0
          %5015 = vmatprep.subr.mxu0 0.0
          %5016 = vmatpush1.msra.mxu0 0.0
          %5017 = vmatprep.subr.mxu0 0.0
          %5018 = vmatpush1.msra.mxu0 0.0
          %5019 = vmatprep.subr.mxu0 0.0
          %5020 = vmatpush1.msra.mxu0 0.0
          %5021 = vmatprep.subr.mxu0 0.0
          %5022 = vmatpush1.msra.mxu0 0.0
          %5023 = vmatprep.subr.mxu0 0.0
          %5024 = vmatpush1.msra.mxu0 0.0
          %5025 = vmatprep.subr.mxu0 0.0
          %5026 = vmatpush1.msra.mxu0 0.0
          %5027 = vmatprep.mubr.f32.mxu0 0.0
          %5028 = vmatmul.mubr.f32.gmra.mrb[0].mxu0 %v3628
          %v5029 = vpop.f32.mrb[0].mxu0
          %v5030 = vadd.f32 %v4911, %v5029
          %v5031 = vpop.f32.mrb[0].mxu0
          %v5032 = vadd.f32 %v4913, %v5031
          %5033 = vmatprep.mubr.f32.mxu0 0.0
          %5034 = vmatmul.mubr.f32.gmra.mrb[0].mxu0 %v3631
          %v5035 = vpop.f32.mrb[0].mxu0
          %v5036 = vadd.f32 %v4917, %v5035
          %v5037 = vpop.f32.mrb[0].mxu0
          %v5038 = vadd.f32 %v4919, %v5037
          %5039 = vmatprep.mubr.f32.mxu0 0.0
          %5040 = vmatmul.mubr.f32.gmra.mrb[0].mxu0 %v3634
          %v5041 = vpop.f32.mrb[0].mxu0
          %v5042 = vadd.f32 %v4923, %v5041
          %v5043 = vpop.f32.mrb[0].mxu0
          %v5044 = vadd.f32 %v4925, %v5043
          %5045 = vmatprep.mubr.f32.mxu0 0.0
          %5046 = vmatmul.mubr.f32.gmra.mrb[0].mxu0 %v3637
          %v5047 = vpop.f32.mrb[0].mxu0
          %v5048 = vadd.f32 %v4929, %v5047
          %v5049 = vpop.f32.mrb[0].mxu0
          %v5050 = vadd.f32 %v4931, %v5049
          %5051 = vmatprep.mubr.f32.mxu0 0.0
          %5052 = vmatmul.mubr.f32.gmra.mrb[0].mxu0 %v3640
          %v5053 = vpop.f32.mrb[0].mxu0
          %v5054 = vadd.f32 %v4935, %v5053
          %v5055 = vpop.f32.mrb[0].mxu0
          %v5056 = vadd.f32 %v4937, %v5055
          %5057 = vmatprep.mubr.f32.mxu0 0.0
          %5058 = vmatmul.mubr.f32.gmra.mrb[0].mxu0 %v3643
          %v5059 = vpop.f32.mrb[0].mxu0
          %v5060 = vadd.f32 %v4941, %v5059
          %v5061 = vpop.f32.mrb[0].mxu0
          %v5062 = vadd.f32 %v4943, %v5061
          %5063 = vmatprep.mubr.f32.mxu0 0.0
          %5064 = vmatmul.mubr.f32.gmra.mrb[0].mxu0 %v3646
          %v5065 = vpop.f32.mrb[0].mxu0
          %v5066 = vadd.f32 %v4947, %v5065
          %v5067 = vpop.f32.mrb[0].mxu0
          %v5068 = vadd.f32 %v4949, %v5067
          %5069 = vmatprep.mubr.f32.mxu0 0.0
          %5070 = vmatmul.mubr.f32.gmra.mrb[0].mxu0 %v3649
          %v5071 = vpop.f32.mrb[0].mxu0
          %v5072 = vadd.f32 %v4953, %v5071
          %v5073 = vpop.f32.mrb[0].mxu0
          %v5074 = vadd.f32 %v4955, %v5073
          %5075 = vmatprep.mubr.f32.mxu0 0.0
          %5076 = vmatmul.mubr.f32.gmra.mrb[0].mxu0 %v3652
          %v5077 = vpop.f32.mrb[0].mxu0
          %v5078 = vadd.f32 %v4959, %v5077
          %v5079 = vpop.f32.mrb[0].mxu0
          %v5080 = vadd.f32 %v4961, %v5079
          %5081 = vdwg.mxu0
          %5082 = vmatprep.subr.mxu0 %v3063
          %5083 = vmatpush1.msra.mxu0 %v3062
          %5084 = vmatprep.subr.mxu0 %v3079
          %5085 = vmatpush1.msra.mxu0 %v3078
          %5086 = vmatprep.subr.mxu0 %v3095
          %5087 = vmatpush1.msra.mxu0 %v3094
          %5088 = vmatprep.subr.mxu0 %v3111
          %5089 = vmatpush1.msra.mxu0 %v3110
          %5090 = vmatprep.subr.mxu0 %v3127
          %5091 = vmatpush1.msra.mxu0 %v3126
          %5092 = vmatprep.subr.mxu0 %v3143
          %5093 = vmatpush1.msra.mxu0 %v3142
          %5094 = vmatprep.subr.mxu0 %v3159
          %5095 = vmatpush1.msra.mxu0 %v3158
          %5096 = vmatprep.subr.mxu0 %v3175
          %5097 = vmatpush1.msra.mxu0 %v3174
          %5098 = vmatprep.subr.mxu0 %v3191
          %5099 = vmatpush1.msra.mxu0 %v3190
          %5100 = vmatprep.subr.mxu0 %v3207
          %5101 = vmatpush1.msra.mxu0 %v3206
          %5102 = vmatprep.subr.mxu0 %v3223
          %5103 = vmatpush1.msra.mxu0 %v3222
          %5104 = vmatprep.subr.mxu0 %v3239
          %5105 = vmatpush1.msra.mxu0 %v3238
          %5106 = vmatprep.subr.mxu0 %v3255
          %5107 = vmatpush1.msra.mxu0 %v3254
          %5108 = vmatprep.subr.mxu0 %v3271
          %5109 = vmatpush1.msra.mxu0 %v3270
          %5110 = vmatprep.subr.mxu0 %v3287
          %5111 = vmatpush1.msra.mxu0 %v3286
          %5112 = vmatprep.subr.mxu0 %v3303
          %5113 = vmatpush1.msra.mxu0 %v3302
          %5114 = vmatprep.subr.mxu0 %v3319
          %5115 = vmatpush1.msra.mxu0 %v3318
          %5116 = vmatprep.subr.mxu0 %v3335
          %5117 = vmatpush1.msra.mxu0 %v3334
          %5118 = vmatprep.subr.mxu0 %v3351
          %5119 = vmatpush1.msra.mxu0 %v3350
          %5120 = vmatprep.subr.mxu0 %v3367
          %5121 = vmatpush1.msra.mxu0 %v3366
          %5122 = vmatprep.subr.mxu0 %v3383
          %5123 = vmatpush1.msra.mxu0 %v3382
          %5124 = vmatprep.subr.mxu0 %v3399
          %5125 = vmatpush1.msra.mxu0 %v3398
          %5126 = vmatprep.subr.mxu0 %v3415
          %5127 = vmatpush1.msra.mxu0 %v3414
          %5128 = vmatprep.subr.mxu0 %v3431
          %5129 = vmatpush1.msra.mxu0 %v3430
          %5130 = vmatprep.subr.mxu0 %v3447
          %5131 = vmatpush1.msra.mxu0 %v3446
          %5132 = vmatprep.subr.mxu0 %v3463
          %5133 = vmatpush1.msra.mxu0 %v3462
          %5134 = vmatprep.subr.mxu0 %v3479
          %5135 = vmatpush1.msra.mxu0 %v3478
          %5136 = vmatprep.subr.mxu0 %v3495
          %5137 = vmatpush1.msra.mxu0 %v3494
          %5138 = vmatprep.subr.mxu0 %v3511
          %5139 = vmatpush1.msra.mxu0 %v3510
          %5140 = vmatprep.subr.mxu0 %v3527
          %5141 = vmatpush1.msra.mxu0 %v3526
          %5142 = vmatprep.subr.mxu0 %v3543
          %5143 = vmatpush1.msra.mxu0 %v3542
          %5144 = vmatprep.subr.mxu0 %v3559
          %5145 = vmatpush1.msra.mxu0 %v3558
          %5146 = vmatprep.mubr.f32.mxu0 %v3024
          %5147 = vmatmul.mubr.f32.gmra.mrb[0].mxu0 %v3023
          %v5148 = vpop.f32.mrb[0].mxu0
          %v5149 = vadd.f32 0.0, %v5148
          %v5150 = vpop.f32.mrb[0].mxu0
          %v5151 = vadd.f32 0.0, %v5150
          %5152 = vmatprep.mubr.f32.mxu0 %v3027
          %5153 = vmatmul.mubr.f32.gmra.mrb[0].mxu0 %v3026
          %v5154 = vpop.f32.mrb[0].mxu0
          %v5155 = vadd.f32 0.0, %v5154
          %v5156 = vpop.f32.mrb[0].mxu0
          %v5157 = vadd.f32 0.0, %v5156
          %5158 = vmatprep.mubr.f32.mxu0 %v3030
          %5159 = vmatmul.mubr.f32.gmra.mrb[0].mxu0 %v3029
          %v5160 = vpop.f32.mrb[0].mxu0
          %v5161 = vadd.f32 0.0, %v5160
          %v5162 = vpop.f32.mrb[0].mxu0
          %v5163 = vadd.f32 0.0, %v5162
          %5164 = vmatprep.mubr.f32.mxu0 %v3033
          %5165 = vmatmul.mubr.f32.gmra.mrb[0].mxu0 %v3032
          %v5166 = vpop.f32.mrb[0].mxu0
          %v5167 = vadd.f32 0.0, %v5166
          %v5168 = vpop.f32.mrb[0].mxu0
          %v5169 = vadd.f32 0.0, %v5168
          %5170 = vmatprep.mubr.f32.mxu0 %v3036
          %5171 = vmatmul.mubr.f32.gmra.mrb[0].mxu0 %v3035
          %v5172 = vpop.f32.mrb[0].mxu0
          %v5173 = vadd.f32 0.0, %v5172
          %v5174 = vpop.f32.mrb[0].mxu0
          %v5175 = vadd.f32 0.0, %v5174
          %5176 = vmatprep.mubr.f32.mxu0 %v3039
          %5177 = vmatmul.mubr.f32.gmra.mrb[0].mxu0 %v3038
          %v5178 = vpop.f32.mrb[0].mxu0
          %v5179 = vadd.f32 0.0, %v5178
          %v5180 = vpop.f32.mrb[0].mxu0
          %v5181 = vadd.f32 0.0, %v5180
          %5182 = vmatprep.mubr.f32.mxu0 %v3042
          %5183 = vmatmul.mubr.f32.gmra.mrb[0].mxu0 %v3041
          %v5184 = vpop.f32.mrb[0].mxu0
          %v5185 = vadd.f32 0.0, %v5184
          %v5186 = vpop.f32.mrb[0].mxu0
          %v5187 = vadd.f32 0.0, %v5186
          %5188 = vmatprep.mubr.f32.mxu0 %v3045
          %5189 = vmatmul.mubr.f32.gmra.mrb[0].mxu0 %v3044
          %v5190 = vpop.f32.mrb[0].mxu0
          %v5191 = vadd.f32 0.0, %v5190
          %v5192 = vpop.f32.mrb[0].mxu0
          %v5193 = vadd.f32 0.0, %v5192
          %5194 = vmatprep.mubr.f32.mxu0 %v3048
          %5195 = vmatmul.mubr.f32.gmra.mrb[0].mxu0 %v3047
          %v5196 = vpop.f32.mrb[0].mxu0
          %v5197 = vadd.f32 0.0, %v5196
          %v5198 = vpop.f32.mrb[0].mxu0
          %v5199 = vadd.f32 0.0, %v5198
          %5200 = vdwg.mxu0
          %5201 = vmatprep.subr.mxu0 %v3575
          %5202 = vmatpush1.msra.mxu0 %v3574
          %5203 = vmatprep.subr.mxu0 %v3591
          %5204 = vmatpush1.msra.mxu0 %v3590
          %5205 = vmatprep.subr.mxu0 %v3607
          %5206 = vmatpush1.msra.mxu0 %v3606
          %5207 = vmatprep.subr.mxu0 %v3623
          %5208 = vmatpush1.msra.mxu0 %v3622
          %5209 = vmatprep.subr.mxu0 0.0
          %5210 = vmatpush1.msra.mxu0 0.0
          %5211 = vmatprep.subr.mxu0 0.0
          %5212 = vmatpush1.msra.mxu0 0.0
          %5213 = vmatprep.subr.mxu0 0.0
          %5214 = vmatpush1.msra.mxu0 0.0
          %5215 = vmatprep.subr.mxu0 0.0
          %5216 = vmatpush1.msra.mxu0 0.0
          %5217 = vmatprep.subr.mxu0 0.0
          %5218 = vmatpush1.msra.mxu0 0.0
          %5219 = vmatprep.subr.mxu0 0.0
          %5220 = vmatpush1.msra.mxu0 0.0
          %5221 = vmatprep.subr.mxu0 0.0
          %5222 = vmatpush1.msra.mxu0 0.0
          %5223 = vmatprep.subr.mxu0 0.0
          %5224 = vmatpush1.msra.mxu0 0.0
          %5225 = vmatprep.subr.mxu0 0.0
          %5226 = vmatpush1.msra.mxu0 0.0
          %5227 = vmatprep.subr.mxu0 0.0
          %5228 = vmatpush1.msra.mxu0 0.0
          %5229 = vmatprep.subr.mxu0 0.0
          %5230 = vmatpush1.msra.mxu0 0.0
          %5231 = vmatprep.subr.mxu0 0.0
          %5232 = vmatpush1.msra.mxu0 0.0
          %5233 = vmatprep.subr.mxu0 0.0
          %5234 = vmatpush1.msra.mxu0 0.0
          %5235 = vmatprep.subr.mxu0 0.0
          %5236 = vmatpush1.msra.mxu0 0.0
          %5237 = vmatprep.subr.mxu0 0.0
          %5238 = vmatpush1.msra.mxu0 0.0
          %5239 = vmatprep.subr.mxu0 0.0
          %5240 = vmatpush1.msra.mxu0 0.0
          %5241 = vmatprep.subr.mxu0 0.0
          %5242 = vmatpush1.msra.mxu0 0.0
          %5243 = vmatprep.subr.mxu0 0.0
          %5244 = vmatpush1.msra.mxu0 0.0
          %5245 = vmatprep.subr.mxu0 0.0
          %5246 = vmatpush1.msra.mxu0 0.0
          %5247 = vmatprep.subr.mxu0 0.0
          %5248 = vmatpush1.msra.mxu0 0.0
          %5249 = vmatprep.subr.mxu0 0.0
          %5250 = vmatpush1.msra.mxu0 0.0
          %5251 = vmatprep.subr.mxu0 0.0
          %5252 = vmatpush1.msra.mxu0 0.0
          %5253 = vmatprep.subr.mxu0 0.0
          %5254 = vmatpush1.msra.mxu0 0.0
          %5255 = vmatprep.subr.mxu0 0.0
          %5256 = vmatpush1.msra.mxu0 0.0
          %5257 = vmatprep.subr.mxu0 0.0
          %5258 = vmatpush1.msra.mxu0 0.0
          %5259 = vmatprep.subr.mxu0 0.0
          %5260 = vmatpush1.msra.mxu0 0.0
          %5261 = vmatprep.subr.mxu0 0.0
          %5262 = vmatpush1.msra.mxu0 0.0
          %5263 = vmatprep.subr.mxu0 0.0
          %5264 = vmatpush1.msra.mxu0 0.0
          %5265 = vmatprep.mubr.f32.mxu0 0.0
          %5266 = vmatmul.mubr.f32.gmra.mrb[0].mxu0 %v3628
          %v5267 = vpop.f32.mrb[0].mxu0
          %v5268 = vadd.f32 %v5149, %v5267
          %v5269 = vpop.f32.mrb[0].mxu0
          %v5270 = vadd.f32 %v5151, %v5269
          %5271 = vmatprep.mubr.f32.mxu0 0.0
          %5272 = vmatmul.mubr.f32.gmra.mrb[0].mxu0 %v3631
          %v5273 = vpop.f32.mrb[0].mxu0
          %v5274 = vadd.f32 %v5155, %v5273
          %v5275 = vpop.f32.mrb[0].mxu0
          %v5276 = vadd.f32 %v5157, %v5275
          %5277 = vmatprep.mubr.f32.mxu0 0.0
          %5278 = vmatmul.mubr.f32.gmra.mrb[0].mxu0 %v3634
          %v5279 = vpop.f32.mrb[0].mxu0
          %v5280 = vadd.f32 %v5161, %v5279
          %v5281 = vpop.f32.mrb[0].mxu0
          %v5282 = vadd.f32 %v5163, %v5281
          %5283 = vmatprep.mubr.f32.mxu0 0.0
          %5284 = vmatmul.mubr.f32.gmra.mrb[0].mxu0 %v3637
          %v5285 = vpop.f32.mrb[0].mxu0
          %v5286 = vadd.f32 %v5167, %v5285
          %v5287 = vpop.f32.mrb[0].mxu0
          %v5288 = vadd.f32 %v5169, %v5287
          %5289 = vmatprep.mubr.f32.mxu0 0.0
          %5290 = vmatmul.mubr.f32.gmra.mrb[0].mxu0 %v3640
          %v5291 = vpop.f32.mrb[0].mxu0
          %v5292 = vadd.f32 %v5173, %v5291
          %v5293 = vpop.f32.mrb[0].mxu0
          %v5294 = vadd.f32 %v5175, %v5293
          %5295 = vmatprep.mubr.f32.mxu0 0.0
          %5296 = vmatmul.mubr.f32.gmra.mrb[0].mxu0 %v3643
          %v5297 = vpop.f32.mrb[0].mxu0
          %v5298 = vadd.f32 %v5179, %v5297
          %v5299 = vpop.f32.mrb[0].mxu0
          %v5300 = vadd.f32 %v5181, %v5299
          %5301 = vmatprep.mubr.f32.mxu0 0.0
          %5302 = vmatmul.mubr.f32.gmra.mrb[0].mxu0 %v3646
          %v5303 = vpop.f32.mrb[0].mxu0
          %v5304 = vadd.f32 %v5185, %v5303
          %v5305 = vpop.f32.mrb[0].mxu0
          %v5306 = vadd.f32 %v5187, %v5305
          %5307 = vmatprep.mubr.f32.mxu0 0.0
          %5308 = vmatmul.mubr.f32.gmra.mrb[0].mxu0 %v3649
          %v5309 = vpop.f32.mrb[0].mxu0
          %v5310 = vadd.f32 %v5191, %v5309
          %v5311 = vpop.f32.mrb[0].mxu0
          %v5312 = vadd.f32 %v5193, %v5311
          %5313 = vmatprep.mubr.f32.mxu0 0.0
          %5314 = vmatmul.mubr.f32.gmra.mrb[0].mxu0 %v3652
          %v5315 = vpop.f32.mrb[0].mxu0
          %v5316 = vadd.f32 %v5197, %v5315
          %v5317 = vpop.f32.mrb[0].mxu0
          %v5318 = vadd.f32 %v5199, %v5317
          %5319 = vdwg.mxu0
          %5320 = vmatprep.subr.mxu0 %v3065
          %5321 = vmatpush1.msra.mxu0 %v3064
          %5322 = vmatprep.subr.mxu0 %v3081
          %5323 = vmatpush1.msra.mxu0 %v3080
          %5324 = vmatprep.subr.mxu0 %v3097
          %5325 = vmatpush1.msra.mxu0 %v3096
          %5326 = vmatprep.subr.mxu0 %v3113
          %5327 = vmatpush1.msra.mxu0 %v3112
          %5328 = vmatprep.subr.mxu0 %v3129
          %5329 = vmatpush1.msra.mxu0 %v3128
          %5330 = vmatprep.subr.mxu0 %v3145
          %5331 = vmatpush1.msra.mxu0 %v3144
          %5332 = vmatprep.subr.mxu0 %v3161
          %5333 = vmatpush1.msra.mxu0 %v3160
          %5334 = vmatprep.subr.mxu0 %v3177
          %5335 = vmatpush1.msra.mxu0 %v3176
          %5336 = vmatprep.subr.mxu0 %v3193
          %5337 = vmatpush1.msra.mxu0 %v3192
          %5338 = vmatprep.subr.mxu0 %v3209
          %5339 = vmatpush1.msra.mxu0 %v3208
          %5340 = vmatprep.subr.mxu0 %v3225
          %5341 = vmatpush1.msra.mxu0 %v3224
          %5342 = vmatprep.subr.mxu0 %v3241
          %5343 = vmatpush1.msra.mxu0 %v3240
          %5344 = vmatprep.subr.mxu0 %v3257
          %5345 = vmatpush1.msra.mxu0 %v3256
          %5346 = vmatprep.subr.mxu0 %v3273
          %5347 = vmatpush1.msra.mxu0 %v3272
          %5348 = vmatprep.subr.mxu0 %v3289
          %5349 = vmatpush1.msra.mxu0 %v3288
          %5350 = vmatprep.subr.mxu0 %v3305
          %5351 = vmatpush1.msra.mxu0 %v3304
          %5352 = vmatprep.subr.mxu0 %v3321
          %5353 = vmatpush1.msra.mxu0 %v3320
          %5354 = vmatprep.subr.mxu0 %v3337
          %5355 = vmatpush1.msra.mxu0 %v3336
          %5356 = vmatprep.subr.mxu0 %v3353
          %5357 = vmatpush1.msra.mxu0 %v3352
          %5358 = vmatprep.subr.mxu0 %v3369
          %5359 = vmatpush1.msra.mxu0 %v3368
          %5360 = vmatprep.subr.mxu0 %v3385
          %5361 = vmatpush1.msra.mxu0 %v3384
          %5362 = vmatprep.subr.mxu0 %v3401
          %5363 = vmatpush1.msra.mxu0 %v3400
          %5364 = vmatprep.subr.mxu0 %v3417
          %5365 = vmatpush1.msra.mxu0 %v3416
          %5366 = vmatprep.subr.mxu0 %v3433
          %5367 = vmatpush1.msra.mxu0 %v3432
          %5368 = vmatprep.subr.mxu0 %v3449
          %5369 = vmatpush1.msra.mxu0 %v3448
          %5370 = vmatprep.subr.mxu0 %v3465
          %5371 = vmatpush1.msra.mxu0 %v3464
          %5372 = vmatprep.subr.mxu0 %v3481
          %5373 = vmatpush1.msra.mxu0 %v3480
          %5374 = vmatprep.subr.mxu0 %v3497
          %5375 = vmatpush1.msra.mxu0 %v3496
          %5376 = vmatprep.subr.mxu0 %v3513
          %5377 = vmatpush1.msra.mxu0 %v3512
          %5378 = vmatprep.subr.mxu0 %v3529
          %5379 = vmatpush1.msra.mxu0 %v3528
          %5380 = vmatprep.subr.mxu0 %v3545
          %5381 = vmatpush1.msra.mxu0 %v3544
          %5382 = vmatprep.subr.mxu0 %v3561
          %5383 = vmatpush1.msra.mxu0 %v3560
          %5384 = vmatprep.mubr.f32.mxu0 %v3024
          %5385 = vmatmul.mubr.f32.gmra.mrb[0].mxu0 %v3023
          %v5386 = vpop.f32.mrb[0].mxu0
          %v5387 = vadd.f32 0.0, %v5386
          %v5388 = vpop.f32.mrb[0].mxu0
          %v5389 = vadd.f32 0.0, %v5388
          %5390 = vmatprep.mubr.f32.mxu0 %v3027
          %5391 = vmatmul.mubr.f32.gmra.mrb[0].mxu0 %v3026
          %v5392 = vpop.f32.mrb[0].mxu0
          %v5393 = vadd.f32 0.0, %v5392
          %v5394 = vpop.f32.mrb[0].mxu0
          %v5395 = vadd.f32 0.0, %v5394
          %5396 = vmatprep.mubr.f32.mxu0 %v3030
          %5397 = vmatmul.mubr.f32.gmra.mrb[0].mxu0 %v3029
          %v5398 = vpop.f32.mrb[0].mxu0
          %v5399 = vadd.f32 0.0, %v5398
          %v5400 = vpop.f32.mrb[0].mxu0
          %v5401 = vadd.f32 0.0, %v5400
          %5402 = vmatprep.mubr.f32.mxu0 %v3033
          %5403 = vmatmul.mubr.f32.gmra.mrb[0].mxu0 %v3032
          %v5404 = vpop.f32.mrb[0].mxu0
          %v5405 = vadd.f32 0.0, %v5404
          %v5406 = vpop.f32.mrb[0].mxu0
          %v5407 = vadd.f32 0.0, %v5406
          %5408 = vmatprep.mubr.f32.mxu0 %v3036
          %5409 = vmatmul.mubr.f32.gmra.mrb[0].mxu0 %v3035
          %v5410 = vpop.f32.mrb[0].mxu0
          %v5411 = vadd.f32 0.0, %v5410
          %v5412 = vpop.f32.mrb[0].mxu0
          %v5413 = vadd.f32 0.0, %v5412
          %5414 = vmatprep.mubr.f32.mxu0 %v3039
          %5415 = vmatmul.mubr.f32.gmra.mrb[0].mxu0 %v3038
          %v5416 = vpop.f32.mrb[0].mxu0
          %v5417 = vadd.f32 0.0, %v5416
          %v5418 = vpop.f32.mrb[0].mxu0
          %v5419 = vadd.f32 0.0, %v5418
          %5420 = vmatprep.mubr.f32.mxu0 %v3042
          %5421 = vmatmul.mubr.f32.gmra.mrb[0].mxu0 %v3041
          %v5422 = vpop.f32.mrb[0].mxu0
          %v5423 = vadd.f32 0.0, %v5422
          %v5424 = vpop.f32.mrb[0].mxu0
          %v5425 = vadd.f32 0.0, %v5424
          %5426 = vmatprep.mubr.f32.mxu0 %v3045
          %5427 = vmatmul.mubr.f32.gmra.mrb[0].mxu0 %v3044
          %v5428 = vpop.f32.mrb[0].mxu0
          %v5429 = vadd.f32 0.0, %v5428
          %v5430 = vpop.f32.mrb[0].mxu0
          %v5431 = vadd.f32 0.0, %v5430
          %5432 = vmatprep.mubr.f32.mxu0 %v3048
          %5433 = vmatmul.mubr.f32.gmra.mrb[0].mxu0 %v3047
          %v5434 = vpop.f32.mrb[0].mxu0
          %v5435 = vadd.f32 0.0, %v5434
          %v5436 = vpop.f32.mrb[0].mxu0
          %v5437 = vadd.f32 0.0, %v5436
          %5438 = vdwg.mxu0
          %5439 = vmatprep.subr.mxu0 %v3577
          %5440 = vmatpush1.msra.mxu0 %v3576
          %5441 = vmatprep.subr.mxu0 %v3593
          %5442 = vmatpush1.msra.mxu0 %v3592
          %5443 = vmatprep.subr.mxu0 %v3609
          %5444 = vmatpush1.msra.mxu0 %v3608
          %5445 = vmatprep.subr.mxu0 %v3625
          %5446 = vmatpush1.msra.mxu0 %v3624
          %5447 = vmatprep.subr.mxu0 0.0
          %5448 = vmatpush1.msra.mxu0 0.0
          %5449 = vmatprep.subr.mxu0 0.0
          %5450 = vmatpush1.msra.mxu0 0.0
          %5451 = vmatprep.subr.mxu0 0.0
          %5452 = vmatpush1.msra.mxu0 0.0
          %5453 = vmatprep.subr.mxu0 0.0
          %5454 = vmatpush1.msra.mxu0 0.0
          %5455 = vmatprep.subr.mxu0 0.0
          %5456 = vmatpush1.msra.mxu0 0.0
          %5457 = vmatprep.subr.mxu0 0.0
          %5458 = vmatpush1.msra.mxu0 0.0
          %5459 = vmatprep.subr.mxu0 0.0
          %5460 = vmatpush1.msra.mxu0 0.0
          %5461 = vmatprep.subr.mxu0 0.0
          %5462 = vmatpush1.msra.mxu0 0.0
          %5463 = vmatprep.subr.mxu0 0.0
          %5464 = vmatpush1.msra.mxu0 0.0
          %5465 = vmatprep.subr.mxu0 0.0
          %5466 = vmatpush1.msra.mxu0 0.0
          %5467 = vmatprep.subr.mxu0 0.0
          %5468 = vmatpush1.msra.mxu0 0.0
          %5469 = vmatprep.subr.mxu0 0.0
          %5470 = vmatpush1.msra.mxu0 0.0
          %5471 = vmatprep.subr.mxu0 0.0
          %5472 = vmatpush1.msra.mxu0 0.0
          %5473 = vmatprep.subr.mxu0 0.0
          %5474 = vmatpush1.msra.mxu0 0.0
          %5475 = vmatprep.subr.mxu0 0.0
          %5476 = vmatpush1.msra.mxu0 0.0
          %5477 = vmatprep.subr.mxu0 0.0
          %5478 = vmatpush1.msra.mxu0 0.0
          %5479 = vmatprep.subr.mxu0 0.0
          %5480 = vmatpush1.msra.mxu0 0.0
          %5481 = vmatprep.subr.mxu0 0.0
          %5482 = vmatpush1.msra.mxu0 0.0
          %5483 = vmatprep.subr.mxu0 0.0
          %5484 = vmatpush1.msra.mxu0 0.0
          %5485 = vmatprep.subr.mxu0 0.0
          %5486 = vmatpush1.msra.mxu0 0.0
          %5487 = vmatprep.subr.mxu0 0.0
          %5488 = vmatpush1.msra.mxu0 0.0
          %5489 = vmatprep.subr.mxu0 0.0
          %5490 = vmatpush1.msra.mxu0 0.0
          %5491 = vmatprep.subr.mxu0 0.0
          %5492 = vmatpush1.msra.mxu0 0.0
          %5493 = vmatprep.subr.mxu0 0.0
          %5494 = vmatpush1.msra.mxu0 0.0
          %5495 = vmatprep.subr.mxu0 0.0
          %5496 = vmatpush1.msra.mxu0 0.0
          %5497 = vmatprep.subr.mxu0 0.0
          %5498 = vmatpush1.msra.mxu0 0.0
          %5499 = vmatprep.subr.mxu0 0.0
          %5500 = vmatpush1.msra.mxu0 0.0
          %5501 = vmatprep.subr.mxu0 0.0
          %5502 = vmatpush1.msra.mxu0 0.0
          %5503 = vmatprep.mubr.f32.mxu0 0.0
          %5504 = vmatmul.mubr.f32.gmra.mrb[0].mxu0 %v3628
          %v5505 = vpop.f32.mrb[0].mxu0
          %v5506 = vadd.f32 %v5387, %v5505
          %v5507 = vpop.f32.mrb[0].mxu0
          %v5508 = vadd.f32 %v5389, %v5507
          %5509 = vmatprep.mubr.f32.mxu0 0.0
          %5510 = vmatmul.mubr.f32.gmra.mrb[0].mxu0 %v3631
          %v5511 = vpop.f32.mrb[0].mxu0
          %v5512 = vadd.f32 %v5393, %v5511
          %v5513 = vpop.f32.mrb[0].mxu0
          %v5514 = vadd.f32 %v5395, %v5513
          %5515 = vmatprep.mubr.f32.mxu0 0.0
          %5516 = vmatmul.mubr.f32.gmra.mrb[0].mxu0 %v3634
          %v5517 = vpop.f32.mrb[0].mxu0
          %v5518 = vadd.f32 %v5399, %v5517
          %v5519 = vpop.f32.mrb[0].mxu0
          %v5520 = vadd.f32 %v5401, %v5519
          %5521 = vmatprep.mubr.f32.mxu0 0.0
          %5522 = vmatmul.mubr.f32.gmra.mrb[0].mxu0 %v3637
          %v5523 = vpop.f32.mrb[0].mxu0
          %v5524 = vadd.f32 %v5405, %v5523
          %v5525 = vpop.f32.mrb[0].mxu0
          %v5526 = vadd.f32 %v5407, %v5525
          %5527 = vmatprep.mubr.f32.mxu0 0.0
          %5528 = vmatmul.mubr.f32.gmra.mrb[0].mxu0 %v3640
          %v5529 = vpop.f32.mrb[0].mxu0
          %v5530 = vadd.f32 %v5411, %v5529
          %v5531 = vpop.f32.mrb[0].mxu0
          %v5532 = vadd.f32 %v5413, %v5531
          %5533 = vmatprep.mubr.f32.mxu0 0.0
          %5534 = vmatmul.mubr.f32.gmra.mrb[0].mxu0 %v3643
          %v5535 = vpop.f32.mrb[0].mxu0
          %v5536 = vadd.f32 %v5417, %v5535
          %v5537 = vpop.f32.mrb[0].mxu0
          %v5538 = vadd.f32 %v5419, %v5537
          %5539 = vmatprep.mubr.f32.mxu0 0.0
          %5540 = vmatmul.mubr.f32.gmra.mrb[0].mxu0 %v3646
          %v5541 = vpop.f32.mrb[0].mxu0
          %v5542 = vadd.f32 %v5423, %v5541
          %v5543 = vpop.f32.mrb[0].mxu0
          %v5544 = vadd.f32 %v5425, %v5543
          %5545 = vmatprep.mubr.f32.mxu0 0.0
          %5546 = vmatmul.mubr.f32.gmra.mrb[0].mxu0 %v3649
          %v5547 = vpop.f32.mrb[0].mxu0
          %v5548 = vadd.f32 %v5429, %v5547
          %v5549 = vpop.f32.mrb[0].mxu0
          %v5550 = vadd.f32 %v5431, %v5549
          %5551 = vmatprep.mubr.f32.mxu0 0.0
          %5552 = vmatmul.mubr.f32.gmra.mrb[0].mxu0 %v3652
          %v5553 = vpop.f32.mrb[0].mxu0
          %v5554 = vadd.f32 %v5435, %v5553
          %v5555 = vpop.f32.mrb[0].mxu0
          %v5556 = vadd.f32 %v5437, %v5555
          %5557 = vdwg.mxu0
          %v5558 = vpack.c.bf16 %v3846, %v3840
          %v5559 = vpack.c.bf16 %v3848, %v3842
          %v5560 = vpack.c.bf16 %v4084, %v4078
          %v5561 = vpack.c.bf16 %v4086, %v4080
          %v5562 = vpack.c.bf16 %v4322, %v4316
          %v5563 = vpack.c.bf16 %v4324, %v4318
          %v5564 = vpack.c.bf16 %v4560, %v4554
          %v5565 = vpack.c.bf16 %v4562, %v4556
          %v5566 = vpack.c.bf16 %v4798, %v4792
          %v5567 = vpack.c.bf16 %v4800, %v4794
          %v5568 = vpack.c.bf16 %v5036, %v5030
          %v5569 = vpack.c.bf16 %v5038, %v5032
          %v5570 = vpack.c.bf16 %v5274, %v5268
          %v5571 = vpack.c.bf16 %v5276, %v5270
          %v5572 = vpack.c.bf16 %v5512, %v5506
          %v5573 = vpack.c.bf16 %v5514, %v5508
          %v5574 = vpack.c.bf16 %v3858, %v3852
          %v5575 = vpack.c.bf16 %v3860, %v3854
          %v5576 = vpack.c.bf16 %v4096, %v4090
          %v5577 = vpack.c.bf16 %v4098, %v4092
          %v5578 = vpack.c.bf16 %v4334, %v4328
          %v5579 = vpack.c.bf16 %v4336, %v4330
          %v5580 = vpack.c.bf16 %v4572, %v4566
          %v5581 = vpack.c.bf16 %v4574, %v4568
          %v5582 = vpack.c.bf16 %v4810, %v4804
          %v5583 = vpack.c.bf16 %v4812, %v4806
          %v5584 = vpack.c.bf16 %v5048, %v5042
          %v5585 = vpack.c.bf16 %v5050, %v5044
          %v5586 = vpack.c.bf16 %v5286, %v5280
          %v5587 = vpack.c.bf16 %v5288, %v5282
          %v5588 = vpack.c.bf16 %v5524, %v5518
          %v5589 = vpack.c.bf16 %v5526, %v5520
          %v5590 = vpack.c.bf16 %v3870, %v3864
          %v5591 = vpack.c.bf16 %v3872, %v3866
          %v5592 = vpack.c.bf16 %v4108, %v4102
          %v5593 = vpack.c.bf16 %v4110, %v4104
          %v5594 = vpack.c.bf16 %v4346, %v4340
          %v5595 = vpack.c.bf16 %v4348, %v4342
          %v5596 = vpack.c.bf16 %v4584, %v4578
          %v5597 = vpack.c.bf16 %v4586, %v4580
          %v5598 = vpack.c.bf16 %v4822, %v4816
          %v5599 = vpack.c.bf16 %v4824, %v4818
          %v5600 = vpack.c.bf16 %v5060, %v5054
          %v5601 = vpack.c.bf16 %v5062, %v5056
          %v5602 = vpack.c.bf16 %v5298, %v5292
          %v5603 = vpack.c.bf16 %v5300, %v5294
          %v5604 = vpack.c.bf16 %v5536, %v5530
          %v5605 = vpack.c.bf16 %v5538, %v5532
          %v5606 = vpack.c.bf16 %v3882, %v3876
          %v5607 = vpack.c.bf16 %v3884, %v3878
          %v5608 = vpack.c.bf16 %v4120, %v4114
          %v5609 = vpack.c.bf16 %v4122, %v4116
          %v5610 = vpack.c.bf16 %v4358, %v4352
          %v5611 = vpack.c.bf16 %v4360, %v4354
          %v5612 = vpack.c.bf16 %v4596, %v4590
          %v5613 = vpack.c.bf16 %v4598, %v4592
          %v5614 = vpack.c.bf16 %v4834, %v4828
          %v5615 = vpack.c.bf16 %v4836, %v4830
          %v5616 = vpack.c.bf16 %v5072, %v5066
          %v5617 = vpack.c.bf16 %v5074, %v5068
          %v5618 = vpack.c.bf16 %v5310, %v5304
          %v5619 = vpack.c.bf16 %v5312, %v5306
          %v5620 = vpack.c.bf16 %v5548, %v5542
          %v5621 = vpack.c.bf16 %v5550, %v5544
          %v5622 = vpack.c.bf16 %v3888, %v3888
          %v5623 = vpack.c.bf16 %v3890, %v3890
          %v5624 = vpack.c.bf16 %v4126, %v4126
          %v5625 = vpack.c.bf16 %v4128, %v4128
          %v5626 = vpack.c.bf16 %v4364, %v4364
          %v5627 = vpack.c.bf16 %v4366, %v4366
          %v5628 = vpack.c.bf16 %v4602, %v4602
          %v5629 = vpack.c.bf16 %v4604, %v4604
          %v5630 = vpack.c.bf16 %v4840, %v4840
          %v5631 = vpack.c.bf16 %v4842, %v4842
          %v5632 = vpack.c.bf16 %v5078, %v5078
          %v5633 = vpack.c.bf16 %v5080, %v5080
          %v5634 = vpack.c.bf16 %v5316, %v5316
          %v5635 = vpack.c.bf16 %v5318, %v5318
          %v5636 = vpack.c.bf16 %v5554, %v5554
          %v5637 = vpack.c.bf16 %v5556, %v5556
          %v5638 = vld [vmem:[%s336] sm:$0xff]
          %v5639 = vld [vmem:[%s336 + $0x8] sm:$0xff]
          %v5640 = vld [vmem:[%s336 + $0x10] sm:$0xff]
          %v5641 = vld [vmem:[%s336 + $0x18] sm:$0xff]
          %v5642 = vld [vmem:[%s336 + $0x20] sm:$0xff]
          %v5643 = vld [vmem:[%s336 + $0x28] sm:$0xff]
          %v5644 = vld [vmem:[%s336 + $0x30] sm:$0xff]
          %v5645 = vld [vmem:[%s336 + $0x38] sm:$0xff]
          %v5646 = vld [vmem:[%s336 + $0x40] sm:$0xff]
          %v5647 = vld [vmem:[%s336 + $0x48] sm:$0xff]
          %v5648 = vld [vmem:[%s336 + $0x50] sm:$0xff]
          %v5649 = vld [vmem:[%s336 + $0x58] sm:$0xff]
          %v5650 = vld [vmem:[%s336 + $0x60] sm:$0xff]
          %v5651 = vld [vmem:[%s336 + $0x68] sm:$0xff]
          %v5652 = vld [vmem:[%s336 + $0x70] sm:$0xff]
          %v5653 = vld [vmem:[%s336 + $0x78] sm:$0xff]
          %v5654 = vld [vmem:[%s336 + $0x80] sm:$0xff]
          %v5655 = vld [vmem:[%s336 + $0x88] sm:$0xff]
          %v5656 = vld [vmem:[%s336 + $0x90] sm:$0xff]
          %v5657 = vld [vmem:[%s336 + $0x98] sm:$0xff]
          %v5658 = vld [vmem:[%s336 + $0xa0] sm:$0xff]
          %v5659 = vld [vmem:[%s336 + $0xa8] sm:$0xff]
          %v5660 = vld [vmem:[%s336 + $0xb0] sm:$0xff]
          %v5661 = vld [vmem:[%s336 + $0xb8] sm:$0xff]
          %v5662 = vld [vmem:[%s336 + $0xc0] sm:$0xff]
          %v5663 = vld [vmem:[%s336 + $0xc8] sm:$0xff]
          %v5664 = vld [vmem:[%s336 + $0xd0] sm:$0xff]
          %v5665 = vld [vmem:[%s336 + $0xd8] sm:$0xff]
          %v5666 = vld [vmem:[%s336 + $0xe0] sm:$0xff]
          %v5667 = vld [vmem:[%s336 + $0xe8] sm:$0xff]
          %v5668 = vld [vmem:[%s336 + $0xf0] sm:$0xff]
          %v5669 = vld [vmem:[%s336 + $0xf8] sm:$0xff]
          %v5670 = vld [vmem:[%s336 + $0x100] sm:$0xff]
          %v5671 = vld [vmem:[%s336 + $0x108] sm:$0xff]
          %v5672 = vld [vmem:[%s336 + $0x110] sm:$0xff]
          %v5673 = vld [vmem:[%s336 + $0x118] sm:$0xff]
          %v5674 = vld [vmem:[%s336 + $0x120] sm:$0xff]
          %v5675 = vld [vmem:[%s336 + $0x128] sm:$0xff]
          %v5676 = vld [vmem:[%s336 + $0x130] sm:$0xff]
          %v5677 = vld [vmem:[%s336 + $0x138] sm:$0xff]
          %v5678 = vld [vmem:[%s336 + $0x140] sm:$0xff]
          %v5679 = vld [vmem:[%s336 + $0x148] sm:$0xff]
          %v5680 = vld [vmem:[%s336 + $0x150] sm:$0xff]
          %v5681 = vld [vmem:[%s336 + $0x158] sm:$0xff]
          %v5682 = vld [vmem:[%s336 + $0x160] sm:$0xff]
          %v5683 = vld [vmem:[%s336 + $0x168] sm:$0xff]
          %v5684 = vld [vmem:[%s336 + $0x170] sm:$0xff]
          %v5685 = vld [vmem:[%s336 + $0x178] sm:$0xff]
          %v5686 = vld [vmem:[%s336 + $0x180] sm:$0xff]
          %v5687 = vld [vmem:[%s336 + $0x188] sm:$0xff]
          %v5688 = vld [vmem:[%s336 + $0x190] sm:$0xff]
          %v5689 = vld [vmem:[%s336 + $0x198] sm:$0xff]
          %v5690 = vld [vmem:[%s336 + $0x1a0] sm:$0xff]
          %v5691 = vld [vmem:[%s336 + $0x1a8] sm:$0xff]
          %v5692 = vld [vmem:[%s336 + $0x1b0] sm:$0xff]
          %v5693 = vld [vmem:[%s336 + $0x1b8] sm:$0xff]
          %v5694 = vld [vmem:[%s336 + $0x1c0] sm:$0xff]
          %v5695 = vld [vmem:[%s336 + $0x1c8] sm:$0xff]
          %v5696 = vld [vmem:[%s336 + $0x1d0] sm:$0xff]
          %v5697 = vld [vmem:[%s336 + $0x1d8] sm:$0xff]
          %v5698 = vld [vmem:[%s336 + $0x1e0] sm:$0xff]
          %v5699 = vld [vmem:[%s336 + $0x1e8] sm:$0xff]
          %v5700 = vld [vmem:[%s336 + $0x1f0] sm:$0xff]
          %v5701 = vld [vmem:[%s336 + $0x1f8] sm:$0xff]
          %v5702 = vld [vmem:[%s336 + $0x200] sm:$0xff]
          %v5703 = vld [vmem:[%s336 + $0x208] sm:$0xff]
          %v5704 = vld [vmem:[%s336 + $0x210] sm:$0xff]
          %v5705 = vld [vmem:[%s336 + $0x218] sm:$0xff]
          %v5706 = vld [vmem:[%s336 + $0x220] sm:$0xff]
          %v5707 = vld [vmem:[%s336 + $0x228] sm:$0xff]
          %v5708 = vld [vmem:[%s336 + $0x230] sm:$0xff]
          %v5709 = vld [vmem:[%s336 + $0x238] sm:$0xff]
          %v5710 = vld [vmem:[%s336 + $0x240] sm:$0xff]
          %v5711 = vld [vmem:[%s336 + $0x248] sm:$0xff]
          %v5712 = vld [vmem:[%s336 + $0x250] sm:$0xff]
          %v5713 = vld [vmem:[%s336 + $0x258] sm:$0xff]
          %v5714 = vld [vmem:[%s336 + $0x260] sm:$0xff]
          %v5715 = vld [vmem:[%s336 + $0x268] sm:$0xff]
          %v5716 = vld [vmem:[%s336 + $0x270] sm:$0xff]
          %v5717 = vld [vmem:[%s336 + $0x278] sm:$0xff]
          %v5718 = vld [vmem:[%s336 + $0x280] sm:$0xff]
          %v5719 = vld [vmem:[%s336 + $0x288] sm:$0xff]
          %v5720 = vld [vmem:[%s336 + $0x290] sm:$0xff]
          %v5721 = vld [vmem:[%s336 + $0x298] sm:$0xff]
          %v5722 = vld [vmem:[%s336 + $0x2a0] sm:$0xff]
          %v5723 = vld [vmem:[%s336 + $0x2a8] sm:$0xff]
          %v5724 = vld [vmem:[%s336 + $0x2b0] sm:$0xff]
          %v5725 = vld [vmem:[%s336 + $0x2b8] sm:$0xff]
          %v5726 = vld [vmem:[%s336 + $0x2c0] sm:$0xff]
          %v5727 = vld [vmem:[%s336 + $0x2c8] sm:$0xff]
          %v5728 = vld [vmem:[%s336 + $0x2d0] sm:$0xff]
          %v5729 = vld [vmem:[%s336 + $0x2d8] sm:$0xff]
          %v5730 = vld [vmem:[%s336 + $0x2e0] sm:$0xff]
          %v5731 = vld [vmem:[%s336 + $0x2e8] sm:$0xff]
          %v5732 = vld [vmem:[%s336 + $0x2f0] sm:$0xff]
          %v5733 = vld [vmem:[%s336 + $0x2f8] sm:$0xff]
          %v5734 = vld [vmem:[%s336 + $0x300] sm:$0xff]
          %v5735 = vld [vmem:[%s336 + $0x308] sm:$0xff]
          %v5736 = vld [vmem:[%s336 + $0x310] sm:$0xff]
          %v5737 = vld [vmem:[%s336 + $0x318] sm:$0xff]
          %v5738 = vld [vmem:[%s336 + $0x320] sm:$0xff]
          %v5739 = vld [vmem:[%s336 + $0x328] sm:$0xff]
          %v5740 = vld [vmem:[%s336 + $0x330] sm:$0xff]
          %v5741 = vld [vmem:[%s336 + $0x338] sm:$0xff]
          %v5742 = vld [vmem:[%s336 + $0x340] sm:$0xff]
          %v5743 = vld [vmem:[%s336 + $0x348] sm:$0xff]
          %v5744 = vld [vmem:[%s336 + $0x350] sm:$0xff]
          %v5745 = vld [vmem:[%s336 + $0x358] sm:$0xff]
          %v5746 = vld [vmem:[%s336 + $0x360] sm:$0xff]
          %v5747 = vld [vmem:[%s336 + $0x368] sm:$0xff]
          %v5748 = vld [vmem:[%s336 + $0x370] sm:$0xff]
          %v5749 = vld [vmem:[%s336 + $0x378] sm:$0xff]
          %v5750 = vld [vmem:[%s336 + $0x380] sm:$0xff]
          %v5751 = vld [vmem:[%s336 + $0x388] sm:$0xff]
          %v5752 = vld [vmem:[%s336 + $0x390] sm:$0xff]
          %v5753 = vld [vmem:[%s336 + $0x398] sm:$0xff]
          %v5754 = vld [vmem:[%s336 + $0x3a0] sm:$0xff]
          %v5755 = vld [vmem:[%s336 + $0x3a8] sm:$0xff]
          %v5756 = vld [vmem:[%s336 + $0x3b0] sm:$0xff]
          %v5757 = vld [vmem:[%s336 + $0x3b8] sm:$0xff]
          %v5758 = vld [vmem:[%s336 + $0x3c0] sm:$0xff]
          %v5759 = vld [vmem:[%s336 + $0x3c8] sm:$0xff]
          %v5760 = vld [vmem:[%s336 + $0x3d0] sm:$0xff]
          %v5761 = vld [vmem:[%s336 + $0x3d8] sm:$0xff]
          %v5762 = vld [vmem:[%s336 + $0x3e0] sm:$0xff]
          %v5763 = vld [vmem:[%s336 + $0x3e8] sm:$0xff]
          %v5764 = vld [vmem:[%s336 + $0x3f0] sm:$0xff]
          %v5765 = vld [vmem:[%s336 + $0x3f8] sm:$0xff]
          %v5766 = vld [vmem:[%s336 + $0x400] sm:$0xff]
          %v5767 = vld [vmem:[%s336 + $0x408] sm:$0xff]
          %v5768 = vld [vmem:[%s336 + $0x410] sm:$0xff]
          %v5769 = vld [vmem:[%s336 + $0x418] sm:$0xff]
          %v5770 = vld [vmem:[%s336 + $0x420] sm:$0xff]
          %v5771 = vld [vmem:[%s336 + $0x428] sm:$0xff]
          %v5772 = vld [vmem:[%s336 + $0x430] sm:$0xff]
          %v5773 = vld [vmem:[%s336 + $0x438] sm:$0xff]
          %v5774 = vld [vmem:[%s336 + $0x440] sm:$0xff]
          %v5775 = vld [vmem:[%s336 + $0x448] sm:$0xff]
          %v5776 = vld [vmem:[%s336 + $0x450] sm:$0xff]
          %v5777 = vld [vmem:[%s336 + $0x458] sm:$0xff]
          %v5778 = vld [vmem:[%s336 + $0x460] sm:$0xff]
          %v5779 = vld [vmem:[%s336 + $0x468] sm:$0xff]
          %v5780 = vld [vmem:[%s336 + $0x470] sm:$0xff]
          %v5781 = vld [vmem:[%s336 + $0x478] sm:$0xff]
          %v5782 = vld [vmem:[%s336 + $0x480] sm:$0xff]
          %v5783 = vld [vmem:[%s336 + $0x488] sm:$0xff]
          %v5784 = vld [vmem:[%s336 + $0x490] sm:$0xff]
          %v5785 = vld [vmem:[%s336 + $0x498] sm:$0xff]
          %v5786 = vld [vmem:[%s336 + $0x4a0] sm:$0xff]
          %v5787 = vld [vmem:[%s336 + $0x4a8] sm:$0xff]
          %v5788 = vld [vmem:[%s336 + $0x4b0] sm:$0xff]
          %v5789 = vld [vmem:[%s336 + $0x4b8] sm:$0xff]
          %v5790 = vld [vmem:[%s336 + $0x4c0] sm:$0xff]
          %v5791 = vld [vmem:[%s336 + $0x4c8] sm:$0xff]
          %v5792 = vld [vmem:[%s336 + $0x4d0] sm:$0xff]
          %v5793 = vld [vmem:[%s336 + $0x4d8] sm:$0xff]
          %v5794 = vld [vmem:[%s336 + $0x4e0] sm:$0xff]
          %v5795 = vld [vmem:[%s336 + $0x4e8] sm:$0xff]
          %v5796 = vld [vmem:[%s336 + $0x4f0] sm:$0xff]
          %v5797 = vld [vmem:[%s336 + $0x4f8] sm:$0xff]
          %v5798 = vld [vmem:[%s336 + $0x500] sm:$0xff]
          %v5799 = vld [vmem:[%s336 + $0x508] sm:$0xff]
          %v5800 = vld [vmem:[%s336 + $0x510] sm:$0xff]
          %v5801 = vld [vmem:[%s336 + $0x518] sm:$0xff]
          %v5802 = vld [vmem:[%s336 + $0x520] sm:$0xff]
          %v5803 = vld [vmem:[%s336 + $0x528] sm:$0xff]
          %v5804 = vld [vmem:[%s336 + $0x530] sm:$0xff]
          %v5805 = vld [vmem:[%s336 + $0x538] sm:$0xff]
          %v5806 = vld [vmem:[%s336 + $0x540] sm:$0xff]
          %v5807 = vld [vmem:[%s336 + $0x548] sm:$0xff]
          %v5808 = vld [vmem:[%s336 + $0x550] sm:$0xff]
          %v5809 = vld [vmem:[%s336 + $0x558] sm:$0xff]
          %v5810 = vld [vmem:[%s336 + $0x560] sm:$0xff]
          %v5811 = vld [vmem:[%s336 + $0x568] sm:$0xff]
          %v5812 = vld [vmem:[%s336 + $0x570] sm:$0xff]
          %v5813 = vld [vmem:[%s336 + $0x578] sm:$0xff]
          %v5814 = vld [vmem:[%s336 + $0x580] sm:$0xff]
          %v5815 = vld [vmem:[%s336 + $0x588] sm:$0xff]
          %v5816 = vld [vmem:[%s336 + $0x590] sm:$0xff]
          %v5817 = vld [vmem:[%s336 + $0x598] sm:$0xff]
          %v5818 = vld [vmem:[%s336 + $0x5a0] sm:$0xff]
          %v5819 = vld [vmem:[%s336 + $0x5a8] sm:$0xff]
          %v5820 = vld [vmem:[%s336 + $0x5b0] sm:$0xff]
          %v5821 = vld [vmem:[%s336 + $0x5b8] sm:$0xff]
          %v5822 = vld [vmem:[%s336 + $0x5c0] sm:$0xff]
          %v5823 = vld [vmem:[%s336 + $0x5c8] sm:$0xff]
          %v5824 = vld [vmem:[%s336 + $0x5d0] sm:$0xff]
          %v5825 = vld [vmem:[%s336 + $0x5d8] sm:$0xff]
          %v5826 = vld [vmem:[%s336 + $0x5e0] sm:$0xff]
          %v5827 = vld [vmem:[%s336 + $0x5e8] sm:$0xff]
          %v5828 = vld [vmem:[%s336 + $0x5f0] sm:$0xff]
          %v5829 = vld [vmem:[%s336 + $0x5f8] sm:$0xff]
          %v5830 = vld [vmem:[%s336 + $0x600] sm:$0xff]
          %v5831 = vld [vmem:[%s336 + $0x608] sm:$0xff]
          %v5832 = vld [vmem:[%s336 + $0x610] sm:$0xff]
          %v5833 = vld [vmem:[%s336 + $0x618] sm:$0xff]
          %v5834 = vld [vmem:[%s336 + $0x620] sm:$0xff]
          %v5835 = vld [vmem:[%s336 + $0x628] sm:$0xff]
          %v5836 = vld [vmem:[%s336 + $0x630] sm:$0xff]
          %v5837 = vld [vmem:[%s336 + $0x638] sm:$0xff]
          %v5838 = vld [vmem:[%s336 + $0x640] sm:$0xff]
          %v5839 = vld [vmem:[%s336 + $0x648] sm:$0xff]
          %v5840 = vld [vmem:[%s336 + $0x650] sm:$0xff]
          %v5841 = vld [vmem:[%s336 + $0x658] sm:$0xff]
          %v5842 = vld [vmem:[%s336 + $0x660] sm:$0xff]
          %v5843 = vld [vmem:[%s336 + $0x668] sm:$0xff]
          %v5844 = vld [vmem:[%s336 + $0x670] sm:$0xff]
          %v5845 = vld [vmem:[%s336 + $0x678] sm:$0xff]
          %v5846 = vld [vmem:[%s336 + $0x680] sm:$0xff]
          %v5847 = vld [vmem:[%s336 + $0x688] sm:$0xff]
          %v5848 = vld [vmem:[%s336 + $0x690] sm:$0xff]
          %v5849 = vld [vmem:[%s336 + $0x698] sm:$0xff]
          %v5850 = vld [vmem:[%s336 + $0x6a0] sm:$0xff]
          %v5851 = vld [vmem:[%s336 + $0x6a8] sm:$0xff]
          %v5852 = vld [vmem:[%s336 + $0x6b0] sm:$0xff]
          %v5853 = vld [vmem:[%s336 + $0x6b8] sm:$0xff]
          %v5854 = vld [vmem:[%s336 + $0x6c0] sm:$0xff]
          %v5855 = vld [vmem:[%s336 + $0x6c8] sm:$0xff]
          %v5856 = vld [vmem:[%s336 + $0x6d0] sm:$0xff]
          %v5857 = vld [vmem:[%s336 + $0x6d8] sm:$0xff]
          %v5858 = vld [vmem:[%s336 + $0x6e0] sm:$0xff]
          %v5859 = vld [vmem:[%s336 + $0x6e8] sm:$0xff]
          %v5860 = vld [vmem:[%s336 + $0x6f0] sm:$0xff]
          %v5861 = vld [vmem:[%s336 + $0x6f8] sm:$0xff]
          %v5862 = vld [vmem:[%s336 + $0x700] sm:$0xff]
          %v5863 = vld [vmem:[%s336 + $0x708] sm:$0xff]
          %v5864 = vld [vmem:[%s336 + $0x710] sm:$0xff]
          %v5865 = vld [vmem:[%s336 + $0x718] sm:$0xff]
          %v5866 = vld [vmem:[%s336 + $0x720] sm:$0xff]
          %v5867 = vld [vmem:[%s336 + $0x728] sm:$0xff]
          %v5868 = vld [vmem:[%s336 + $0x730] sm:$0xff]
          %v5869 = vld [vmem:[%s336 + $0x738] sm:$0xff]
          %v5870 = vld [vmem:[%s336 + $0x740] sm:$0xff]
          %v5871 = vld [vmem:[%s336 + $0x748] sm:$0xff]
          %v5872 = vld [vmem:[%s336 + $0x750] sm:$0xff]
          %v5873 = vld [vmem:[%s336 + $0x758] sm:$0xff]
          %v5874 = vld [vmem:[%s336 + $0x760] sm:$0xff]
          %v5875 = vld [vmem:[%s336 + $0x768] sm:$0xff]
          %v5876 = vld [vmem:[%s336 + $0x770] sm:$0xff]
          %v5877 = vld [vmem:[%s336 + $0x778] sm:$0xff]
          %v5878 = vld [vmem:[%s336 + $0x780] sm:$0xff]
          %v5879 = vld [vmem:[%s336 + $0x788] sm:$0xff]
          %v5880 = vld [vmem:[%s336 + $0x790] sm:$0xff]
          %v5881 = vld [vmem:[%s336 + $0x798] sm:$0xff]
          %v5882 = vld [vmem:[%s336 + $0x7a0] sm:$0xff]
          %v5883 = vld [vmem:[%s336 + $0x7a8] sm:$0xff]
          %v5884 = vld [vmem:[%s336 + $0x7b0] sm:$0xff]
          %v5885 = vld [vmem:[%s336 + $0x7b8] sm:$0xff]
          %v5886 = vld [vmem:[%s336 + $0x7c0] sm:$0xff]
          %v5887 = vld [vmem:[%s336 + $0x7c8] sm:$0xff]
          %v5888 = vld [vmem:[%s336 + $0x7d0] sm:$0xff]
          %v5889 = vld [vmem:[%s336 + $0x7d8] sm:$0xff]
          %v5890 = vld [vmem:[%s336 + $0x7e0] sm:$0xff]
          %v5891 = vld [vmem:[%s336 + $0x7e8] sm:$0xff]
          %v5892 = vld [vmem:[%s336 + $0x7f0] sm:$0xff]
          %v5893 = vld [vmem:[%s336 + $0x7f8] sm:$0xff]
          %v5894 = vld [vmem:[%s336 + $0x800] sm:$0xff]
          %v5895 = vld [vmem:[%s336 + $0x808] sm:$0xff]
          %v5896 = vld [vmem:[%s336 + $0x810] sm:$0xff]
          %v5897 = vld [vmem:[%s336 + $0x818] sm:$0xff]
          %v5898 = vld [vmem:[%s336 + $0x820] sm:$0xff]
          %v5899 = vld [vmem:[%s336 + $0x828] sm:$0xff]
          %v5900 = vld [vmem:[%s336 + $0x830] sm:$0xff]
          %v5901 = vld [vmem:[%s336 + $0x838] sm:$0xff]
          %v5902 = vld [vmem:[%s336 + $0x840] sm:$0xff]
          %v5903 = vld [vmem:[%s336 + $0x848] sm:$0xff]
          %v5904 = vld [vmem:[%s336 + $0x850] sm:$0xff]
          %v5905 = vld [vmem:[%s336 + $0x858] sm:$0xff]
          %v5906 = vld [vmem:[%s336 + $0x860] sm:$0xff]
          %v5907 = vld [vmem:[%s336 + $0x868] sm:$0xff]
          %v5908 = vld [vmem:[%s336 + $0x870] sm:$0xff]
          %v5909 = vld [vmem:[%s336 + $0x878] sm:$0xff]
          %v5910 = vld [vmem:[%s336 + $0x880] sm:$0xff]
          %v5911 = vld [vmem:[%s336 + $0x888] sm:$0xff]
          %v5912 = vld [vmem:[%s336 + $0x890] sm:$0xff]
          %v5913 = vld [vmem:[%s336 + $0x898] sm:$0xff]
          %v5914 = vld [vmem:[%s336 + $0x8a0] sm:$0xff]
          %v5915 = vld [vmem:[%s336 + $0x8a8] sm:$0xff]
          %v5916 = vld [vmem:[%s336 + $0x8b0] sm:$0xff]
          %v5917 = vld [vmem:[%s336 + $0x8b8] sm:$0xff]
          %v5918 = vld [vmem:[%s336 + $0x8c0] sm:$0xff]
          %v5919 = vld [vmem:[%s336 + $0x8c8] sm:$0xff]
          %v5920 = vld [vmem:[%s336 + $0x8d0] sm:$0xff]
          %v5921 = vld [vmem:[%s336 + $0x8d8] sm:$0xff]
          %v5922 = vld [vmem:[%s336 + $0x8e0] sm:$0xff]
          %v5923 = vld [vmem:[%s336 + $0x8e8] sm:$0xff]
          %v5924 = vld [vmem:[%s336 + $0x8f0] sm:$0xff]
          %v5925 = vld [vmem:[%s336 + $0x8f8] sm:$0xff]
          %v5926 = vld [vmem:[%s336 + $0x900] sm:$0xff]
          %v5927 = vld [vmem:[%s336 + $0x908] sm:$0xff]
          %v5928 = vld [vmem:[%s336 + $0x910] sm:$0xff]
          %v5929 = vld [vmem:[%s336 + $0x918] sm:$0xff]
          %v5930 = vld [vmem:[%s336 + $0x920] sm:$0xff]
          %v5931 = vld [vmem:[%s336 + $0x928] sm:$0xff]
          %v5932 = vld [vmem:[%s336 + $0x930] sm:$0xff]
          %v5933 = vld [vmem:[%s336 + $0x938] sm:$0xff]
          %v5934 = vld [vmem:[%s336 + $0x940] sm:$0xff]
          %v5935 = vld [vmem:[%s336 + $0x948] sm:$0xff]
          %v5936 = vld [vmem:[%s336 + $0x950] sm:$0xff]
          %v5937 = vld [vmem:[%s336 + $0x958] sm:$0xff]
          %v5938 = vld [vmem:[%s336 + $0x960] sm:$0xff]
          %v5939 = vld [vmem:[%s336 + $0x968] sm:$0xff]
          %v5940 = vld [vmem:[%s336 + $0x970] sm:$0xff]
          %v5941 = vld [vmem:[%s336 + $0x978] sm:$0xff]
          %v5942 = vld [vmem:[%s336 + $0x980] sm:$0xff]
          %v5943 = vld [vmem:[%s336 + $0x988] sm:$0xff]
          %v5944 = vld [vmem:[%s336 + $0x990] sm:$0xff]
          %v5945 = vld [vmem:[%s336 + $0x998] sm:$0xff]
          %v5946 = vld [vmem:[%s336 + $0x9a0] sm:$0xff]
          %v5947 = vld [vmem:[%s336 + $0x9a8] sm:$0xff]
          %v5948 = vld [vmem:[%s336 + $0x9b0] sm:$0xff]
          %v5949 = vld [vmem:[%s336 + $0x9b8] sm:$0xff]
          %v5950 = vld [vmem:[%s336 + $0x9c0] sm:$0xff]
          %v5951 = vld [vmem:[%s336 + $0x9c8] sm:$0xff]
          %v5952 = vld [vmem:[%s336 + $0x9d0] sm:$0xff]
          %v5953 = vld [vmem:[%s336 + $0x9d8] sm:$0xff]
          %v5954 = vld [vmem:[%s336 + $0x9e0] sm:$0xff]
          %v5955 = vld [vmem:[%s336 + $0x9e8] sm:$0xff]
          %v5956 = vld [vmem:[%s336 + $0x9f0] sm:$0xff]
          %v5957 = vld [vmem:[%s336 + $0x9f8] sm:$0xff]
          %v5958 = vld [vmem:[%s336 + $0xa00] sm:$0xff]
          %v5959 = vld [vmem:[%s336 + $0xa08] sm:$0xff]
          %v5960 = vld [vmem:[%s336 + $0xa10] sm:$0xff]
          %v5961 = vld [vmem:[%s336 + $0xa18] sm:$0xff]
          %v5962 = vld [vmem:[%s336 + $0xa20] sm:$0xff]
          %v5963 = vld [vmem:[%s336 + $0xa28] sm:$0xff]
          %v5964 = vld [vmem:[%s336 + $0xa30] sm:$0xff]
          %v5965 = vld [vmem:[%s336 + $0xa38] sm:$0xff]
          %v5966 = vld [vmem:[%s336 + $0xa40] sm:$0xff]
          %v5967 = vld [vmem:[%s336 + $0xa48] sm:$0xff]
          %v5968 = vld [vmem:[%s336 + $0xa50] sm:$0xff]
          %v5969 = vld [vmem:[%s336 + $0xa58] sm:$0xff]
          %v5970 = vld [vmem:[%s336 + $0xa60] sm:$0xff]
          %v5971 = vld [vmem:[%s336 + $0xa68] sm:$0xff]
          %v5972 = vld [vmem:[%s336 + $0xa70] sm:$0xff]
          %v5973 = vld [vmem:[%s336 + $0xa78] sm:$0xff]
          %v5974 = vld [vmem:[%s336 + $0xa80] sm:$0xff]
          %v5975 = vld [vmem:[%s336 + $0xa88] sm:$0xff]
          %v5976 = vld [vmem:[%s336 + $0xa90] sm:$0xff]
          %v5977 = vld [vmem:[%s336 + $0xa98] sm:$0xff]
          %v5978 = vld [vmem:[%s336 + $0xaa0] sm:$0xff]
          %v5979 = vld [vmem:[%s336 + $0xaa8] sm:$0xff]
          %v5980 = vld [vmem:[%s336 + $0xab0] sm:$0xff]
          %v5981 = vld [vmem:[%s336 + $0xab8] sm:$0xff]
          %v5982 = vld [vmem:[%s336 + $0xac0] sm:$0xff]
          %v5983 = vld [vmem:[%s336 + $0xac8] sm:$0xff]
          %v5984 = vld [vmem:[%s336 + $0xad0] sm:$0xff]
          %v5985 = vld [vmem:[%s336 + $0xad8] sm:$0xff]
          %v5986 = vld [vmem:[%s336 + $0xae0] sm:$0xff]
          %v5987 = vld [vmem:[%s336 + $0xae8] sm:$0xff]
          %v5988 = vld [vmem:[%s336 + $0xaf0] sm:$0xff]
          %v5989 = vld [vmem:[%s336 + $0xaf8] sm:$0xff]
          %v5990 = vld [vmem:[%s336 + $0xb00] sm:$0xff]
          %v5991 = vld [vmem:[%s336 + $0xb08] sm:$0xff]
          %v5992 = vld [vmem:[%s336 + $0xb10] sm:$0xff]
          %v5993 = vld [vmem:[%s336 + $0xb18] sm:$0xff]
          %v5994 = vld [vmem:[%s336 + $0xb20] sm:$0xff]
          %v5995 = vld [vmem:[%s336 + $0xb28] sm:$0xff]
          %v5996 = vld [vmem:[%s336 + $0xb30] sm:$0xff]
          %v5997 = vld [vmem:[%s336 + $0xb38] sm:$0xff]
          %v5998 = vld [vmem:[%s336 + $0xb40] sm:$0xff]
          %v5999 = vld [vmem:[%s336 + $0xb48] sm:$0xff]
          %v6000 = vld [vmem:[%s336 + $0xb50] sm:$0xff]
          %v6001 = vld [vmem:[%s336 + $0xb58] sm:$0xff]
          %v6002 = vld [vmem:[%s336 + $0xb60] sm:$0xff]
          %v6003 = vld [vmem:[%s336 + $0xb68] sm:$0xff]
          %v6004 = vld [vmem:[%s336 + $0xb70] sm:$0xff]
          %v6005 = vld [vmem:[%s336 + $0xb78] sm:$0xff]
          %v6006 = vld [vmem:[%s336 + $0xb80] sm:$0xff]
          %v6007 = vld [vmem:[%s336 + $0xb88] sm:$0xff]
          %v6008 = vld [vmem:[%s336 + $0xb90] sm:$0xff]
          %v6009 = vld [vmem:[%s336 + $0xb98] sm:$0xff]
          %v6010 = vld [vmem:[%s336 + $0xba0] sm:$0xff]
          %v6011 = vld [vmem:[%s336 + $0xba8] sm:$0xff]
          %v6012 = vld [vmem:[%s336 + $0xbb0] sm:$0xff]
          %v6013 = vld [vmem:[%s336 + $0xbb8] sm:$0xff]
          %v6014 = vld [vmem:[%s336 + $0xbc0] sm:$0xff]
          %v6015 = vld [vmem:[%s336 + $0xbc8] sm:$0xff]
          %v6016 = vld [vmem:[%s336 + $0xbd0] sm:$0xff]
          %v6017 = vld [vmem:[%s336 + $0xbd8] sm:$0xff]
          %v6018 = vld [vmem:[%s336 + $0xbe0] sm:$0xff]
          %v6019 = vld [vmem:[%s336 + $0xbe8] sm:$0xff]
          %v6020 = vld [vmem:[%s336 + $0xbf0] sm:$0xff]
          %v6021 = vld [vmem:[%s336 + $0xbf8] sm:$0xff]
          %v6022 = vld [vmem:[%s336 + $0xc00] sm:$0xff]
          %v6023 = vld [vmem:[%s336 + $0xc08] sm:$0xff]
          %v6024 = vld [vmem:[%s336 + $0xc10] sm:$0xff]
          %v6025 = vld [vmem:[%s336 + $0xc18] sm:$0xff]
          %v6026 = vld [vmem:[%s336 + $0xc20] sm:$0xff]
          %v6027 = vld [vmem:[%s336 + $0xc28] sm:$0xff]
          %v6028 = vld [vmem:[%s336 + $0xc30] sm:$0xff]
          %v6029 = vld [vmem:[%s336 + $0xc38] sm:$0xff]
          %v6030 = vld [vmem:[%s336 + $0xc40] sm:$0xff]
          %v6031 = vld [vmem:[%s336 + $0xc48] sm:$0xff]
          %v6032 = vld [vmem:[%s336 + $0xc50] sm:$0xff]
          %v6033 = vld [vmem:[%s336 + $0xc58] sm:$0xff]
          %v6034 = vld [vmem:[%s336 + $0xc60] sm:$0xff]
          %v6035 = vld [vmem:[%s336 + $0xc68] sm:$0xff]
          %v6036 = vld [vmem:[%s336 + $0xc70] sm:$0xff]
          %v6037 = vld [vmem:[%s336 + $0xc78] sm:$0xff]
          %v6038 = vld [vmem:[%s336 + $0xc80] sm:$0xff]
          %v6039 = vld [vmem:[%s336 + $0xc88] sm:$0xff]
          %v6040 = vld [vmem:[%s336 + $0xc90] sm:$0xff]
          %v6041 = vld [vmem:[%s336 + $0xc98] sm:$0xff]
          %v6042 = vld [vmem:[%s336 + $0xca0] sm:$0xff]
          %v6043 = vld [vmem:[%s336 + $0xca8] sm:$0xff]
          %v6044 = vld [vmem:[%s336 + $0xcb0] sm:$0xff]
          %v6045 = vld [vmem:[%s336 + $0xcb8] sm:$0xff]
          %v6046 = vld [vmem:[%s336 + $0xcc0] sm:$0xff]
          %v6047 = vld [vmem:[%s336 + $0xcc8] sm:$0xff]
          %v6048 = vld [vmem:[%s336 + $0xcd0] sm:$0xff]
          %v6049 = vld [vmem:[%s336 + $0xcd8] sm:$0xff]
          %v6050 = vld [vmem:[%s336 + $0xce0] sm:$0xff]
          %v6051 = vld [vmem:[%s336 + $0xce8] sm:$0xff]
          %v6052 = vld [vmem:[%s336 + $0xcf0] sm:$0xff]
          %v6053 = vld [vmem:[%s336 + $0xcf8] sm:$0xff]
          %v6054 = vld [vmem:[%s336 + $0xd00] sm:$0xff]
          %v6055 = vld [vmem:[%s336 + $0xd08] sm:$0xff]
          %v6056 = vld [vmem:[%s336 + $0xd10] sm:$0xff]
          %v6057 = vld [vmem:[%s336 + $0xd18] sm:$0xff]
          %v6058 = vld [vmem:[%s336 + $0xd20] sm:$0xff]
          %v6059 = vld [vmem:[%s336 + $0xd28] sm:$0xff]
          %v6060 = vld [vmem:[%s336 + $0xd30] sm:$0xff]
          %v6061 = vld [vmem:[%s336 + $0xd38] sm:$0xff]
          %v6062 = vld [vmem:[%s336 + $0xd40] sm:$0xff]
          %v6063 = vld [vmem:[%s336 + $0xd48] sm:$0xff]
          %v6064 = vld [vmem:[%s336 + $0xd50] sm:$0xff]
          %v6065 = vld [vmem:[%s336 + $0xd58] sm:$0xff]
          %v6066 = vld [vmem:[%s336 + $0xd60] sm:$0xff]
          %v6067 = vld [vmem:[%s336 + $0xd68] sm:$0xff]
          %v6068 = vld [vmem:[%s336 + $0xd70] sm:$0xff]
          %v6069 = vld [vmem:[%s336 + $0xd78] sm:$0xff]
          %v6070 = vld [vmem:[%s336 + $0xd80] sm:$0xff]
          %v6071 = vld [vmem:[%s336 + $0xd88] sm:$0xff]
          %v6072 = vld [vmem:[%s336 + $0xd90] sm:$0xff]
          %v6073 = vld [vmem:[%s336 + $0xd98] sm:$0xff]
          %v6074 = vld [vmem:[%s336 + $0xda0] sm:$0xff]
          %v6075 = vld [vmem:[%s336 + $0xda8] sm:$0xff]
          %v6076 = vld [vmem:[%s336 + $0xdb0] sm:$0xff]
          %v6077 = vld [vmem:[%s336 + $0xdb8] sm:$0xff]
          %v6078 = vld [vmem:[%s336 + $0xdc0] sm:$0xff]
          %v6079 = vld [vmem:[%s336 + $0xdc8] sm:$0xff]
          %v6080 = vld [vmem:[%s336 + $0xdd0] sm:$0xff]
          %v6081 = vld [vmem:[%s336 + $0xdd8] sm:$0xff]
          %v6082 = vld [vmem:[%s336 + $0xde0] sm:$0xff]
          %v6083 = vld [vmem:[%s336 + $0xde8] sm:$0xff]
          %v6084 = vld [vmem:[%s336 + $0xdf0] sm:$0xff]
          %v6085 = vld [vmem:[%s336 + $0xdf8] sm:$0xff]
          %v6086 = vld [vmem:[%s336 + $0xe00] sm:$0xff]
          %v6087 = vld [vmem:[%s336 + $0xe08] sm:$0xff]
          %v6088 = vld [vmem:[%s336 + $0xe10] sm:$0xff]
          %v6089 = vld [vmem:[%s336 + $0xe18] sm:$0xff]
          %v6090 = vld [vmem:[%s336 + $0xe20] sm:$0xff]
          %v6091 = vld [vmem:[%s336 + $0xe28] sm:$0xff]
          %v6092 = vld [vmem:[%s336 + $0xe30] sm:$0xff]
          %v6093 = vld [vmem:[%s336 + $0xe38] sm:$0xff]
          %v6094 = vld [vmem:[%s336 + $0xe40] sm:$0xff]
          %v6095 = vld [vmem:[%s336 + $0xe48] sm:$0xff]
          %v6096 = vld [vmem:[%s336 + $0xe50] sm:$0xff]
          %v6097 = vld [vmem:[%s336 + $0xe58] sm:$0xff]
          %v6098 = vld [vmem:[%s336 + $0xe60] sm:$0xff]
          %v6099 = vld [vmem:[%s336 + $0xe68] sm:$0xff]
          %v6100 = vld [vmem:[%s336 + $0xe70] sm:$0xff]
          %v6101 = vld [vmem:[%s336 + $0xe78] sm:$0xff]
          %v6102 = vld [vmem:[%s336 + $0xe80] sm:$0xff]
          %v6103 = vld [vmem:[%s336 + $0xe88] sm:$0xff]
          %v6104 = vld [vmem:[%s336 + $0xe90] sm:$0xff]
          %v6105 = vld [vmem:[%s336 + $0xe98] sm:$0xff]
          %v6106 = vld [vmem:[%s336 + $0xea0] sm:$0xff]
          %v6107 = vld [vmem:[%s336 + $0xea8] sm:$0xff]
          %v6108 = vld [vmem:[%s336 + $0xeb0] sm:$0xff]
          %v6109 = vld [vmem:[%s336 + $0xeb8] sm:$0xff]
          %v6110 = vld [vmem:[%s336 + $0xec0] sm:$0xff]
          %v6111 = vld [vmem:[%s336 + $0xec8] sm:$0xff]
          %v6112 = vld [vmem:[%s336 + $0xed0] sm:$0xff]
          %v6113 = vld [vmem:[%s336 + $0xed8] sm:$0xff]
          %v6114 = vld [vmem:[%s336 + $0xee0] sm:$0xff]
          %v6115 = vld [vmem:[%s336 + $0xee8] sm:$0xff]
          %v6116 = vld [vmem:[%s336 + $0xef0] sm:$0xff]
          %v6117 = vld [vmem:[%s336 + $0xef8] sm:$0xff]
          %v6118 = vld [vmem:[%s336 + $0xf00] sm:$0xff]
          %v6119 = vld [vmem:[%s336 + $0xf08] sm:$0xff]
          %v6120 = vld [vmem:[%s336 + $0xf10] sm:$0xff]
          %v6121 = vld [vmem:[%s336 + $0xf18] sm:$0xff]
          %v6122 = vld [vmem:[%s336 + $0xf20] sm:$0xff]
          %v6123 = vld [vmem:[%s336 + $0xf28] sm:$0xff]
          %v6124 = vld [vmem:[%s336 + $0xf30] sm:$0xff]
          %v6125 = vld [vmem:[%s336 + $0xf38] sm:$0xff]
          %v6126 = vld [vmem:[%s336 + $0xf40] sm:$0xff]
          %v6127 = vld [vmem:[%s336 + $0xf48] sm:$0xff]
          %v6128 = vld [vmem:[%s336 + $0xf50] sm:$0xff]
          %v6129 = vld [vmem:[%s336 + $0xf58] sm:$0xff]
          %v6130 = vld [vmem:[%s336 + $0xf60] sm:$0xff]
          %v6131 = vld [vmem:[%s336 + $0xf68] sm:$0xff]
          %v6132 = vld [vmem:[%s336 + $0xf70] sm:$0xff]
          %v6133 = vld [vmem:[%s336 + $0xf78] sm:$0xff]
          %v6134 = vld [vmem:[%s336 + $0xf80] sm:$0xff]
          %v6135 = vld [vmem:[%s336 + $0xf88] sm:$0xff]
          %v6136 = vld [vmem:[%s336 + $0xf90] sm:$0xff]
          %v6137 = vld [vmem:[%s336 + $0xf98] sm:$0xff]
          %v6138 = vld [vmem:[%s336 + $0xfa0] sm:$0xff]
          %v6139 = vld [vmem:[%s336 + $0xfa8] sm:$0xff]
          %v6140 = vld [vmem:[%s336 + $0xfb0] sm:$0xff]
          %v6141 = vld [vmem:[%s336 + $0xfb8] sm:$0xff]
          %v6142 = vld [vmem:[%s336 + $0xfc0] sm:$0xff]
          %v6143 = vld [vmem:[%s336 + $0xfc8] sm:$0xff]
          %v6144 = vld [vmem:[%s336 + $0xfd0] sm:$0xff]
          %v6145 = vld [vmem:[%s336 + $0xfd8] sm:$0xff]
          %v6146 = vld [vmem:[%s336 + $0xfe0] sm:$0xff]
          %v6147 = vld [vmem:[%s336 + $0xfe8] sm:$0xff]
          %v6148 = vld [vmem:[%s336 + $0xff0] sm:$0xff]
          %v6149 = vld [vmem:[%s336 + $0xff8] sm:$0xff]
          %v6150 = vld [vmem:[%s345] sm:$0xf]
          %v6152 = vlaneseq
          %v6153 = vshrl.u32 %v6152, 7
          %v6154 = vsub.s32 0, %v6153
          %v6155 = vrot.slane %v6150, %v6154
          %v6156 = vlaneseq
          %v6157 = vshrl.u32 %v6156, 7
          %v6158 = vsub.s32 1, %v6157
          %v6159 = vrot.slane %v6150, %v6158
          %v6160 = vlaneseq
          %v6161 = vshrl.u32 %v6160, 7
          %v6162 = vsub.s32 2, %v6161
          %v6163 = vrot.slane %v6150, %v6162
          %v6164 = vlaneseq
          %v6165 = vshrl.u32 %v6164, 7
          %v6166 = vsub.s32 3, %v6165
          %v6167 = vrot.slane %v6150, %v6166
          %v6684 = vunpack.c.l.b16 %v5638
          %v6685 = vunpack.c.h.b16 %v5638
          %v6686 = vunpack.c.l.b16 %v5639
          %v6687 = vunpack.c.h.b16 %v5639
          %v6688 = vunpack.c.l.b16 %v5640
          %v6689 = vunpack.c.h.b16 %v5640
          %v6690 = vunpack.c.l.b16 %v5641
          %v6691 = vunpack.c.h.b16 %v5641
          %v6692 = vunpack.c.l.b16 %v5642
          %v6693 = vunpack.c.h.b16 %v5642
          %v6694 = vunpack.c.l.b16 %v5643
          %v6695 = vunpack.c.h.b16 %v5643
          %v6696 = vunpack.c.l.b16 %v5644
          %v6697 = vunpack.c.h.b16 %v5644
          %v6698 = vunpack.c.l.b16 %v5645
          %v6699 = vunpack.c.h.b16 %v5645
          %v6700 = vunpack.c.l.b16 %v5646
          %v6701 = vunpack.c.h.b16 %v5646
          %v6702 = vunpack.c.l.b16 %v5647
          %v6703 = vunpack.c.h.b16 %v5647
          %v6704 = vunpack.c.l.b16 %v5648
          %v6705 = vunpack.c.h.b16 %v5648
          %v6706 = vunpack.c.l.b16 %v5649
          %v6707 = vunpack.c.h.b16 %v5649
          %v6708 = vunpack.c.l.b16 %v5650
          %v6709 = vunpack.c.h.b16 %v5650
          %v6710 = vunpack.c.l.b16 %v5651
          %v6711 = vunpack.c.h.b16 %v5651
          %v6712 = vunpack.c.l.b16 %v5652
          %v6713 = vunpack.c.h.b16 %v5652
          %v6714 = vunpack.c.l.b16 %v5653
          %v6715 = vunpack.c.h.b16 %v5653
          %v6716 = vunpack.c.l.b16 %v5654
          %v6717 = vunpack.c.h.b16 %v5654
          %v6718 = vunpack.c.l.b16 %v5655
          %v6719 = vunpack.c.h.b16 %v5655
          %v6720 = vunpack.c.l.b16 %v5656
          %v6721 = vunpack.c.h.b16 %v5656
          %v6722 = vunpack.c.l.b16 %v5657
          %v6723 = vunpack.c.h.b16 %v5657
          %v6724 = vunpack.c.l.b16 %v5658
          %v6725 = vunpack.c.h.b16 %v5658
          %v6726 = vunpack.c.l.b16 %v5659
          %v6727 = vunpack.c.h.b16 %v5659
          %v6728 = vunpack.c.l.b16 %v5660
          %v6729 = vunpack.c.h.b16 %v5660
          %v6730 = vunpack.c.l.b16 %v5661
          %v6731 = vunpack.c.h.b16 %v5661
          %v6732 = vunpack.c.l.b16 %v5662
          %v6733 = vunpack.c.h.b16 %v5662
          %v6734 = vunpack.c.l.b16 %v5663
          %v6735 = vunpack.c.h.b16 %v5663
          %v6736 = vunpack.c.l.b16 %v5664
          %v6737 = vunpack.c.h.b16 %v5664
          %v6738 = vunpack.c.l.b16 %v5665
          %v6739 = vunpack.c.h.b16 %v5665
          %v6740 = vunpack.c.l.b16 %v5666
          %v6741 = vunpack.c.h.b16 %v5666
          %v6742 = vunpack.c.l.b16 %v5667
          %v6743 = vunpack.c.h.b16 %v5667
          %v6744 = vunpack.c.l.b16 %v5668
          %v6745 = vunpack.c.h.b16 %v5668
          %v6746 = vunpack.c.l.b16 %v5669
          %v6747 = vunpack.c.h.b16 %v5669
          %v6748 = vunpack.c.l.b16 %v5670
          %v6749 = vunpack.c.h.b16 %v5670
          %v6750 = vunpack.c.l.b16 %v5671
          %v6751 = vunpack.c.h.b16 %v5671
          %v6752 = vunpack.c.l.b16 %v5672
          %v6753 = vunpack.c.h.b16 %v5672
          %v6754 = vunpack.c.l.b16 %v5673
          %v6755 = vunpack.c.h.b16 %v5673
          %v6756 = vunpack.c.l.b16 %v5674
          %v6757 = vunpack.c.h.b16 %v5674
          %v6758 = vunpack.c.l.b16 %v5675
          %v6759 = vunpack.c.h.b16 %v5675
          %v6760 = vunpack.c.l.b16 %v5676
          %v6761 = vunpack.c.h.b16 %v5676
          %v6762 = vunpack.c.l.b16 %v5677
          %v6763 = vunpack.c.h.b16 %v5677
          %v6764 = vunpack.c.l.b16 %v5678
          %v6765 = vunpack.c.h.b16 %v5678
          %v6766 = vunpack.c.l.b16 %v5679
          %v6767 = vunpack.c.h.b16 %v5679
          %v6768 = vunpack.c.l.b16 %v5680
          %v6769 = vunpack.c.h.b16 %v5680
          %v6770 = vunpack.c.l.b16 %v5681
          %v6771 = vunpack.c.h.b16 %v5681
          %v6772 = vunpack.c.l.b16 %v5682
          %v6773 = vunpack.c.h.b16 %v5682
          %v6774 = vunpack.c.l.b16 %v5683
          %v6775 = vunpack.c.h.b16 %v5683
          %v6776 = vunpack.c.l.b16 %v5684
          %v6777 = vunpack.c.h.b16 %v5684
          %v6778 = vunpack.c.l.b16 %v5685
          %v6779 = vunpack.c.h.b16 %v5685
          %v6780 = vunpack.c.l.b16 %v5686
          %v6781 = vunpack.c.h.b16 %v5686
          %v6782 = vunpack.c.l.b16 %v5687
          %v6783 = vunpack.c.h.b16 %v5687
          %v6784 = vunpack.c.l.b16 %v5688
          %v6785 = vunpack.c.h.b16 %v5688
          %v6786 = vunpack.c.l.b16 %v5689
          %v6787 = vunpack.c.h.b16 %v5689
          %v6788 = vunpack.c.l.b16 %v5690
          %v6789 = vunpack.c.h.b16 %v5690
          %v6790 = vunpack.c.l.b16 %v5691
          %v6791 = vunpack.c.h.b16 %v5691
          %v6792 = vunpack.c.l.b16 %v5692
          %v6793 = vunpack.c.h.b16 %v5692
          %v6794 = vunpack.c.l.b16 %v5693
          %v6795 = vunpack.c.h.b16 %v5693
          %v6796 = vunpack.c.l.b16 %v5694
          %v6797 = vunpack.c.h.b16 %v5694
          %v6798 = vunpack.c.l.b16 %v5695
          %v6799 = vunpack.c.h.b16 %v5695
          %v6800 = vunpack.c.l.b16 %v5696
          %v6801 = vunpack.c.h.b16 %v5696
          %v6802 = vunpack.c.l.b16 %v5697
          %v6803 = vunpack.c.h.b16 %v5697
          %v6804 = vunpack.c.l.b16 %v5698
          %v6805 = vunpack.c.h.b16 %v5698
          %v6806 = vunpack.c.l.b16 %v5699
          %v6807 = vunpack.c.h.b16 %v5699
          %v6808 = vunpack.c.l.b16 %v5700
          %v6809 = vunpack.c.h.b16 %v5700
          %v6810 = vunpack.c.l.b16 %v5701
          %v6811 = vunpack.c.h.b16 %v5701
          %v6812 = vunpack.c.l.b16 %v5702
          %v6813 = vunpack.c.h.b16 %v5702
          %v6814 = vunpack.c.l.b16 %v5703
          %v6815 = vunpack.c.h.b16 %v5703
          %v6816 = vunpack.c.l.b16 %v5704
          %v6817 = vunpack.c.h.b16 %v5704
          %v6818 = vunpack.c.l.b16 %v5705
          %v6819 = vunpack.c.h.b16 %v5705
          %v6820 = vunpack.c.l.b16 %v5706
          %v6821 = vunpack.c.h.b16 %v5706
          %v6822 = vunpack.c.l.b16 %v5707
          %v6823 = vunpack.c.h.b16 %v5707
          %v6824 = vunpack.c.l.b16 %v5708
          %v6825 = vunpack.c.h.b16 %v5708
          %v6826 = vunpack.c.l.b16 %v5709
          %v6827 = vunpack.c.h.b16 %v5709
          %v6828 = vunpack.c.l.b16 %v5710
          %v6829 = vunpack.c.h.b16 %v5710
          %v6830 = vunpack.c.l.b16 %v5711
          %v6831 = vunpack.c.h.b16 %v5711
          %v6832 = vunpack.c.l.b16 %v5712
          %v6833 = vunpack.c.h.b16 %v5712
          %v6834 = vunpack.c.l.b16 %v5713
          %v6835 = vunpack.c.h.b16 %v5713
          %v6836 = vunpack.c.l.b16 %v5714
          %v6837 = vunpack.c.h.b16 %v5714
          %v6838 = vunpack.c.l.b16 %v5715
          %v6839 = vunpack.c.h.b16 %v5715
          %v6840 = vunpack.c.l.b16 %v5716
          %v6841 = vunpack.c.h.b16 %v5716
          %v6842 = vunpack.c.l.b16 %v5717
          %v6843 = vunpack.c.h.b16 %v5717
          %v6844 = vunpack.c.l.b16 %v5718
          %v6845 = vunpack.c.h.b16 %v5718
          %v6846 = vunpack.c.l.b16 %v5719
          %v6847 = vunpack.c.h.b16 %v5719
          %v6848 = vunpack.c.l.b16 %v5720
          %v6849 = vunpack.c.h.b16 %v5720
          %v6850 = vunpack.c.l.b16 %v5721
          %v6851 = vunpack.c.h.b16 %v5721
          %v6852 = vunpack.c.l.b16 %v5722
          %v6853 = vunpack.c.h.b16 %v5722
          %v6854 = vunpack.c.l.b16 %v5723
          %v6855 = vunpack.c.h.b16 %v5723
          %v6856 = vunpack.c.l.b16 %v5724
          %v6857 = vunpack.c.h.b16 %v5724
          %v6858 = vunpack.c.l.b16 %v5725
          %v6859 = vunpack.c.h.b16 %v5725
          %v6860 = vunpack.c.l.b16 %v5726
          %v6861 = vunpack.c.h.b16 %v5726
          %v6862 = vunpack.c.l.b16 %v5727
          %v6863 = vunpack.c.h.b16 %v5727
          %v6864 = vunpack.c.l.b16 %v5728
          %v6865 = vunpack.c.h.b16 %v5728
          %v6866 = vunpack.c.l.b16 %v5729
          %v6867 = vunpack.c.h.b16 %v5729
          %v6868 = vunpack.c.l.b16 %v5730
          %v6869 = vunpack.c.h.b16 %v5730
          %v6870 = vunpack.c.l.b16 %v5731
          %v6871 = vunpack.c.h.b16 %v5731
          %v6872 = vunpack.c.l.b16 %v5732
          %v6873 = vunpack.c.h.b16 %v5732
          %v6874 = vunpack.c.l.b16 %v5733
          %v6875 = vunpack.c.h.b16 %v5733
          %v6876 = vunpack.c.l.b16 %v5734
          %v6877 = vunpack.c.h.b16 %v5734
          %v6878 = vunpack.c.l.b16 %v5735
          %v6879 = vunpack.c.h.b16 %v5735
          %v6880 = vunpack.c.l.b16 %v5736
          %v6881 = vunpack.c.h.b16 %v5736
          %v6882 = vunpack.c.l.b16 %v5737
          %v6883 = vunpack.c.h.b16 %v5737
          %v6884 = vunpack.c.l.b16 %v5738
          %v6885 = vunpack.c.h.b16 %v5738
          %v6886 = vunpack.c.l.b16 %v5739
          %v6887 = vunpack.c.h.b16 %v5739
          %v6888 = vunpack.c.l.b16 %v5740
          %v6889 = vunpack.c.h.b16 %v5740
          %v6890 = vunpack.c.l.b16 %v5741
          %v6891 = vunpack.c.h.b16 %v5741
          %v6892 = vunpack.c.l.b16 %v5742
          %v6893 = vunpack.c.h.b16 %v5742
          %v6894 = vunpack.c.l.b16 %v5743
          %v6895 = vunpack.c.h.b16 %v5743
          %v6896 = vunpack.c.l.b16 %v5744
          %v6897 = vunpack.c.h.b16 %v5744
          %v6898 = vunpack.c.l.b16 %v5745
          %v6899 = vunpack.c.h.b16 %v5745
          %v6900 = vunpack.c.l.b16 %v5746
          %v6901 = vunpack.c.h.b16 %v5746
          %v6902 = vunpack.c.l.b16 %v5747
          %v6903 = vunpack.c.h.b16 %v5747
          %v6904 = vunpack.c.l.b16 %v5748
          %v6905 = vunpack.c.h.b16 %v5748
          %v6906 = vunpack.c.l.b16 %v5749
          %v6907 = vunpack.c.h.b16 %v5749
          %v6908 = vunpack.c.l.b16 %v5750
          %v6909 = vunpack.c.h.b16 %v5750
          %v6910 = vunpack.c.l.b16 %v5751
          %v6911 = vunpack.c.h.b16 %v5751
          %v6912 = vunpack.c.l.b16 %v5752
          %v6913 = vunpack.c.h.b16 %v5752
          %v6914 = vunpack.c.l.b16 %v5753
          %v6915 = vunpack.c.h.b16 %v5753
          %v6916 = vunpack.c.l.b16 %v5754
          %v6917 = vunpack.c.h.b16 %v5754
          %v6918 = vunpack.c.l.b16 %v5755
          %v6919 = vunpack.c.h.b16 %v5755
          %v6920 = vunpack.c.l.b16 %v5756
          %v6921 = vunpack.c.h.b16 %v5756
          %v6922 = vunpack.c.l.b16 %v5757
          %v6923 = vunpack.c.h.b16 %v5757
          %v6924 = vunpack.c.l.b16 %v5758
          %v6925 = vunpack.c.h.b16 %v5758
          %v6926 = vunpack.c.l.b16 %v5759
          %v6927 = vunpack.c.h.b16 %v5759
          %v6928 = vunpack.c.l.b16 %v5760
          %v6929 = vunpack.c.h.b16 %v5760
          %v6930 = vunpack.c.l.b16 %v5761
          %v6931 = vunpack.c.h.b16 %v5761
          %v6932 = vunpack.c.l.b16 %v5762
          %v6933 = vunpack.c.h.b16 %v5762
          %v6934 = vunpack.c.l.b16 %v5763
          %v6935 = vunpack.c.h.b16 %v5763
          %v6936 = vunpack.c.l.b16 %v5764
          %v6937 = vunpack.c.h.b16 %v5764
          %v6938 = vunpack.c.l.b16 %v5765
          %v6939 = vunpack.c.h.b16 %v5765
          %v6940 = vunpack.c.l.b16 %v5766
          %v6941 = vunpack.c.h.b16 %v5766
          %v6942 = vunpack.c.l.b16 %v5767
          %v6943 = vunpack.c.h.b16 %v5767
          %v6944 = vunpack.c.l.b16 %v5768
          %v6945 = vunpack.c.h.b16 %v5768
          %v6946 = vunpack.c.l.b16 %v5769
          %v6947 = vunpack.c.h.b16 %v5769
          %v6948 = vunpack.c.l.b16 %v5770
          %v6949 = vunpack.c.h.b16 %v5770
          %v6950 = vunpack.c.l.b16 %v5771
          %v6951 = vunpack.c.h.b16 %v5771
          %v6952 = vunpack.c.l.b16 %v5772
          %v6953 = vunpack.c.h.b16 %v5772
          %v6954 = vunpack.c.l.b16 %v5773
          %v6955 = vunpack.c.h.b16 %v5773
          %v6956 = vunpack.c.l.b16 %v5774
          %v6957 = vunpack.c.h.b16 %v5774
          %v6958 = vunpack.c.l.b16 %v5775
          %v6959 = vunpack.c.h.b16 %v5775
          %v6960 = vunpack.c.l.b16 %v5776
          %v6961 = vunpack.c.h.b16 %v5776
          %v6962 = vunpack.c.l.b16 %v5777
          %v6963 = vunpack.c.h.b16 %v5777
          %v6964 = vunpack.c.l.b16 %v5778
          %v6965 = vunpack.c.h.b16 %v5778
          %v6966 = vunpack.c.l.b16 %v5779
          %v6967 = vunpack.c.h.b16 %v5779
          %v6968 = vunpack.c.l.b16 %v5780
          %v6969 = vunpack.c.h.b16 %v5780
          %v6970 = vunpack.c.l.b16 %v5781
          %v6971 = vunpack.c.h.b16 %v5781
          %v6972 = vunpack.c.l.b16 %v5782
          %v6973 = vunpack.c.h.b16 %v5782
          %v6974 = vunpack.c.l.b16 %v5783
          %v6975 = vunpack.c.h.b16 %v5783
          %v6976 = vunpack.c.l.b16 %v5784
          %v6977 = vunpack.c.h.b16 %v5784
          %v6978 = vunpack.c.l.b16 %v5785
          %v6979 = vunpack.c.h.b16 %v5785
          %v6980 = vunpack.c.l.b16 %v5786
          %v6981 = vunpack.c.h.b16 %v5786
          %v6982 = vunpack.c.l.b16 %v5787
          %v6983 = vunpack.c.h.b16 %v5787
          %v6984 = vunpack.c.l.b16 %v5788
          %v6985 = vunpack.c.h.b16 %v5788
          %v6986 = vunpack.c.l.b16 %v5789
          %v6987 = vunpack.c.h.b16 %v5789
          %v6988 = vunpack.c.l.b16 %v5790
          %v6989 = vunpack.c.h.b16 %v5790
          %v6990 = vunpack.c.l.b16 %v5791
          %v6991 = vunpack.c.h.b16 %v5791
          %v6992 = vunpack.c.l.b16 %v5792
          %v6993 = vunpack.c.h.b16 %v5792
          %v6994 = vunpack.c.l.b16 %v5793
          %v6995 = vunpack.c.h.b16 %v5793
          %v6996 = vunpack.c.l.b16 %v5794
          %v6997 = vunpack.c.h.b16 %v5794
          %v6998 = vunpack.c.l.b16 %v5795
          %v6999 = vunpack.c.h.b16 %v5795
          %v7000 = vunpack.c.l.b16 %v5796
          %v7001 = vunpack.c.h.b16 %v5796
          %v7002 = vunpack.c.l.b16 %v5797
          %v7003 = vunpack.c.h.b16 %v5797
          %v7004 = vunpack.c.l.b16 %v5798
          %v7005 = vunpack.c.h.b16 %v5798
          %v7006 = vunpack.c.l.b16 %v5799
          %v7007 = vunpack.c.h.b16 %v5799
          %v7008 = vunpack.c.l.b16 %v5800
          %v7009 = vunpack.c.h.b16 %v5800
          %v7010 = vunpack.c.l.b16 %v5801
          %v7011 = vunpack.c.h.b16 %v5801
          %v7012 = vunpack.c.l.b16 %v5802
          %v7013 = vunpack.c.h.b16 %v5802
          %v7014 = vunpack.c.l.b16 %v5803
          %v7015 = vunpack.c.h.b16 %v5803
          %v7016 = vunpack.c.l.b16 %v5804
          %v7017 = vunpack.c.h.b16 %v5804
          %v7018 = vunpack.c.l.b16 %v5805
          %v7019 = vunpack.c.h.b16 %v5805
          %v7020 = vunpack.c.l.b16 %v5806
          %v7021 = vunpack.c.h.b16 %v5806
          %v7022 = vunpack.c.l.b16 %v5807
          %v7023 = vunpack.c.h.b16 %v5807
          %v7024 = vunpack.c.l.b16 %v5808
          %v7025 = vunpack.c.h.b16 %v5808
          %v7026 = vunpack.c.l.b16 %v5809
          %v7027 = vunpack.c.h.b16 %v5809
          %v7028 = vunpack.c.l.b16 %v5810
          %v7029 = vunpack.c.h.b16 %v5810
          %v7030 = vunpack.c.l.b16 %v5811
          %v7031 = vunpack.c.h.b16 %v5811
          %v7032 = vunpack.c.l.b16 %v5812
          %v7033 = vunpack.c.h.b16 %v5812
          %v7034 = vunpack.c.l.b16 %v5813
          %v7035 = vunpack.c.h.b16 %v5813
          %v7036 = vunpack.c.l.b16 %v5814
          %v7037 = vunpack.c.h.b16 %v5814
          %v7038 = vunpack.c.l.b16 %v5815
          %v7039 = vunpack.c.h.b16 %v5815
          %v7040 = vunpack.c.l.b16 %v5816
          %v7041 = vunpack.c.h.b16 %v5816
          %v7042 = vunpack.c.l.b16 %v5817
          %v7043 = vunpack.c.h.b16 %v5817
          %v7044 = vunpack.c.l.b16 %v5818
          %v7045 = vunpack.c.h.b16 %v5818
          %v7046 = vunpack.c.l.b16 %v5819
          %v7047 = vunpack.c.h.b16 %v5819
          %v7048 = vunpack.c.l.b16 %v5820
          %v7049 = vunpack.c.h.b16 %v5820
          %v7050 = vunpack.c.l.b16 %v5821
          %v7051 = vunpack.c.h.b16 %v5821
          %v7052 = vunpack.c.l.b16 %v5822
          %v7053 = vunpack.c.h.b16 %v5822
          %v7054 = vunpack.c.l.b16 %v5823
          %v7055 = vunpack.c.h.b16 %v5823
          %v7056 = vunpack.c.l.b16 %v5824
          %v7057 = vunpack.c.h.b16 %v5824
          %v7058 = vunpack.c.l.b16 %v5825
          %v7059 = vunpack.c.h.b16 %v5825
          %v7060 = vunpack.c.l.b16 %v5826
          %v7061 = vunpack.c.h.b16 %v5826
          %v7062 = vunpack.c.l.b16 %v5827
          %v7063 = vunpack.c.h.b16 %v5827
          %v7064 = vunpack.c.l.b16 %v5828
          %v7065 = vunpack.c.h.b16 %v5828
          %v7066 = vunpack.c.l.b16 %v5829
          %v7067 = vunpack.c.h.b16 %v5829
          %v7068 = vunpack.c.l.b16 %v5830
          %v7069 = vunpack.c.h.b16 %v5830
          %v7070 = vunpack.c.l.b16 %v5831
          %v7071 = vunpack.c.h.b16 %v5831
          %v7072 = vunpack.c.l.b16 %v5832
          %v7073 = vunpack.c.h.b16 %v5832
          %v7074 = vunpack.c.l.b16 %v5833
          %v7075 = vunpack.c.h.b16 %v5833
          %v7076 = vunpack.c.l.b16 %v5834
          %v7077 = vunpack.c.h.b16 %v5834
          %v7078 = vunpack.c.l.b16 %v5835
          %v7079 = vunpack.c.h.b16 %v5835
          %v7080 = vunpack.c.l.b16 %v5836
          %v7081 = vunpack.c.h.b16 %v5836
          %v7082 = vunpack.c.l.b16 %v5837
          %v7083 = vunpack.c.h.b16 %v5837
          %v7084 = vunpack.c.l.b16 %v5838
          %v7085 = vunpack.c.h.b16 %v5838
          %v7086 = vunpack.c.l.b16 %v5839
          %v7087 = vunpack.c.h.b16 %v5839
          %v7088 = vunpack.c.l.b16 %v5840
          %v7089 = vunpack.c.h.b16 %v5840
          %v7090 = vunpack.c.l.b16 %v5841
          %v7091 = vunpack.c.h.b16 %v5841
          %v7092 = vunpack.c.l.b16 %v5842
          %v7093 = vunpack.c.h.b16 %v5842
          %v7094 = vunpack.c.l.b16 %v5843
          %v7095 = vunpack.c.h.b16 %v5843
          %v7096 = vunpack.c.l.b16 %v5844
          %v7097 = vunpack.c.h.b16 %v5844
          %v7098 = vunpack.c.l.b16 %v5845
          %v7099 = vunpack.c.h.b16 %v5845
          %v7100 = vunpack.c.l.b16 %v5846
          %v7101 = vunpack.c.h.b16 %v5846
          %v7102 = vunpack.c.l.b16 %v5847
          %v7103 = vunpack.c.h.b16 %v5847
          %v7104 = vunpack.c.l.b16 %v5848
          %v7105 = vunpack.c.h.b16 %v5848
          %v7106 = vunpack.c.l.b16 %v5849
          %v7107 = vunpack.c.h.b16 %v5849
          %v7108 = vunpack.c.l.b16 %v5850
          %v7109 = vunpack.c.h.b16 %v5850
          %v7110 = vunpack.c.l.b16 %v5851
          %v7111 = vunpack.c.h.b16 %v5851
          %v7112 = vunpack.c.l.b16 %v5852
          %v7113 = vunpack.c.h.b16 %v5852
          %v7114 = vunpack.c.l.b16 %v5853
          %v7115 = vunpack.c.h.b16 %v5853
          %v7116 = vunpack.c.l.b16 %v5854
          %v7117 = vunpack.c.h.b16 %v5854
          %v7118 = vunpack.c.l.b16 %v5855
          %v7119 = vunpack.c.h.b16 %v5855
          %v7120 = vunpack.c.l.b16 %v5856
          %v7121 = vunpack.c.h.b16 %v5856
          %v7122 = vunpack.c.l.b16 %v5857
          %v7123 = vunpack.c.h.b16 %v5857
          %v7124 = vunpack.c.l.b16 %v5858
          %v7125 = vunpack.c.h.b16 %v5858
          %v7126 = vunpack.c.l.b16 %v5859
          %v7127 = vunpack.c.h.b16 %v5859
          %v7128 = vunpack.c.l.b16 %v5860
          %v7129 = vunpack.c.h.b16 %v5860
          %v7130 = vunpack.c.l.b16 %v5861
          %v7131 = vunpack.c.h.b16 %v5861
          %v7132 = vunpack.c.l.b16 %v5862
          %v7133 = vunpack.c.h.b16 %v5862
          %v7134 = vunpack.c.l.b16 %v5863
          %v7135 = vunpack.c.h.b16 %v5863
          %v7136 = vunpack.c.l.b16 %v5864
          %v7137 = vunpack.c.h.b16 %v5864
          %v7138 = vunpack.c.l.b16 %v5865
          %v7139 = vunpack.c.h.b16 %v5865
          %v7140 = vunpack.c.l.b16 %v5866
          %v7141 = vunpack.c.h.b16 %v5866
          %v7142 = vunpack.c.l.b16 %v5867
          %v7143 = vunpack.c.h.b16 %v5867
          %v7144 = vunpack.c.l.b16 %v5868
          %v7145 = vunpack.c.h.b16 %v5868
          %v7146 = vunpack.c.l.b16 %v5869
          %v7147 = vunpack.c.h.b16 %v5869
          %v7148 = vunpack.c.l.b16 %v5870
          %v7149 = vunpack.c.h.b16 %v5870
          %v7150 = vunpack.c.l.b16 %v5871
          %v7151 = vunpack.c.h.b16 %v5871
          %v7152 = vunpack.c.l.b16 %v5872
          %v7153 = vunpack.c.h.b16 %v5872
          %v7154 = vunpack.c.l.b16 %v5873
          %v7155 = vunpack.c.h.b16 %v5873
          %v7156 = vunpack.c.l.b16 %v5874
          %v7157 = vunpack.c.h.b16 %v5874
          %v7158 = vunpack.c.l.b16 %v5875
          %v7159 = vunpack.c.h.b16 %v5875
          %v7160 = vunpack.c.l.b16 %v5876
          %v7161 = vunpack.c.h.b16 %v5876
          %v7162 = vunpack.c.l.b16 %v5877
          %v7163 = vunpack.c.h.b16 %v5877
          %v7164 = vunpack.c.l.b16 %v5878
          %v7165 = vunpack.c.h.b16 %v5878
          %v7166 = vunpack.c.l.b16 %v5879
          %v7167 = vunpack.c.h.b16 %v5879
          %v7168 = vunpack.c.l.b16 %v5880
          %v7169 = vunpack.c.h.b16 %v5880
          %v7170 = vunpack.c.l.b16 %v5881
          %v7171 = vunpack.c.h.b16 %v5881
          %v7172 = vunpack.c.l.b16 %v5882
          %v7173 = vunpack.c.h.b16 %v5882
          %v7174 = vunpack.c.l.b16 %v5883
          %v7175 = vunpack.c.h.b16 %v5883
          %v7176 = vunpack.c.l.b16 %v5884
          %v7177 = vunpack.c.h.b16 %v5884
          %v7178 = vunpack.c.l.b16 %v5885
          %v7179 = vunpack.c.h.b16 %v5885
          %v7180 = vunpack.c.l.b16 %v5886
          %v7181 = vunpack.c.h.b16 %v5886
          %v7182 = vunpack.c.l.b16 %v5887
          %v7183 = vunpack.c.h.b16 %v5887
          %v7184 = vunpack.c.l.b16 %v5888
          %v7185 = vunpack.c.h.b16 %v5888
          %v7186 = vunpack.c.l.b16 %v5889
          %v7187 = vunpack.c.h.b16 %v5889
          %v7188 = vunpack.c.l.b16 %v5890
          %v7189 = vunpack.c.h.b16 %v5890
          %v7190 = vunpack.c.l.b16 %v5891
          %v7191 = vunpack.c.h.b16 %v5891
          %v7192 = vunpack.c.l.b16 %v5892
          %v7193 = vunpack.c.h.b16 %v5892
          %v7194 = vunpack.c.l.b16 %v5893
          %v7195 = vunpack.c.h.b16 %v5893
          %v7196 = vunpack.c.l.b16 %v5894
          %v7197 = vunpack.c.h.b16 %v5894
          %v7198 = vunpack.c.l.b16 %v5895
          %v7199 = vunpack.c.h.b16 %v5895
          %v7200 = vunpack.c.l.b16 %v5896
          %v7201 = vunpack.c.h.b16 %v5896
          %v7202 = vunpack.c.l.b16 %v5897
          %v7203 = vunpack.c.h.b16 %v5897
          %v7204 = vunpack.c.l.b16 %v5898
          %v7205 = vunpack.c.h.b16 %v5898
          %v7206 = vunpack.c.l.b16 %v5899
          %v7207 = vunpack.c.h.b16 %v5899
          %v7208 = vunpack.c.l.b16 %v5900
          %v7209 = vunpack.c.h.b16 %v5900
          %v7210 = vunpack.c.l.b16 %v5901
          %v7211 = vunpack.c.h.b16 %v5901
          %v7212 = vunpack.c.l.b16 %v5902
          %v7213 = vunpack.c.h.b16 %v5902
          %v7214 = vunpack.c.l.b16 %v5903
          %v7215 = vunpack.c.h.b16 %v5903
          %v7216 = vunpack.c.l.b16 %v5904
          %v7217 = vunpack.c.h.b16 %v5904
          %v7218 = vunpack.c.l.b16 %v5905
          %v7219 = vunpack.c.h.b16 %v5905
          %v7220 = vunpack.c.l.b16 %v5906
          %v7221 = vunpack.c.h.b16 %v5906
          %v7222 = vunpack.c.l.b16 %v5907
          %v7223 = vunpack.c.h.b16 %v5907
          %v7224 = vunpack.c.l.b16 %v5908
          %v7225 = vunpack.c.h.b16 %v5908
          %v7226 = vunpack.c.l.b16 %v5909
          %v7227 = vunpack.c.h.b16 %v5909
          %v7228 = vunpack.c.l.b16 %v5910
          %v7229 = vunpack.c.h.b16 %v5910
          %v7230 = vunpack.c.l.b16 %v5911
          %v7231 = vunpack.c.h.b16 %v5911
          %v7232 = vunpack.c.l.b16 %v5912
          %v7233 = vunpack.c.h.b16 %v5912
          %v7234 = vunpack.c.l.b16 %v5913
          %v7235 = vunpack.c.h.b16 %v5913
          %v7236 = vunpack.c.l.b16 %v5914
          %v7237 = vunpack.c.h.b16 %v5914
          %v7238 = vunpack.c.l.b16 %v5915
          %v7239 = vunpack.c.h.b16 %v5915
          %v7240 = vunpack.c.l.b16 %v5916
          %v7241 = vunpack.c.h.b16 %v5916
          %v7242 = vunpack.c.l.b16 %v5917
          %v7243 = vunpack.c.h.b16 %v5917
          %v7244 = vunpack.c.l.b16 %v5918
          %v7245 = vunpack.c.h.b16 %v5918
          %v7246 = vunpack.c.l.b16 %v5919
          %v7247 = vunpack.c.h.b16 %v5919
          %v7248 = vunpack.c.l.b16 %v5920
          %v7249 = vunpack.c.h.b16 %v5920
          %v7250 = vunpack.c.l.b16 %v5921
          %v7251 = vunpack.c.h.b16 %v5921
          %v7252 = vunpack.c.l.b16 %v5922
          %v7253 = vunpack.c.h.b16 %v5922
          %v7254 = vunpack.c.l.b16 %v5923
          %v7255 = vunpack.c.h.b16 %v5923
          %v7256 = vunpack.c.l.b16 %v5924
          %v7257 = vunpack.c.h.b16 %v5924
          %v7258 = vunpack.c.l.b16 %v5925
          %v7259 = vunpack.c.h.b16 %v5925
          %v7260 = vunpack.c.l.b16 %v5926
          %v7261 = vunpack.c.h.b16 %v5926
          %v7262 = vunpack.c.l.b16 %v5927
          %v7263 = vunpack.c.h.b16 %v5927
          %v7264 = vunpack.c.l.b16 %v5928
          %v7265 = vunpack.c.h.b16 %v5928
          %v7266 = vunpack.c.l.b16 %v5929
          %v7267 = vunpack.c.h.b16 %v5929
          %v7268 = vunpack.c.l.b16 %v5930
          %v7269 = vunpack.c.h.b16 %v5930
          %v7270 = vunpack.c.l.b16 %v5931
          %v7271 = vunpack.c.h.b16 %v5931
          %v7272 = vunpack.c.l.b16 %v5932
          %v7273 = vunpack.c.h.b16 %v5932
          %v7274 = vunpack.c.l.b16 %v5933
          %v7275 = vunpack.c.h.b16 %v5933
          %v7276 = vunpack.c.l.b16 %v5934
          %v7277 = vunpack.c.h.b16 %v5934
          %v7278 = vunpack.c.l.b16 %v5935
          %v7279 = vunpack.c.h.b16 %v5935
          %v7280 = vunpack.c.l.b16 %v5936
          %v7281 = vunpack.c.h.b16 %v5936
          %v7282 = vunpack.c.l.b16 %v5937
          %v7283 = vunpack.c.h.b16 %v5937
          %v7284 = vunpack.c.l.b16 %v5938
          %v7285 = vunpack.c.h.b16 %v5938
          %v7286 = vunpack.c.l.b16 %v5939
          %v7287 = vunpack.c.h.b16 %v5939
          %v7288 = vunpack.c.l.b16 %v5940
          %v7289 = vunpack.c.h.b16 %v5940
          %v7290 = vunpack.c.l.b16 %v5941
          %v7291 = vunpack.c.h.b16 %v5941
          %v7292 = vunpack.c.l.b16 %v5942
          %v7293 = vunpack.c.h.b16 %v5942
          %v7294 = vunpack.c.l.b16 %v5943
          %v7295 = vunpack.c.h.b16 %v5943
          %v7296 = vunpack.c.l.b16 %v5944
          %v7297 = vunpack.c.h.b16 %v5944
          %v7298 = vunpack.c.l.b16 %v5945
          %v7299 = vunpack.c.h.b16 %v5945
          %v7300 = vunpack.c.l.b16 %v5946
          %v7301 = vunpack.c.h.b16 %v5946
          %v7302 = vunpack.c.l.b16 %v5947
          %v7303 = vunpack.c.h.b16 %v5947
          %v7304 = vunpack.c.l.b16 %v5948
          %v7305 = vunpack.c.h.b16 %v5948
          %v7306 = vunpack.c.l.b16 %v5949
          %v7307 = vunpack.c.h.b16 %v5949
          %v7308 = vunpack.c.l.b16 %v5950
          %v7309 = vunpack.c.h.b16 %v5950
          %v7310 = vunpack.c.l.b16 %v5951
          %v7311 = vunpack.c.h.b16 %v5951
          %v7312 = vunpack.c.l.b16 %v5952
          %v7313 = vunpack.c.h.b16 %v5952
          %v7314 = vunpack.c.l.b16 %v5953
          %v7315 = vunpack.c.h.b16 %v5953
          %v7316 = vunpack.c.l.b16 %v5954
          %v7317 = vunpack.c.h.b16 %v5954
          %v7318 = vunpack.c.l.b16 %v5955
          %v7319 = vunpack.c.h.b16 %v5955
          %v7320 = vunpack.c.l.b16 %v5956
          %v7321 = vunpack.c.h.b16 %v5956
          %v7322 = vunpack.c.l.b16 %v5957
          %v7323 = vunpack.c.h.b16 %v5957
          %v7324 = vunpack.c.l.b16 %v5958
          %v7325 = vunpack.c.h.b16 %v5958
          %v7326 = vunpack.c.l.b16 %v5959
          %v7327 = vunpack.c.h.b16 %v5959
          %v7328 = vunpack.c.l.b16 %v5960
          %v7329 = vunpack.c.h.b16 %v5960
          %v7330 = vunpack.c.l.b16 %v5961
          %v7331 = vunpack.c.h.b16 %v5961
          %v7332 = vunpack.c.l.b16 %v5962
          %v7333 = vunpack.c.h.b16 %v5962
          %v7334 = vunpack.c.l.b16 %v5963
          %v7335 = vunpack.c.h.b16 %v5963
          %v7336 = vunpack.c.l.b16 %v5964
          %v7337 = vunpack.c.h.b16 %v5964
          %v7338 = vunpack.c.l.b16 %v5965
          %v7339 = vunpack.c.h.b16 %v5965
          %v7340 = vunpack.c.l.b16 %v5966
          %v7341 = vunpack.c.h.b16 %v5966
          %v7342 = vunpack.c.l.b16 %v5967
          %v7343 = vunpack.c.h.b16 %v5967
          %v7344 = vunpack.c.l.b16 %v5968
          %v7345 = vunpack.c.h.b16 %v5968
          %v7346 = vunpack.c.l.b16 %v5969
          %v7347 = vunpack.c.h.b16 %v5969
          %v7348 = vunpack.c.l.b16 %v5970
          %v7349 = vunpack.c.h.b16 %v5970
          %v7350 = vunpack.c.l.b16 %v5971
          %v7351 = vunpack.c.h.b16 %v5971
          %v7352 = vunpack.c.l.b16 %v5972
          %v7353 = vunpack.c.h.b16 %v5972
          %v7354 = vunpack.c.l.b16 %v5973
          %v7355 = vunpack.c.h.b16 %v5973
          %v7356 = vunpack.c.l.b16 %v5974
          %v7357 = vunpack.c.h.b16 %v5974
          %v7358 = vunpack.c.l.b16 %v5975
          %v7359 = vunpack.c.h.b16 %v5975
          %v7360 = vunpack.c.l.b16 %v5976
          %v7361 = vunpack.c.h.b16 %v5976
          %v7362 = vunpack.c.l.b16 %v5977
          %v7363 = vunpack.c.h.b16 %v5977
          %v7364 = vunpack.c.l.b16 %v5978
          %v7365 = vunpack.c.h.b16 %v5978
          %v7366 = vunpack.c.l.b16 %v5979
          %v7367 = vunpack.c.h.b16 %v5979
          %v7368 = vunpack.c.l.b16 %v5980
          %v7369 = vunpack.c.h.b16 %v5980
          %v7370 = vunpack.c.l.b16 %v5981
          %v7371 = vunpack.c.h.b16 %v5981
          %v7372 = vunpack.c.l.b16 %v5982
          %v7373 = vunpack.c.h.b16 %v5982
          %v7374 = vunpack.c.l.b16 %v5983
          %v7375 = vunpack.c.h.b16 %v5983
          %v7376 = vunpack.c.l.b16 %v5984
          %v7377 = vunpack.c.h.b16 %v5984
          %v7378 = vunpack.c.l.b16 %v5985
          %v7379 = vunpack.c.h.b16 %v5985
          %v7380 = vunpack.c.l.b16 %v5986
          %v7381 = vunpack.c.h.b16 %v5986
          %v7382 = vunpack.c.l.b16 %v5987
          %v7383 = vunpack.c.h.b16 %v5987
          %v7384 = vunpack.c.l.b16 %v5988
          %v7385 = vunpack.c.h.b16 %v5988
          %v7386 = vunpack.c.l.b16 %v5989
          %v7387 = vunpack.c.h.b16 %v5989
          %v7388 = vunpack.c.l.b16 %v5990
          %v7389 = vunpack.c.h.b16 %v5990
          %v7390 = vunpack.c.l.b16 %v5991
          %v7391 = vunpack.c.h.b16 %v5991
          %v7392 = vunpack.c.l.b16 %v5992
          %v7393 = vunpack.c.h.b16 %v5992
          %v7394 = vunpack.c.l.b16 %v5993
          %v7395 = vunpack.c.h.b16 %v5993
          %v7396 = vunpack.c.l.b16 %v5994
          %v7397 = vunpack.c.h.b16 %v5994
          %v7398 = vunpack.c.l.b16 %v5995
          %v7399 = vunpack.c.h.b16 %v5995
          %v7400 = vunpack.c.l.b16 %v5996
          %v7401 = vunpack.c.h.b16 %v5996
          %v7402 = vunpack.c.l.b16 %v5997
          %v7403 = vunpack.c.h.b16 %v5997
          %v7404 = vunpack.c.l.b16 %v5998
          %v7405 = vunpack.c.h.b16 %v5998
          %v7406 = vunpack.c.l.b16 %v5999
          %v7407 = vunpack.c.h.b16 %v5999
          %v7408 = vunpack.c.l.b16 %v6000
          %v7409 = vunpack.c.h.b16 %v6000
          %v7410 = vunpack.c.l.b16 %v6001
          %v7411 = vunpack.c.h.b16 %v6001
          %v7412 = vunpack.c.l.b16 %v6002
          %v7413 = vunpack.c.h.b16 %v6002
          %v7414 = vunpack.c.l.b16 %v6003
          %v7415 = vunpack.c.h.b16 %v6003
          %v7416 = vunpack.c.l.b16 %v6004
          %v7417 = vunpack.c.h.b16 %v6004
          %v7418 = vunpack.c.l.b16 %v6005
          %v7419 = vunpack.c.h.b16 %v6005
          %v7420 = vunpack.c.l.b16 %v6006
          %v7421 = vunpack.c.h.b16 %v6006
          %v7422 = vunpack.c.l.b16 %v6007
          %v7423 = vunpack.c.h.b16 %v6007
          %v7424 = vunpack.c.l.b16 %v6008
          %v7425 = vunpack.c.h.b16 %v6008
          %v7426 = vunpack.c.l.b16 %v6009
          %v7427 = vunpack.c.h.b16 %v6009
          %v7428 = vunpack.c.l.b16 %v6010
          %v7429 = vunpack.c.h.b16 %v6010
          %v7430 = vunpack.c.l.b16 %v6011
          %v7431 = vunpack.c.h.b16 %v6011
          %v7432 = vunpack.c.l.b16 %v6012
          %v7433 = vunpack.c.h.b16 %v6012
          %v7434 = vunpack.c.l.b16 %v6013
          %v7435 = vunpack.c.h.b16 %v6013
          %v7436 = vunpack.c.l.b16 %v6014
          %v7437 = vunpack.c.h.b16 %v6014
          %v7438 = vunpack.c.l.b16 %v6015
          %v7439 = vunpack.c.h.b16 %v6015
          %v7440 = vunpack.c.l.b16 %v6016
          %v7441 = vunpack.c.h.b16 %v6016
          %v7442 = vunpack.c.l.b16 %v6017
          %v7443 = vunpack.c.h.b16 %v6017
          %v7444 = vunpack.c.l.b16 %v6018
          %v7445 = vunpack.c.h.b16 %v6018
          %v7446 = vunpack.c.l.b16 %v6019
          %v7447 = vunpack.c.h.b16 %v6019
          %v7448 = vunpack.c.l.b16 %v6020
          %v7449 = vunpack.c.h.b16 %v6020
          %v7450 = vunpack.c.l.b16 %v6021
          %v7451 = vunpack.c.h.b16 %v6021
          %v7452 = vunpack.c.l.b16 %v6022
          %v7453 = vunpack.c.h.b16 %v6022
          %v7454 = vunpack.c.l.b16 %v6023
          %v7455 = vunpack.c.h.b16 %v6023
          %v7456 = vunpack.c.l.b16 %v6024
          %v7457 = vunpack.c.h.b16 %v6024
          %v7458 = vunpack.c.l.b16 %v6025
          %v7459 = vunpack.c.h.b16 %v6025
          %v7460 = vunpack.c.l.b16 %v6026
          %v7461 = vunpack.c.h.b16 %v6026
          %v7462 = vunpack.c.l.b16 %v6027
          %v7463 = vunpack.c.h.b16 %v6027
          %v7464 = vunpack.c.l.b16 %v6028
          %v7465 = vunpack.c.h.b16 %v6028
          %v7466 = vunpack.c.l.b16 %v6029
          %v7467 = vunpack.c.h.b16 %v6029
          %v7468 = vunpack.c.l.b16 %v6030
          %v7469 = vunpack.c.h.b16 %v6030
          %v7470 = vunpack.c.l.b16 %v6031
          %v7471 = vunpack.c.h.b16 %v6031
          %v7472 = vunpack.c.l.b16 %v6032
          %v7473 = vunpack.c.h.b16 %v6032
          %v7474 = vunpack.c.l.b16 %v6033
          %v7475 = vunpack.c.h.b16 %v6033
          %v7476 = vunpack.c.l.b16 %v6034
          %v7477 = vunpack.c.h.b16 %v6034
          %v7478 = vunpack.c.l.b16 %v6035
          %v7479 = vunpack.c.h.b16 %v6035
          %v7480 = vunpack.c.l.b16 %v6036
          %v7481 = vunpack.c.h.b16 %v6036
          %v7482 = vunpack.c.l.b16 %v6037
          %v7483 = vunpack.c.h.b16 %v6037
          %v7484 = vunpack.c.l.b16 %v6038
          %v7485 = vunpack.c.h.b16 %v6038
          %v7486 = vunpack.c.l.b16 %v6039
          %v7487 = vunpack.c.h.b16 %v6039
          %v7488 = vunpack.c.l.b16 %v6040
          %v7489 = vunpack.c.h.b16 %v6040
          %v7490 = vunpack.c.l.b16 %v6041
          %v7491 = vunpack.c.h.b16 %v6041
          %v7492 = vunpack.c.l.b16 %v6042
          %v7493 = vunpack.c.h.b16 %v6042
          %v7494 = vunpack.c.l.b16 %v6043
          %v7495 = vunpack.c.h.b16 %v6043
          %v7496 = vunpack.c.l.b16 %v6044
          %v7497 = vunpack.c.h.b16 %v6044
          %v7498 = vunpack.c.l.b16 %v6045
          %v7499 = vunpack.c.h.b16 %v6045
          %v7500 = vunpack.c.l.b16 %v6046
          %v7501 = vunpack.c.h.b16 %v6046
          %v7502 = vunpack.c.l.b16 %v6047
          %v7503 = vunpack.c.h.b16 %v6047
          %v7504 = vunpack.c.l.b16 %v6048
          %v7505 = vunpack.c.h.b16 %v6048
          %v7506 = vunpack.c.l.b16 %v6049
          %v7507 = vunpack.c.h.b16 %v6049
          %v7508 = vunpack.c.l.b16 %v6050
          %v7509 = vunpack.c.h.b16 %v6050
          %v7510 = vunpack.c.l.b16 %v6051
          %v7511 = vunpack.c.h.b16 %v6051
          %v7512 = vunpack.c.l.b16 %v6052
          %v7513 = vunpack.c.h.b16 %v6052
          %v7514 = vunpack.c.l.b16 %v6053
          %v7515 = vunpack.c.h.b16 %v6053
          %v7516 = vunpack.c.l.b16 %v6054
          %v7517 = vunpack.c.h.b16 %v6054
          %v7518 = vunpack.c.l.b16 %v6055
          %v7519 = vunpack.c.h.b16 %v6055
          %v7520 = vunpack.c.l.b16 %v6056
          %v7521 = vunpack.c.h.b16 %v6056
          %v7522 = vunpack.c.l.b16 %v6057
          %v7523 = vunpack.c.h.b16 %v6057
          %v7524 = vunpack.c.l.b16 %v6058
          %v7525 = vunpack.c.h.b16 %v6058
          %v7526 = vunpack.c.l.b16 %v6059
          %v7527 = vunpack.c.h.b16 %v6059
          %v7528 = vunpack.c.l.b16 %v6060
          %v7529 = vunpack.c.h.b16 %v6060
          %v7530 = vunpack.c.l.b16 %v6061
          %v7531 = vunpack.c.h.b16 %v6061
          %v7532 = vunpack.c.l.b16 %v6062
          %v7533 = vunpack.c.h.b16 %v6062
          %v7534 = vunpack.c.l.b16 %v6063
          %v7535 = vunpack.c.h.b16 %v6063
          %v7536 = vunpack.c.l.b16 %v6064
          %v7537 = vunpack.c.h.b16 %v6064
          %v7538 = vunpack.c.l.b16 %v6065
          %v7539 = vunpack.c.h.b16 %v6065
          %v7540 = vunpack.c.l.b16 %v6066
          %v7541 = vunpack.c.h.b16 %v6066
          %v7542 = vunpack.c.l.b16 %v6067
          %v7543 = vunpack.c.h.b16 %v6067
          %v7544 = vunpack.c.l.b16 %v6068
          %v7545 = vunpack.c.h.b16 %v6068
          %v7546 = vunpack.c.l.b16 %v6069
          %v7547 = vunpack.c.h.b16 %v6069
          %v7548 = vunpack.c.l.b16 %v6070
          %v7549 = vunpack.c.h.b16 %v6070
          %v7550 = vunpack.c.l.b16 %v6071
          %v7551 = vunpack.c.h.b16 %v6071
          %v7552 = vunpack.c.l.b16 %v6072
          %v7553 = vunpack.c.h.b16 %v6072
          %v7554 = vunpack.c.l.b16 %v6073
          %v7555 = vunpack.c.h.b16 %v6073
          %v7556 = vunpack.c.l.b16 %v6074
          %v7557 = vunpack.c.h.b16 %v6074
          %v7558 = vunpack.c.l.b16 %v6075
          %v7559 = vunpack.c.h.b16 %v6075
          %v7560 = vunpack.c.l.b16 %v6076
          %v7561 = vunpack.c.h.b16 %v6076
          %v7562 = vunpack.c.l.b16 %v6077
          %v7563 = vunpack.c.h.b16 %v6077
          %v7564 = vunpack.c.l.b16 %v6078
          %v7565 = vunpack.c.h.b16 %v6078
          %v7566 = vunpack.c.l.b16 %v6079
          %v7567 = vunpack.c.h.b16 %v6079
          %v7568 = vunpack.c.l.b16 %v6080
          %v7569 = vunpack.c.h.b16 %v6080
          %v7570 = vunpack.c.l.b16 %v6081
          %v7571 = vunpack.c.h.b16 %v6081
          %v7572 = vunpack.c.l.b16 %v6082
          %v7573 = vunpack.c.h.b16 %v6082
          %v7574 = vunpack.c.l.b16 %v6083
          %v7575 = vunpack.c.h.b16 %v6083
          %v7576 = vunpack.c.l.b16 %v6084
          %v7577 = vunpack.c.h.b16 %v6084
          %v7578 = vunpack.c.l.b16 %v6085
          %v7579 = vunpack.c.h.b16 %v6085
          %v7580 = vunpack.c.l.b16 %v6086
          %v7581 = vunpack.c.h.b16 %v6086
          %v7582 = vunpack.c.l.b16 %v6087
          %v7583 = vunpack.c.h.b16 %v6087
          %v7584 = vunpack.c.l.b16 %v6088
          %v7585 = vunpack.c.h.b16 %v6088
          %v7586 = vunpack.c.l.b16 %v6089
          %v7587 = vunpack.c.h.b16 %v6089
          %v7588 = vunpack.c.l.b16 %v6090
          %v7589 = vunpack.c.h.b16 %v6090
          %v7590 = vunpack.c.l.b16 %v6091
          %v7591 = vunpack.c.h.b16 %v6091
          %v7592 = vunpack.c.l.b16 %v6092
          %v7593 = vunpack.c.h.b16 %v6092
          %v7594 = vunpack.c.l.b16 %v6093
          %v7595 = vunpack.c.h.b16 %v6093
          %v7596 = vunpack.c.l.b16 %v6094
          %v7597 = vunpack.c.h.b16 %v6094
          %v7598 = vunpack.c.l.b16 %v6095
          %v7599 = vunpack.c.h.b16 %v6095
          %v7600 = vunpack.c.l.b16 %v6096
          %v7601 = vunpack.c.h.b16 %v6096
          %v7602 = vunpack.c.l.b16 %v6097
          %v7603 = vunpack.c.h.b16 %v6097
          %v7604 = vunpack.c.l.b16 %v6098
          %v7605 = vunpack.c.h.b16 %v6098
          %v7606 = vunpack.c.l.b16 %v6099
          %v7607 = vunpack.c.h.b16 %v6099
          %v7608 = vunpack.c.l.b16 %v6100
          %v7609 = vunpack.c.h.b16 %v6100
          %v7610 = vunpack.c.l.b16 %v6101
          %v7611 = vunpack.c.h.b16 %v6101
          %v7612 = vunpack.c.l.b16 %v6102
          %v7613 = vunpack.c.h.b16 %v6102
          %v7614 = vunpack.c.l.b16 %v6103
          %v7615 = vunpack.c.h.b16 %v6103
          %v7616 = vunpack.c.l.b16 %v6104
          %v7617 = vunpack.c.h.b16 %v6104
          %v7618 = vunpack.c.l.b16 %v6105
          %v7619 = vunpack.c.h.b16 %v6105
          %v7620 = vunpack.c.l.b16 %v6106
          %v7621 = vunpack.c.h.b16 %v6106
          %v7622 = vunpack.c.l.b16 %v6107
          %v7623 = vunpack.c.h.b16 %v6107
          %v7624 = vunpack.c.l.b16 %v6108
          %v7625 = vunpack.c.h.b16 %v6108
          %v7626 = vunpack.c.l.b16 %v6109
          %v7627 = vunpack.c.h.b16 %v6109
          %v7628 = vunpack.c.l.b16 %v6110
          %v7629 = vunpack.c.h.b16 %v6110
          %v7630 = vunpack.c.l.b16 %v6111
          %v7631 = vunpack.c.h.b16 %v6111
          %v7632 = vunpack.c.l.b16 %v6112
          %v7633 = vunpack.c.h.b16 %v6112
          %v7634 = vunpack.c.l.b16 %v6113
          %v7635 = vunpack.c.h.b16 %v6113
          %v7636 = vunpack.c.l.b16 %v6114
          %v7637 = vunpack.c.h.b16 %v6114
          %v7638 = vunpack.c.l.b16 %v6115
          %v7639 = vunpack.c.h.b16 %v6115
          %v7640 = vunpack.c.l.b16 %v6116
          %v7641 = vunpack.c.h.b16 %v6116
          %v7642 = vunpack.c.l.b16 %v6117
          %v7643 = vunpack.c.h.b16 %v6117
          %v7644 = vunpack.c.l.b16 %v6118
          %v7645 = vunpack.c.h.b16 %v6118
          %v7646 = vunpack.c.l.b16 %v6119
          %v7647 = vunpack.c.h.b16 %v6119
          %v7648 = vunpack.c.l.b16 %v6120
          %v7649 = vunpack.c.h.b16 %v6120
          %v7650 = vunpack.c.l.b16 %v6121
          %v7651 = vunpack.c.h.b16 %v6121
          %v7652 = vunpack.c.l.b16 %v6122
          %v7653 = vunpack.c.h.b16 %v6122
          %v7654 = vunpack.c.l.b16 %v6123
          %v7655 = vunpack.c.h.b16 %v6123
          %v7656 = vunpack.c.l.b16 %v6124
          %v7657 = vunpack.c.h.b16 %v6124
          %v7658 = vunpack.c.l.b16 %v6125
          %v7659 = vunpack.c.h.b16 %v6125
          %v7660 = vunpack.c.l.b16 %v6126
          %v7661 = vunpack.c.h.b16 %v6126
          %v7662 = vunpack.c.l.b16 %v6127
          %v7663 = vunpack.c.h.b16 %v6127
          %v7664 = vunpack.c.l.b16 %v6128
          %v7665 = vunpack.c.h.b16 %v6128
          %v7666 = vunpack.c.l.b16 %v6129
          %v7667 = vunpack.c.h.b16 %v6129
          %v7668 = vunpack.c.l.b16 %v6130
          %v7669 = vunpack.c.h.b16 %v6130
          %v7670 = vunpack.c.l.b16 %v6131
          %v7671 = vunpack.c.h.b16 %v6131
          %v7672 = vunpack.c.l.b16 %v6132
          %v7673 = vunpack.c.h.b16 %v6132
          %v7674 = vunpack.c.l.b16 %v6133
          %v7675 = vunpack.c.h.b16 %v6133
          %v7676 = vunpack.c.l.b16 %v6134
          %v7677 = vunpack.c.h.b16 %v6134
          %v7678 = vunpack.c.l.b16 %v6135
          %v7679 = vunpack.c.h.b16 %v6135
          %v7680 = vunpack.c.l.b16 %v6136
          %v7681 = vunpack.c.h.b16 %v6136
          %v7682 = vunpack.c.l.b16 %v6137
          %v7683 = vunpack.c.h.b16 %v6137
          %v7684 = vunpack.c.l.b16 %v6138
          %v7685 = vunpack.c.h.b16 %v6138
          %v7686 = vunpack.c.l.b16 %v6139
          %v7687 = vunpack.c.h.b16 %v6139
          %v7688 = vunpack.c.l.b16 %v6140
          %v7689 = vunpack.c.h.b16 %v6140
          %v7690 = vunpack.c.l.b16 %v6141
          %v7691 = vunpack.c.h.b16 %v6141
          %v7692 = vunpack.c.l.b16 %v6142
          %v7693 = vunpack.c.h.b16 %v6142
          %v7694 = vunpack.c.l.b16 %v6143
          %v7695 = vunpack.c.h.b16 %v6143
          %v7696 = vunpack.c.l.b16 %v6144
          %v7697 = vunpack.c.h.b16 %v6144
          %v7698 = vunpack.c.l.b16 %v6145
          %v7699 = vunpack.c.h.b16 %v6145
          %v7700 = vunpack.c.l.b16 %v6146
          %v7701 = vunpack.c.h.b16 %v6146
          %v7702 = vunpack.c.l.b16 %v6147
          %v7703 = vunpack.c.h.b16 %v6147
          %v7704 = vunpack.c.l.b16 %v6148
          %v7705 = vunpack.c.h.b16 %v6148
          %v7706 = vunpack.c.l.b16 %v6149
          %v7707 = vunpack.c.h.b16 %v6149
          %v7708 = vpack.c.b16 %v6688, %v6684
          %v7709 = vpack.c.b16 %v6689, %v6685
          %v7710 = vpack.c.b16 %v6690, %v6686
          %v7711 = vpack.c.b16 %v6691, %v6687
          %v7712 = vpack.c.b16 %v6696, %v6692
          %v7713 = vpack.c.b16 %v6697, %v6693
          %v7714 = vpack.c.b16 %v6698, %v6694
          %v7715 = vpack.c.b16 %v6699, %v6695
          %v7716 = vpack.c.b16 %v6704, %v6700
          %v7717 = vpack.c.b16 %v6705, %v6701
          %v7718 = vpack.c.b16 %v6706, %v6702
          %v7719 = vpack.c.b16 %v6707, %v6703
          %v7720 = vpack.c.b16 %v6712, %v6708
          %v7721 = vpack.c.b16 %v6713, %v6709
          %v7722 = vpack.c.b16 %v6714, %v6710
          %v7723 = vpack.c.b16 %v6715, %v6711
          %v7724 = vpack.c.b16 %v6720, %v6716
          %v7725 = vpack.c.b16 %v6721, %v6717
          %v7726 = vpack.c.b16 %v6722, %v6718
          %v7727 = vpack.c.b16 %v6723, %v6719
          %v7728 = vpack.c.b16 %v6728, %v6724
          %v7729 = vpack.c.b16 %v6729, %v6725
          %v7730 = vpack.c.b16 %v6730, %v6726
          %v7731 = vpack.c.b16 %v6731, %v6727
          %v7732 = vpack.c.b16 %v6736, %v6732
          %v7733 = vpack.c.b16 %v6737, %v6733
          %v7734 = vpack.c.b16 %v6738, %v6734
          %v7735 = vpack.c.b16 %v6739, %v6735
          %v7736 = vpack.c.b16 %v6744, %v6740
          %v7737 = vpack.c.b16 %v6745, %v6741
          %v7738 = vpack.c.b16 %v6746, %v6742
          %v7739 = vpack.c.b16 %v6747, %v6743
          %v7740 = vpack.c.b16 %v6752, %v6748
          %v7741 = vpack.c.b16 %v6753, %v6749
          %v7742 = vpack.c.b16 %v6754, %v6750
          %v7743 = vpack.c.b16 %v6755, %v6751
          %v7744 = vpack.c.b16 %v6760, %v6756
          %v7745 = vpack.c.b16 %v6761, %v6757
          %v7746 = vpack.c.b16 %v6762, %v6758
          %v7747 = vpack.c.b16 %v6763, %v6759
          %v7748 = vpack.c.b16 %v6768, %v6764
          %v7749 = vpack.c.b16 %v6769, %v6765
          %v7750 = vpack.c.b16 %v6770, %v6766
          %v7751 = vpack.c.b16 %v6771, %v6767
          %v7752 = vpack.c.b16 %v6776, %v6772
          %v7753 = vpack.c.b16 %v6777, %v6773
          %v7754 = vpack.c.b16 %v6778, %v6774
          %v7755 = vpack.c.b16 %v6779, %v6775
          %v7756 = vpack.c.b16 %v6784, %v6780
          %v7757 = vpack.c.b16 %v6785, %v6781
          %v7758 = vpack.c.b16 %v6786, %v6782
          %v7759 = vpack.c.b16 %v6787, %v6783
          %v7760 = vpack.c.b16 %v6792, %v6788
          %v7761 = vpack.c.b16 %v6793, %v6789
          %v7762 = vpack.c.b16 %v6794, %v6790
          %v7763 = vpack.c.b16 %v6795, %v6791
          %v7764 = vpack.c.b16 %v6800, %v6796
          %v7765 = vpack.c.b16 %v6801, %v6797
          %v7766 = vpack.c.b16 %v6802, %v6798
          %v7767 = vpack.c.b16 %v6803, %v6799
          %v7768 = vpack.c.b16 %v6808, %v6804
          %v7769 = vpack.c.b16 %v6809, %v6805
          %v7770 = vpack.c.b16 %v6810, %v6806
          %v7771 = vpack.c.b16 %v6811, %v6807
          %v7772 = vpack.c.b16 %v6816, %v6812
          %v7773 = vpack.c.b16 %v6817, %v6813
          %v7774 = vpack.c.b16 %v6818, %v6814
          %v7775 = vpack.c.b16 %v6819, %v6815
          %v7776 = vpack.c.b16 %v6824, %v6820
          %v7777 = vpack.c.b16 %v6825, %v6821
          %v7778 = vpack.c.b16 %v6826, %v6822
          %v7779 = vpack.c.b16 %v6827, %v6823
          %v7780 = vpack.c.b16 %v6832, %v6828
          %v7781 = vpack.c.b16 %v6833, %v6829
          %v7782 = vpack.c.b16 %v6834, %v6830
          %v7783 = vpack.c.b16 %v6835, %v6831
          %v7784 = vpack.c.b16 %v6840, %v6836
          %v7785 = vpack.c.b16 %v6841, %v6837
          %v7786 = vpack.c.b16 %v6842, %v6838
          %v7787 = vpack.c.b16 %v6843, %v6839
          %v7788 = vpack.c.b16 %v6848, %v6844
          %v7789 = vpack.c.b16 %v6849, %v6845
          %v7790 = vpack.c.b16 %v6850, %v6846
          %v7791 = vpack.c.b16 %v6851, %v6847
          %v7792 = vpack.c.b16 %v6856, %v6852
          %v7793 = vpack.c.b16 %v6857, %v6853
          %v7794 = vpack.c.b16 %v6858, %v6854
          %v7795 = vpack.c.b16 %v6859, %v6855
          %v7796 = vpack.c.b16 %v6864, %v6860
          %v7797 = vpack.c.b16 %v6865, %v6861
          %v7798 = vpack.c.b16 %v6866, %v6862
          %v7799 = vpack.c.b16 %v6867, %v6863
          %v7800 = vpack.c.b16 %v6872, %v6868
          %v7801 = vpack.c.b16 %v6873, %v6869
          %v7802 = vpack.c.b16 %v6874, %v6870
          %v7803 = vpack.c.b16 %v6875, %v6871
          %v7804 = vpack.c.b16 %v6880, %v6876
          %v7805 = vpack.c.b16 %v6881, %v6877
          %v7806 = vpack.c.b16 %v6882, %v6878
          %v7807 = vpack.c.b16 %v6883, %v6879
          %v7808 = vpack.c.b16 %v6888, %v6884
          %v7809 = vpack.c.b16 %v6889, %v6885
          %v7810 = vpack.c.b16 %v6890, %v6886
          %v7811 = vpack.c.b16 %v6891, %v6887
          %v7812 = vpack.c.b16 %v6896, %v6892
          %v7813 = vpack.c.b16 %v6897, %v6893
          %v7814 = vpack.c.b16 %v6898, %v6894
          %v7815 = vpack.c.b16 %v6899, %v6895
          %v7816 = vpack.c.b16 %v6904, %v6900
          %v7817 = vpack.c.b16 %v6905, %v6901
          %v7818 = vpack.c.b16 %v6906, %v6902
          %v7819 = vpack.c.b16 %v6907, %v6903
          %v7820 = vpack.c.b16 %v6912, %v6908
          %v7821 = vpack.c.b16 %v6913, %v6909
          %v7822 = vpack.c.b16 %v6914, %v6910
          %v7823 = vpack.c.b16 %v6915, %v6911
          %v7824 = vpack.c.b16 %v6920, %v6916
          %v7825 = vpack.c.b16 %v6921, %v6917
          %v7826 = vpack.c.b16 %v6922, %v6918
          %v7827 = vpack.c.b16 %v6923, %v6919
          %v7828 = vpack.c.b16 %v6928, %v6924
          %v7829 = vpack.c.b16 %v6929, %v6925
          %v7830 = vpack.c.b16 %v6930, %v6926
          %v7831 = vpack.c.b16 %v6931, %v6927
          %v7832 = vpack.c.b16 %v6936, %v6932
          %v7833 = vpack.c.b16 %v6937, %v6933
          %v7834 = vpack.c.b16 %v6938, %v6934
          %v7835 = vpack.c.b16 %v6939, %v6935
          %v7836 = vpack.c.b16 %v6944, %v6940
          %v7837 = vpack.c.b16 %v6945, %v6941
          %v7838 = vpack.c.b16 %v6946, %v6942
          %v7839 = vpack.c.b16 %v6947, %v6943
          %v7840 = vpack.c.b16 %v6952, %v6948
          %v7841 = vpack.c.b16 %v6953, %v6949
          %v7842 = vpack.c.b16 %v6954, %v6950
          %v7843 = vpack.c.b16 %v6955, %v6951
          %v7844 = vpack.c.b16 %v6960, %v6956
          %v7845 = vpack.c.b16 %v6961, %v6957
          %v7846 = vpack.c.b16 %v6962, %v6958
          %v7847 = vpack.c.b16 %v6963, %v6959
          %v7848 = vpack.c.b16 %v6968, %v6964
          %v7849 = vpack.c.b16 %v6969, %v6965
          %v7850 = vpack.c.b16 %v6970, %v6966
          %v7851 = vpack.c.b16 %v6971, %v6967
          %v7852 = vpack.c.b16 %v6976, %v6972
          %v7853 = vpack.c.b16 %v6977, %v6973
          %v7854 = vpack.c.b16 %v6978, %v6974
          %v7855 = vpack.c.b16 %v6979, %v6975
          %v7856 = vpack.c.b16 %v6984, %v6980
          %v7857 = vpack.c.b16 %v6985, %v6981
          %v7858 = vpack.c.b16 %v6986, %v6982
          %v7859 = vpack.c.b16 %v6987, %v6983
          %v7860 = vpack.c.b16 %v6992, %v6988
          %v7861 = vpack.c.b16 %v6993, %v6989
          %v7862 = vpack.c.b16 %v6994, %v6990
          %v7863 = vpack.c.b16 %v6995, %v6991
          %v7864 = vpack.c.b16 %v7000, %v6996
          %v7865 = vpack.c.b16 %v7001, %v6997
          %v7866 = vpack.c.b16 %v7002, %v6998
          %v7867 = vpack.c.b16 %v7003, %v6999
          %v7868 = vpack.c.b16 %v7008, %v7004
          %v7869 = vpack.c.b16 %v7009, %v7005
          %v7870 = vpack.c.b16 %v7010, %v7006
          %v7871 = vpack.c.b16 %v7011, %v7007
          %v7872 = vpack.c.b16 %v7016, %v7012
          %v7873 = vpack.c.b16 %v7017, %v7013
          %v7874 = vpack.c.b16 %v7018, %v7014
          %v7875 = vpack.c.b16 %v7019, %v7015
          %v7876 = vpack.c.b16 %v7024, %v7020
          %v7877 = vpack.c.b16 %v7025, %v7021
          %v7878 = vpack.c.b16 %v7026, %v7022
          %v7879 = vpack.c.b16 %v7027, %v7023
          %v7880 = vpack.c.b16 %v7032, %v7028
          %v7881 = vpack.c.b16 %v7033, %v7029
          %v7882 = vpack.c.b16 %v7034, %v7030
          %v7883 = vpack.c.b16 %v7035, %v7031
          %v7884 = vpack.c.b16 %v7040, %v7036
          %v7885 = vpack.c.b16 %v7041, %v7037
          %v7886 = vpack.c.b16 %v7042, %v7038
          %v7887 = vpack.c.b16 %v7043, %v7039
          %v7888 = vpack.c.b16 %v7048, %v7044
          %v7889 = vpack.c.b16 %v7049, %v7045
          %v7890 = vpack.c.b16 %v7050, %v7046
          %v7891 = vpack.c.b16 %v7051, %v7047
          %v7892 = vpack.c.b16 %v7056, %v7052
          %v7893 = vpack.c.b16 %v7057, %v7053
          %v7894 = vpack.c.b16 %v7058, %v7054
          %v7895 = vpack.c.b16 %v7059, %v7055
          %v7896 = vpack.c.b16 %v7064, %v7060
          %v7897 = vpack.c.b16 %v7065, %v7061
          %v7898 = vpack.c.b16 %v7066, %v7062
          %v7899 = vpack.c.b16 %v7067, %v7063
          %v7900 = vpack.c.b16 %v7072, %v7068
          %v7901 = vpack.c.b16 %v7073, %v7069
          %v7902 = vpack.c.b16 %v7074, %v7070
          %v7903 = vpack.c.b16 %v7075, %v7071
          %v7904 = vpack.c.b16 %v7080, %v7076
          %v7905 = vpack.c.b16 %v7081, %v7077
          %v7906 = vpack.c.b16 %v7082, %v7078
          %v7907 = vpack.c.b16 %v7083, %v7079
          %v7908 = vpack.c.b16 %v7088, %v7084
          %v7909 = vpack.c.b16 %v7089, %v7085
          %v7910 = vpack.c.b16 %v7090, %v7086
          %v7911 = vpack.c.b16 %v7091, %v7087
          %v7912 = vpack.c.b16 %v7096, %v7092
          %v7913 = vpack.c.b16 %v7097, %v7093
          %v7914 = vpack.c.b16 %v7098, %v7094
          %v7915 = vpack.c.b16 %v7099, %v7095
          %v7916 = vpack.c.b16 %v7104, %v7100
          %v7917 = vpack.c.b16 %v7105, %v7101
          %v7918 = vpack.c.b16 %v7106, %v7102
          %v7919 = vpack.c.b16 %v7107, %v7103
          %v7920 = vpack.c.b16 %v7112, %v7108
          %v7921 = vpack.c.b16 %v7113, %v7109
          %v7922 = vpack.c.b16 %v7114, %v7110
          %v7923 = vpack.c.b16 %v7115, %v7111
          %v7924 = vpack.c.b16 %v7120, %v7116
          %v7925 = vpack.c.b16 %v7121, %v7117
          %v7926 = vpack.c.b16 %v7122, %v7118
          %v7927 = vpack.c.b16 %v7123, %v7119
          %v7928 = vpack.c.b16 %v7128, %v7124
          %v7929 = vpack.c.b16 %v7129, %v7125
          %v7930 = vpack.c.b16 %v7130, %v7126
          %v7931 = vpack.c.b16 %v7131, %v7127
          %v7932 = vpack.c.b16 %v7136, %v7132
          %v7933 = vpack.c.b16 %v7137, %v7133
          %v7934 = vpack.c.b16 %v7138, %v7134
          %v7935 = vpack.c.b16 %v7139, %v7135
          %v7936 = vpack.c.b16 %v7144, %v7140
          %v7937 = vpack.c.b16 %v7145, %v7141
          %v7938 = vpack.c.b16 %v7146, %v7142
          %v7939 = vpack.c.b16 %v7147, %v7143
          %v7940 = vpack.c.b16 %v7152, %v7148
          %v7941 = vpack.c.b16 %v7153, %v7149
          %v7942 = vpack.c.b16 %v7154, %v7150
          %v7943 = vpack.c.b16 %v7155, %v7151
          %v7944 = vpack.c.b16 %v7160, %v7156
          %v7945 = vpack.c.b16 %v7161, %v7157
          %v7946 = vpack.c.b16 %v7162, %v7158
          %v7947 = vpack.c.b16 %v7163, %v7159
          %v7948 = vpack.c.b16 %v7168, %v7164
          %v7949 = vpack.c.b16 %v7169, %v7165
          %v7950 = vpack.c.b16 %v7170, %v7166
          %v7951 = vpack.c.b16 %v7171, %v7167
          %v7952 = vpack.c.b16 %v7176, %v7172
          %v7953 = vpack.c.b16 %v7177, %v7173
          %v7954 = vpack.c.b16 %v7178, %v7174
          %v7955 = vpack.c.b16 %v7179, %v7175
          %v7956 = vpack.c.b16 %v7184, %v7180
          %v7957 = vpack.c.b16 %v7185, %v7181
          %v7958 = vpack.c.b16 %v7186, %v7182
          %v7959 = vpack.c.b16 %v7187, %v7183
          %v7960 = vpack.c.b16 %v7192, %v7188
          %v7961 = vpack.c.b16 %v7193, %v7189
          %v7962 = vpack.c.b16 %v7194, %v7190
          %v7963 = vpack.c.b16 %v7195, %v7191
          %v7964 = vpack.c.b16 %v7200, %v7196
          %v7965 = vpack.c.b16 %v7201, %v7197
          %v7966 = vpack.c.b16 %v7202, %v7198
          %v7967 = vpack.c.b16 %v7203, %v7199
          %v7968 = vpack.c.b16 %v7208, %v7204
          %v7969 = vpack.c.b16 %v7209, %v7205
          %v7970 = vpack.c.b16 %v7210, %v7206
          %v7971 = vpack.c.b16 %v7211, %v7207
          %v7972 = vpack.c.b16 %v7216, %v7212
          %v7973 = vpack.c.b16 %v7217, %v7213
          %v7974 = vpack.c.b16 %v7218, %v7214
          %v7975 = vpack.c.b16 %v7219, %v7215
          %v7976 = vpack.c.b16 %v7224, %v7220
          %v7977 = vpack.c.b16 %v7225, %v7221
          %v7978 = vpack.c.b16 %v7226, %v7222
          %v7979 = vpack.c.b16 %v7227, %v7223
          %v7980 = vpack.c.b16 %v7232, %v7228
          %v7981 = vpack.c.b16 %v7233, %v7229
          %v7982 = vpack.c.b16 %v7234, %v7230
          %v7983 = vpack.c.b16 %v7235, %v7231
          %v7984 = vpack.c.b16 %v7240, %v7236
          %v7985 = vpack.c.b16 %v7241, %v7237
          %v7986 = vpack.c.b16 %v7242, %v7238
          %v7987 = vpack.c.b16 %v7243, %v7239
          %v7988 = vpack.c.b16 %v7248, %v7244
          %v7989 = vpack.c.b16 %v7249, %v7245
          %v7990 = vpack.c.b16 %v7250, %v7246
          %v7991 = vpack.c.b16 %v7251, %v7247
          %v7992 = vpack.c.b16 %v7256, %v7252
          %v7993 = vpack.c.b16 %v7257, %v7253
          %v7994 = vpack.c.b16 %v7258, %v7254
          %v7995 = vpack.c.b16 %v7259, %v7255
          %v7996 = vpack.c.b16 %v7264, %v7260
          %v7997 = vpack.c.b16 %v7265, %v7261
          %v7998 = vpack.c.b16 %v7266, %v7262
          %v7999 = vpack.c.b16 %v7267, %v7263
          %v8000 = vpack.c.b16 %v7272, %v7268
          %v8001 = vpack.c.b16 %v7273, %v7269
          %v8002 = vpack.c.b16 %v7274, %v7270
          %v8003 = vpack.c.b16 %v7275, %v7271
          %v8004 = vpack.c.b16 %v7280, %v7276
          %v8005 = vpack.c.b16 %v7281, %v7277
          %v8006 = vpack.c.b16 %v7282, %v7278
          %v8007 = vpack.c.b16 %v7283, %v7279
          %v8008 = vpack.c.b16 %v7288, %v7284
          %v8009 = vpack.c.b16 %v7289, %v7285
          %v8010 = vpack.c.b16 %v7290, %v7286
          %v8011 = vpack.c.b16 %v7291, %v7287
          %v8012 = vpack.c.b16 %v7296, %v7292
          %v8013 = vpack.c.b16 %v7297, %v7293
          %v8014 = vpack.c.b16 %v7298, %v7294
          %v8015 = vpack.c.b16 %v7299, %v7295
          %v8016 = vpack.c.b16 %v7304, %v7300
          %v8017 = vpack.c.b16 %v7305, %v7301
          %v8018 = vpack.c.b16 %v7306, %v7302
          %v8019 = vpack.c.b16 %v7307, %v7303
          %v8020 = vpack.c.b16 %v7312, %v7308
          %v8021 = vpack.c.b16 %v7313, %v7309
          %v8022 = vpack.c.b16 %v7314, %v7310
          %v8023 = vpack.c.b16 %v7315, %v7311
          %v8024 = vpack.c.b16 %v7320, %v7316
          %v8025 = vpack.c.b16 %v7321, %v7317
          %v8026 = vpack.c.b16 %v7322, %v7318
          %v8027 = vpack.c.b16 %v7323, %v7319
          %v8028 = vpack.c.b16 %v7328, %v7324
          %v8029 = vpack.c.b16 %v7329, %v7325
          %v8030 = vpack.c.b16 %v7330, %v7326
          %v8031 = vpack.c.b16 %v7331, %v7327
          %v8032 = vpack.c.b16 %v7336, %v7332
          %v8033 = vpack.c.b16 %v7337, %v7333
          %v8034 = vpack.c.b16 %v7338, %v7334
          %v8035 = vpack.c.b16 %v7339, %v7335
          %v8036 = vpack.c.b16 %v7344, %v7340
          %v8037 = vpack.c.b16 %v7345, %v7341
          %v8038 = vpack.c.b16 %v7346, %v7342
          %v8039 = vpack.c.b16 %v7347, %v7343
          %v8040 = vpack.c.b16 %v7352, %v7348
          %v8041 = vpack.c.b16 %v7353, %v7349
          %v8042 = vpack.c.b16 %v7354, %v7350
          %v8043 = vpack.c.b16 %v7355, %v7351
          %v8044 = vpack.c.b16 %v7360, %v7356
          %v8045 = vpack.c.b16 %v7361, %v7357
          %v8046 = vpack.c.b16 %v7362, %v7358
          %v8047 = vpack.c.b16 %v7363, %v7359
          %v8048 = vpack.c.b16 %v7368, %v7364
          %v8049 = vpack.c.b16 %v7369, %v7365
          %v8050 = vpack.c.b16 %v7370, %v7366
          %v8051 = vpack.c.b16 %v7371, %v7367
          %v8052 = vpack.c.b16 %v7376, %v7372
          %v8053 = vpack.c.b16 %v7377, %v7373
          %v8054 = vpack.c.b16 %v7378, %v7374
          %v8055 = vpack.c.b16 %v7379, %v7375
          %v8056 = vpack.c.b16 %v7384, %v7380
          %v8057 = vpack.c.b16 %v7385, %v7381
          %v8058 = vpack.c.b16 %v7386, %v7382
          %v8059 = vpack.c.b16 %v7387, %v7383
          %v8060 = vpack.c.b16 %v7392, %v7388
          %v8061 = vpack.c.b16 %v7393, %v7389
          %v8062 = vpack.c.b16 %v7394, %v7390
          %v8063 = vpack.c.b16 %v7395, %v7391
          %v8064 = vpack.c.b16 %v7400, %v7396
          %v8065 = vpack.c.b16 %v7401, %v7397
          %v8066 = vpack.c.b16 %v7402, %v7398
          %v8067 = vpack.c.b16 %v7403, %v7399
          %v8068 = vpack.c.b16 %v7408, %v7404
          %v8069 = vpack.c.b16 %v7409, %v7405
          %v8070 = vpack.c.b16 %v7410, %v7406
          %v8071 = vpack.c.b16 %v7411, %v7407
          %v8072 = vpack.c.b16 %v7416, %v7412
          %v8073 = vpack.c.b16 %v7417, %v7413
          %v8074 = vpack.c.b16 %v7418, %v7414
          %v8075 = vpack.c.b16 %v7419, %v7415
          %v8076 = vpack.c.b16 %v7424, %v7420
          %v8077 = vpack.c.b16 %v7425, %v7421
          %v8078 = vpack.c.b16 %v7426, %v7422
          %v8079 = vpack.c.b16 %v7427, %v7423
          %v8080 = vpack.c.b16 %v7432, %v7428
          %v8081 = vpack.c.b16 %v7433, %v7429
          %v8082 = vpack.c.b16 %v7434, %v7430
          %v8083 = vpack.c.b16 %v7435, %v7431
          %v8084 = vpack.c.b16 %v7440, %v7436
          %v8085 = vpack.c.b16 %v7441, %v7437
          %v8086 = vpack.c.b16 %v7442, %v7438
          %v8087 = vpack.c.b16 %v7443, %v7439
          %v8088 = vpack.c.b16 %v7448, %v7444
          %v8089 = vpack.c.b16 %v7449, %v7445
          %v8090 = vpack.c.b16 %v7450, %v7446
          %v8091 = vpack.c.b16 %v7451, %v7447
          %v8092 = vpack.c.b16 %v7456, %v7452
          %v8093 = vpack.c.b16 %v7457, %v7453
          %v8094 = vpack.c.b16 %v7458, %v7454
          %v8095 = vpack.c.b16 %v7459, %v7455
          %v8096 = vpack.c.b16 %v7464, %v7460
          %v8097 = vpack.c.b16 %v7465, %v7461
          %v8098 = vpack.c.b16 %v7466, %v7462
          %v8099 = vpack.c.b16 %v7467, %v7463
          %v8100 = vpack.c.b16 %v7472, %v7468
          %v8101 = vpack.c.b16 %v7473, %v7469
          %v8102 = vpack.c.b16 %v7474, %v7470
          %v8103 = vpack.c.b16 %v7475, %v7471
          %v8104 = vpack.c.b16 %v7480, %v7476
          %v8105 = vpack.c.b16 %v7481, %v7477
          %v8106 = vpack.c.b16 %v7482, %v7478
          %v8107 = vpack.c.b16 %v7483, %v7479
          %v8108 = vpack.c.b16 %v7488, %v7484
          %v8109 = vpack.c.b16 %v7489, %v7485
          %v8110 = vpack.c.b16 %v7490, %v7486
          %v8111 = vpack.c.b16 %v7491, %v7487
          %v8112 = vpack.c.b16 %v7496, %v7492
          %v8113 = vpack.c.b16 %v7497, %v7493
          %v8114 = vpack.c.b16 %v7498, %v7494
          %v8115 = vpack.c.b16 %v7499, %v7495
          %v8116 = vpack.c.b16 %v7504, %v7500
          %v8117 = vpack.c.b16 %v7505, %v7501
          %v8118 = vpack.c.b16 %v7506, %v7502
          %v8119 = vpack.c.b16 %v7507, %v7503
          %v8120 = vpack.c.b16 %v7512, %v7508
          %v8121 = vpack.c.b16 %v7513, %v7509
          %v8122 = vpack.c.b16 %v7514, %v7510
          %v8123 = vpack.c.b16 %v7515, %v7511
          %v8124 = vpack.c.b16 %v7520, %v7516
          %v8125 = vpack.c.b16 %v7521, %v7517
          %v8126 = vpack.c.b16 %v7522, %v7518
          %v8127 = vpack.c.b16 %v7523, %v7519
          %v8128 = vpack.c.b16 %v7528, %v7524
          %v8129 = vpack.c.b16 %v7529, %v7525
          %v8130 = vpack.c.b16 %v7530, %v7526
          %v8131 = vpack.c.b16 %v7531, %v7527
          %v8132 = vpack.c.b16 %v7536, %v7532
          %v8133 = vpack.c.b16 %v7537, %v7533
          %v8134 = vpack.c.b16 %v7538, %v7534
          %v8135 = vpack.c.b16 %v7539, %v7535
          %v8136 = vpack.c.b16 %v7544, %v7540
          %v8137 = vpack.c.b16 %v7545, %v7541
          %v8138 = vpack.c.b16 %v7546, %v7542
          %v8139 = vpack.c.b16 %v7547, %v7543
          %v8140 = vpack.c.b16 %v7552, %v7548
          %v8141 = vpack.c.b16 %v7553, %v7549
          %v8142 = vpack.c.b16 %v7554, %v7550
          %v8143 = vpack.c.b16 %v7555, %v7551
          %v8144 = vpack.c.b16 %v7560, %v7556
          %v8145 = vpack.c.b16 %v7561, %v7557
          %v8146 = vpack.c.b16 %v7562, %v7558
          %v8147 = vpack.c.b16 %v7563, %v7559
          %v8148 = vpack.c.b16 %v7568, %v7564
          %v8149 = vpack.c.b16 %v7569, %v7565
          %v8150 = vpack.c.b16 %v7570, %v7566
          %v8151 = vpack.c.b16 %v7571, %v7567
          %v8152 = vpack.c.b16 %v7576, %v7572
          %v8153 = vpack.c.b16 %v7577, %v7573
          %v8154 = vpack.c.b16 %v7578, %v7574
          %v8155 = vpack.c.b16 %v7579, %v7575
          %v8156 = vpack.c.b16 %v7584, %v7580
          %v8157 = vpack.c.b16 %v7585, %v7581
          %v8158 = vpack.c.b16 %v7586, %v7582
          %v8159 = vpack.c.b16 %v7587, %v7583
          %v8160 = vpack.c.b16 %v7592, %v7588
          %v8161 = vpack.c.b16 %v7593, %v7589
          %v8162 = vpack.c.b16 %v7594, %v7590
          %v8163 = vpack.c.b16 %v7595, %v7591
          %v8164 = vpack.c.b16 %v7600, %v7596
          %v8165 = vpack.c.b16 %v7601, %v7597
          %v8166 = vpack.c.b16 %v7602, %v7598
          %v8167 = vpack.c.b16 %v7603, %v7599
          %v8168 = vpack.c.b16 %v7608, %v7604
          %v8169 = vpack.c.b16 %v7609, %v7605
          %v8170 = vpack.c.b16 %v7610, %v7606
          %v8171 = vpack.c.b16 %v7611, %v7607
          %v8172 = vpack.c.b16 %v7616, %v7612
          %v8173 = vpack.c.b16 %v7617, %v7613
          %v8174 = vpack.c.b16 %v7618, %v7614
          %v8175 = vpack.c.b16 %v7619, %v7615
          %v8176 = vpack.c.b16 %v7624, %v7620
          %v8177 = vpack.c.b16 %v7625, %v7621
          %v8178 = vpack.c.b16 %v7626, %v7622
          %v8179 = vpack.c.b16 %v7627, %v7623
          %v8180 = vpack.c.b16 %v7632, %v7628
          %v8181 = vpack.c.b16 %v7633, %v7629
          %v8182 = vpack.c.b16 %v7634, %v7630
          %v8183 = vpack.c.b16 %v7635, %v7631
          %v8184 = vpack.c.b16 %v7640, %v7636
          %v8185 = vpack.c.b16 %v7641, %v7637
          %v8186 = vpack.c.b16 %v7642, %v7638
          %v8187 = vpack.c.b16 %v7643, %v7639
          %v8188 = vpack.c.b16 %v7648, %v7644
          %v8189 = vpack.c.b16 %v7649, %v7645
          %v8190 = vpack.c.b16 %v7650, %v7646
          %v8191 = vpack.c.b16 %v7651, %v7647
          %v8192 = vpack.c.b16 %v7656, %v7652
          %v8193 = vpack.c.b16 %v7657, %v7653
          %v8194 = vpack.c.b16 %v7658, %v7654
          %v8195 = vpack.c.b16 %v7659, %v7655
          %v8196 = vpack.c.b16 %v7664, %v7660
          %v8197 = vpack.c.b16 %v7665, %v7661
          %v8198 = vpack.c.b16 %v7666, %v7662
          %v8199 = vpack.c.b16 %v7667, %v7663
          %v8200 = vpack.c.b16 %v7672, %v7668
          %v8201 = vpack.c.b16 %v7673, %v7669
          %v8202 = vpack.c.b16 %v7674, %v7670
          %v8203 = vpack.c.b16 %v7675, %v7671
          %v8204 = vpack.c.b16 %v7680, %v7676
          %v8205 = vpack.c.b16 %v7681, %v7677
          %v8206 = vpack.c.b16 %v7682, %v7678
          %v8207 = vpack.c.b16 %v7683, %v7679
          %v8208 = vpack.c.b16 %v7688, %v7684
          %v8209 = vpack.c.b16 %v7689, %v7685
          %v8210 = vpack.c.b16 %v7690, %v7686
          %v8211 = vpack.c.b16 %v7691, %v7687
          %v8212 = vpack.c.b16 %v7696, %v7692
          %v8213 = vpack.c.b16 %v7697, %v7693
          %v8214 = vpack.c.b16 %v7698, %v7694
          %v8215 = vpack.c.b16 %v7699, %v7695
          %v8216 = vpack.c.b16 %v7704, %v7700
          %v8217 = vpack.c.b16 %v7705, %v7701
          %v8218 = vpack.c.b16 %v7706, %v7702
          %v8219 = vpack.c.b16 %v7707, %v7703
          %8732 = vmatprep.subr.bf16.mxu0 %v7709
          %8733 = vmatpush1.bf16.msra.mxu0 %v7708
          %8734 = vmatprep.subr.bf16.mxu0 %v7713
          %8735 = vmatpush1.bf16.msra.mxu0 %v7712
          %8736 = vmatprep.subr.bf16.mxu0 %v7717
          %8737 = vmatpush1.bf16.msra.mxu0 %v7716
          %8738 = vmatprep.subr.bf16.mxu0 %v7721
          %8739 = vmatpush1.bf16.msra.mxu0 %v7720
          %8740 = vmatprep.subr.bf16.mxu0 %v7725
          %8741 = vmatpush1.bf16.msra.mxu0 %v7724
          %8742 = vmatprep.subr.bf16.mxu0 %v7729
          %8743 = vmatpush1.bf16.msra.mxu0 %v7728
          %8744 = vmatprep.subr.bf16.mxu0 %v7733
          %8745 = vmatpush1.bf16.msra.mxu0 %v7732
          %8746 = vmatprep.subr.bf16.mxu0 %v7737
          %8747 = vmatpush1.bf16.msra.mxu0 %v7736
          %8748 = vmatprep.subr.bf16.mxu0 %v7741
          %8749 = vmatpush1.bf16.msra.mxu0 %v7740
          %8750 = vmatprep.subr.bf16.mxu0 %v7745
          %8751 = vmatpush1.bf16.msra.mxu0 %v7744
          %8752 = vmatprep.subr.bf16.mxu0 %v7749
          %8753 = vmatpush1.bf16.msra.mxu0 %v7748
          %8754 = vmatprep.subr.bf16.mxu0 %v7753
          %8755 = vmatpush1.bf16.msra.mxu0 %v7752
          %8756 = vmatprep.subr.bf16.mxu0 %v7757
          %8757 = vmatpush1.bf16.msra.mxu0 %v7756
          %8758 = vmatprep.subr.bf16.mxu0 %v7761
          %8759 = vmatpush1.bf16.msra.mxu0 %v7760
          %8760 = vmatprep.subr.bf16.mxu0 %v7765
          %8761 = vmatpush1.bf16.msra.mxu0 %v7764
          %8762 = vmatprep.subr.bf16.mxu0 %v7769
          %8763 = vmatpush1.bf16.msra.mxu0 %v7768
          %8764 = vmatprep.mubr.bf16.mxu0 %v5559
          %8765 = vmatmul.mubr.bf16.gmra.mrb[0].mxu0 %v5558
          %v8766 = vpop.f32.mrb[0].mxu0
          %v8767 = vadd.f32 %v6155, %v8766
          %v8768 = vpop.f32.mrb[0].mxu0
          %v8769 = vadd.f32 %v6159, %v8768
          %v8770 = vpop.f32.mrb[0].mxu0
          %v8771 = vadd.f32 %v6155, %v8770
          %v8772 = vpop.f32.mrb[0].mxu0
          %v8773 = vadd.f32 %v6159, %v8772
          %8774 = vmatprep.mubr.bf16.mxu0 %v5575
          %8775 = vmatmul.mubr.bf16.gmra.mrb[0].mxu0 %v5574
          %v8776 = vpop.f32.mrb[0].mxu0
          %v8777 = vadd.f32 %v6155, %v8776
          %v8778 = vpop.f32.mrb[0].mxu0
          %v8779 = vadd.f32 %v6159, %v8778
          %v8780 = vpop.f32.mrb[0].mxu0
          %v8781 = vadd.f32 %v6155, %v8780
          %v8782 = vpop.f32.mrb[0].mxu0
          %v8783 = vadd.f32 %v6159, %v8782
          %8784 = vmatprep.mubr.bf16.mxu0 %v5591
          %8785 = vmatmul.mubr.bf16.gmra.mrb[0].mxu0 %v5590
          %v8786 = vpop.f32.mrb[0].mxu0
          %v8787 = vadd.f32 %v6155, %v8786
          %v8788 = vpop.f32.mrb[0].mxu0
          %v8789 = vadd.f32 %v6159, %v8788
          %v8790 = vpop.f32.mrb[0].mxu0
          %v8791 = vadd.f32 %v6155, %v8790
          %v8792 = vpop.f32.mrb[0].mxu0
          %v8793 = vadd.f32 %v6159, %v8792
          %8794 = vmatprep.mubr.bf16.mxu0 %v5607
          %8795 = vmatmul.mubr.bf16.gmra.mrb[0].mxu0 %v5606
          %v8796 = vpop.f32.mrb[0].mxu0
          %v8797 = vadd.f32 %v6155, %v8796
          %v8798 = vpop.f32.mrb[0].mxu0
          %v8799 = vadd.f32 %v6159, %v8798
          %v8800 = vpop.f32.mrb[0].mxu0
          %v8801 = vadd.f32 %v6155, %v8800
          %v8802 = vpop.f32.mrb[0].mxu0
          %v8803 = vadd.f32 %v6159, %v8802
          %8804 = vmatprep.mubr.bf16.mxu0 %v5623
          %8805 = vmatmul.mubr.bf16.gmra.mrb[0].mxu0 %v5622
          %v8806 = vpop.f32.mrb[0].mxu0
          %v8807 = vadd.f32 %v6155, %v8806
          %v8808 = vpop.f32.mrb[0].mxu0
          %v8809 = vadd.f32 %v6159, %v8808
          %v8810 = vpop.f32.mrb[0].mxu0
          %v8811 = vpop.f32.mrb[0].mxu0
          %8812 = vdwg.mxu0
          %8813 = vmatprep.subr.bf16.mxu0 %v7773
          %8814 = vmatpush1.bf16.msra.mxu0 %v7772
          %8815 = vmatprep.subr.bf16.mxu0 %v7777
          %8816 = vmatpush1.bf16.msra.mxu0 %v7776
          %8817 = vmatprep.subr.bf16.mxu0 %v7781
          %8818 = vmatpush1.bf16.msra.mxu0 %v7780
          %8819 = vmatprep.subr.bf16.mxu0 %v7785
          %8820 = vmatpush1.bf16.msra.mxu0 %v7784
          %8821 = vmatprep.subr.bf16.mxu0 %v7789
          %8822 = vmatpush1.bf16.msra.mxu0 %v7788
          %8823 = vmatprep.subr.bf16.mxu0 %v7793
          %8824 = vmatpush1.bf16.msra.mxu0 %v7792
          %8825 = vmatprep.subr.bf16.mxu0 %v7797
          %8826 = vmatpush1.bf16.msra.mxu0 %v7796
          %8827 = vmatprep.subr.bf16.mxu0 %v7801
          %8828 = vmatpush1.bf16.msra.mxu0 %v7800
          %8829 = vmatprep.subr.bf16.mxu0 %v7805
          %8830 = vmatpush1.bf16.msra.mxu0 %v7804
          %8831 = vmatprep.subr.bf16.mxu0 %v7809
          %8832 = vmatpush1.bf16.msra.mxu0 %v7808
          %8833 = vmatprep.subr.bf16.mxu0 %v7813
          %8834 = vmatpush1.bf16.msra.mxu0 %v7812
          %8835 = vmatprep.subr.bf16.mxu0 %v7817
          %8836 = vmatpush1.bf16.msra.mxu0 %v7816
          %8837 = vmatprep.subr.bf16.mxu0 %v7821
          %8838 = vmatpush1.bf16.msra.mxu0 %v7820
          %8839 = vmatprep.subr.bf16.mxu0 %v7825
          %8840 = vmatpush1.bf16.msra.mxu0 %v7824
          %8841 = vmatprep.subr.bf16.mxu0 %v7829
          %8842 = vmatpush1.bf16.msra.mxu0 %v7828
          %8843 = vmatprep.subr.bf16.mxu0 %v7833
          %8844 = vmatpush1.bf16.msra.mxu0 %v7832
          %8845 = vmatprep.mubr.bf16.mxu0 %v5561
          %8846 = vmatmul.mubr.bf16.gmra.mrb[0].mxu0 %v5560
          %v8847 = vpop.f32.mrb[0].mxu0
          %v8848 = vadd.f32 %v8767, %v8847
          %v8849 = vpop.f32.mrb[0].mxu0
          %v8850 = vadd.f32 %v8769, %v8849
          %v8851 = vpop.f32.mrb[0].mxu0
          %v8852 = vadd.f32 %v8771, %v8851
          %v8853 = vpop.f32.mrb[0].mxu0
          %v8854 = vadd.f32 %v8773, %v8853
          %8855 = vmatprep.mubr.bf16.mxu0 %v5577
          %8856 = vmatmul.mubr.bf16.gmra.mrb[0].mxu0 %v5576
          %v8857 = vpop.f32.mrb[0].mxu0
          %v8858 = vadd.f32 %v8777, %v8857
          %v8859 = vpop.f32.mrb[0].mxu0
          %v8860 = vadd.f32 %v8779, %v8859
          %v8861 = vpop.f32.mrb[0].mxu0
          %v8862 = vadd.f32 %v8781, %v8861
          %v8863 = vpop.f32.mrb[0].mxu0
          %v8864 = vadd.f32 %v8783, %v8863
          %8865 = vmatprep.mubr.bf16.mxu0 %v5593
          %8866 = vmatmul.mubr.bf16.gmra.mrb[0].mxu0 %v5592
          %v8867 = vpop.f32.mrb[0].mxu0
          %v8868 = vadd.f32 %v8787, %v8867
          %v8869 = vpop.f32.mrb[0].mxu0
          %v8870 = vadd.f32 %v8789, %v8869
          %v8871 = vpop.f32.mrb[0].mxu0
          %v8872 = vadd.f32 %v8791, %v8871
          %v8873 = vpop.f32.mrb[0].mxu0
          %v8874 = vadd.f32 %v8793, %v8873
          %8875 = vmatprep.mubr.bf16.mxu0 %v5609
          %8876 = vmatmul.mubr.bf16.gmra.mrb[0].mxu0 %v5608
          %v8877 = vpop.f32.mrb[0].mxu0
          %v8878 = vadd.f32 %v8797, %v8877
          %v8879 = vpop.f32.mrb[0].mxu0
          %v8880 = vadd.f32 %v8799, %v8879
          %v8881 = vpop.f32.mrb[0].mxu0
          %v8882 = vadd.f32 %v8801, %v8881
          %v8883 = vpop.f32.mrb[0].mxu0
          %v8884 = vadd.f32 %v8803, %v8883
          %8885 = vmatprep.mubr.bf16.mxu0 %v5625
          %8886 = vmatmul.mubr.bf16.gmra.mrb[0].mxu0 %v5624
          %v8887 = vpop.f32.mrb[0].mxu0
          %v8888 = vadd.f32 %v8807, %v8887
          %v8889 = vpop.f32.mrb[0].mxu0
          %v8890 = vadd.f32 %v8809, %v8889
          %v8891 = vpop.f32.mrb[0].mxu0
          %v8892 = vpop.f32.mrb[0].mxu0
          %8893 = vdwg.mxu0
          %8894 = vmatprep.subr.bf16.mxu0 %v7837
          %8895 = vmatpush1.bf16.msra.mxu0 %v7836
          %8896 = vmatprep.subr.bf16.mxu0 %v7841
          %8897 = vmatpush1.bf16.msra.mxu0 %v7840
          %8898 = vmatprep.subr.bf16.mxu0 %v7845
          %8899 = vmatpush1.bf16.msra.mxu0 %v7844
          %8900 = vmatprep.subr.bf16.mxu0 %v7849
          %8901 = vmatpush1.bf16.msra.mxu0 %v7848
          %8902 = vmatprep.subr.bf16.mxu0 %v7853
          %8903 = vmatpush1.bf16.msra.mxu0 %v7852
          %8904 = vmatprep.subr.bf16.mxu0 %v7857
          %8905 = vmatpush1.bf16.msra.mxu0 %v7856
          %8906 = vmatprep.subr.bf16.mxu0 %v7861
          %8907 = vmatpush1.bf16.msra.mxu0 %v7860
          %8908 = vmatprep.subr.bf16.mxu0 %v7865
          %8909 = vmatpush1.bf16.msra.mxu0 %v7864
          %8910 = vmatprep.subr.bf16.mxu0 %v7869
          %8911 = vmatpush1.bf16.msra.mxu0 %v7868
          %8912 = vmatprep.subr.bf16.mxu0 %v7873
          %8913 = vmatpush1.bf16.msra.mxu0 %v7872
          %8914 = vmatprep.subr.bf16.mxu0 %v7877
          %8915 = vmatpush1.bf16.msra.mxu0 %v7876
          %8916 = vmatprep.subr.bf16.mxu0 %v7881
          %8917 = vmatpush1.bf16.msra.mxu0 %v7880
          %8918 = vmatprep.subr.bf16.mxu0 %v7885
          %8919 = vmatpush1.bf16.msra.mxu0 %v7884
          %8920 = vmatprep.subr.bf16.mxu0 %v7889
          %8921 = vmatpush1.bf16.msra.mxu0 %v7888
          %8922 = vmatprep.subr.bf16.mxu0 %v7893
          %8923 = vmatpush1.bf16.msra.mxu0 %v7892
          %8924 = vmatprep.subr.bf16.mxu0 %v7897
          %8925 = vmatpush1.bf16.msra.mxu0 %v7896
          %8926 = vmatprep.mubr.bf16.mxu0 %v5563
          %8927 = vmatmul.mubr.bf16.gmra.mrb[0].mxu0 %v5562
          %v8928 = vpop.f32.mrb[0].mxu0
          %v8929 = vadd.f32 %v8848, %v8928
          %v8930 = vpop.f32.mrb[0].mxu0
          %v8931 = vadd.f32 %v8850, %v8930
          %v8932 = vpop.f32.mrb[0].mxu0
          %v8933 = vadd.f32 %v8852, %v8932
          %v8934 = vpop.f32.mrb[0].mxu0
          %v8935 = vadd.f32 %v8854, %v8934
          %8936 = vmatprep.mubr.bf16.mxu0 %v5579
          %8937 = vmatmul.mubr.bf16.gmra.mrb[0].mxu0 %v5578
          %v8938 = vpop.f32.mrb[0].mxu0
          %v8939 = vadd.f32 %v8858, %v8938
          %v8940 = vpop.f32.mrb[0].mxu0
          %v8941 = vadd.f32 %v8860, %v8940
          %v8942 = vpop.f32.mrb[0].mxu0
          %v8943 = vadd.f32 %v8862, %v8942
          %v8944 = vpop.f32.mrb[0].mxu0
          %v8945 = vadd.f32 %v8864, %v8944
          %8946 = vmatprep.mubr.bf16.mxu0 %v5595
          %8947 = vmatmul.mubr.bf16.gmra.mrb[0].mxu0 %v5594
          %v8948 = vpop.f32.mrb[0].mxu0
          %v8949 = vadd.f32 %v8868, %v8948
          %v8950 = vpop.f32.mrb[0].mxu0
          %v8951 = vadd.f32 %v8870, %v8950
          %v8952 = vpop.f32.mrb[0].mxu0
          %v8953 = vadd.f32 %v8872, %v8952
          %v8954 = vpop.f32.mrb[0].mxu0
          %v8955 = vadd.f32 %v8874, %v8954
          %8956 = vmatprep.mubr.bf16.mxu0 %v5611
          %8957 = vmatmul.mubr.bf16.gmra.mrb[0].mxu0 %v5610
          %v8958 = vpop.f32.mrb[0].mxu0
          %v8959 = vadd.f32 %v8878, %v8958
          %v8960 = vpop.f32.mrb[0].mxu0
          %v8961 = vadd.f32 %v8880, %v8960
          %v8962 = vpop.f32.mrb[0].mxu0
          %v8963 = vadd.f32 %v8882, %v8962
          %v8964 = vpop.f32.mrb[0].mxu0
          %v8965 = vadd.f32 %v8884, %v8964
          %8966 = vmatprep.mubr.bf16.mxu0 %v5627
          %8967 = vmatmul.mubr.bf16.gmra.mrb[0].mxu0 %v5626
          %v8968 = vpop.f32.mrb[0].mxu0
          %v8969 = vadd.f32 %v8888, %v8968
          %v8970 = vpop.f32.mrb[0].mxu0
          %v8971 = vadd.f32 %v8890, %v8970
          %v8972 = vpop.f32.mrb[0].mxu0
          %v8973 = vpop.f32.mrb[0].mxu0
          %8974 = vdwg.mxu0
          %8975 = vmatprep.subr.bf16.mxu0 %v7901
          %8976 = vmatpush1.bf16.msra.mxu0 %v7900
          %8977 = vmatprep.subr.bf16.mxu0 %v7905
          %8978 = vmatpush1.bf16.msra.mxu0 %v7904
          %8979 = vmatprep.subr.bf16.mxu0 %v7909
          %8980 = vmatpush1.bf16.msra.mxu0 %v7908
          %8981 = vmatprep.subr.bf16.mxu0 %v7913
          %8982 = vmatpush1.bf16.msra.mxu0 %v7912
          %8983 = vmatprep.subr.bf16.mxu0 %v7917
          %8984 = vmatpush1.bf16.msra.mxu0 %v7916
          %8985 = vmatprep.subr.bf16.mxu0 %v7921
          %8986 = vmatpush1.bf16.msra.mxu0 %v7920
          %8987 = vmatprep.subr.bf16.mxu0 %v7925
          %8988 = vmatpush1.bf16.msra.mxu0 %v7924
          %8989 = vmatprep.subr.bf16.mxu0 %v7929
          %8990 = vmatpush1.bf16.msra.mxu0 %v7928
          %8991 = vmatprep.subr.bf16.mxu0 %v7933
          %8992 = vmatpush1.bf16.msra.mxu0 %v7932
          %8993 = vmatprep.subr.bf16.mxu0 %v7937
          %8994 = vmatpush1.bf16.msra.mxu0 %v7936
          %8995 = vmatprep.subr.bf16.mxu0 %v7941
          %8996 = vmatpush1.bf16.msra.mxu0 %v7940
          %8997 = vmatprep.subr.bf16.mxu0 %v7945
          %8998 = vmatpush1.bf16.msra.mxu0 %v7944
          %8999 = vmatprep.subr.bf16.mxu0 %v7949
          %9000 = vmatpush1.bf16.msra.mxu0 %v7948
          %9001 = vmatprep.subr.bf16.mxu0 %v7953
          %9002 = vmatpush1.bf16.msra.mxu0 %v7952
          %9003 = vmatprep.subr.bf16.mxu0 %v7957
          %9004 = vmatpush1.bf16.msra.mxu0 %v7956
          %9005 = vmatprep.subr.bf16.mxu0 %v7961
          %9006 = vmatpush1.bf16.msra.mxu0 %v7960
          %9007 = vmatprep.mubr.bf16.mxu0 %v5565
          %9008 = vmatmul.mubr.bf16.gmra.mrb[0].mxu0 %v5564
          %v9009 = vpop.f32.mrb[0].mxu0
          %v9010 = vadd.f32 %v8929, %v9009
          %v9011 = vpop.f32.mrb[0].mxu0
          %v9012 = vadd.f32 %v8931, %v9011
          %v9013 = vpop.f32.mrb[0].mxu0
          %v9014 = vadd.f32 %v8933, %v9013
          %v9015 = vpop.f32.mrb[0].mxu0
          %v9016 = vadd.f32 %v8935, %v9015
          %9017 = vmatprep.mubr.bf16.mxu0 %v5581
          %9018 = vmatmul.mubr.bf16.gmra.mrb[0].mxu0 %v5580
          %v9019 = vpop.f32.mrb[0].mxu0
          %v9020 = vadd.f32 %v8939, %v9019
          %v9021 = vpop.f32.mrb[0].mxu0
          %v9022 = vadd.f32 %v8941, %v9021
          %v9023 = vpop.f32.mrb[0].mxu0
          %v9024 = vadd.f32 %v8943, %v9023
          %v9025 = vpop.f32.mrb[0].mxu0
          %v9026 = vadd.f32 %v8945, %v9025
          %9027 = vmatprep.mubr.bf16.mxu0 %v5597
          %9028 = vmatmul.mubr.bf16.gmra.mrb[0].mxu0 %v5596
          %v9029 = vpop.f32.mrb[0].mxu0
          %v9030 = vadd.f32 %v8949, %v9029
          %v9031 = vpop.f32.mrb[0].mxu0
          %v9032 = vadd.f32 %v8951, %v9031
          %v9033 = vpop.f32.mrb[0].mxu0
          %v9034 = vadd.f32 %v8953, %v9033
          %v9035 = vpop.f32.mrb[0].mxu0
          %v9036 = vadd.f32 %v8955, %v9035
          %9037 = vmatprep.mubr.bf16.mxu0 %v5613
          %9038 = vmatmul.mubr.bf16.gmra.mrb[0].mxu0 %v5612
          %v9039 = vpop.f32.mrb[0].mxu0
          %v9040 = vadd.f32 %v8959, %v9039
          %v9041 = vpop.f32.mrb[0].mxu0
          %v9042 = vadd.f32 %v8961, %v9041
          %v9043 = vpop.f32.mrb[0].mxu0
          %v9044 = vadd.f32 %v8963, %v9043
          %v9045 = vpop.f32.mrb[0].mxu0
          %v9046 = vadd.f32 %v8965, %v9045
          %9047 = vmatprep.mubr.bf16.mxu0 %v5629
          %9048 = vmatmul.mubr.bf16.gmra.mrb[0].mxu0 %v5628
          %v9049 = vpop.f32.mrb[0].mxu0
          %v9050 = vadd.f32 %v8969, %v9049
          %v9051 = vpop.f32.mrb[0].mxu0
          %v9052 = vadd.f32 %v8971, %v9051
          %v9053 = vpop.f32.mrb[0].mxu0
          %v9054 = vpop.f32.mrb[0].mxu0
          %9055 = vdwg.mxu0
          %9056 = vmatprep.subr.bf16.mxu0 %v7965
          %9057 = vmatpush1.bf16.msra.mxu0 %v7964
          %9058 = vmatprep.subr.bf16.mxu0 %v7969
          %9059 = vmatpush1.bf16.msra.mxu0 %v7968
          %9060 = vmatprep.subr.bf16.mxu0 %v7973
          %9061 = vmatpush1.bf16.msra.mxu0 %v7972
          %9062 = vmatprep.subr.bf16.mxu0 %v7977
          %9063 = vmatpush1.bf16.msra.mxu0 %v7976
          %9064 = vmatprep.subr.bf16.mxu0 %v7981
          %9065 = vmatpush1.bf16.msra.mxu0 %v7980
          %9066 = vmatprep.subr.bf16.mxu0 %v7985
          %9067 = vmatpush1.bf16.msra.mxu0 %v7984
          %9068 = vmatprep.subr.bf16.mxu0 %v7989
          %9069 = vmatpush1.bf16.msra.mxu0 %v7988
          %9070 = vmatprep.subr.bf16.mxu0 %v7993
          %9071 = vmatpush1.bf16.msra.mxu0 %v7992
          %9072 = vmatprep.subr.bf16.mxu0 %v7997
          %9073 = vmatpush1.bf16.msra.mxu0 %v7996
          %9074 = vmatprep.subr.bf16.mxu0 %v8001
          %9075 = vmatpush1.bf16.msra.mxu0 %v8000
          %9076 = vmatprep.subr.bf16.mxu0 %v8005
          %9077 = vmatpush1.bf16.msra.mxu0 %v8004
          %9078 = vmatprep.subr.bf16.mxu0 %v8009
          %9079 = vmatpush1.bf16.msra.mxu0 %v8008
          %9080 = vmatprep.subr.bf16.mxu0 %v8013
          %9081 = vmatpush1.bf16.msra.mxu0 %v8012
          %9082 = vmatprep.subr.bf16.mxu0 %v8017
          %9083 = vmatpush1.bf16.msra.mxu0 %v8016
          %9084 = vmatprep.subr.bf16.mxu0 %v8021
          %9085 = vmatpush1.bf16.msra.mxu0 %v8020
          %9086 = vmatprep.subr.bf16.mxu0 %v8025
          %9087 = vmatpush1.bf16.msra.mxu0 %v8024
          %9088 = vmatprep.mubr.bf16.mxu0 %v5567
          %9089 = vmatmul.mubr.bf16.gmra.mrb[0].mxu0 %v5566
          %v9090 = vpop.f32.mrb[0].mxu0
          %v9091 = vadd.f32 %v9010, %v9090
          %v9092 = vpop.f32.mrb[0].mxu0
          %v9093 = vadd.f32 %v9012, %v9092
          %v9094 = vpop.f32.mrb[0].mxu0
          %v9095 = vadd.f32 %v9014, %v9094
          %v9096 = vpop.f32.mrb[0].mxu0
          %v9097 = vadd.f32 %v9016, %v9096
          %9098 = vmatprep.mubr.bf16.mxu0 %v5583
          %9099 = vmatmul.mubr.bf16.gmra.mrb[0].mxu0 %v5582
          %v9100 = vpop.f32.mrb[0].mxu0
          %v9101 = vadd.f32 %v9020, %v9100
          %v9102 = vpop.f32.mrb[0].mxu0
          %v9103 = vadd.f32 %v9022, %v9102
          %v9104 = vpop.f32.mrb[0].mxu0
          %v9105 = vadd.f32 %v9024, %v9104
          %v9106 = vpop.f32.mrb[0].mxu0
          %v9107 = vadd.f32 %v9026, %v9106
          %9108 = vmatprep.mubr.bf16.mxu0 %v5599
          %9109 = vmatmul.mubr.bf16.gmra.mrb[0].mxu0 %v5598
          %v9110 = vpop.f32.mrb[0].mxu0
          %v9111 = vadd.f32 %v9030, %v9110
          %v9112 = vpop.f32.mrb[0].mxu0
          %v9113 = vadd.f32 %v9032, %v9112
          %v9114 = vpop.f32.mrb[0].mxu0
          %v9115 = vadd.f32 %v9034, %v9114
          %v9116 = vpop.f32.mrb[0].mxu0
          %v9117 = vadd.f32 %v9036, %v9116
          %9118 = vmatprep.mubr.bf16.mxu0 %v5615
          %9119 = vmatmul.mubr.bf16.gmra.mrb[0].mxu0 %v5614
          %v9120 = vpop.f32.mrb[0].mxu0
          %v9121 = vadd.f32 %v9040, %v9120
          %v9122 = vpop.f32.mrb[0].mxu0
          %v9123 = vadd.f32 %v9042, %v9122
          %v9124 = vpop.f32.mrb[0].mxu0
          %v9125 = vadd.f32 %v9044, %v9124
          %v9126 = vpop.f32.mrb[0].mxu0
          %v9127 = vadd.f32 %v9046, %v9126
          %9128 = vmatprep.mubr.bf16.mxu0 %v5631
          %9129 = vmatmul.mubr.bf16.gmra.mrb[0].mxu0 %v5630
          %v9130 = vpop.f32.mrb[0].mxu0
          %v9131 = vadd.f32 %v9050, %v9130
          %v9132 = vpop.f32.mrb[0].mxu0
          %v9133 = vadd.f32 %v9052, %v9132
          %v9134 = vpop.f32.mrb[0].mxu0
          %v9135 = vpop.f32.mrb[0].mxu0
          %9136 = vdwg.mxu0
          %9137 = vmatprep.subr.bf16.mxu0 %v8029
          %9138 = vmatpush1.bf16.msra.mxu0 %v8028
          %9139 = vmatprep.subr.bf16.mxu0 %v8033
          %9140 = vmatpush1.bf16.msra.mxu0 %v8032
          %9141 = vmatprep.subr.bf16.mxu0 %v8037
          %9142 = vmatpush1.bf16.msra.mxu0 %v8036
          %9143 = vmatprep.subr.bf16.mxu0 %v8041
          %9144 = vmatpush1.bf16.msra.mxu0 %v8040
          %9145 = vmatprep.subr.bf16.mxu0 %v8045
          %9146 = vmatpush1.bf16.msra.mxu0 %v8044
          %9147 = vmatprep.subr.bf16.mxu0 %v8049
          %9148 = vmatpush1.bf16.msra.mxu0 %v8048
          %9149 = vmatprep.subr.bf16.mxu0 %v8053
          %9150 = vmatpush1.bf16.msra.mxu0 %v8052
          %9151 = vmatprep.subr.bf16.mxu0 %v8057
          %9152 = vmatpush1.bf16.msra.mxu0 %v8056
          %9153 = vmatprep.subr.bf16.mxu0 %v8061
          %9154 = vmatpush1.bf16.msra.mxu0 %v8060
          %9155 = vmatprep.subr.bf16.mxu0 %v8065
          %9156 = vmatpush1.bf16.msra.mxu0 %v8064
          %9157 = vmatprep.subr.bf16.mxu0 %v8069
          %9158 = vmatpush1.bf16.msra.mxu0 %v8068
          %9159 = vmatprep.subr.bf16.mxu0 %v8073
          %9160 = vmatpush1.bf16.msra.mxu0 %v8072
          %9161 = vmatprep.subr.bf16.mxu0 %v8077
          %9162 = vmatpush1.bf16.msra.mxu0 %v8076
          %9163 = vmatprep.subr.bf16.mxu0 %v8081
          %9164 = vmatpush1.bf16.msra.mxu0 %v8080
          %9165 = vmatprep.subr.bf16.mxu0 %v8085
          %9166 = vmatpush1.bf16.msra.mxu0 %v8084
          %9167 = vmatprep.subr.bf16.mxu0 %v8089
          %9168 = vmatpush1.bf16.msra.mxu0 %v8088
          %9169 = vmatprep.mubr.bf16.mxu0 %v5569
          %9170 = vmatmul.mubr.bf16.gmra.mrb[0].mxu0 %v5568
          %v9171 = vpop.f32.mrb[0].mxu0
          %v9172 = vadd.f32 %v9091, %v9171
          %v9173 = vpop.f32.mrb[0].mxu0
          %v9174 = vadd.f32 %v9093, %v9173
          %v9175 = vpop.f32.mrb[0].mxu0
          %v9176 = vadd.f32 %v9095, %v9175
          %v9177 = vpop.f32.mrb[0].mxu0
          %v9178 = vadd.f32 %v9097, %v9177
          %9179 = vmatprep.mubr.bf16.mxu0 %v5585
          %9180 = vmatmul.mubr.bf16.gmra.mrb[0].mxu0 %v5584
          %v9181 = vpop.f32.mrb[0].mxu0
          %v9182 = vadd.f32 %v9101, %v9181
          %v9183 = vpop.f32.mrb[0].mxu0
          %v9184 = vadd.f32 %v9103, %v9183
          %v9185 = vpop.f32.mrb[0].mxu0
          %v9186 = vadd.f32 %v9105, %v9185
          %v9187 = vpop.f32.mrb[0].mxu0
          %v9188 = vadd.f32 %v9107, %v9187
          %9189 = vmatprep.mubr.bf16.mxu0 %v5601
          %9190 = vmatmul.mubr.bf16.gmra.mrb[0].mxu0 %v5600
          %v9191 = vpop.f32.mrb[0].mxu0
          %v9192 = vadd.f32 %v9111, %v9191
          %v9193 = vpop.f32.mrb[0].mxu0
          %v9194 = vadd.f32 %v9113, %v9193
          %v9195 = vpop.f32.mrb[0].mxu0
          %v9196 = vadd.f32 %v9115, %v9195
          %v9197 = vpop.f32.mrb[0].mxu0
          %v9198 = vadd.f32 %v9117, %v9197
          %9199 = vmatprep.mubr.bf16.mxu0 %v5617
          %9200 = vmatmul.mubr.bf16.gmra.mrb[0].mxu0 %v5616
          %v9201 = vpop.f32.mrb[0].mxu0
          %v9202 = vadd.f32 %v9121, %v9201
          %v9203 = vpop.f32.mrb[0].mxu0
          %v9204 = vadd.f32 %v9123, %v9203
          %v9205 = vpop.f32.mrb[0].mxu0
          %v9206 = vadd.f32 %v9125, %v9205
          %v9207 = vpop.f32.mrb[0].mxu0
          %v9208 = vadd.f32 %v9127, %v9207
          %9209 = vmatprep.mubr.bf16.mxu0 %v5633
          %9210 = vmatmul.mubr.bf16.gmra.mrb[0].mxu0 %v5632
          %v9211 = vpop.f32.mrb[0].mxu0
          %v9212 = vadd.f32 %v9131, %v9211
          %v9213 = vpop.f32.mrb[0].mxu0
          %v9214 = vadd.f32 %v9133, %v9213
          %v9215 = vpop.f32.mrb[0].mxu0
          %v9216 = vpop.f32.mrb[0].mxu0
          %9217 = vdwg.mxu0
          %9218 = vmatprep.subr.bf16.mxu0 %v8093
          %9219 = vmatpush1.bf16.msra.mxu0 %v8092
          %9220 = vmatprep.subr.bf16.mxu0 %v8097
          %9221 = vmatpush1.bf16.msra.mxu0 %v8096
          %9222 = vmatprep.subr.bf16.mxu0 %v8101
          %9223 = vmatpush1.bf16.msra.mxu0 %v8100
          %9224 = vmatprep.subr.bf16.mxu0 %v8105
          %9225 = vmatpush1.bf16.msra.mxu0 %v8104
          %9226 = vmatprep.subr.bf16.mxu0 %v8109
          %9227 = vmatpush1.bf16.msra.mxu0 %v8108
          %9228 = vmatprep.subr.bf16.mxu0 %v8113
          %9229 = vmatpush1.bf16.msra.mxu0 %v8112
          %9230 = vmatprep.subr.bf16.mxu0 %v8117
          %9231 = vmatpush1.bf16.msra.mxu0 %v8116
          %9232 = vmatprep.subr.bf16.mxu0 %v8121
          %9233 = vmatpush1.bf16.msra.mxu0 %v8120
          %9234 = vmatprep.subr.bf16.mxu0 %v8125
          %9235 = vmatpush1.bf16.msra.mxu0 %v8124
          %9236 = vmatprep.subr.bf16.mxu0 %v8129
          %9237 = vmatpush1.bf16.msra.mxu0 %v8128
          %9238 = vmatprep.subr.bf16.mxu0 %v8133
          %9239 = vmatpush1.bf16.msra.mxu0 %v8132
          %9240 = vmatprep.subr.bf16.mxu0 %v8137
          %9241 = vmatpush1.bf16.msra.mxu0 %v8136
          %9242 = vmatprep.subr.bf16.mxu0 %v8141
          %9243 = vmatpush1.bf16.msra.mxu0 %v8140
          %9244 = vmatprep.subr.bf16.mxu0 %v8145
          %9245 = vmatpush1.bf16.msra.mxu0 %v8144
          %9246 = vmatprep.subr.bf16.mxu0 %v8149
          %9247 = vmatpush1.bf16.msra.mxu0 %v8148
          %9248 = vmatprep.subr.bf16.mxu0 %v8153
          %9249 = vmatpush1.bf16.msra.mxu0 %v8152
          %9250 = vmatprep.mubr.bf16.mxu0 %v5571
          %9251 = vmatmul.mubr.bf16.gmra.mrb[0].mxu0 %v5570
          %v9252 = vpop.f32.mrb[0].mxu0
          %v9253 = vadd.f32 %v9172, %v9252
          %v9254 = vpop.f32.mrb[0].mxu0
          %v9255 = vadd.f32 %v9174, %v9254
          %v9256 = vpop.f32.mrb[0].mxu0
          %v9257 = vadd.f32 %v9176, %v9256
          %v9258 = vpop.f32.mrb[0].mxu0
          %v9259 = vadd.f32 %v9178, %v9258
          %9260 = vmatprep.mubr.bf16.mxu0 %v5587
          %9261 = vmatmul.mubr.bf16.gmra.mrb[0].mxu0 %v5586
          %v9262 = vpop.f32.mrb[0].mxu0
          %v9263 = vadd.f32 %v9182, %v9262
          %v9264 = vpop.f32.mrb[0].mxu0
          %v9265 = vadd.f32 %v9184, %v9264
          %v9266 = vpop.f32.mrb[0].mxu0
          %v9267 = vadd.f32 %v9186, %v9266
          %v9268 = vpop.f32.mrb[0].mxu0
          %v9269 = vadd.f32 %v9188, %v9268
          %9270 = vmatprep.mubr.bf16.mxu0 %v5603
          %9271 = vmatmul.mubr.bf16.gmra.mrb[0].mxu0 %v5602
          %v9272 = vpop.f32.mrb[0].mxu0
          %v9273 = vadd.f32 %v9192, %v9272
          %v9274 = vpop.f32.mrb[0].mxu0
          %v9275 = vadd.f32 %v9194, %v9274
          %v9276 = vpop.f32.mrb[0].mxu0
          %v9277 = vadd.f32 %v9196, %v9276
          %v9278 = vpop.f32.mrb[0].mxu0
          %v9279 = vadd.f32 %v9198, %v9278
          %9280 = vmatprep.mubr.bf16.mxu0 %v5619
          %9281 = vmatmul.mubr.bf16.gmra.mrb[0].mxu0 %v5618
          %v9282 = vpop.f32.mrb[0].mxu0
          %v9283 = vadd.f32 %v9202, %v9282
          %v9284 = vpop.f32.mrb[0].mxu0
          %v9285 = vadd.f32 %v9204, %v9284
          %v9286 = vpop.f32.mrb[0].mxu0
          %v9287 = vadd.f32 %v9206, %v9286
          %v9288 = vpop.f32.mrb[0].mxu0
          %v9289 = vadd.f32 %v9208, %v9288
          %9290 = vmatprep.mubr.bf16.mxu0 %v5635
          %9291 = vmatmul.mubr.bf16.gmra.mrb[0].mxu0 %v5634
          %v9292 = vpop.f32.mrb[0].mxu0
          %v9293 = vadd.f32 %v9212, %v9292
          %v9294 = vpop.f32.mrb[0].mxu0
          %v9295 = vadd.f32 %v9214, %v9294
          %v9296 = vpop.f32.mrb[0].mxu0
          %v9297 = vpop.f32.mrb[0].mxu0
          %9298 = vdwg.mxu0
          %9299 = vmatprep.subr.bf16.mxu0 %v8157
          %9300 = vmatpush1.bf16.msra.mxu0 %v8156
          %9301 = vmatprep.subr.bf16.mxu0 %v8161
          %9302 = vmatpush1.bf16.msra.mxu0 %v8160
          %9303 = vmatprep.subr.bf16.mxu0 %v8165
          %9304 = vmatpush1.bf16.msra.mxu0 %v8164
          %9305 = vmatprep.subr.bf16.mxu0 %v8169
          %9306 = vmatpush1.bf16.msra.mxu0 %v8168
          %9307 = vmatprep.subr.bf16.mxu0 %v8173
          %9308 = vmatpush1.bf16.msra.mxu0 %v8172
          %9309 = vmatprep.subr.bf16.mxu0 %v8177
          %9310 = vmatpush1.bf16.msra.mxu0 %v8176
          %9311 = vmatprep.subr.bf16.mxu0 %v8181
          %9312 = vmatpush1.bf16.msra.mxu0 %v8180
          %9313 = vmatprep.subr.bf16.mxu0 %v8185
          %9314 = vmatpush1.bf16.msra.mxu0 %v8184
          %9315 = vmatprep.subr.bf16.mxu0 %v8189
          %9316 = vmatpush1.bf16.msra.mxu0 %v8188
          %9317 = vmatprep.subr.bf16.mxu0 %v8193
          %9318 = vmatpush1.bf16.msra.mxu0 %v8192
          %9319 = vmatprep.subr.bf16.mxu0 %v8197
          %9320 = vmatpush1.bf16.msra.mxu0 %v8196
          %9321 = vmatprep.subr.bf16.mxu0 %v8201
          %9322 = vmatpush1.bf16.msra.mxu0 %v8200
          %9323 = vmatprep.subr.bf16.mxu0 %v8205
          %9324 = vmatpush1.bf16.msra.mxu0 %v8204
          %9325 = vmatprep.subr.bf16.mxu0 %v8209
          %9326 = vmatpush1.bf16.msra.mxu0 %v8208
          %9327 = vmatprep.subr.bf16.mxu0 %v8213
          %9328 = vmatpush1.bf16.msra.mxu0 %v8212
          %9329 = vmatprep.subr.bf16.mxu0 %v8217
          %9330 = vmatpush1.bf16.msra.mxu0 %v8216
          %9331 = vmatprep.mubr.bf16.mxu0 %v5573
          %9332 = vmatmul.mubr.bf16.gmra.mrb[0].mxu0 %v5572
          %v9333 = vpop.f32.mrb[0].mxu0
          %v9334 = vadd.f32 %v9253, %v9333
          %v9335 = vpop.f32.mrb[0].mxu0
          %v9336 = vadd.f32 %v9255, %v9335
          %v9337 = vpop.f32.mrb[0].mxu0
          %v9338 = vadd.f32 %v9257, %v9337
          %v9339 = vpop.f32.mrb[0].mxu0
          %v9340 = vadd.f32 %v9259, %v9339
          %9341 = vmatprep.mubr.bf16.mxu0 %v5589
          %9342 = vmatmul.mubr.bf16.gmra.mrb[0].mxu0 %v5588
          %v9343 = vpop.f32.mrb[0].mxu0
          %v9344 = vadd.f32 %v9263, %v9343
          %v9345 = vpop.f32.mrb[0].mxu0
          %v9346 = vadd.f32 %v9265, %v9345
          %v9347 = vpop.f32.mrb[0].mxu0
          %v9348 = vadd.f32 %v9267, %v9347
          %v9349 = vpop.f32.mrb[0].mxu0
          %v9350 = vadd.f32 %v9269, %v9349
          %9351 = vmatprep.mubr.bf16.mxu0 %v5605
          %9352 = vmatmul.mubr.bf16.gmra.mrb[0].mxu0 %v5604
          %v9353 = vpop.f32.mrb[0].mxu0
          %v9354 = vadd.f32 %v9273, %v9353
          %v9355 = vpop.f32.mrb[0].mxu0
          %v9356 = vadd.f32 %v9275, %v9355
          %v9357 = vpop.f32.mrb[0].mxu0
          %v9358 = vadd.f32 %v9277, %v9357
          %v9359 = vpop.f32.mrb[0].mxu0
          %v9360 = vadd.f32 %v9279, %v9359
          %9361 = vmatprep.mubr.bf16.mxu0 %v5621
          %9362 = vmatmul.mubr.bf16.gmra.mrb[0].mxu0 %v5620
          %v9363 = vpop.f32.mrb[0].mxu0
          %v9364 = vadd.f32 %v9283, %v9363
          %v9365 = vpop.f32.mrb[0].mxu0
          %v9366 = vadd.f32 %v9285, %v9365
          %v9367 = vpop.f32.mrb[0].mxu0
          %v9368 = vadd.f32 %v9287, %v9367
          %v9369 = vpop.f32.mrb[0].mxu0
          %v9370 = vadd.f32 %v9289, %v9369
          %9371 = vmatprep.mubr.bf16.mxu0 %v5637
          %9372 = vmatmul.mubr.bf16.gmra.mrb[0].mxu0 %v5636
          %v9373 = vpop.f32.mrb[0].mxu0
          %v9374 = vadd.f32 %v9293, %v9373
          %v9375 = vpop.f32.mrb[0].mxu0
          %v9376 = vadd.f32 %v9295, %v9375
          %v9377 = vpop.f32.mrb[0].mxu0
          %v9378 = vpop.f32.mrb[0].mxu0
          %9379 = vdwg.mxu0
          %9380 = vmatprep.subr.bf16.mxu0 %v7711
          %9381 = vmatpush1.bf16.msra.mxu0 %v7710
          %9382 = vmatprep.subr.bf16.mxu0 %v7715
          %9383 = vmatpush1.bf16.msra.mxu0 %v7714
          %9384 = vmatprep.subr.bf16.mxu0 %v7719
          %9385 = vmatpush1.bf16.msra.mxu0 %v7718
          %9386 = vmatprep.subr.bf16.mxu0 %v7723
          %9387 = vmatpush1.bf16.msra.mxu0 %v7722
          %9388 = vmatprep.subr.bf16.mxu0 %v7727
          %9389 = vmatpush1.bf16.msra.mxu0 %v7726
          %9390 = vmatprep.subr.bf16.mxu0 %v7731
          %9391 = vmatpush1.bf16.msra.mxu0 %v7730
          %9392 = vmatprep.subr.bf16.mxu0 %v7735
          %9393 = vmatpush1.bf16.msra.mxu0 %v7734
          %9394 = vmatprep.subr.bf16.mxu0 %v7739
          %9395 = vmatpush1.bf16.msra.mxu0 %v7738
          %9396 = vmatprep.subr.bf16.mxu0 %v7743
          %9397 = vmatpush1.bf16.msra.mxu0 %v7742
          %9398 = vmatprep.subr.bf16.mxu0 %v7747
          %9399 = vmatpush1.bf16.msra.mxu0 %v7746
          %9400 = vmatprep.subr.bf16.mxu0 %v7751
          %9401 = vmatpush1.bf16.msra.mxu0 %v7750
          %9402 = vmatprep.subr.bf16.mxu0 %v7755
          %9403 = vmatpush1.bf16.msra.mxu0 %v7754
          %9404 = vmatprep.subr.bf16.mxu0 %v7759
          %9405 = vmatpush1.bf16.msra.mxu0 %v7758
          %9406 = vmatprep.subr.bf16.mxu0 %v7763
          %9407 = vmatpush1.bf16.msra.mxu0 %v7762
          %9408 = vmatprep.subr.bf16.mxu0 %v7767
          %9409 = vmatpush1.bf16.msra.mxu0 %v7766
          %9410 = vmatprep.subr.bf16.mxu0 %v7771
          %9411 = vmatpush1.bf16.msra.mxu0 %v7770
          %9412 = vmatprep.mubr.bf16.mxu0 %v5559
          %9413 = vmatmul.mubr.bf16.gmra.mrb[0].mxu0 %v5558
          %v9414 = vpop.f32.mrb[0].mxu0
          %v9415 = vadd.f32 %v6163, %v9414
          %v9416 = vpop.f32.mrb[0].mxu0
          %v9417 = vadd.f32 %v6167, %v9416
          %v9418 = vpop.f32.mrb[0].mxu0
          %v9419 = vadd.f32 %v6163, %v9418
          %v9420 = vpop.f32.mrb[0].mxu0
          %v9421 = vadd.f32 %v6167, %v9420
          %9422 = vmatprep.mubr.bf16.mxu0 %v5575
          %9423 = vmatmul.mubr.bf16.gmra.mrb[0].mxu0 %v5574
          %v9424 = vpop.f32.mrb[0].mxu0
          %v9425 = vadd.f32 %v6163, %v9424
          %v9426 = vpop.f32.mrb[0].mxu0
          %v9427 = vadd.f32 %v6167, %v9426
          %v9428 = vpop.f32.mrb[0].mxu0
          %v9429 = vadd.f32 %v6163, %v9428
          %v9430 = vpop.f32.mrb[0].mxu0
          %v9431 = vadd.f32 %v6167, %v9430
          %9432 = vmatprep.mubr.bf16.mxu0 %v5591
          %9433 = vmatmul.mubr.bf16.gmra.mrb[0].mxu0 %v5590
          %v9434 = vpop.f32.mrb[0].mxu0
          %v9435 = vadd.f32 %v6163, %v9434
          %v9436 = vpop.f32.mrb[0].mxu0
          %v9437 = vadd.f32 %v6167, %v9436
          %v9438 = vpop.f32.mrb[0].mxu0
          %v9439 = vadd.f32 %v6163, %v9438
          %v9440 = vpop.f32.mrb[0].mxu0
          %v9441 = vadd.f32 %v6167, %v9440
          %9442 = vmatprep.mubr.bf16.mxu0 %v5607
          %9443 = vmatmul.mubr.bf16.gmra.mrb[0].mxu0 %v5606
          %v9444 = vpop.f32.mrb[0].mxu0
          %v9445 = vadd.f32 %v6163, %v9444
          %v9446 = vpop.f32.mrb[0].mxu0
          %v9447 = vadd.f32 %v6167, %v9446
          %v9448 = vpop.f32.mrb[0].mxu0
          %v9449 = vadd.f32 %v6163, %v9448
          %v9450 = vpop.f32.mrb[0].mxu0
          %v9451 = vadd.f32 %v6167, %v9450
          %9452 = vmatprep.mubr.bf16.mxu0 %v5623
          %9453 = vmatmul.mubr.bf16.gmra.mrb[0].mxu0 %v5622
          %v9454 = vpop.f32.mrb[0].mxu0
          %v9455 = vadd.f32 %v6163, %v9454
          %v9456 = vpop.f32.mrb[0].mxu0
          %v9457 = vadd.f32 %v6167, %v9456
          %v9458 = vpop.f32.mrb[0].mxu0
          %v9459 = vpop.f32.mrb[0].mxu0
          %9460 = vdwg.mxu0
          %9461 = vmatprep.subr.bf16.mxu0 %v7775
          %9462 = vmatpush1.bf16.msra.mxu0 %v7774
          %9463 = vmatprep.subr.bf16.mxu0 %v7779
          %9464 = vmatpush1.bf16.msra.mxu0 %v7778
          %9465 = vmatprep.subr.bf16.mxu0 %v7783
          %9466 = vmatpush1.bf16.msra.mxu0 %v7782
          %9467 = vmatprep.subr.bf16.mxu0 %v7787
          %9468 = vmatpush1.bf16.msra.mxu0 %v7786
          %9469 = vmatprep.subr.bf16.mxu0 %v7791
          %9470 = vmatpush1.bf16.msra.mxu0 %v7790
          %9471 = vmatprep.subr.bf16.mxu0 %v7795
          %9472 = vmatpush1.bf16.msra.mxu0 %v7794
          %9473 = vmatprep.subr.bf16.mxu0 %v7799
          %9474 = vmatpush1.bf16.msra.mxu0 %v7798
          %9475 = vmatprep.subr.bf16.mxu0 %v7803
          %9476 = vmatpush1.bf16.msra.mxu0 %v7802
          %9477 = vmatprep.subr.bf16.mxu0 %v7807
          %9478 = vmatpush1.bf16.msra.mxu0 %v7806
          %9479 = vmatprep.subr.bf16.mxu0 %v7811
          %9480 = vmatpush1.bf16.msra.mxu0 %v7810
          %9481 = vmatprep.subr.bf16.mxu0 %v7815
          %9482 = vmatpush1.bf16.msra.mxu0 %v7814
          %9483 = vmatprep.subr.bf16.mxu0 %v7819
          %9484 = vmatpush1.bf16.msra.mxu0 %v7818
          %9485 = vmatprep.subr.bf16.mxu0 %v7823
          %9486 = vmatpush1.bf16.msra.mxu0 %v7822
          %9487 = vmatprep.subr.bf16.mxu0 %v7827
          %9488 = vmatpush1.bf16.msra.mxu0 %v7826
          %9489 = vmatprep.subr.bf16.mxu0 %v7831
          %9490 = vmatpush1.bf16.msra.mxu0 %v7830
          %9491 = vmatprep.subr.bf16.mxu0 %v7835
          %9492 = vmatpush1.bf16.msra.mxu0 %v7834
          %9493 = vmatprep.mubr.bf16.mxu0 %v5561
          %9494 = vmatmul.mubr.bf16.gmra.mrb[0].mxu0 %v5560
          %v9495 = vpop.f32.mrb[0].mxu0
          %v9496 = vadd.f32 %v9415, %v9495
          %v9497 = vpop.f32.mrb[0].mxu0
          %v9498 = vadd.f32 %v9417, %v9497
          %v9499 = vpop.f32.mrb[0].mxu0
          %v9500 = vadd.f32 %v9419, %v9499
          %v9501 = vpop.f32.mrb[0].mxu0
          %v9502 = vadd.f32 %v9421, %v9501
          %9503 = vmatprep.mubr.bf16.mxu0 %v5577
          %9504 = vmatmul.mubr.bf16.gmra.mrb[0].mxu0 %v5576
          %v9505 = vpop.f32.mrb[0].mxu0
          %v9506 = vadd.f32 %v9425, %v9505
          %v9507 = vpop.f32.mrb[0].mxu0
          %v9508 = vadd.f32 %v9427, %v9507
          %v9509 = vpop.f32.mrb[0].mxu0
          %v9510 = vadd.f32 %v9429, %v9509
          %v9511 = vpop.f32.mrb[0].mxu0
          %v9512 = vadd.f32 %v9431, %v9511
          %9513 = vmatprep.mubr.bf16.mxu0 %v5593
          %9514 = vmatmul.mubr.bf16.gmra.mrb[0].mxu0 %v5592
          %v9515 = vpop.f32.mrb[0].mxu0
          %v9516 = vadd.f32 %v9435, %v9515
          %v9517 = vpop.f32.mrb[0].mxu0
          %v9518 = vadd.f32 %v9437, %v9517
          %v9519 = vpop.f32.mrb[0].mxu0
          %v9520 = vadd.f32 %v9439, %v9519
          %v9521 = vpop.f32.mrb[0].mxu0
          %v9522 = vadd.f32 %v9441, %v9521
          %9523 = vmatprep.mubr.bf16.mxu0 %v5609
          %9524 = vmatmul.mubr.bf16.gmra.mrb[0].mxu0 %v5608
          %v9525 = vpop.f32.mrb[0].mxu0
          %v9526 = vadd.f32 %v9445, %v9525
          %v9527 = vpop.f32.mrb[0].mxu0
          %v9528 = vadd.f32 %v9447, %v9527
          %v9529 = vpop.f32.mrb[0].mxu0
          %v9530 = vadd.f32 %v9449, %v9529
          %v9531 = vpop.f32.mrb[0].mxu0
          %v9532 = vadd.f32 %v9451, %v9531
          %9533 = vmatprep.mubr.bf16.mxu0 %v5625
          %9534 = vmatmul.mubr.bf16.gmra.mrb[0].mxu0 %v5624
          %v9535 = vpop.f32.mrb[0].mxu0
          %v9536 = vadd.f32 %v9455, %v9535
          %v9537 = vpop.f32.mrb[0].mxu0
          %v9538 = vadd.f32 %v9457, %v9537
          %v9539 = vpop.f32.mrb[0].mxu0
          %v9540 = vpop.f32.mrb[0].mxu0
          %9541 = vdwg.mxu0
          %9542 = vmatprep.subr.bf16.mxu0 %v7839
          %9543 = vmatpush1.bf16.msra.mxu0 %v7838
          %9544 = vmatprep.subr.bf16.mxu0 %v7843
          %9545 = vmatpush1.bf16.msra.mxu0 %v7842
          %9546 = vmatprep.subr.bf16.mxu0 %v7847
          %9547 = vmatpush1.bf16.msra.mxu0 %v7846
          %9548 = vmatprep.subr.bf16.mxu0 %v7851
          %9549 = vmatpush1.bf16.msra.mxu0 %v7850
          %9550 = vmatprep.subr.bf16.mxu0 %v7855
          %9551 = vmatpush1.bf16.msra.mxu0 %v7854
          %9552 = vmatprep.subr.bf16.mxu0 %v7859
          %9553 = vmatpush1.bf16.msra.mxu0 %v7858
          %9554 = vmatprep.subr.bf16.mxu0 %v7863
          %9555 = vmatpush1.bf16.msra.mxu0 %v7862
          %9556 = vmatprep.subr.bf16.mxu0 %v7867
          %9557 = vmatpush1.bf16.msra.mxu0 %v7866
          %9558 = vmatprep.subr.bf16.mxu0 %v7871
          %9559 = vmatpush1.bf16.msra.mxu0 %v7870
          %9560 = vmatprep.subr.bf16.mxu0 %v7875
          %9561 = vmatpush1.bf16.msra.mxu0 %v7874
          %9562 = vmatprep.subr.bf16.mxu0 %v7879
          %9563 = vmatpush1.bf16.msra.mxu0 %v7878
          %9564 = vmatprep.subr.bf16.mxu0 %v7883
          %9565 = vmatpush1.bf16.msra.mxu0 %v7882
          %9566 = vmatprep.subr.bf16.mxu0 %v7887
          %9567 = vmatpush1.bf16.msra.mxu0 %v7886
          %9568 = vmatprep.subr.bf16.mxu0 %v7891
          %9569 = vmatpush1.bf16.msra.mxu0 %v7890
          %9570 = vmatprep.subr.bf16.mxu0 %v7895
          %9571 = vmatpush1.bf16.msra.mxu0 %v7894
          %9572 = vmatprep.subr.bf16.mxu0 %v7899
          %9573 = vmatpush1.bf16.msra.mxu0 %v7898
          %9574 = vmatprep.mubr.bf16.mxu0 %v5563
          %9575 = vmatmul.mubr.bf16.gmra.mrb[0].mxu0 %v5562
          %v9576 = vpop.f32.mrb[0].mxu0
          %v9577 = vadd.f32 %v9496, %v9576
          %v9578 = vpop.f32.mrb[0].mxu0
          %v9579 = vadd.f32 %v9498, %v9578
          %v9580 = vpop.f32.mrb[0].mxu0
          %v9581 = vadd.f32 %v9500, %v9580
          %v9582 = vpop.f32.mrb[0].mxu0
          %v9583 = vadd.f32 %v9502, %v9582
          %9584 = vmatprep.mubr.bf16.mxu0 %v5579
          %9585 = vmatmul.mubr.bf16.gmra.mrb[0].mxu0 %v5578
          %v9586 = vpop.f32.mrb[0].mxu0
          %v9587 = vadd.f32 %v9506, %v9586
          %v9588 = vpop.f32.mrb[0].mxu0
          %v9589 = vadd.f32 %v9508, %v9588
          %v9590 = vpop.f32.mrb[0].mxu0
          %v9591 = vadd.f32 %v9510, %v9590
          %v9592 = vpop.f32.mrb[0].mxu0
          %v9593 = vadd.f32 %v9512, %v9592
          %9594 = vmatprep.mubr.bf16.mxu0 %v5595
          %9595 = vmatmul.mubr.bf16.gmra.mrb[0].mxu0 %v5594
          %v9596 = vpop.f32.mrb[0].mxu0
          %v9597 = vadd.f32 %v9516, %v9596
          %v9598 = vpop.f32.mrb[0].mxu0
          %v9599 = vadd.f32 %v9518, %v9598
          %v9600 = vpop.f32.mrb[0].mxu0
          %v9601 = vadd.f32 %v9520, %v9600
          %v9602 = vpop.f32.mrb[0].mxu0
          %v9603 = vadd.f32 %v9522, %v9602
          %9604 = vmatprep.mubr.bf16.mxu0 %v5611
          %9605 = vmatmul.mubr.bf16.gmra.mrb[0].mxu0 %v5610
          %v9606 = vpop.f32.mrb[0].mxu0
          %v9607 = vadd.f32 %v9526, %v9606
          %v9608 = vpop.f32.mrb[0].mxu0
          %v9609 = vadd.f32 %v9528, %v9608
          %v9610 = vpop.f32.mrb[0].mxu0
          %v9611 = vadd.f32 %v9530, %v9610
          %v9612 = vpop.f32.mrb[0].mxu0
          %v9613 = vadd.f32 %v9532, %v9612
          %9614 = vmatprep.mubr.bf16.mxu0 %v5627
          %9615 = vmatmul.mubr.bf16.gmra.mrb[0].mxu0 %v5626
          %v9616 = vpop.f32.mrb[0].mxu0
          %v9617 = vadd.f32 %v9536, %v9616
          %v9618 = vpop.f32.mrb[0].mxu0
          %v9619 = vadd.f32 %v9538, %v9618
          %v9620 = vpop.f32.mrb[0].mxu0
          %v9621 = vpop.f32.mrb[0].mxu0
          %9622 = vdwg.mxu0
          %9623 = vmatprep.subr.bf16.mxu0 %v7903
          %9624 = vmatpush1.bf16.msra.mxu0 %v7902
          %9625 = vmatprep.subr.bf16.mxu0 %v7907
          %9626 = vmatpush1.bf16.msra.mxu0 %v7906
          %9627 = vmatprep.subr.bf16.mxu0 %v7911
          %9628 = vmatpush1.bf16.msra.mxu0 %v7910
          %9629 = vmatprep.subr.bf16.mxu0 %v7915
          %9630 = vmatpush1.bf16.msra.mxu0 %v7914
          %9631 = vmatprep.subr.bf16.mxu0 %v7919
          %9632 = vmatpush1.bf16.msra.mxu0 %v7918
          %9633 = vmatprep.subr.bf16.mxu0 %v7923
          %9634 = vmatpush1.bf16.msra.mxu0 %v7922
          %9635 = vmatprep.subr.bf16.mxu0 %v7927
          %9636 = vmatpush1.bf16.msra.mxu0 %v7926
          %9637 = vmatprep.subr.bf16.mxu0 %v7931
          %9638 = vmatpush1.bf16.msra.mxu0 %v7930
          %9639 = vmatprep.subr.bf16.mxu0 %v7935
          %9640 = vmatpush1.bf16.msra.mxu0 %v7934
          %9641 = vmatprep.subr.bf16.mxu0 %v7939
          %9642 = vmatpush1.bf16.msra.mxu0 %v7938
          %9643 = vmatprep.subr.bf16.mxu0 %v7943
          %9644 = vmatpush1.bf16.msra.mxu0 %v7942
          %9645 = vmatprep.subr.bf16.mxu0 %v7947
          %9646 = vmatpush1.bf16.msra.mxu0 %v7946
          %9647 = vmatprep.subr.bf16.mxu0 %v7951
          %9648 = vmatpush1.bf16.msra.mxu0 %v7950
          %9649 = vmatprep.subr.bf16.mxu0 %v7955
          %9650 = vmatpush1.bf16.msra.mxu0 %v7954
          %9651 = vmatprep.subr.bf16.mxu0 %v7959
          %9652 = vmatpush1.bf16.msra.mxu0 %v7958
          %9653 = vmatprep.subr.bf16.mxu0 %v7963
          %9654 = vmatpush1.bf16.msra.mxu0 %v7962
          %9655 = vmatprep.mubr.bf16.mxu0 %v5565
          %9656 = vmatmul.mubr.bf16.gmra.mrb[0].mxu0 %v5564
          %v9657 = vpop.f32.mrb[0].mxu0
          %v9658 = vadd.f32 %v9577, %v9657
          %v9659 = vpop.f32.mrb[0].mxu0
          %v9660 = vadd.f32 %v9579, %v9659
          %v9661 = vpop.f32.mrb[0].mxu0
          %v9662 = vadd.f32 %v9581, %v9661
          %v9663 = vpop.f32.mrb[0].mxu0
          %v9664 = vadd.f32 %v9583, %v9663
          %9665 = vmatprep.mubr.bf16.mxu0 %v5581
          %9666 = vmatmul.mubr.bf16.gmra.mrb[0].mxu0 %v5580
          %v9667 = vpop.f32.mrb[0].mxu0
          %v9668 = vadd.f32 %v9587, %v9667
          %v9669 = vpop.f32.mrb[0].mxu0
          %v9670 = vadd.f32 %v9589, %v9669
          %v9671 = vpop.f32.mrb[0].mxu0
          %v9672 = vadd.f32 %v9591, %v9671
          %v9673 = vpop.f32.mrb[0].mxu0
          %v9674 = vadd.f32 %v9593, %v9673
          %9675 = vmatprep.mubr.bf16.mxu0 %v5597
          %9676 = vmatmul.mubr.bf16.gmra.mrb[0].mxu0 %v5596
          %v9677 = vpop.f32.mrb[0].mxu0
          %v9678 = vadd.f32 %v9597, %v9677
          %v9679 = vpop.f32.mrb[0].mxu0
          %v9680 = vadd.f32 %v9599, %v9679
          %v9681 = vpop.f32.mrb[0].mxu0
          %v9682 = vadd.f32 %v9601, %v9681
          %v9683 = vpop.f32.mrb[0].mxu0
          %v9684 = vadd.f32 %v9603, %v9683
          %9685 = vmatprep.mubr.bf16.mxu0 %v5613
          %9686 = vmatmul.mubr.bf16.gmra.mrb[0].mxu0 %v5612
          %v9687 = vpop.f32.mrb[0].mxu0
          %v9688 = vadd.f32 %v9607, %v9687
          %v9689 = vpop.f32.mrb[0].mxu0
          %v9690 = vadd.f32 %v9609, %v9689
          %v9691 = vpop.f32.mrb[0].mxu0
          %v9692 = vadd.f32 %v9611, %v9691
          %v9693 = vpop.f32.mrb[0].mxu0
          %v9694 = vadd.f32 %v9613, %v9693
          %9695 = vmatprep.mubr.bf16.mxu0 %v5629
          %9696 = vmatmul.mubr.bf16.gmra.mrb[0].mxu0 %v5628
          %v9697 = vpop.f32.mrb[0].mxu0
          %v9698 = vadd.f32 %v9617, %v9697
          %v9699 = vpop.f32.mrb[0].mxu0
          %v9700 = vadd.f32 %v9619, %v9699
          %v9701 = vpop.f32.mrb[0].mxu0
          %v9702 = vpop.f32.mrb[0].mxu0
          %9703 = vdwg.mxu0
          %9704 = vmatprep.subr.bf16.mxu0 %v7967
          %9705 = vmatpush1.bf16.msra.mxu0 %v7966
          %9706 = vmatprep.subr.bf16.mxu0 %v7971
          %9707 = vmatpush1.bf16.msra.mxu0 %v7970
          %9708 = vmatprep.subr.bf16.mxu0 %v7975
          %9709 = vmatpush1.bf16.msra.mxu0 %v7974
          %9710 = vmatprep.subr.bf16.mxu0 %v7979
          %9711 = vmatpush1.bf16.msra.mxu0 %v7978
          %9712 = vmatprep.subr.bf16.mxu0 %v7983
          %9713 = vmatpush1.bf16.msra.mxu0 %v7982
          %9714 = vmatprep.subr.bf16.mxu0 %v7987
          %9715 = vmatpush1.bf16.msra.mxu0 %v7986
          %9716 = vmatprep.subr.bf16.mxu0 %v7991
          %9717 = vmatpush1.bf16.msra.mxu0 %v7990
          %9718 = vmatprep.subr.bf16.mxu0 %v7995
          %9719 = vmatpush1.bf16.msra.mxu0 %v7994
          %9720 = vmatprep.subr.bf16.mxu0 %v7999
          %9721 = vmatpush1.bf16.msra.mxu0 %v7998
          %9722 = vmatprep.subr.bf16.mxu0 %v8003
          %9723 = vmatpush1.bf16.msra.mxu0 %v8002
          %9724 = vmatprep.subr.bf16.mxu0 %v8007
          %9725 = vmatpush1.bf16.msra.mxu0 %v8006
          %9726 = vmatprep.subr.bf16.mxu0 %v8011
          %9727 = vmatpush1.bf16.msra.mxu0 %v8010
          %9728 = vmatprep.subr.bf16.mxu0 %v8015
          %9729 = vmatpush1.bf16.msra.mxu0 %v8014
          %9730 = vmatprep.subr.bf16.mxu0 %v8019
          %9731 = vmatpush1.bf16.msra.mxu0 %v8018
          %9732 = vmatprep.subr.bf16.mxu0 %v8023
          %9733 = vmatpush1.bf16.msra.mxu0 %v8022
          %9734 = vmatprep.subr.bf16.mxu0 %v8027
          %9735 = vmatpush1.bf16.msra.mxu0 %v8026
          %9736 = vmatprep.mubr.bf16.mxu0 %v5567
          %9737 = vmatmul.mubr.bf16.gmra.mrb[0].mxu0 %v5566
          %v9738 = vpop.f32.mrb[0].mxu0
          %v9739 = vadd.f32 %v9658, %v9738
          %v9740 = vpop.f32.mrb[0].mxu0
          %v9741 = vadd.f32 %v9660, %v9740
          %v9742 = vpop.f32.mrb[0].mxu0
          %v9743 = vadd.f32 %v9662, %v9742
          %v9744 = vpop.f32.mrb[0].mxu0
          %v9745 = vadd.f32 %v9664, %v9744
          %9746 = vmatprep.mubr.bf16.mxu0 %v5583
          %9747 = vmatmul.mubr.bf16.gmra.mrb[0].mxu0 %v5582
          %v9748 = vpop.f32.mrb[0].mxu0
          %v9749 = vadd.f32 %v9668, %v9748
          %v9750 = vpop.f32.mrb[0].mxu0
          %v9751 = vadd.f32 %v9670, %v9750
          %v9752 = vpop.f32.mrb[0].mxu0
          %v9753 = vadd.f32 %v9672, %v9752
          %v9754 = vpop.f32.mrb[0].mxu0
          %v9755 = vadd.f32 %v9674, %v9754
          %9756 = vmatprep.mubr.bf16.mxu0 %v5599
          %9757 = vmatmul.mubr.bf16.gmra.mrb[0].mxu0 %v5598
          %v9758 = vpop.f32.mrb[0].mxu0
          %v9759 = vadd.f32 %v9678, %v9758
          %v9760 = vpop.f32.mrb[0].mxu0
          %v9761 = vadd.f32 %v9680, %v9760
          %v9762 = vpop.f32.mrb[0].mxu0
          %v9763 = vadd.f32 %v9682, %v9762
          %v9764 = vpop.f32.mrb[0].mxu0
          %v9765 = vadd.f32 %v9684, %v9764
          %9766 = vmatprep.mubr.bf16.mxu0 %v5615
          %9767 = vmatmul.mubr.bf16.gmra.mrb[0].mxu0 %v5614
          %v9768 = vpop.f32.mrb[0].mxu0
          %v9769 = vadd.f32 %v9688, %v9768
          %v9770 = vpop.f32.mrb[0].mxu0
          %v9771 = vadd.f32 %v9690, %v9770
          %v9772 = vpop.f32.mrb[0].mxu0
          %v9773 = vadd.f32 %v9692, %v9772
          %v9774 = vpop.f32.mrb[0].mxu0
          %v9775 = vadd.f32 %v9694, %v9774
          %9776 = vmatprep.mubr.bf16.mxu0 %v5631
          %9777 = vmatmul.mubr.bf16.gmra.mrb[0].mxu0 %v5630
          %v9778 = vpop.f32.mrb[0].mxu0
          %v9779 = vadd.f32 %v9698, %v9778
          %v9780 = vpop.f32.mrb[0].mxu0
          %v9781 = vadd.f32 %v9700, %v9780
          %v9782 = vpop.f32.mrb[0].mxu0
          %v9783 = vpop.f32.mrb[0].mxu0
          %9784 = vdwg.mxu0
          %9785 = vmatprep.subr.bf16.mxu0 %v8031
          %9786 = vmatpush1.bf16.msra.mxu0 %v8030
          %9787 = vmatprep.subr.bf16.mxu0 %v8035
          %9788 = vmatpush1.bf16.msra.mxu0 %v8034
          %9789 = vmatprep.subr.bf16.mxu0 %v8039
          %9790 = vmatpush1.bf16.msra.mxu0 %v8038
          %9791 = vmatprep.subr.bf16.mxu0 %v8043
          %9792 = vmatpush1.bf16.msra.mxu0 %v8042
          %9793 = vmatprep.subr.bf16.mxu0 %v8047
          %9794 = vmatpush1.bf16.msra.mxu0 %v8046
          %9795 = vmatprep.subr.bf16.mxu0 %v8051
          %9796 = vmatpush1.bf16.msra.mxu0 %v8050
          %9797 = vmatprep.subr.bf16.mxu0 %v8055
          %9798 = vmatpush1.bf16.msra.mxu0 %v8054
          %9799 = vmatprep.subr.bf16.mxu0 %v8059
          %9800 = vmatpush1.bf16.msra.mxu0 %v8058
          %9801 = vmatprep.subr.bf16.mxu0 %v8063
          %9802 = vmatpush1.bf16.msra.mxu0 %v8062
          %9803 = vmatprep.subr.bf16.mxu0 %v8067
          %9804 = vmatpush1.bf16.msra.mxu0 %v8066
          %9805 = vmatprep.subr.bf16.mxu0 %v8071
          %9806 = vmatpush1.bf16.msra.mxu0 %v8070
          %9807 = vmatprep.subr.bf16.mxu0 %v8075
          %9808 = vmatpush1.bf16.msra.mxu0 %v8074
          %9809 = vmatprep.subr.bf16.mxu0 %v8079
          %9810 = vmatpush1.bf16.msra.mxu0 %v8078
          %9811 = vmatprep.subr.bf16.mxu0 %v8083
          %9812 = vmatpush1.bf16.msra.mxu0 %v8082
          %9813 = vmatprep.subr.bf16.mxu0 %v8087
          %9814 = vmatpush1.bf16.msra.mxu0 %v8086
          %9815 = vmatprep.subr.bf16.mxu0 %v8091
          %9816 = vmatpush1.bf16.msra.mxu0 %v8090
          %9817 = vmatprep.mubr.bf16.mxu0 %v5569
          %9818 = vmatmul.mubr.bf16.gmra.mrb[0].mxu0 %v5568
          %v9819 = vpop.f32.mrb[0].mxu0
          %v9820 = vadd.f32 %v9739, %v9819
          %v9821 = vpop.f32.mrb[0].mxu0
          %v9822 = vadd.f32 %v9741, %v9821
          %v9823 = vpop.f32.mrb[0].mxu0
          %v9824 = vadd.f32 %v9743, %v9823
          %v9825 = vpop.f32.mrb[0].mxu0
          %v9826 = vadd.f32 %v9745, %v9825
          %9827 = vmatprep.mubr.bf16.mxu0 %v5585
          %9828 = vmatmul.mubr.bf16.gmra.mrb[0].mxu0 %v5584
          %v9829 = vpop.f32.mrb[0].mxu0
          %v9830 = vadd.f32 %v9749, %v9829
          %v9831 = vpop.f32.mrb[0].mxu0
          %v9832 = vadd.f32 %v9751, %v9831
          %v9833 = vpop.f32.mrb[0].mxu0
          %v9834 = vadd.f32 %v9753, %v9833
          %v9835 = vpop.f32.mrb[0].mxu0
          %v9836 = vadd.f32 %v9755, %v9835
          %9837 = vmatprep.mubr.bf16.mxu0 %v5601
          %9838 = vmatmul.mubr.bf16.gmra.mrb[0].mxu0 %v5600
          %v9839 = vpop.f32.mrb[0].mxu0
          %v9840 = vadd.f32 %v9759, %v9839
          %v9841 = vpop.f32.mrb[0].mxu0
          %v9842 = vadd.f32 %v9761, %v9841
          %v9843 = vpop.f32.mrb[0].mxu0
          %v9844 = vadd.f32 %v9763, %v9843
          %v9845 = vpop.f32.mrb[0].mxu0
          %v9846 = vadd.f32 %v9765, %v9845
          %9847 = vmatprep.mubr.bf16.mxu0 %v5617
          %9848 = vmatmul.mubr.bf16.gmra.mrb[0].mxu0 %v5616
          %v9849 = vpop.f32.mrb[0].mxu0
          %v9850 = vadd.f32 %v9769, %v9849
          %v9851 = vpop.f32.mrb[0].mxu0
          %v9852 = vadd.f32 %v9771, %v9851
          %v9853 = vpop.f32.mrb[0].mxu0
          %v9854 = vadd.f32 %v9773, %v9853
          %v9855 = vpop.f32.mrb[0].mxu0
          %v9856 = vadd.f32 %v9775, %v9855
          %9857 = vmatprep.mubr.bf16.mxu0 %v5633
          %9858 = vmatmul.mubr.bf16.gmra.mrb[0].mxu0 %v5632
          %v9859 = vpop.f32.mrb[0].mxu0
          %v9860 = vadd.f32 %v9779, %v9859
          %v9861 = vpop.f32.mrb[0].mxu0
          %v9862 = vadd.f32 %v9781, %v9861
          %v9863 = vpop.f32.mrb[0].mxu0
          %v9864 = vpop.f32.mrb[0].mxu0
          %9865 = vdwg.mxu0
          %9866 = vmatprep.subr.bf16.mxu0 %v8095
          %9867 = vmatpush1.bf16.msra.mxu0 %v8094
          %9868 = vmatprep.subr.bf16.mxu0 %v8099
          %9869 = vmatpush1.bf16.msra.mxu0 %v8098
          %9870 = vmatprep.subr.bf16.mxu0 %v8103
          %9871 = vmatpush1.bf16.msra.mxu0 %v8102
          %9872 = vmatprep.subr.bf16.mxu0 %v8107
          %9873 = vmatpush1.bf16.msra.mxu0 %v8106
          %9874 = vmatprep.subr.bf16.mxu0 %v8111
          %9875 = vmatpush1.bf16.msra.mxu0 %v8110
          %9876 = vmatprep.subr.bf16.mxu0 %v8115
          %9877 = vmatpush1.bf16.msra.mxu0 %v8114
          %9878 = vmatprep.subr.bf16.mxu0 %v8119
          %9879 = vmatpush1.bf16.msra.mxu0 %v8118
          %9880 = vmatprep.subr.bf16.mxu0 %v8123
          %9881 = vmatpush1.bf16.msra.mxu0 %v8122
          %9882 = vmatprep.subr.bf16.mxu0 %v8127
          %9883 = vmatpush1.bf16.msra.mxu0 %v8126
          %9884 = vmatprep.subr.bf16.mxu0 %v8131
          %9885 = vmatpush1.bf16.msra.mxu0 %v8130
          %9886 = vmatprep.subr.bf16.mxu0 %v8135
          %9887 = vmatpush1.bf16.msra.mxu0 %v8134
          %9888 = vmatprep.subr.bf16.mxu0 %v8139
          %9889 = vmatpush1.bf16.msra.mxu0 %v8138
          %9890 = vmatprep.subr.bf16.mxu0 %v8143
          %9891 = vmatpush1.bf16.msra.mxu0 %v8142
          %9892 = vmatprep.subr.bf16.mxu0 %v8147
          %9893 = vmatpush1.bf16.msra.mxu0 %v8146
          %9894 = vmatprep.subr.bf16.mxu0 %v8151
          %9895 = vmatpush1.bf16.msra.mxu0 %v8150
          %9896 = vmatprep.subr.bf16.mxu0 %v8155
          %9897 = vmatpush1.bf16.msra.mxu0 %v8154
          %9898 = vmatprep.mubr.bf16.mxu0 %v5571
          %9899 = vmatmul.mubr.bf16.gmra.mrb[0].mxu0 %v5570
          %v9900 = vpop.f32.mrb[0].mxu0
          %v9901 = vadd.f32 %v9820, %v9900
          %v9902 = vpop.f32.mrb[0].mxu0
          %v9903 = vadd.f32 %v9822, %v9902
          %v9904 = vpop.f32.mrb[0].mxu0
          %v9905 = vadd.f32 %v9824, %v9904
          %v9906 = vpop.f32.mrb[0].mxu0
          %v9907 = vadd.f32 %v9826, %v9906
          %9908 = vmatprep.mubr.bf16.mxu0 %v5587
          %9909 = vmatmul.mubr.bf16.gmra.mrb[0].mxu0 %v5586
          %v9910 = vpop.f32.mrb[0].mxu0
          %v9911 = vadd.f32 %v9830, %v9910
          %v9912 = vpop.f32.mrb[0].mxu0
          %v9913 = vadd.f32 %v9832, %v9912
          %v9914 = vpop.f32.mrb[0].mxu0
          %v9915 = vadd.f32 %v9834, %v9914
          %v9916 = vpop.f32.mrb[0].mxu0
          %v9917 = vadd.f32 %v9836, %v9916
          %9918 = vmatprep.mubr.bf16.mxu0 %v5603
          %9919 = vmatmul.mubr.bf16.gmra.mrb[0].mxu0 %v5602
          %v9920 = vpop.f32.mrb[0].mxu0
          %v9921 = vadd.f32 %v9840, %v9920
          %v9922 = vpop.f32.mrb[0].mxu0
          %v9923 = vadd.f32 %v9842, %v9922
          %v9924 = vpop.f32.mrb[0].mxu0
          %v9925 = vadd.f32 %v9844, %v9924
          %v9926 = vpop.f32.mrb[0].mxu0
          %v9927 = vadd.f32 %v9846, %v9926
          %9928 = vmatprep.mubr.bf16.mxu0 %v5619
          %9929 = vmatmul.mubr.bf16.gmra.mrb[0].mxu0 %v5618
          %v9930 = vpop.f32.mrb[0].mxu0
          %v9931 = vadd.f32 %v9850, %v9930
          %v9932 = vpop.f32.mrb[0].mxu0
          %v9933 = vadd.f32 %v9852, %v9932
          %v9934 = vpop.f32.mrb[0].mxu0
          %v9935 = vadd.f32 %v9854, %v9934
          %v9936 = vpop.f32.mrb[0].mxu0
          %v9937 = vadd.f32 %v9856, %v9936
          %9938 = vmatprep.mubr.bf16.mxu0 %v5635
          %9939 = vmatmul.mubr.bf16.gmra.mrb[0].mxu0 %v5634
          %v9940 = vpop.f32.mrb[0].mxu0
          %v9941 = vadd.f32 %v9860, %v9940
          %v9942 = vpop.f32.mrb[0].mxu0
          %v9943 = vadd.f32 %v9862, %v9942
          %v9944 = vpop.f32.mrb[0].mxu0
          %v9945 = vpop.f32.mrb[0].mxu0
          %9946 = vdwg.mxu0
          %9947 = vmatprep.subr.bf16.mxu0 %v8159
          %9948 = vmatpush1.bf16.msra.mxu0 %v8158
          %9949 = vmatprep.subr.bf16.mxu0 %v8163
          %9950 = vmatpush1.bf16.msra.mxu0 %v8162
          %9951 = vmatprep.subr.bf16.mxu0 %v8167
          %9952 = vmatpush1.bf16.msra.mxu0 %v8166
          %9953 = vmatprep.subr.bf16.mxu0 %v8171
          %9954 = vmatpush1.bf16.msra.mxu0 %v8170
          %9955 = vmatprep.subr.bf16.mxu0 %v8175
          %9956 = vmatpush1.bf16.msra.mxu0 %v8174
          %9957 = vmatprep.subr.bf16.mxu0 %v8179
          %9958 = vmatpush1.bf16.msra.mxu0 %v8178
          %9959 = vmatprep.subr.bf16.mxu0 %v8183
          %9960 = vmatpush1.bf16.msra.mxu0 %v8182
          %9961 = vmatprep.subr.bf16.mxu0 %v8187
          %9962 = vmatpush1.bf16.msra.mxu0 %v8186
          %9963 = vmatprep.subr.bf16.mxu0 %v8191
          %9964 = vmatpush1.bf16.msra.mxu0 %v8190
          %9965 = vmatprep.subr.bf16.mxu0 %v8195
          %9966 = vmatpush1.bf16.msra.mxu0 %v8194
          %9967 = vmatprep.subr.bf16.mxu0 %v8199
          %9968 = vmatpush1.bf16.msra.mxu0 %v8198
          %9969 = vmatprep.subr.bf16.mxu0 %v8203
          %9970 = vmatpush1.bf16.msra.mxu0 %v8202
          %9971 = vmatprep.subr.bf16.mxu0 %v8207
          %9972 = vmatpush1.bf16.msra.mxu0 %v8206
          %9973 = vmatprep.subr.bf16.mxu0 %v8211
          %9974 = vmatpush1.bf16.msra.mxu0 %v8210
          %9975 = vmatprep.subr.bf16.mxu0 %v8215
          %9976 = vmatpush1.bf16.msra.mxu0 %v8214
          %9977 = vmatprep.subr.bf16.mxu0 %v8219
          %9978 = vmatpush1.bf16.msra.mxu0 %v8218
          %9979 = vmatprep.mubr.bf16.mxu0 %v5573
          %9980 = vmatmul.mubr.bf16.gmra.mrb[0].mxu0 %v5572
          %v9981 = vpop.f32.mrb[0].mxu0
          %v9982 = vadd.f32 %v9901, %v9981
          %v9983 = vpop.f32.mrb[0].mxu0
          %v9984 = vadd.f32 %v9903, %v9983
          %v9985 = vpop.f32.mrb[0].mxu0
          %v9986 = vadd.f32 %v9905, %v9985
          %v9987 = vpop.f32.mrb[0].mxu0
          %v9988 = vadd.f32 %v9907, %v9987
          %9989 = vmatprep.mubr.bf16.mxu0 %v5589
          %9990 = vmatmul.mubr.bf16.gmra.mrb[0].mxu0 %v5588
          %v9991 = vpop.f32.mrb[0].mxu0
          %v9992 = vadd.f32 %v9911, %v9991
          %v9993 = vpop.f32.mrb[0].mxu0
          %v9994 = vadd.f32 %v9913, %v9993
          %v9995 = vpop.f32.mrb[0].mxu0
          %v9996 = vadd.f32 %v9915, %v9995
          %v9997 = vpop.f32.mrb[0].mxu0
          %v9998 = vadd.f32 %v9917, %v9997
          %9999 = vmatprep.mubr.bf16.mxu0 %v5605
          %10000 = vmatmul.mubr.bf16.gmra.mrb[0].mxu0 %v5604
          %v10001 = vpop.f32.mrb[0].mxu0
          %v10002 = vadd.f32 %v9921, %v10001
          %v10003 = vpop.f32.mrb[0].mxu0
          %v10004 = vadd.f32 %v9923, %v10003
          %v10005 = vpop.f32.mrb[0].mxu0
          %v10006 = vadd.f32 %v9925, %v10005
          %v10007 = vpop.f32.mrb[0].mxu0
          %v10008 = vadd.f32 %v9927, %v10007
          %10009 = vmatprep.mubr.bf16.mxu0 %v5621
          %10010 = vmatmul.mubr.bf16.gmra.mrb[0].mxu0 %v5620
          %v10011 = vpop.f32.mrb[0].mxu0
          %v10012 = vadd.f32 %v9931, %v10011
          %v10013 = vpop.f32.mrb[0].mxu0
          %v10014 = vadd.f32 %v9933, %v10013
          %v10015 = vpop.f32.mrb[0].mxu0
          %v10016 = vadd.f32 %v9935, %v10015
          %v10017 = vpop.f32.mrb[0].mxu0
          %v10018 = vadd.f32 %v9937, %v10017
          %10019 = vmatprep.mubr.bf16.mxu0 %v5637
          %10020 = vmatmul.mubr.bf16.gmra.mrb[0].mxu0 %v5636
          %v10021 = vpop.f32.mrb[0].mxu0
          %v10022 = vadd.f32 %v9941, %v10021
          %v10023 = vpop.f32.mrb[0].mxu0
          %v10024 = vadd.f32 %v9943, %v10023
          %v10025 = vpop.f32.mrb[0].mxu0
          %v10026 = vpop.f32.mrb[0].mxu0
          %10027 = vdwg.mxu0
          %v10028 = vmax.f32 %v9334, 0.0
          %v10029 = vmax.f32 %v9336, 0.0
          %v10030 = vmax.f32 %v9982, 0.0
          %v10031 = vmax.f32 %v9984, 0.0
          %v10032 = vmax.f32 %v9338, 0.0
          %v10033 = vmax.f32 %v9340, 0.0
          %v10034 = vmax.f32 %v9986, 0.0
          %v10035 = vmax.f32 %v9988, 0.0
          %v10036 = vmax.f32 %v9344, 0.0
          %v10037 = vmax.f32 %v9346, 0.0
          %v10038 = vmax.f32 %v9992, 0.0
          %v10039 = vmax.f32 %v9994, 0.0
          %v10040 = vmax.f32 %v9348, 0.0
          %v10041 = vmax.f32 %v9350, 0.0
          %v10042 = vmax.f32 %v9996, 0.0
          %v10043 = vmax.f32 %v9998, 0.0
          %v10044 = vmax.f32 %v9354, 0.0
          %v10045 = vmax.f32 %v9356, 0.0
          %v10046 = vmax.f32 %v10002, 0.0
          %v10047 = vmax.f32 %v10004, 0.0
          %v10048 = vmax.f32 %v9358, 0.0
          %v10049 = vmax.f32 %v9360, 0.0
          %v10050 = vmax.f32 %v10006, 0.0
          %v10051 = vmax.f32 %v10008, 0.0
          %v10052 = vmax.f32 %v9364, 0.0
          %v10053 = vmax.f32 %v9366, 0.0
          %v10054 = vmax.f32 %v10012, 0.0
          %v10055 = vmax.f32 %v10014, 0.0
          %v10056 = vmax.f32 %v9368, 0.0
          %v10057 = vmax.f32 %v9370, 0.0
          %v10058 = vmax.f32 %v10016, 0.0
          %v10059 = vmax.f32 %v10018, 0.0
          %v10060 = vmax.f32 %v9374, 0.0
          %v10061 = vmax.f32 %v9376, 0.0
          %v10062 = vmax.f32 %v10022, 0.0
          %v10063 = vmax.f32 %v10024, 0.0
          %v10064 = vld [vmem:[%s400] sm:$0xff]
          %v10065 = vld [vmem:[%s400 + $0x8] sm:$0xff]
          %v10066 = vld [vmem:[%s400 + $0x10] sm:$0xff]
          %v10067 = vld [vmem:[%s400 + $0x18] sm:$0xff]
          %v10068 = vld [vmem:[%s400 + $0x20] sm:$0xff]
          %v10069 = vld [vmem:[%s400 + $0x28] sm:$0xff]
          %v10070 = vld [vmem:[%s400 + $0x30] sm:$0xff]
          %v10071 = vld [vmem:[%s400 + $0x38] sm:$0xff]
          %v10072 = vld [vmem:[%s400 + $0x40] sm:$0xff]
          %v10073 = vld [vmem:[%s400 + $0x48] sm:$0xff]
          %v10074 = vld [vmem:[%s400 + $0x50] sm:$0xff]
          %v10075 = vld [vmem:[%s400 + $0x58] sm:$0xff]
          %v10076 = vld [vmem:[%s400 + $0x60] sm:$0xff]
          %v10077 = vld [vmem:[%s400 + $0x68] sm:$0xff]
          %v10078 = vld [vmem:[%s400 + $0x70] sm:$0xff]
          %v10079 = vld [vmem:[%s400 + $0x78] sm:$0xff]
          %v10080 = vld [vmem:[%s400 + $0x80] sm:$0xff]
          %v10081 = vld [vmem:[%s400 + $0x88] sm:$0xff]
          %v10082 = vld [vmem:[%s400 + $0x90] sm:$0xff]
          %v10083 = vld [vmem:[%s400 + $0x98] sm:$0xff]
          %v10084 = vld [vmem:[%s400 + $0xa0] sm:$0xff]
          %v10085 = vld [vmem:[%s400 + $0xa8] sm:$0xff]
          %v10086 = vld [vmem:[%s400 + $0xb0] sm:$0xff]
          %v10087 = vld [vmem:[%s400 + $0xb8] sm:$0xff]
          %v10088 = vld [vmem:[%s400 + $0xc0] sm:$0xff]
          %v10089 = vld [vmem:[%s400 + $0xc8] sm:$0xff]
          %v10090 = vld [vmem:[%s400 + $0xd0] sm:$0xff]
          %v10091 = vld [vmem:[%s400 + $0xd8] sm:$0xff]
          %v10092 = vld [vmem:[%s400 + $0xe0] sm:$0xff]
          %v10093 = vld [vmem:[%s400 + $0xe8] sm:$0xff]
          %v10094 = vld [vmem:[%s400 + $0xf0] sm:$0xff]
          %v10095 = vld [vmem:[%s400 + $0xf8] sm:$0xff]
          %v10096 = vld [vmem:[%s400 + $0x100] sm:$0xff]
          %v10097 = vld [vmem:[%s400 + $0x108] sm:$0xff]
          %v10098 = vld [vmem:[%s400 + $0x110] sm:$0xff]
          %v10099 = vld [vmem:[%s400 + $0x118] sm:$0xff]
          %vm10100 = vcmask 588800
          %v10102 = vsel %vm10100, %v10064, 0
          %v10105 = vsel %vm10100, %v10065, 0
          %v10108 = vsel %vm10100, %v10066, 0
          %v10111 = vsel %vm10100, %v10067, 0
          %v10114 = vsel %vm10100, %v10068, 0
          %v10117 = vsel %vm10100, %v10069, 0
          %v10120 = vsel %vm10100, %v10070, 0
          %v10123 = vsel %vm10100, %v10071, 0
          %v10126 = vsel %vm10100, %v10072, 0
          %v10129 = vsel %vm10100, %v10073, 0
          %v10132 = vsel %vm10100, %v10074, 0
          %v10135 = vsel %vm10100, %v10075, 0
          %v10138 = vsel %vm10100, %v10076, 0
          %v10141 = vsel %vm10100, %v10077, 0
          %v10144 = vsel %vm10100, %v10078, 0
          %v10147 = vsel %vm10100, %v10079, 0
          %v10150 = vsel %vm10100, %v10080, 0
          %v10153 = vsel %vm10100, %v10081, 0
          %v10156 = vsel %vm10100, %v10082, 0
          %v10159 = vsel %vm10100, %v10083, 0
          %v10162 = vsel %vm10100, %v10084, 0
          %v10165 = vsel %vm10100, %v10085, 0
          %v10168 = vsel %vm10100, %v10086, 0
          %v10171 = vsel %vm10100, %v10087, 0
          %v10174 = vsel %vm10100, %v10088, 0
          %v10177 = vsel %vm10100, %v10089, 0
          %v10180 = vsel %vm10100, %v10090, 0
          %v10183 = vsel %vm10100, %v10091, 0
          %v10186 = vsel %vm10100, %v10092, 0
          %v10189 = vsel %vm10100, %v10093, 0
          %v10192 = vsel %vm10100, %v10094, 0
          %v10195 = vsel %vm10100, %v10095, 0
          %v10198 = vsel %vm10100, %v10096, 0
          %v10201 = vsel %vm10100, %v10097, 0
          %v10204 = vsel %vm10100, %v10098, 0
          %v10207 = vsel %vm10100, %v10099, 0
          %10209 = vmatprep.subr.mxu0 %v10029
          %10210 = vmatpush1.msra.mxu0 %v10028
          %10211 = vmatprep.subr.mxu0 %v10033
          %10212 = vmatpush1.msra.mxu0 %v10032
          %10213 = vmatprep.subr.mxu0 %v10037
          %10214 = vmatpush1.msra.mxu0 %v10036
          %10215 = vmatprep.subr.mxu0 %v10041
          %10216 = vmatpush1.msra.mxu0 %v10040
          %10217 = vmatprep.subr.mxu0 %v10045
          %10218 = vmatpush1.msra.mxu0 %v10044
          %10219 = vmatprep.subr.mxu0 %v10049
          %10220 = vmatpush1.msra.mxu0 %v10048
          %10221 = vmatprep.subr.mxu0 %v10053
          %10222 = vmatpush1.msra.mxu0 %v10052
          %10223 = vmatprep.subr.mxu0 %v10057
          %10224 = vmatpush1.msra.mxu0 %v10056
          %10225 = vmatprep.subr.mxu0 %v10061
          %10226 = vmatpush1.msra.mxu0 %v10060
          %10227 = vmatprep.subr.mxu0 0.0
          %10228 = vmatpush1.msra.mxu0 0.0
          %10229 = vmatprep.subr.mxu0 0.0
          %10230 = vmatpush1.msra.mxu0 0.0
          %10231 = vmatprep.subr.mxu0 0.0
          %10232 = vmatpush1.msra.mxu0 0.0
          %10233 = vmatprep.subr.mxu0 0.0
          %10234 = vmatpush1.msra.mxu0 0.0
          %10235 = vmatprep.subr.mxu0 0.0
          %10236 = vmatpush1.msra.mxu0 0.0
          %10237 = vmatprep.subr.mxu0 0.0
          %10238 = vmatpush1.msra.mxu0 0.0
          %10239 = vmatprep.subr.mxu0 0.0
          %10240 = vmatpush1.msra.mxu0 0.0
          %10241 = vmatprep.subr.mxu0 0.0
          %10242 = vmatpush1.msra.mxu0 0.0
          %10243 = vmatprep.subr.mxu0 0.0
          %10244 = vmatpush1.msra.mxu0 0.0
          %10245 = vmatprep.subr.mxu0 0.0
          %10246 = vmatpush1.msra.mxu0 0.0
          %10247 = vmatprep.subr.mxu0 0.0
          %10248 = vmatpush1.msra.mxu0 0.0
          %10249 = vmatprep.subr.mxu0 0.0
          %10250 = vmatpush1.msra.mxu0 0.0
          %10251 = vmatprep.subr.mxu0 0.0
          %10252 = vmatpush1.msra.mxu0 0.0
          %10253 = vmatprep.subr.mxu0 0.0
          %10254 = vmatpush1.msra.mxu0 0.0
          %10255 = vmatprep.subr.mxu0 0.0
          %10256 = vmatpush1.msra.mxu0 0.0
          %10257 = vmatprep.subr.mxu0 0.0
          %10258 = vmatpush1.msra.mxu0 0.0
          %10259 = vmatprep.subr.mxu0 0.0
          %10260 = vmatpush1.msra.mxu0 0.0
          %10261 = vmatprep.subr.mxu0 0.0
          %10262 = vmatpush1.msra.mxu0 0.0
          %10263 = vmatprep.subr.mxu0 0.0
          %10264 = vmatpush1.msra.mxu0 0.0
          %10265 = vmatprep.subr.mxu0 0.0
          %10266 = vmatpush1.msra.mxu0 0.0
          %10267 = vmatprep.subr.mxu0 0.0
          %10268 = vmatpush1.msra.mxu0 0.0
          %10269 = vmatprep.subr.mxu0 0.0
          %10270 = vmatpush1.msra.mxu0 0.0
          %10271 = vmatprep.subr.mxu0 0.0
          %10272 = vmatpush1.msra.mxu0 0.0
          %10273 = vmatprep.mubr.f32.mxu0 0.0
          %10274 = vmatmul.mubr.f32.gmra.mrb[0].mxu0 %v10102
          %v10275 = vpop.f32.mrb[0].mxu0
          %v10276 = vadd.f32 0.0, %v10275
          %v10277 = vpop.f32.mrb[0].mxu0
          %v10278 = vadd.f32 0.0, %v10277
          %10279 = vmatprep.mubr.f32.mxu0 0.0
          %10280 = vmatmul.mubr.f32.gmra.mrb[0].mxu0 %v10105
          %v10281 = vpop.f32.mrb[0].mxu0
          %v10282 = vadd.f32 0.0, %v10281
          %v10283 = vpop.f32.mrb[0].mxu0
          %v10284 = vadd.f32 0.0, %v10283
          %10285 = vmatprep.mubr.f32.mxu0 0.0
          %10286 = vmatmul.mubr.f32.gmra.mrb[0].mxu0 %v10108
          %v10287 = vpop.f32.mrb[0].mxu0
          %v10288 = vadd.f32 0.0, %v10287
          %v10289 = vpop.f32.mrb[0].mxu0
          %v10290 = vadd.f32 0.0, %v10289
          %10291 = vmatprep.mubr.f32.mxu0 0.0
          %10292 = vmatmul.mubr.f32.gmra.mrb[0].mxu0 %v10111
          %v10293 = vpop.f32.mrb[0].mxu0
          %v10294 = vadd.f32 0.0, %v10293
          %v10295 = vpop.f32.mrb[0].mxu0
          %v10296 = vadd.f32 0.0, %v10295
          %10297 = vmatprep.mubr.f32.mxu0 0.0
          %10298 = vmatmul.mubr.f32.gmra.mrb[0].mxu0 %v10114
          %v10299 = vpop.f32.mrb[0].mxu0
          %v10300 = vadd.f32 0.0, %v10299
          %v10301 = vpop.f32.mrb[0].mxu0
          %v10302 = vadd.f32 0.0, %v10301
          %10303 = vmatprep.mubr.f32.mxu0 0.0
          %10304 = vmatmul.mubr.f32.gmra.mrb[0].mxu0 %v10117
          %v10305 = vpop.f32.mrb[0].mxu0
          %v10306 = vadd.f32 0.0, %v10305
          %v10307 = vpop.f32.mrb[0].mxu0
          %v10308 = vadd.f32 0.0, %v10307
          %10309 = vmatprep.mubr.f32.mxu0 0.0
          %10310 = vmatmul.mubr.f32.gmra.mrb[0].mxu0 %v10120
          %v10311 = vpop.f32.mrb[0].mxu0
          %v10312 = vadd.f32 0.0, %v10311
          %v10313 = vpop.f32.mrb[0].mxu0
          %v10314 = vadd.f32 0.0, %v10313
          %10315 = vmatprep.mubr.f32.mxu0 0.0
          %10316 = vmatmul.mubr.f32.gmra.mrb[0].mxu0 %v10123
          %v10317 = vpop.f32.mrb[0].mxu0
          %v10318 = vadd.f32 0.0, %v10317
          %v10319 = vpop.f32.mrb[0].mxu0
          %v10320 = vadd.f32 0.0, %v10319
          %10321 = vmatprep.mubr.f32.mxu0 0.0
          %10322 = vmatmul.mubr.f32.gmra.mrb[0].mxu0 %v10126
          %v10323 = vpop.f32.mrb[0].mxu0
          %v10324 = vadd.f32 0.0, %v10323
          %v10325 = vpop.f32.mrb[0].mxu0
          %v10326 = vadd.f32 0.0, %v10325
          %10327 = vmatprep.mubr.f32.mxu0 0.0
          %10328 = vmatmul.mubr.f32.gmra.mrb[0].mxu0 %v10129
          %v10329 = vpop.f32.mrb[0].mxu0
          %v10330 = vadd.f32 0.0, %v10329
          %v10331 = vpop.f32.mrb[0].mxu0
          %v10332 = vadd.f32 0.0, %v10331
          %10333 = vmatprep.mubr.f32.mxu0 0.0
          %10334 = vmatmul.mubr.f32.gmra.mrb[0].mxu0 %v10132
          %v10335 = vpop.f32.mrb[0].mxu0
          %v10336 = vadd.f32 0.0, %v10335
          %v10337 = vpop.f32.mrb[0].mxu0
          %v10338 = vadd.f32 0.0, %v10337
          %10339 = vmatprep.mubr.f32.mxu0 0.0
          %10340 = vmatmul.mubr.f32.gmra.mrb[0].mxu0 %v10135
          %v10341 = vpop.f32.mrb[0].mxu0
          %v10342 = vadd.f32 0.0, %v10341
          %v10343 = vpop.f32.mrb[0].mxu0
          %v10344 = vadd.f32 0.0, %v10343
          %10345 = vmatprep.mubr.f32.mxu0 0.0
          %10346 = vmatmul.mubr.f32.gmra.mrb[0].mxu0 %v10138
          %v10347 = vpop.f32.mrb[0].mxu0
          %v10348 = vadd.f32 0.0, %v10347
          %v10349 = vpop.f32.mrb[0].mxu0
          %v10350 = vadd.f32 0.0, %v10349
          %10351 = vmatprep.mubr.f32.mxu0 0.0
          %10352 = vmatmul.mubr.f32.gmra.mrb[0].mxu0 %v10141
          %v10353 = vpop.f32.mrb[0].mxu0
          %v10354 = vadd.f32 0.0, %v10353
          %v10355 = vpop.f32.mrb[0].mxu0
          %v10356 = vadd.f32 0.0, %v10355
          %10357 = vmatprep.mubr.f32.mxu0 0.0
          %10358 = vmatmul.mubr.f32.gmra.mrb[0].mxu0 %v10144
          %v10359 = vpop.f32.mrb[0].mxu0
          %v10360 = vadd.f32 0.0, %v10359
          %v10361 = vpop.f32.mrb[0].mxu0
          %v10362 = vadd.f32 0.0, %v10361
          %10363 = vmatprep.mubr.f32.mxu0 0.0
          %10364 = vmatmul.mubr.f32.gmra.mrb[0].mxu0 %v10147
          %v10365 = vpop.f32.mrb[0].mxu0
          %v10366 = vadd.f32 0.0, %v10365
          %v10367 = vpop.f32.mrb[0].mxu0
          %v10368 = vadd.f32 0.0, %v10367
          %10369 = vmatprep.mubr.f32.mxu0 0.0
          %10370 = vmatmul.mubr.f32.gmra.mrb[0].mxu0 %v10150
          %v10371 = vpop.f32.mrb[0].mxu0
          %v10372 = vadd.f32 0.0, %v10371
          %v10373 = vpop.f32.mrb[0].mxu0
          %v10374 = vadd.f32 0.0, %v10373
          %10375 = vmatprep.mubr.f32.mxu0 0.0
          %10376 = vmatmul.mubr.f32.gmra.mrb[0].mxu0 %v10153
          %v10377 = vpop.f32.mrb[0].mxu0
          %v10378 = vadd.f32 0.0, %v10377
          %v10379 = vpop.f32.mrb[0].mxu0
          %v10380 = vadd.f32 0.0, %v10379
          %10381 = vmatprep.mubr.f32.mxu0 0.0
          %10382 = vmatmul.mubr.f32.gmra.mrb[0].mxu0 %v10156
          %v10383 = vpop.f32.mrb[0].mxu0
          %v10384 = vadd.f32 0.0, %v10383
          %v10385 = vpop.f32.mrb[0].mxu0
          %v10386 = vadd.f32 0.0, %v10385
          %10387 = vmatprep.mubr.f32.mxu0 0.0
          %10388 = vmatmul.mubr.f32.gmra.mrb[0].mxu0 %v10159
          %v10389 = vpop.f32.mrb[0].mxu0
          %v10390 = vadd.f32 0.0, %v10389
          %v10391 = vpop.f32.mrb[0].mxu0
          %v10392 = vadd.f32 0.0, %v10391
          %10393 = vmatprep.mubr.f32.mxu0 0.0
          %10394 = vmatmul.mubr.f32.gmra.mrb[0].mxu0 %v10162
          %v10395 = vpop.f32.mrb[0].mxu0
          %v10396 = vadd.f32 0.0, %v10395
          %v10397 = vpop.f32.mrb[0].mxu0
          %v10398 = vadd.f32 0.0, %v10397
          %10399 = vmatprep.mubr.f32.mxu0 0.0
          %10400 = vmatmul.mubr.f32.gmra.mrb[0].mxu0 %v10165
          %v10401 = vpop.f32.mrb[0].mxu0
          %v10402 = vadd.f32 0.0, %v10401
          %v10403 = vpop.f32.mrb[0].mxu0
          %v10404 = vadd.f32 0.0, %v10403
          %10405 = vmatprep.mubr.f32.mxu0 0.0
          %10406 = vmatmul.mubr.f32.gmra.mrb[0].mxu0 %v10168
          %v10407 = vpop.f32.mrb[0].mxu0
          %v10408 = vadd.f32 0.0, %v10407
          %v10409 = vpop.f32.mrb[0].mxu0
          %v10410 = vadd.f32 0.0, %v10409
          %10411 = vmatprep.mubr.f32.mxu0 0.0
          %10412 = vmatmul.mubr.f32.gmra.mrb[0].mxu0 %v10171
          %v10413 = vpop.f32.mrb[0].mxu0
          %v10414 = vadd.f32 0.0, %v10413
          %v10415 = vpop.f32.mrb[0].mxu0
          %v10416 = vadd.f32 0.0, %v10415
          %10417 = vmatprep.mubr.f32.mxu0 0.0
          %10418 = vmatmul.mubr.f32.gmra.mrb[0].mxu0 %v10174
          %v10419 = vpop.f32.mrb[0].mxu0
          %v10420 = vadd.f32 0.0, %v10419
          %v10421 = vpop.f32.mrb[0].mxu0
          %v10422 = vadd.f32 0.0, %v10421
          %10423 = vmatprep.mubr.f32.mxu0 0.0
          %10424 = vmatmul.mubr.f32.gmra.mrb[0].mxu0 %v10177
          %v10425 = vpop.f32.mrb[0].mxu0
          %v10426 = vadd.f32 0.0, %v10425
          %v10427 = vpop.f32.mrb[0].mxu0
          %v10428 = vadd.f32 0.0, %v10427
          %10429 = vmatprep.mubr.f32.mxu0 0.0
          %10430 = vmatmul.mubr.f32.gmra.mrb[0].mxu0 %v10180
          %v10431 = vpop.f32.mrb[0].mxu0
          %v10432 = vadd.f32 0.0, %v10431
          %v10433 = vpop.f32.mrb[0].mxu0
          %v10434 = vadd.f32 0.0, %v10433
          %10435 = vmatprep.mubr.f32.mxu0 0.0
          %10436 = vmatmul.mubr.f32.gmra.mrb[0].mxu0 %v10183
          %v10437 = vpop.f32.mrb[0].mxu0
          %v10438 = vadd.f32 0.0, %v10437
          %v10439 = vpop.f32.mrb[0].mxu0
          %v10440 = vadd.f32 0.0, %v10439
          %10441 = vmatprep.mubr.f32.mxu0 0.0
          %10442 = vmatmul.mubr.f32.gmra.mrb[0].mxu0 %v10186
          %v10443 = vpop.f32.mrb[0].mxu0
          %v10444 = vadd.f32 0.0, %v10443
          %v10445 = vpop.f32.mrb[0].mxu0
          %v10446 = vadd.f32 0.0, %v10445
          %10447 = vmatprep.mubr.f32.mxu0 0.0
          %10448 = vmatmul.mubr.f32.gmra.mrb[0].mxu0 %v10189
          %v10449 = vpop.f32.mrb[0].mxu0
          %v10450 = vadd.f32 0.0, %v10449
          %v10451 = vpop.f32.mrb[0].mxu0
          %v10452 = vadd.f32 0.0, %v10451
          %10453 = vmatprep.mubr.f32.mxu0 0.0
          %10454 = vmatmul.mubr.f32.gmra.mrb[0].mxu0 %v10192
          %v10455 = vpop.f32.mrb[0].mxu0
          %v10456 = vadd.f32 0.0, %v10455
          %v10457 = vpop.f32.mrb[0].mxu0
          %v10458 = vadd.f32 0.0, %v10457
          %10459 = vmatprep.mubr.f32.mxu0 0.0
          %10460 = vmatmul.mubr.f32.gmra.mrb[0].mxu0 %v10195
          %v10461 = vpop.f32.mrb[0].mxu0
          %v10462 = vadd.f32 0.0, %v10461
          %v10463 = vpop.f32.mrb[0].mxu0
          %v10464 = vadd.f32 0.0, %v10463
          %10465 = vmatprep.mubr.f32.mxu0 0.0
          %10466 = vmatmul.mubr.f32.gmra.mrb[0].mxu0 %v10198
          %v10467 = vpop.f32.mrb[0].mxu0
          %v10468 = vadd.f32 0.0, %v10467
          %v10469 = vpop.f32.mrb[0].mxu0
          %v10470 = vadd.f32 0.0, %v10469
          %10471 = vmatprep.mubr.f32.mxu0 0.0
          %10472 = vmatmul.mubr.f32.gmra.mrb[0].mxu0 %v10201
          %v10473 = vpop.f32.mrb[0].mxu0
          %v10474 = vadd.f32 0.0, %v10473
          %v10475 = vpop.f32.mrb[0].mxu0
          %v10476 = vadd.f32 0.0, %v10475
          %10477 = vmatprep.mubr.f32.mxu0 0.0
          %10478 = vmatmul.mubr.f32.gmra.mrb[0].mxu0 %v10204
          %v10479 = vpop.f32.mrb[0].mxu0
          %v10480 = vadd.f32 0.0, %v10479
          %v10481 = vpop.f32.mrb[0].mxu0
          %v10482 = vadd.f32 0.0, %v10481
          %10483 = vmatprep.mubr.f32.mxu0 0.0
          %10484 = vmatmul.mubr.f32.gmra.mrb[0].mxu0 %v10207
          %v10485 = vpop.f32.mrb[0].mxu0
          %v10486 = vadd.f32 0.0, %v10485
          %v10487 = vpop.f32.mrb[0].mxu0
          %v10488 = vadd.f32 0.0, %v10487
          %10489 = vdwg.mxu0
          %10490 = vmatprep.subr.mxu0 %v10031
          %10491 = vmatpush1.msra.mxu0 %v10030
          %10492 = vmatprep.subr.mxu0 %v10035
          %10493 = vmatpush1.msra.mxu0 %v10034
          %10494 = vmatprep.subr.mxu0 %v10039
          %10495 = vmatpush1.msra.mxu0 %v10038
          %10496 = vmatprep.subr.mxu0 %v10043
          %10497 = vmatpush1.msra.mxu0 %v10042
          %10498 = vmatprep.subr.mxu0 %v10047
          %10499 = vmatpush1.msra.mxu0 %v10046
          %10500 = vmatprep.subr.mxu0 %v10051
          %10501 = vmatpush1.msra.mxu0 %v10050
          %10502 = vmatprep.subr.mxu0 %v10055
          %10503 = vmatpush1.msra.mxu0 %v10054
          %10504 = vmatprep.subr.mxu0 %v10059
          %10505 = vmatpush1.msra.mxu0 %v10058
          %10506 = vmatprep.subr.mxu0 %v10063
          %10507 = vmatpush1.msra.mxu0 %v10062
          %10508 = vmatprep.subr.mxu0 0.0
          %10509 = vmatpush1.msra.mxu0 0.0
          %10510 = vmatprep.subr.mxu0 0.0
          %10511 = vmatpush1.msra.mxu0 0.0
          %10512 = vmatprep.subr.mxu0 0.0
          %10513 = vmatpush1.msra.mxu0 0.0
          %10514 = vmatprep.subr.mxu0 0.0
          %10515 = vmatpush1.msra.mxu0 0.0
          %10516 = vmatprep.subr.mxu0 0.0
          %10517 = vmatpush1.msra.mxu0 0.0
          %10518 = vmatprep.subr.mxu0 0.0
          %10519 = vmatpush1.msra.mxu0 0.0
          %10520 = vmatprep.subr.mxu0 0.0
          %10521 = vmatpush1.msra.mxu0 0.0
          %10522 = vmatprep.subr.mxu0 0.0
          %10523 = vmatpush1.msra.mxu0 0.0
          %10524 = vmatprep.subr.mxu0 0.0
          %10525 = vmatpush1.msra.mxu0 0.0
          %10526 = vmatprep.subr.mxu0 0.0
          %10527 = vmatpush1.msra.mxu0 0.0
          %10528 = vmatprep.subr.mxu0 0.0
          %10529 = vmatpush1.msra.mxu0 0.0
          %10530 = vmatprep.subr.mxu0 0.0
          %10531 = vmatpush1.msra.mxu0 0.0
          %10532 = vmatprep.subr.mxu0 0.0
          %10533 = vmatpush1.msra.mxu0 0.0
          %10534 = vmatprep.subr.mxu0 0.0
          %10535 = vmatpush1.msra.mxu0 0.0
          %10536 = vmatprep.subr.mxu0 0.0
          %10537 = vmatpush1.msra.mxu0 0.0
          %10538 = vmatprep.subr.mxu0 0.0
          %10539 = vmatpush1.msra.mxu0 0.0
          %10540 = vmatprep.subr.mxu0 0.0
          %10541 = vmatpush1.msra.mxu0 0.0
          %10542 = vmatprep.subr.mxu0 0.0
          %10543 = vmatpush1.msra.mxu0 0.0
          %10544 = vmatprep.subr.mxu0 0.0
          %10545 = vmatpush1.msra.mxu0 0.0
          %10546 = vmatprep.subr.mxu0 0.0
          %10547 = vmatpush1.msra.mxu0 0.0
          %10548 = vmatprep.subr.mxu0 0.0
          %10549 = vmatpush1.msra.mxu0 0.0
          %10550 = vmatprep.subr.mxu0 0.0
          %10551 = vmatpush1.msra.mxu0 0.0
          %10552 = vmatprep.subr.mxu0 0.0
          %10553 = vmatpush1.msra.mxu0 0.0
          %10554 = vmatprep.mubr.f32.mxu0 0.0
          %10555 = vmatmul.mubr.f32.gmra.mrb[0].mxu0 %v10102
          %v10556 = vpop.f32.mrb[0].mxu0
          %v10557 = vadd.f32 0.0, %v10556
          %v10558 = vpop.f32.mrb[0].mxu0
          %v10559 = vadd.f32 0.0, %v10558
          %10560 = vmatprep.mubr.f32.mxu0 0.0
          %10561 = vmatmul.mubr.f32.gmra.mrb[0].mxu0 %v10105
          %v10562 = vpop.f32.mrb[0].mxu0
          %v10563 = vadd.f32 0.0, %v10562
          %v10564 = vpop.f32.mrb[0].mxu0
          %v10565 = vadd.f32 0.0, %v10564
          %10566 = vmatprep.mubr.f32.mxu0 0.0
          %10567 = vmatmul.mubr.f32.gmra.mrb[0].mxu0 %v10108
          %v10568 = vpop.f32.mrb[0].mxu0
          %v10569 = vadd.f32 0.0, %v10568
          %v10570 = vpop.f32.mrb[0].mxu0
          %v10571 = vadd.f32 0.0, %v10570
          %10572 = vmatprep.mubr.f32.mxu0 0.0
          %10573 = vmatmul.mubr.f32.gmra.mrb[0].mxu0 %v10111
          %v10574 = vpop.f32.mrb[0].mxu0
          %v10575 = vadd.f32 0.0, %v10574
          %v10576 = vpop.f32.mrb[0].mxu0
          %v10577 = vadd.f32 0.0, %v10576
          %10578 = vmatprep.mubr.f32.mxu0 0.0
          %10579 = vmatmul.mubr.f32.gmra.mrb[0].mxu0 %v10114
          %v10580 = vpop.f32.mrb[0].mxu0
          %v10581 = vadd.f32 0.0, %v10580
          %v10582 = vpop.f32.mrb[0].mxu0
          %v10583 = vadd.f32 0.0, %v10582
          %10584 = vmatprep.mubr.f32.mxu0 0.0
          %10585 = vmatmul.mubr.f32.gmra.mrb[0].mxu0 %v10117
          %v10586 = vpop.f32.mrb[0].mxu0
          %v10587 = vadd.f32 0.0, %v10586
          %v10588 = vpop.f32.mrb[0].mxu0
          %v10589 = vadd.f32 0.0, %v10588
          %10590 = vmatprep.mubr.f32.mxu0 0.0
          %10591 = vmatmul.mubr.f32.gmra.mrb[0].mxu0 %v10120
          %v10592 = vpop.f32.mrb[0].mxu0
          %v10593 = vadd.f32 0.0, %v10592
          %v10594 = vpop.f32.mrb[0].mxu0
          %v10595 = vadd.f32 0.0, %v10594
          %10596 = vmatprep.mubr.f32.mxu0 0.0
          %10597 = vmatmul.mubr.f32.gmra.mrb[0].mxu0 %v10123
          %v10598 = vpop.f32.mrb[0].mxu0
          %v10599 = vadd.f32 0.0, %v10598
          %v10600 = vpop.f32.mrb[0].mxu0
          %v10601 = vadd.f32 0.0, %v10600
          %10602 = vmatprep.mubr.f32.mxu0 0.0
          %10603 = vmatmul.mubr.f32.gmra.mrb[0].mxu0 %v10126
          %v10604 = vpop.f32.mrb[0].mxu0
          %v10605 = vadd.f32 0.0, %v10604
          %v10606 = vpop.f32.mrb[0].mxu0
          %v10607 = vadd.f32 0.0, %v10606
          %10608 = vmatprep.mubr.f32.mxu0 0.0
          %10609 = vmatmul.mubr.f32.gmra.mrb[0].mxu0 %v10129
          %v10610 = vpop.f32.mrb[0].mxu0
          %v10611 = vadd.f32 0.0, %v10610
          %v10612 = vpop.f32.mrb[0].mxu0
          %v10613 = vadd.f32 0.0, %v10612
          %10614 = vmatprep.mubr.f32.mxu0 0.0
          %10615 = vmatmul.mubr.f32.gmra.mrb[0].mxu0 %v10132
          %v10616 = vpop.f32.mrb[0].mxu0
          %v10617 = vadd.f32 0.0, %v10616
          %v10618 = vpop.f32.mrb[0].mxu0
          %v10619 = vadd.f32 0.0, %v10618
          %10620 = vmatprep.mubr.f32.mxu0 0.0
          %10621 = vmatmul.mubr.f32.gmra.mrb[0].mxu0 %v10135
          %v10622 = vpop.f32.mrb[0].mxu0
          %v10623 = vadd.f32 0.0, %v10622
          %v10624 = vpop.f32.mrb[0].mxu0
          %v10625 = vadd.f32 0.0, %v10624
          %10626 = vmatprep.mubr.f32.mxu0 0.0
          %10627 = vmatmul.mubr.f32.gmra.mrb[0].mxu0 %v10138
          %v10628 = vpop.f32.mrb[0].mxu0
          %v10629 = vadd.f32 0.0, %v10628
          %v10630 = vpop.f32.mrb[0].mxu0
          %v10631 = vadd.f32 0.0, %v10630
          %10632 = vmatprep.mubr.f32.mxu0 0.0
          %10633 = vmatmul.mubr.f32.gmra.mrb[0].mxu0 %v10141
          %v10634 = vpop.f32.mrb[0].mxu0
          %v10635 = vadd.f32 0.0, %v10634
          %v10636 = vpop.f32.mrb[0].mxu0
          %v10637 = vadd.f32 0.0, %v10636
          %10638 = vmatprep.mubr.f32.mxu0 0.0
          %10639 = vmatmul.mubr.f32.gmra.mrb[0].mxu0 %v10144
          %v10640 = vpop.f32.mrb[0].mxu0
          %v10641 = vadd.f32 0.0, %v10640
          %v10642 = vpop.f32.mrb[0].mxu0
          %v10643 = vadd.f32 0.0, %v10642
          %10644 = vmatprep.mubr.f32.mxu0 0.0
          %10645 = vmatmul.mubr.f32.gmra.mrb[0].mxu0 %v10147
          %v10646 = vpop.f32.mrb[0].mxu0
          %v10647 = vadd.f32 0.0, %v10646
          %v10648 = vpop.f32.mrb[0].mxu0
          %v10649 = vadd.f32 0.0, %v10648
          %10650 = vmatprep.mubr.f32.mxu0 0.0
          %10651 = vmatmul.mubr.f32.gmra.mrb[0].mxu0 %v10150
          %v10652 = vpop.f32.mrb[0].mxu0
          %v10653 = vadd.f32 0.0, %v10652
          %v10654 = vpop.f32.mrb[0].mxu0
          %v10655 = vadd.f32 0.0, %v10654
          %10656 = vmatprep.mubr.f32.mxu0 0.0
          %10657 = vmatmul.mubr.f32.gmra.mrb[0].mxu0 %v10153
          %v10658 = vpop.f32.mrb[0].mxu0
          %v10659 = vadd.f32 0.0, %v10658
          %v10660 = vpop.f32.mrb[0].mxu0
          %v10661 = vadd.f32 0.0, %v10660
          %10662 = vmatprep.mubr.f32.mxu0 0.0
          %10663 = vmatmul.mubr.f32.gmra.mrb[0].mxu0 %v10156
          %v10664 = vpop.f32.mrb[0].mxu0
          %v10665 = vadd.f32 0.0, %v10664
          %v10666 = vpop.f32.mrb[0].mxu0
          %v10667 = vadd.f32 0.0, %v10666
          %10668 = vmatprep.mubr.f32.mxu0 0.0
          %10669 = vmatmul.mubr.f32.gmra.mrb[0].mxu0 %v10159
          %v10670 = vpop.f32.mrb[0].mxu0
          %v10671 = vadd.f32 0.0, %v10670
          %v10672 = vpop.f32.mrb[0].mxu0
          %v10673 = vadd.f32 0.0, %v10672
          %10674 = vmatprep.mubr.f32.mxu0 0.0
          %10675 = vmatmul.mubr.f32.gmra.mrb[0].mxu0 %v10162
          %v10676 = vpop.f32.mrb[0].mxu0
          %v10677 = vadd.f32 0.0, %v10676
          %v10678 = vpop.f32.mrb[0].mxu0
          %v10679 = vadd.f32 0.0, %v10678
          %10680 = vmatprep.mubr.f32.mxu0 0.0
          %10681 = vmatmul.mubr.f32.gmra.mrb[0].mxu0 %v10165
          %v10682 = vpop.f32.mrb[0].mxu0
          %v10683 = vadd.f32 0.0, %v10682
          %v10684 = vpop.f32.mrb[0].mxu0
          %v10685 = vadd.f32 0.0, %v10684
          %10686 = vmatprep.mubr.f32.mxu0 0.0
          %10687 = vmatmul.mubr.f32.gmra.mrb[0].mxu0 %v10168
          %v10688 = vpop.f32.mrb[0].mxu0
          %v10689 = vadd.f32 0.0, %v10688
          %v10690 = vpop.f32.mrb[0].mxu0
          %v10691 = vadd.f32 0.0, %v10690
          %10692 = vmatprep.mubr.f32.mxu0 0.0
          %10693 = vmatmul.mubr.f32.gmra.mrb[0].mxu0 %v10171
          %v10694 = vpop.f32.mrb[0].mxu0
          %v10695 = vadd.f32 0.0, %v10694
          %v10696 = vpop.f32.mrb[0].mxu0
          %v10697 = vadd.f32 0.0, %v10696
          %10698 = vmatprep.mubr.f32.mxu0 0.0
          %10699 = vmatmul.mubr.f32.gmra.mrb[0].mxu0 %v10174
          %v10700 = vpop.f32.mrb[0].mxu0
          %v10701 = vadd.f32 0.0, %v10700
          %v10702 = vpop.f32.mrb[0].mxu0
          %v10703 = vadd.f32 0.0, %v10702
          %10704 = vmatprep.mubr.f32.mxu0 0.0
          %10705 = vmatmul.mubr.f32.gmra.mrb[0].mxu0 %v10177
          %v10706 = vpop.f32.mrb[0].mxu0
          %v10707 = vadd.f32 0.0, %v10706
          %v10708 = vpop.f32.mrb[0].mxu0
          %v10709 = vadd.f32 0.0, %v10708
          %10710 = vmatprep.mubr.f32.mxu0 0.0
          %10711 = vmatmul.mubr.f32.gmra.mrb[0].mxu0 %v10180
          %v10712 = vpop.f32.mrb[0].mxu0
          %v10713 = vadd.f32 0.0, %v10712
          %v10714 = vpop.f32.mrb[0].mxu0
          %v10715 = vadd.f32 0.0, %v10714
          %10716 = vmatprep.mubr.f32.mxu0 0.0
          %10717 = vmatmul.mubr.f32.gmra.mrb[0].mxu0 %v10183
          %v10718 = vpop.f32.mrb[0].mxu0
          %v10719 = vadd.f32 0.0, %v10718
          %v10720 = vpop.f32.mrb[0].mxu0
          %v10721 = vadd.f32 0.0, %v10720
          %10722 = vmatprep.mubr.f32.mxu0 0.0
          %10723 = vmatmul.mubr.f32.gmra.mrb[0].mxu0 %v10186
          %v10724 = vpop.f32.mrb[0].mxu0
          %v10725 = vadd.f32 0.0, %v10724
          %v10726 = vpop.f32.mrb[0].mxu0
          %v10727 = vadd.f32 0.0, %v10726
          %10728 = vmatprep.mubr.f32.mxu0 0.0
          %10729 = vmatmul.mubr.f32.gmra.mrb[0].mxu0 %v10189
          %v10730 = vpop.f32.mrb[0].mxu0
          %v10731 = vadd.f32 0.0, %v10730
          %v10732 = vpop.f32.mrb[0].mxu0
          %v10733 = vadd.f32 0.0, %v10732
          %10734 = vmatprep.mubr.f32.mxu0 0.0
          %10735 = vmatmul.mubr.f32.gmra.mrb[0].mxu0 %v10192
          %v10736 = vpop.f32.mrb[0].mxu0
          %v10737 = vadd.f32 0.0, %v10736
          %v10738 = vpop.f32.mrb[0].mxu0
          %v10739 = vadd.f32 0.0, %v10738
          %10740 = vmatprep.mubr.f32.mxu0 0.0
          %10741 = vmatmul.mubr.f32.gmra.mrb[0].mxu0 %v10195
          %v10742 = vpop.f32.mrb[0].mxu0
          %v10743 = vadd.f32 0.0, %v10742
          %v10744 = vpop.f32.mrb[0].mxu0
          %v10745 = vadd.f32 0.0, %v10744
          %10746 = vmatprep.mubr.f32.mxu0 0.0
          %10747 = vmatmul.mubr.f32.gmra.mrb[0].mxu0 %v10198
          %v10748 = vpop.f32.mrb[0].mxu0
          %v10749 = vadd.f32 0.0, %v10748
          %v10750 = vpop.f32.mrb[0].mxu0
          %v10751 = vadd.f32 0.0, %v10750
          %10752 = vmatprep.mubr.f32.mxu0 0.0
          %10753 = vmatmul.mubr.f32.gmra.mrb[0].mxu0 %v10201
          %v10754 = vpop.f32.mrb[0].mxu0
          %v10755 = vadd.f32 0.0, %v10754
          %v10756 = vpop.f32.mrb[0].mxu0
          %v10757 = vadd.f32 0.0, %v10756
          %10758 = vmatprep.mubr.f32.mxu0 0.0
          %10759 = vmatmul.mubr.f32.gmra.mrb[0].mxu0 %v10204
          %v10760 = vpop.f32.mrb[0].mxu0
          %v10761 = vadd.f32 0.0, %v10760
          %v10762 = vpop.f32.mrb[0].mxu0
          %v10763 = vadd.f32 0.0, %v10762
          %10764 = vmatprep.mubr.f32.mxu0 0.0
          %10765 = vmatmul.mubr.f32.gmra.mrb[0].mxu0 %v10207
          %v10766 = vpop.f32.mrb[0].mxu0
          %v10767 = vadd.f32 0.0, %v10766
          %v10768 = vpop.f32.mrb[0].mxu0
          %v10769 = vadd.f32 0.0, %v10768
          %10770 = vdwg.mxu0
          %v10771 = vpack.c.bf16 %v10282, %v10276
          %v10772 = vpack.c.bf16 %v10284, %v10278
          %v10773 = vpack.c.bf16 %v10563, %v10557
          %v10774 = vpack.c.bf16 %v10565, %v10559
          %v10775 = vpack.c.bf16 %v10294, %v10288
          %v10776 = vpack.c.bf16 %v10296, %v10290
          %v10777 = vpack.c.bf16 %v10575, %v10569
          %v10778 = vpack.c.bf16 %v10577, %v10571
          %v10779 = vpack.c.bf16 %v10306, %v10300
          %v10780 = vpack.c.bf16 %v10308, %v10302
          %v10781 = vpack.c.bf16 %v10587, %v10581
          %v10782 = vpack.c.bf16 %v10589, %v10583
          %v10783 = vpack.c.bf16 %v10318, %v10312
          %v10784 = vpack.c.bf16 %v10320, %v10314
          %v10785 = vpack.c.bf16 %v10599, %v10593
          %v10786 = vpack.c.bf16 %v10601, %v10595
          %v10787 = vpack.c.bf16 %v10330, %v10324
          %v10788 = vpack.c.bf16 %v10332, %v10326
          %v10789 = vpack.c.bf16 %v10611, %v10605
          %v10790 = vpack.c.bf16 %v10613, %v10607
          %v10791 = vpack.c.bf16 %v10342, %v10336
          %v10792 = vpack.c.bf16 %v10344, %v10338
          %v10793 = vpack.c.bf16 %v10623, %v10617
          %v10794 = vpack.c.bf16 %v10625, %v10619
          %v10795 = vpack.c.bf16 %v10354, %v10348
          %v10796 = vpack.c.bf16 %v10356, %v10350
          %v10797 = vpack.c.bf16 %v10635, %v10629
          %v10798 = vpack.c.bf16 %v10637, %v10631
          %v10799 = vpack.c.bf16 %v10366, %v10360
          %v10800 = vpack.c.bf16 %v10368, %v10362
          %v10801 = vpack.c.bf16 %v10647, %v10641
          %v10802 = vpack.c.bf16 %v10649, %v10643
          %v10803 = vpack.c.bf16 %v10378, %v10372
          %v10804 = vpack.c.bf16 %v10380, %v10374
          %v10805 = vpack.c.bf16 %v10659, %v10653
          %v10806 = vpack.c.bf16 %v10661, %v10655
          %v10807 = vpack.c.bf16 %v10390, %v10384
          %v10808 = vpack.c.bf16 %v10392, %v10386
          %v10809 = vpack.c.bf16 %v10671, %v10665
          %v10810 = vpack.c.bf16 %v10673, %v10667
          %v10811 = vpack.c.bf16 %v10402, %v10396
          %v10812 = vpack.c.bf16 %v10404, %v10398
          %v10813 = vpack.c.bf16 %v10683, %v10677
          %v10814 = vpack.c.bf16 %v10685, %v10679
          %v10815 = vpack.c.bf16 %v10414, %v10408
          %v10816 = vpack.c.bf16 %v10416, %v10410
          %v10817 = vpack.c.bf16 %v10695, %v10689
          %v10818 = vpack.c.bf16 %v10697, %v10691
          %v10819 = vpack.c.bf16 %v10426, %v10420
          %v10820 = vpack.c.bf16 %v10428, %v10422
          %v10821 = vpack.c.bf16 %v10707, %v10701
          %v10822 = vpack.c.bf16 %v10709, %v10703
          %v10823 = vpack.c.bf16 %v10438, %v10432
          %v10824 = vpack.c.bf16 %v10440, %v10434
          %v10825 = vpack.c.bf16 %v10719, %v10713
          %v10826 = vpack.c.bf16 %v10721, %v10715
          %v10827 = vpack.c.bf16 %v10450, %v10444
          %v10828 = vpack.c.bf16 %v10452, %v10446
          %v10829 = vpack.c.bf16 %v10731, %v10725
          %v10830 = vpack.c.bf16 %v10733, %v10727
          %v10831 = vpack.c.bf16 %v10462, %v10456
          %v10832 = vpack.c.bf16 %v10464, %v10458
          %v10833 = vpack.c.bf16 %v10743, %v10737
          %v10834 = vpack.c.bf16 %v10745, %v10739
          %v10835 = vpack.c.bf16 %v10474, %v10468
          %v10836 = vpack.c.bf16 %v10476, %v10470
          %v10837 = vpack.c.bf16 %v10755, %v10749
          %v10838 = vpack.c.bf16 %v10757, %v10751
          %v10839 = vpack.c.bf16 %v10486, %v10480
          %v10840 = vpack.c.bf16 %v10488, %v10482
          %v10841 = vpack.c.bf16 %v10767, %v10761
          %v10842 = vpack.c.bf16 %v10769, %v10763
          %v10915 = vunpack.c.l.b16 %v10771
          %v10916 = vunpack.c.l.b16 %v10772
          %v10917 = vunpack.c.l.b16 %v10773
          %v10918 = vunpack.c.l.b16 %v10774
          %v10919 = vunpack.c.h.b16 %v10771
          %v10920 = vunpack.c.h.b16 %v10772
          %v10921 = vunpack.c.h.b16 %v10773
          %v10922 = vunpack.c.h.b16 %v10774
          %v10923 = vunpack.c.l.b16 %v10775
          %v10924 = vunpack.c.l.b16 %v10776
          %v10925 = vunpack.c.l.b16 %v10777
          %v10926 = vunpack.c.l.b16 %v10778
          %v10927 = vunpack.c.h.b16 %v10775
          %v10928 = vunpack.c.h.b16 %v10776
          %v10929 = vunpack.c.h.b16 %v10777
          %v10930 = vunpack.c.h.b16 %v10778
          %v10931 = vunpack.c.l.b16 %v10779
          %v10932 = vunpack.c.l.b16 %v10780
          %v10933 = vunpack.c.l.b16 %v10781
          %v10934 = vunpack.c.l.b16 %v10782
          %v10935 = vunpack.c.h.b16 %v10779
          %v10936 = vunpack.c.h.b16 %v10780
          %v10937 = vunpack.c.h.b16 %v10781
          %v10938 = vunpack.c.h.b16 %v10782
          %v10939 = vunpack.c.l.b16 %v10783
          %v10940 = vunpack.c.l.b16 %v10784
          %v10941 = vunpack.c.l.b16 %v10785
          %v10942 = vunpack.c.l.b16 %v10786
          %v10943 = vunpack.c.h.b16 %v10783
          %v10944 = vunpack.c.h.b16 %v10784
          %v10945 = vunpack.c.h.b16 %v10785
          %v10946 = vunpack.c.h.b16 %v10786
          %v10947 = vunpack.c.l.b16 %v10787
          %v10948 = vunpack.c.l.b16 %v10788
          %v10949 = vunpack.c.l.b16 %v10789
          %v10950 = vunpack.c.l.b16 %v10790
          %v10951 = vunpack.c.h.b16 %v10787
          %v10952 = vunpack.c.h.b16 %v10788
          %v10953 = vunpack.c.h.b16 %v10789
          %v10954 = vunpack.c.h.b16 %v10790
          %v10955 = vunpack.c.l.b16 %v10791
          %v10956 = vunpack.c.l.b16 %v10792
          %v10957 = vunpack.c.l.b16 %v10793
          %v10958 = vunpack.c.l.b16 %v10794
          %v10959 = vunpack.c.h.b16 %v10791
          %v10960 = vunpack.c.h.b16 %v10792
          %v10961 = vunpack.c.h.b16 %v10793
          %v10962 = vunpack.c.h.b16 %v10794
          %v10963 = vunpack.c.l.b16 %v10795
          %v10964 = vunpack.c.l.b16 %v10796
          %v10965 = vunpack.c.l.b16 %v10797
          %v10966 = vunpack.c.l.b16 %v10798
          %v10967 = vunpack.c.h.b16 %v10795
          %v10968 = vunpack.c.h.b16 %v10796
          %v10969 = vunpack.c.h.b16 %v10797
          %v10970 = vunpack.c.h.b16 %v10798
          %v10971 = vunpack.c.l.b16 %v10799
          %v10972 = vunpack.c.l.b16 %v10800
          %v10973 = vunpack.c.l.b16 %v10801
          %v10974 = vunpack.c.l.b16 %v10802
          %v10975 = vunpack.c.h.b16 %v10799
          %v10976 = vunpack.c.h.b16 %v10800
          %v10977 = vunpack.c.h.b16 %v10801
          %v10978 = vunpack.c.h.b16 %v10802
          %v10979 = vunpack.c.l.b16 %v10803
          %v10980 = vunpack.c.l.b16 %v10804
          %v10981 = vunpack.c.l.b16 %v10805
          %v10982 = vunpack.c.l.b16 %v10806
          %v10983 = vunpack.c.h.b16 %v10803
          %v10984 = vunpack.c.h.b16 %v10804
          %v10985 = vunpack.c.h.b16 %v10805
          %v10986 = vunpack.c.h.b16 %v10806
          %v10987 = vunpack.c.l.b16 %v10807
          %v10988 = vunpack.c.l.b16 %v10808
          %v10989 = vunpack.c.l.b16 %v10809
          %v10990 = vunpack.c.l.b16 %v10810
          %v10991 = vunpack.c.h.b16 %v10807
          %v10992 = vunpack.c.h.b16 %v10808
          %v10993 = vunpack.c.h.b16 %v10809
          %v10994 = vunpack.c.h.b16 %v10810
          %v10995 = vunpack.c.l.b16 %v10811
          %v10996 = vunpack.c.l.b16 %v10812
          %v10997 = vunpack.c.l.b16 %v10813
          %v10998 = vunpack.c.l.b16 %v10814
          %v10999 = vunpack.c.h.b16 %v10811
          %v11000 = vunpack.c.h.b16 %v10812
          %v11001 = vunpack.c.h.b16 %v10813
          %v11002 = vunpack.c.h.b16 %v10814
          %v11003 = vunpack.c.l.b16 %v10815
          %v11004 = vunpack.c.l.b16 %v10816
          %v11005 = vunpack.c.l.b16 %v10817
          %v11006 = vunpack.c.l.b16 %v10818
          %v11007 = vunpack.c.h.b16 %v10815
          %v11008 = vunpack.c.h.b16 %v10816
          %v11009 = vunpack.c.h.b16 %v10817
          %v11010 = vunpack.c.h.b16 %v10818
          %v11011 = vunpack.c.l.b16 %v10819
          %v11012 = vunpack.c.l.b16 %v10820
          %v11013 = vunpack.c.l.b16 %v10821
          %v11014 = vunpack.c.l.b16 %v10822
          %v11015 = vunpack.c.h.b16 %v10819
          %v11016 = vunpack.c.h.b16 %v10820
          %v11017 = vunpack.c.h.b16 %v10821
          %v11018 = vunpack.c.h.b16 %v10822
          %v11019 = vunpack.c.l.b16 %v10823
          %v11020 = vunpack.c.l.b16 %v10824
          %v11021 = vunpack.c.l.b16 %v10825
          %v11022 = vunpack.c.l.b16 %v10826
          %v11023 = vunpack.c.h.b16 %v10823
          %v11024 = vunpack.c.h.b16 %v10824
          %v11025 = vunpack.c.h.b16 %v10825
          %v11026 = vunpack.c.h.b16 %v10826
          %v11027 = vunpack.c.l.b16 %v10827
          %v11028 = vunpack.c.l.b16 %v10828
          %v11029 = vunpack.c.l.b16 %v10829
          %v11030 = vunpack.c.l.b16 %v10830
          %v11031 = vunpack.c.h.b16 %v10827
          %v11032 = vunpack.c.h.b16 %v10828
          %v11033 = vunpack.c.h.b16 %v10829
          %v11034 = vunpack.c.h.b16 %v10830
          %v11035 = vunpack.c.l.b16 %v10831
          %v11036 = vunpack.c.l.b16 %v10832
          %v11037 = vunpack.c.l.b16 %v10833
          %v11038 = vunpack.c.l.b16 %v10834
          %v11039 = vunpack.c.h.b16 %v10831
          %v11040 = vunpack.c.h.b16 %v10832
          %v11041 = vunpack.c.h.b16 %v10833
          %v11042 = vunpack.c.h.b16 %v10834
          %v11043 = vunpack.c.l.b16 %v10835
          %v11044 = vunpack.c.l.b16 %v10836
          %v11045 = vunpack.c.l.b16 %v10837
          %v11046 = vunpack.c.l.b16 %v10838
          %v11047 = vunpack.c.h.b16 %v10835
          %v11048 = vunpack.c.h.b16 %v10836
          %v11049 = vunpack.c.h.b16 %v10837
          %v11050 = vunpack.c.h.b16 %v10838
          %v11051 = vunpack.c.l.b16 %v10839
          %v11052 = vunpack.c.l.b16 %v10840
          %v11053 = vunpack.c.l.b16 %v10841
          %v11054 = vunpack.c.l.b16 %v10842
          %v11055 = vunpack.c.h.b16 %v10839
          %v11056 = vunpack.c.h.b16 %v10840
          %v11057 = vunpack.c.h.b16 %v10841
          %v11058 = vunpack.c.h.b16 %v10842
          %v11059 = vpack.c.b16 %v10916, %v10915
          %v11060 = vpack.c.b16 %v10918, %v10917
          %v11061 = vpack.c.b16 %v10920, %v10919
          %v11062 = vpack.c.b16 %v10922, %v10921
          %v11063 = vpack.c.b16 %v10924, %v10923
          %v11064 = vpack.c.b16 %v10926, %v10925
          %v11065 = vpack.c.b16 %v10928, %v10927
          %v11066 = vpack.c.b16 %v10930, %v10929
          %v11067 = vpack.c.b16 %v10932, %v10931
          %v11068 = vpack.c.b16 %v10934, %v10933
          %v11069 = vpack.c.b16 %v10936, %v10935
          %v11070 = vpack.c.b16 %v10938, %v10937
          %v11071 = vpack.c.b16 %v10940, %v10939
          %v11072 = vpack.c.b16 %v10942, %v10941
          %v11073 = vpack.c.b16 %v10944, %v10943
          %v11074 = vpack.c.b16 %v10946, %v10945
          %v11075 = vpack.c.b16 %v10948, %v10947
          %v11076 = vpack.c.b16 %v10950, %v10949
          %v11077 = vpack.c.b16 %v10952, %v10951
          %v11078 = vpack.c.b16 %v10954, %v10953
          %v11079 = vpack.c.b16 %v10956, %v10955
          %v11080 = vpack.c.b16 %v10958, %v10957
          %v11081 = vpack.c.b16 %v10960, %v10959
          %v11082 = vpack.c.b16 %v10962, %v10961
          %v11083 = vpack.c.b16 %v10964, %v10963
          %v11084 = vpack.c.b16 %v10966, %v10965
          %v11085 = vpack.c.b16 %v10968, %v10967
          %v11086 = vpack.c.b16 %v10970, %v10969
          %v11087 = vpack.c.b16 %v10972, %v10971
          %v11088 = vpack.c.b16 %v10974, %v10973
          %v11089 = vpack.c.b16 %v10976, %v10975
          %v11090 = vpack.c.b16 %v10978, %v10977
          %v11091 = vpack.c.b16 %v10980, %v10979
          %v11092 = vpack.c.b16 %v10982, %v10981
          %v11093 = vpack.c.b16 %v10984, %v10983
          %v11094 = vpack.c.b16 %v10986, %v10985
          %v11095 = vpack.c.b16 %v10988, %v10987
          %v11096 = vpack.c.b16 %v10990, %v10989
          %v11097 = vpack.c.b16 %v10992, %v10991
          %v11098 = vpack.c.b16 %v10994, %v10993
          %v11099 = vpack.c.b16 %v10996, %v10995
          %v11100 = vpack.c.b16 %v10998, %v10997
          %v11101 = vpack.c.b16 %v11000, %v10999
          %v11102 = vpack.c.b16 %v11002, %v11001
          %v11103 = vpack.c.b16 %v11004, %v11003
          %v11104 = vpack.c.b16 %v11006, %v11005
          %v11105 = vpack.c.b16 %v11008, %v11007
          %v11106 = vpack.c.b16 %v11010, %v11009
          %v11107 = vpack.c.b16 %v11012, %v11011
          %v11108 = vpack.c.b16 %v11014, %v11013
          %v11109 = vpack.c.b16 %v11016, %v11015
          %v11110 = vpack.c.b16 %v11018, %v11017
          %v11111 = vpack.c.b16 %v11020, %v11019
          %v11112 = vpack.c.b16 %v11022, %v11021
          %v11113 = vpack.c.b16 %v11024, %v11023
          %v11114 = vpack.c.b16 %v11026, %v11025
          %v11115 = vpack.c.b16 %v11028, %v11027
          %v11116 = vpack.c.b16 %v11030, %v11029
          %v11117 = vpack.c.b16 %v11032, %v11031
          %v11118 = vpack.c.b16 %v11034, %v11033
          %v11119 = vpack.c.b16 %v11036, %v11035
          %v11120 = vpack.c.b16 %v11038, %v11037
          %v11121 = vpack.c.b16 %v11040, %v11039
          %v11122 = vpack.c.b16 %v11042, %v11041
          %v11123 = vpack.c.b16 %v11044, %v11043
          %v11124 = vpack.c.b16 %v11046, %v11045
          %v11125 = vpack.c.b16 %v11048, %v11047
          %v11126 = vpack.c.b16 %v11050, %v11049
          %v11127 = vpack.c.b16 %v11052, %v11051
          %v11128 = vpack.c.b16 %v11054, %v11053
          %v11129 = vpack.c.b16 %v11056, %v11055
          %v11130 = vpack.c.b16 %v11058, %v11057
          %11203 = vst [vmem:[%s389] sm:$0xff] %v11059
          %11204 = vst [vmem:[%s389 + $0x8] sm:$0xff] %v11060
          %11205 = vst [vmem:[%s389 + $0x10] sm:$0xff] %v11061
          %11206 = vst [vmem:[%s389 + $0x18] sm:$0xff] %v11062
          %11207 = vst [vmem:[%s389 + $0x20] sm:$0xff] %v11063
          %11208 = vst [vmem:[%s389 + $0x28] sm:$0xff] %v11064
          %11209 = vst [vmem:[%s389 + $0x30] sm:$0xff] %v11065
          %11210 = vst [vmem:[%s389 + $0x38] sm:$0xff] %v11066
          %11211 = vst [vmem:[%s389 + $0x40] sm:$0xff] %v11067
          %11212 = vst [vmem:[%s389 + $0x48] sm:$0xff] %v11068
          %11213 = vst [vmem:[%s389 + $0x50] sm:$0xff] %v11069
          %11214 = vst [vmem:[%s389 + $0x58] sm:$0xff] %v11070
          %11215 = vst [vmem:[%s389 + $0x60] sm:$0xff] %v11071
          %11216 = vst [vmem:[%s389 + $0x68] sm:$0xff] %v11072
          %11217 = vst [vmem:[%s389 + $0x70] sm:$0xff] %v11073
          %11218 = vst [vmem:[%s389 + $0x78] sm:$0xff] %v11074
          %11219 = vst [vmem:[%s389 + $0x80] sm:$0xff] %v11075
          %11220 = vst [vmem:[%s389 + $0x88] sm:$0xff] %v11076
          %11221 = vst [vmem:[%s389 + $0x90] sm:$0xff] %v11077
          %11222 = vst [vmem:[%s389 + $0x98] sm:$0xff] %v11078
          %11223 = vst [vmem:[%s389 + $0xa0] sm:$0xff] %v11079
          %11224 = vst [vmem:[%s389 + $0xa8] sm:$0xff] %v11080
          %11225 = vst [vmem:[%s389 + $0xb0] sm:$0xff] %v11081
          %11226 = vst [vmem:[%s389 + $0xb8] sm:$0xff] %v11082
          %11227 = vst [vmem:[%s389 + $0xc0] sm:$0xff] %v11083
          %11228 = vst [vmem:[%s389 + $0xc8] sm:$0xff] %v11084
          %11229 = vst [vmem:[%s389 + $0xd0] sm:$0xff] %v11085
          %11230 = vst [vmem:[%s389 + $0xd8] sm:$0xff] %v11086
          %11231 = vst [vmem:[%s389 + $0xe0] sm:$0xff] %v11087
          %11232 = vst [vmem:[%s389 + $0xe8] sm:$0xff] %v11088
          %11233 = vst [vmem:[%s389 + $0xf0] sm:$0xff] %v11089
          %11234 = vst [vmem:[%s389 + $0xf8] sm:$0xff] %v11090
          %11235 = vst [vmem:[%s389 + $0x100] sm:$0xff] %v11091
          %11236 = vst [vmem:[%s389 + $0x108] sm:$0xff] %v11092
          %11237 = vst [vmem:[%s389 + $0x110] sm:$0xff] %v11093
          %11238 = vst [vmem:[%s389 + $0x118] sm:$0xff] %v11094
          %11239 = vst [vmem:[%s389 + $0x120] sm:$0xff] %v11095
          %11240 = vst [vmem:[%s389 + $0x128] sm:$0xff] %v11096
          %11241 = vst [vmem:[%s389 + $0x130] sm:$0xff] %v11097
          %11242 = vst [vmem:[%s389 + $0x138] sm:$0xff] %v11098
          %11243 = vst [vmem:[%s389 + $0x140] sm:$0xff] %v11099
          %11244 = vst [vmem:[%s389 + $0x148] sm:$0xff] %v11100
          %11245 = vst [vmem:[%s389 + $0x150] sm:$0xff] %v11101
          %11246 = vst [vmem:[%s389 + $0x158] sm:$0xff] %v11102
          %11247 = vst [vmem:[%s389 + $0x160] sm:$0xff] %v11103
          %11248 = vst [vmem:[%s389 + $0x168] sm:$0xff] %v11104
          %11249 = vst [vmem:[%s389 + $0x170] sm:$0xff] %v11105
          %11250 = vst [vmem:[%s389 + $0x178] sm:$0xff] %v11106
          %11251 = vst [vmem:[%s389 + $0x180] sm:$0xff] %v11107
          %11252 = vst [vmem:[%s389 + $0x188] sm:$0xff] %v11108
          %11253 = vst [vmem:[%s389 + $0x190] sm:$0xff] %v11109
          %11254 = vst [vmem:[%s389 + $0x198] sm:$0xff] %v11110
          %11255 = vst [vmem:[%s389 + $0x1a0] sm:$0xff] %v11111
          %11256 = vst [vmem:[%s389 + $0x1a8] sm:$0xff] %v11112
          %11257 = vst [vmem:[%s389 + $0x1b0] sm:$0xff] %v11113
          %11258 = vst [vmem:[%s389 + $0x1b8] sm:$0xff] %v11114
          %11259 = vst [vmem:[%s389 + $0x1c0] sm:$0xff] %v11115
          %11260 = vst [vmem:[%s389 + $0x1c8] sm:$0xff] %v11116
          %11261 = vst [vmem:[%s389 + $0x1d0] sm:$0xff] %v11117
          %11262 = vst [vmem:[%s389 + $0x1d8] sm:$0xff] %v11118
          %11263 = vst [vmem:[%s389 + $0x1e0] sm:$0xff] %v11119
          %11264 = vst [vmem:[%s389 + $0x1e8] sm:$0xff] %v11120
          %11265 = vst [vmem:[%s389 + $0x1f0] sm:$0xff] %v11121
          %11266 = vst [vmem:[%s389 + $0x1f8] sm:$0xff] %v11122
          %11267 = vst [vmem:[%s389 + $0x200] sm:$0xff] %v11123
          %11268 = vst [vmem:[%s389 + $0x208] sm:$0xff] %v11124
          %11269 = vst [vmem:[%s389 + $0x210] sm:$0xff] %v11125
          %11270 = vst [vmem:[%s389 + $0x218] sm:$0xff] %v11126
          %11271 = vst [vmem:[%s389 + $0x220] sm:$0xff] %v11127
          %11272 = vst [vmem:[%s389 + $0x228] sm:$0xff] %v11128
          %11273 = vst [vmem:[%s389 + $0x230] sm:$0xff] %v11129
          %11274 = vst [vmem:[%s389 + $0x238] sm:$0xff] %v11130
        $region76: #{tpu_custom_call.1} parent=39 // pred_fallthru
          _
        %s11275 = sand.u32 %s183, 1
        %s11276 = scalar_lea.sflag [#allocation4], %s11275
        %s11277 = sand.u32 %s183, 1
        %s11278 = smul.addr %s11277, 576
        %s11279 = scalar_lea.vmem [#allocation10], %s11278
        // Predicated region
        $region77: #{tpu_custom_call.1} parent=39 // pred_check
          %p11280 = pneg %p193
        $region78: #{tpu_custom_call.1} parent=39 // pred_check_branch
          %11282 = sbr.rel (%p11280) target = $region80
        $region79: #{tpu_custom_call.1} parent=39 // pred_region
          %s11283 = smul.u32 4, %s26
          %s11285 = ssub.s32 9216, 9216
          %11286 = vsyncadd %s11276, %s11285
          %s11287 = smul.addr %s11283, 64
          %s11288 = scalar_lea.hbm %s5, %s11287
          %s11289 = sshll.u32 %s11279, 4
          %s11290 = int_to_ptr.vmem [resolvable:$true] %s11289
          %11295 = dma.vmem_to_hbm [thread:$0]  %s11290, 9216, %s11288, %s11276, 256, 2048, 16
        $region80: #{tpu_custom_call.1} parent=39 // pred_fallthru
          _
      $region40: #{tpu_custom_call.1} parent=5 // pred_fallthru
        _
      %p11296 = scmp.le.s32.totalorder 2, %s21
      // Predicated region
      $region81: #{tpu_custom_call.1} parent=5 // pred_check
        %p11297 = pneg %p11296
      $region82: #{tpu_custom_call.1} parent=5 // pred_check_branch
        %11299 = sbr.rel (%p11297) target = $region84
      $region83: #{tpu_custom_call.1} parent=5 // pred_region
        %s11300 = ssub.s32 %s21, 2
        // Predicated region
        $region85: #{tpu_custom_call.1} parent=83 // pred_check
          %p11301 = pneg %p199
        $region86: #{tpu_custom_call.1} parent=83 // pred_check_branch
          %11303 = sbr.rel (%p11301) target = $region88
        $region87: #{tpu_custom_call.1} parent=83 // pred_region
          %s11304 = sand.u32 %s184, 1
          %s11305 = scalar_lea.sflag [#allocation4], %s11304
          %s11306 = sand.u32 %s184, 1
          %s11307 = smul.addr %s11306, 576
          %s11308 = scalar_lea.vmem [#allocation10], %s11307
          %11309 = dma.done %s11305, 9216
        $region88: #{tpu_custom_call.1} parent=83 // pred_fallthru
          _
      $region84: #{tpu_custom_call.1} parent=5 // pred_fallthru
        _
    $region6: #{tpu_custom_call.1} parent=1 // loop_footer
      %s25 = sadd.s32 1, %s21
    $region7: #{tpu_custom_call.1} parent=1 // loop_footer_branch
      %20 = sbr.rel target = $region3
    $region8: #{tpu_custom_call.1} parent=1 // loop_exit
      _
    %11310 = vsyncpa [#allocation3], 1
    %s11311 = scalar_lea.sflag [#allocation3], 1
    %11312 = vsyncpa %s11311, 1
    %11313 = vsyncpa [#allocation6], 1
    %s11314 = scalar_lea.sflag [#allocation6], 1
    %11315 = vsyncpa %s11314, 1
    %11316 = vsyncpa [#allocation9], 1
    %s11317 = scalar_lea.sflag [#allocation9], 1
    %11318 = vsyncpa %s11317, 1
    %11319 = vsyncpa [#allocation4], 1
    %s11320 = scalar_lea.sflag [#allocation4], 1
    %11321 = vsyncpa %s11320, 1

</llo_original>
